<compile_context>
chip_gen: v7x
topology: tpu7x:2x2x1
jax: 0.10.0
libtpu: 0.0.40
codegen_flags: <defaults>
</compile_context>

<pallas_src>
import functools
import math

import numpy as np
import jax
import jax.numpy as jnp
from jax import lax
from jax.experimental import pallas as pl
from jax.experimental.pallas import tpu as pltpu


# --------------------------------------------------------------------------
# Pallas kernel: one encoder layer for one tile of `tb` batch samples.
# Grid = (num_tiles, N_dec); the activation slab is carried in VMEM scratch.
# --------------------------------------------------------------------------
def _encoder_layer_kernel(x_ref,
                          ln1_g_ref, ln1_b_ref, wqkv_ref, bqkv_ref, wo_ref, bo_ref,
                          ln2_g_ref, ln2_b_ref, w1_ref, b1_ref, w2_ref, b2_ref,
                          lnf_g_ref, lnf_b_ref, w_head_ref, head_c_ref,
                          out_ref, x_scr, *, h, tb, L):
    f32 = jnp.float32
    d_model = x_ref.shape[-1]
    d_k = d_model // h
    M = tb * L
    scale = 1.0 / math.sqrt(d_k)
    cdt = wqkv_ref.dtype                      # matmul-input dtype (f32 or bf16)
    l_idx = pl.program_id(1)

    def layer_norm(v, g, b):                  # f32 math (VPU/EUP), eps = 1e-5
        mu = jnp.mean(v, axis=-1, keepdims=True)
        c = v - mu
        var = jnp.mean(c * c, axis=-1, keepdims=True)
        return c * lax.rsqrt(var + 1e-5) * g + b

    # ---- layer 0: load the embedding slab into the carried scratch ----
    @pl.when(l_idx == 0)
    def _():
        x_scr[...] = x_ref[...].reshape(M, d_model).astype(f32)

    x = x_scr[...]                             # (M, d_model), M = tb*L

    # ---- pre-norm multi-head self-attention (dropout = 0) ----
    xn = layer_norm(x, ln1_g_ref[0], ln1_b_ref[0])
    qkv = jnp.dot(xn.astype(cdt), wqkv_ref[0],
                  preferred_element_type=f32) + bqkv_ref[0]          # (M, 3*dm)
    q = qkv[:, :d_model] * scale
    k = qkv[:, d_model:2 * d_model]
    v = qkv[:, 2 * d_model:]

    heads = []
    for hd in range(h):                        # static unroll over heads
        sl = slice(hd * d_k, (hd + 1) * d_k)
        qh = q[:, sl].reshape(tb, L, d_k)      # per-sample batched attention:
        kh = k[:, sl].reshape(tb, L, d_k)      # no cross-sample scores, no mask
        vh = v[:, sl].reshape(tb, L, d_k)
        s = jnp.einsum('bqd,bkd->bqk', qh.astype(cdt), kh.astype(cdt),
                       preferred_element_type=f32)                   # (tb, L, L)
        s = s - jnp.max(s, axis=-1, keepdims=True)
        p = jnp.exp(s)
        p = p * pl.reciprocal(jnp.sum(p, axis=-1, keepdims=True), approx=True)
        heads.append(jnp.einsum('bqk,bkd->bqd', p.astype(cdt), vh.astype(cdt),
                                preferred_element_type=f32))         # (tb, L, d_k)
    attn = jnp.concatenate(heads, axis=-1).reshape(M, d_model)
    x = x + jnp.dot(attn.astype(cdt), wo_ref[0],
                    preferred_element_type=f32) + bo_ref[0]

    # ---- pre-norm feed-forward ----
    xn = layer_norm(x, ln2_g_ref[0], ln2_b_ref[0])
    hid = jnp.maximum(jnp.dot(xn.astype(cdt), w1_ref[0],
                              preferred_element_type=f32) + b1_ref[0], 0.0)
    x = x + jnp.dot(hid.astype(cdt), w2_ref[0],
                    preferred_element_type=f32) + b2_ref[0]

    x_scr[...] = x                             # carry to next layer step

    # ---- last layer: final norm + fused output head (VPU mul + XLU reduce) ----
    @pl.when(l_idx == pl.num_programs(1) - 1)
    def _():
        xf = layer_norm(x, lnf_g_ref[...], lnf_b_ref[...])
        contrib = xf.reshape(tb, L, d_model) * w_head_ref[...]       # (tb, L, dm)
        r = jnp.sum(contrib, axis=-1)                                # (tb, L)
        logit = jnp.sum(r, axis=-1, keepdims=True) + head_c_ref[...]  # (tb, 1)
        out_ref[...] = (1.0 / (1.0 + jnp.exp(-logit))).reshape(1, 1, tb)


# --------------------------------------------------------------------------
# Plain-JAX glue: mod-2 adjacency preprocessing (tiny, data prep only).
# --------------------------------------------------------------------------
def _preprocess(bit_adj, phase_adj, check_adj, error_probabilities, n_checks):
    B = bit_adj.shape[0]
    bt_pa = jnp.einsum('bij,bik->bjk', bit_adj, phase_adj)          # bit_adj^T @ phase_adj
    phase_check = jnp.mod(jnp.mod(bt_pa, 2.0) + check_adj, 2.0)
    eye = jnp.broadcast_to(jnp.eye(n_checks, dtype=bit_adj.dtype),
                           (B, n_checks, n_checks))
    pc = jnp.concatenate([jnp.swapaxes(phase_adj, -1, -2), phase_check,
                          jnp.swapaxes(bit_adj, -1, -2), eye], axis=-1)   # (B, n_checks, n)
    scal = jnp.concatenate([pc.reshape(B, -1), error_probabilities], axis=-1)  # (B, L)
    return scal[..., None]                                           # (B, L, 1)


def _layer_spec(arr):
    """Per-layer streamed weight: block (1, ...) indexed by the layer grid axis."""
    bs = (1,) + arr.shape[1:]
    nd = arr.ndim
    return pl.BlockSpec(bs, lambda i, l, nd=nd: (l,) + (0,) * (nd - 1))


def _const_spec(arr):
    zeros = (0,) * arr.ndim
    return pl.BlockSpec(arr.shape, lambda i, l, z=zeros: z)


def _device_kind():
    try:
        return jax.devices()[0].device_kind.lower()
    except Exception:
        return ""


def _vmem_capacity_bytes():
    try:
        return int(pltpu.get_tpu_info().vmem_capacity_bytes)
    except Exception:
        return 64 * 2**20        # conservative (v7x-sized) fallback


# --------------------------------------------------------------------------
# Wrapper: pallas_call with grid = (batch tiles, layers).
# --------------------------------------------------------------------------
def scoring_transformer_forward(params, bit_adj, phase_adj, check_adj,
                                error_probabilities, *, h, N_dec,
                                compute_dtype=None, batch_tile=None):
    B, n_bits, n_checks = bit_adj.shape
    n = (n_bits + n_checks) * 2
    L = n * n_checks + n
    d_model = params["src_embed"].shape[-1]
    d_ff = params["w1"].shape[-1]
    assert params["src_embed"].shape[0] == L

    kind = _device_kind()
    is_v5 = "v5" in kind
    is_v7 = "v7" in kind
    if compute_dtype is None:
        # bf16 matmul inputs (f32 accumulation + f32 LN/softmax) on v6e/v7x;
        # f32 on v5e (no bf16 VPU, tiny demo config).
        compute_dtype = jnp.float32 if is_v5 else jnp.bfloat16

    # --- preprocessing + embedding (lane-dense activation slab) ---
    scal = _preprocess(bit_adj, phase_adj, check_adj, error_probabilities, n_checks)
    x = (params["src_embed"][None] * scal).astype(jnp.float32)       # (B, L, d_model)

    # --- batch tiling: stack tb samples into the matmul M dimension ---
    if batch_tile is None:
        target_m = 256 if is_v5 else 512
        batch_tile = max(1, min(B, -(-target_m // L)))
        if is_v7 and B >= 2:
            batch_tile = min(batch_tile, max(1, B // 2))   # >=2 tiles for 2 TCs
    tb = int(batch_tile)
    B_pad = -(-B // tb) * tb
    if B_pad != B:
        x = jnp.concatenate([x, jnp.zeros((B_pad - B, L, d_model), x.dtype)], axis=0)
    num_tiles = B_pad // tb
    M = tb * L

    # --- fused / reshaped weights (weights in compute_dtype, biases in f32) ---
    wdt = compute_dtype
    row = lambda a: a.reshape(a.shape[0], 1, a.shape[1])             # (N, d) -> (N, 1, d)
    wqkv = jnp.concatenate([params["wq"], params["wk"], params["wv"]], axis=-1).astype(wdt)
    bqkv = row(jnp.concatenate([params["bq"], params["bk"], params["bv"]], axis=-1))
    wo = params["wo"].astype(wdt)
    w1 = params["w1"].astype(wdt)
    w2 = params["w2"].astype(wdt)
    # fold Linear(d_model,1) and Linear(L,1) into one (L, d_model) weight + scalar
    w_head = (params["w_out"][0][:, None] * params["w_oned"][:, 0][None, :]).astype(jnp.float32)
    head_const = (params["b_oned"][0, 0] * jnp.sum(params["w_out"])
                  + params["b_out"][0, 0]).reshape(1, 1).astype(jnp.float32)

    layer_args = [row(params["ln1_g"]), row(params["ln1_b"]),
                  wqkv, bqkv, wo, row(params["bo"]),
                  row(params["ln2_g"]), row(params["ln2_b"]),
                  w1, row(params["b1"]), w2, row(params["b2"])]
    const_args = [params["lnf_g"], params["lnf_b"], w_head, head_const]

    in_specs = ([pl.BlockSpec((tb, L, d_model), lambda i, l: (i, 0, 0))]
                + [_layer_spec(a) for a in layer_args]
                + [_const_spec(a) for a in const_args])

    kernel = functools.partial(_encoder_layer_kernel, h=h, tb=tb, L=L)

    # --- VMEM budget: 2x-buffered per-layer weights + x block + scratch + temps ---
    layer_block_bytes = sum(int(a.size) // N_dec * a.dtype.itemsize for a in layer_args)
    const_bytes = sum(int(a.size) * a.dtype.itemsize for a in const_args)
    x_block_bytes = tb * L * d_model * 4
    temp_bytes = (4 * M * 3 * d_model      # qkv
                  + 4 * M * d_ff           # FFN hidden
                  + 8 * tb * L * L         # per-head scores + probs
                  + 4 * M * d_model)       # attn concat
    est = (2 * layer_block_bytes + const_bytes + 2 * x_block_bytes
           + 4 * M * d_model               # carried x scratch
           + temp_bytes + (8 << 20))
    cap = int(0.9 * _vmem_capacity_bytes())
    vmem_limit = int(min(cap, max(32 << 20, est)))

    out = pl.pallas_call(
        kernel,
        out_shape=jax.ShapeDtypeStruct((num_tiles, 1, tb), jnp.float32),
        grid_spec=pltpu.PrefetchScalarGridSpec(
            num_scalar_prefetch=0,
            grid=(num_tiles, N_dec),
            in_specs=in_specs,
            out_specs=pl.BlockSpec((1, 1, tb), lambda i, l: (i, 0, 0)),
            scratch_shapes=[pltpu.VMEM((M, d_model), jnp.float32)],
        ),
        compiler_params=pltpu.CompilerParams(
            dimension_semantics=("parallel", "arbitrary"),
            vmem_limit_bytes=vmem_limit,
        ),
    )(x, *layer_args, *const_args)
    return out.reshape(B_pad, 1)[:B]


# --------------------------------------------------------------------------
# Deterministic parameter init (xavier_uniform for >1-dim params).
# --------------------------------------------------------------------------
def init_params(key, n_bits, n_checks, h, d_model, N_dec):
    n = (n_bits + n_checks) * 2
    L = n * n_checks + n
    d_ff = 4 * d_model

    def xavier(k, shape):
        fan_in, fan_out = shape[-2], shape[-1]
        bound = math.sqrt(6.0 / (fan_in + fan_out))
        return jax.random.uniform(k, shape, jnp.float32, -bound, bound)

    ks = jax.random.split(key, 10)
    z = lambda *s: jnp.zeros(s, jnp.float32)
    o = lambda *s: jnp.ones(s, jnp.float32)
    return dict(
        src_embed=xavier(ks[0], (L, d_model)),
        ln1_g=o(N_dec, d_model), ln1_b=z(N_dec, d_model),
        wq=xavier(ks[1], (N_dec, d_model, d_model)), bq=z(N_dec, d_model),
        wk=xavier(ks[2], (N_dec, d_model, d_model)), bk=z(N_dec, d_model),
        wv=xavier(ks[3], (N_dec, d_model, d_model)), bv=z(N_dec, d_model),
        wo=xavier(ks[4], (N_dec, d_model, d_model)), bo=z(N_dec, d_model),
        ln2_g=o(N_dec, d_model), ln2_b=z(N_dec, d_model),
        w1=xavier(ks[5], (N_dec, d_model, d_ff)), b1=z(N_dec, d_ff),
        w2=xavier(ks[6], (N_dec, d_ff, d_model)), b2=z(N_dec, d_model),
        lnf_g=o(1, d_model), lnf_b=z(1, d_model),
        w_oned=xavier(ks[7], (d_model, 1)), b_oned=z(1, 1),
        w_out=xavier(ks[8], (1, L)), b_out=z(1, 1),
    )


# --------------------------------------------------------------------------
# Pure-JAX reference (mirrors the PyTorch forward) for validation.
# --------------------------------------------------------------------------
def reference_forward(params, bit_adj, phase_adj, check_adj, error_probabilities,
                      *, h, N_dec, n_checks):
    scal = _preprocess(bit_adj, phase_adj, check_adj, error_probabilities, n_checks)
    x = params["src_embed"][None] * scal                       # (B, L, d_model)
    d_model = params["src_embed"].shape[-1]
    d_k = d_model // h

    def ln(v, g, b):
        mu = v.mean(-1, keepdims=True)
        var = ((v - mu) ** 2).mean(-1, keepdims=True)
        return (v - mu) / jnp.sqrt(var + 1e-5) * g + b

    B, L, _ = x.shape
    for l in range(N_dec):
        xn = ln(x, params["ln1_g"][l], params["ln1_b"][l])
        q = xn @ params["wq"][l] + params["bq"][l]
        k = xn @ params["wk"][l] + params["bk"][l]
        v = xn @ params["wv"][l] + params["bv"][l]
        qh = q.reshape(B, L, h, d_k).transpose(0, 2, 1, 3)
        kh = k.reshape(B, L, h, d_k).transpose(0, 2, 1, 3)
        vh = v.reshape(B, L, h, d_k).transpose(0, 2, 1, 3)
        s = qh @ jnp.swapaxes(kh, -1, -2) / math.sqrt(d_k)
        p = jax.nn.softmax(s, axis=-1)
        a = (p @ vh).transpose(0, 2, 1, 3).reshape(B, L, d_model)
        x = x + (a @ params["wo"][l] + params["bo"][l])
        xn = ln(x, params["ln2_g"][l], params["ln2_b"][l])
        x = x + (jnp.maximum(xn @ params["w1"][l] + params["b1"][l], 0.0)
                 @ params["w2"][l] + params["b2"][l])

    x = ln(x, params["lnf_g"], params["lnf_b"])
    y = x @ params["w_oned"] + params["b_oned"][0]              # (B, L, 1)
    y = jnp.swapaxes(y, -1, -2)                                 # (B, 1, L)
    logit = jnp.einsum('bil,l->bi', y, params["w_out"][0]) + params["b_out"][0]
    return jax.nn.sigmoid(logit)                                # (B, 1)


# --------------------------------------------------------------------------
if __name__ == "__main__":
    n_bits, n_checks, h, d_model, N_dec = 6, 3, 4, 32, 2
    B = 2
    n = (n_bits + n_checks) * 2          # 18
    L = n * n_checks + n                 # 72

    key = jax.random.PRNGKey(0)
    kp, k1, k2, k3, k4 = jax.random.split(key, 5)
    params = init_params(kp, n_bits, n_checks, h, d_model, N_dec)

    bit_adj = jax.random.bernoulli(k1, 0.5, (B, n_bits, n_checks)).astype(jnp.float32)
    phase_adj = jax.random.bernoulli(k2, 0.5, (B, n_bits, n_checks)).astype(jnp.float32)
    check_adj = jax.random.bernoulli(k3, 0.5, (B, n_checks, n_checks)).astype(jnp.float32)
    error_probabilities = jax.random.uniform(k4, (B, n), jnp.float32)

    ref = reference_forward(params, bit_adj, phase_adj, check_adj,
                            error_probabilities, h=h, N_dec=N_dec, n_checks=n_checks)

    # f32 matmul inputs: must match the reference closely.
    out = scoring_transformer_forward(params, bit_adj, phase_adj, check_adj,
                                      error_probabilities, h=h, N_dec=N_dec,
                                      compute_dtype=jnp.float32)
    out = jax.block_until_ready(out)
    assert out.shape == (B, 1), out.shape
    if not np.allclose(np.asarray(out), np.asarray(ref), atol=2e-3, rtol=2e-3):
        raise AssertionError(f"kernel/reference mismatch (f32):\n{out}\nvs\n{ref}")

    # bf16 matmul inputs (v6e/v7x fast path), f32 accumulation + f32 LN/softmax.
    out_bf16 = scoring_transformer_forward(params, bit_adj, phase_adj, check_adj,
                                           error_probabilities, h=h, N_dec=N_dec,
                                           compute_dtype=jnp.bfloat16)
    out_bf16 = jax.block_until_ready(out_bf16)
    assert out_bf16.shape == (B, 1)
    if not np.allclose(np.asarray(out_bf16), np.asarray(ref), atol=5e-2, rtol=5e-2):
        raise AssertionError(f"kernel/reference mismatch (bf16):\n{out_bf16}\nvs\n{ref}")

    print("KERNEL_OK")
</pallas_src>

<mosaic_0001>
module attributes {stable_mosaic.version = 11 : i64} {
  func.func @_encoder_layer_kernel(%arg0: i32, %arg1: i32, %arg2: memref<2x72x32xf32, #tpu.memory_space<vmem>>, %arg3: memref<1x1x32xf32, #tpu.memory_space<vmem>>, %arg4: memref<1x1x32xf32, #tpu.memory_space<vmem>>, %arg5: memref<1x32x96xf32, #tpu.memory_space<vmem>>, %arg6: memref<1x1x96xf32, #tpu.memory_space<vmem>>, %arg7: memref<1x32x32xf32, #tpu.memory_space<vmem>>, %arg8: memref<1x1x32xf32, #tpu.memory_space<vmem>>, %arg9: memref<1x1x32xf32, #tpu.memory_space<vmem>>, %arg10: memref<1x1x32xf32, #tpu.memory_space<vmem>>, %arg11: memref<1x32x128xf32, #tpu.memory_space<vmem>>, %arg12: memref<1x1x128xf32, #tpu.memory_space<vmem>>, %arg13: memref<1x128x32xf32, #tpu.memory_space<vmem>>, %arg14: memref<1x1x32xf32, #tpu.memory_space<vmem>>, %arg15: memref<1x32xf32, #tpu.memory_space<vmem>>, %arg16: memref<1x32xf32, #tpu.memory_space<vmem>>, %arg17: memref<72x32xf32, #tpu.memory_space<vmem>>, %arg18: memref<1x1xf32, #tpu.memory_space<vmem>>, %arg19: memref<1x1x2xf32, #tpu.memory_space<vmem>>, %arg20: memref<144x32xf32, #tpu.memory_space<vmem>>) attributes {dimension_semantics = [#tpu.dimension_semantics<parallel>, #tpu.dimension_semantics<arbitrary>], iteration_bounds = array<i64: 1, 2>, scalar_prefetch = 0 : i64, scratch_operands = 1 : i64, tpu.core_type = #tpu.core_type<tc>, window_params = [{transform_indices = @transform_0, window_bounds = array<i64: 2, 72, 32>}, {transform_indices = @transform_1, window_bounds = array<i64: 1, 1, 32>}, {transform_indices = @transform_2, window_bounds = array<i64: 1, 1, 32>}, {transform_indices = @transform_3, window_bounds = array<i64: 1, 32, 96>}, {transform_indices = @transform_4, window_bounds = array<i64: 1, 1, 96>}, {transform_indices = @transform_5, window_bounds = array<i64: 1, 32, 32>}, {transform_indices = @transform_6, window_bounds = array<i64: 1, 1, 32>}, {transform_indices = @transform_7, window_bounds = array<i64: 1, 1, 32>}, {transform_indices = @transform_8, window_bounds = array<i64: 1, 1, 32>}, {transform_indices = @transform_9, window_bounds = array<i64: 1, 32, 128>}, {transform_indices = @transform_10, window_bounds = array<i64: 1, 1, 128>}, {transform_indices = @transform_11, window_bounds = array<i64: 1, 128, 32>}, {transform_indices = @transform_12, window_bounds = array<i64: 1, 1, 32>}, {pipeline_mode = #tpu.pipeline_mode<synchronous>, transform_indices = @transform_13, window_bounds = array<i64: 1, 32>}, {pipeline_mode = #tpu.pipeline_mode<synchronous>, transform_indices = @transform_14, window_bounds = array<i64: 1, 32>}, {pipeline_mode = #tpu.pipeline_mode<synchronous>, transform_indices = @transform_15, window_bounds = array<i64: 72, 32>}, {pipeline_mode = #tpu.pipeline_mode<synchronous>, transform_indices = @transform_16, window_bounds = array<i64: 1, 1>}, {transform_indices = @transform_17, window_bounds = array<i64: 1, 1, 2>}]} {
    %c0_i32 = arith.constant 0 : i32
    %0 = arith.cmpi eq, %arg1, %c0_i32 : i32
    %1 = arith.extui %0 : i1 to i32
    %c0_i32_0 = arith.constant 0 : i32
    %2 = arith.cmpi ne, %1, %c0_i32_0 : i32
    scf.if %2 {
      %c0_72 = arith.constant 0 : index
      %c0_73 = arith.constant 0 : index
      %c0_74 = arith.constant 0 : index
      %167 = vector.load %arg2[%c0_72, %c0_73, %c0_74] : memref<2x72x32xf32, #tpu.memory_space<vmem>>, vector<2x72x32xf32>
      %168 = vector.shape_cast %167 : vector<2x72x32xf32> to vector<144x32xf32>
      %c0_75 = arith.constant 0 : index
      %c0_76 = arith.constant 0 : index
      %169 = vector.load %arg20[%c0_75, %c0_76] : memref<144x32xf32, #tpu.memory_space<vmem>>, vector<144x32xf32>
      tpu.vector_store %arg20[%c0_75, %c0_76], %168 {strides = array<i32>} : memref<144x32xf32, #tpu.memory_space<vmem>>, vector<144x32xf32>,
    } else {
    }
    %c0 = arith.constant 0 : index
    %c0_1 = arith.constant 0 : index
    %3 = vector.load %arg20[%c0, %c0_1] : memref<144x32xf32, #tpu.memory_space<vmem>>, vector<144x32xf32>
    %c0_2 = arith.constant 0 : index
    %c0_3 = arith.constant 0 : index
    %c0_4 = arith.constant 0 : index
    %4 = vector.load %arg3[%c0_2, %c0_3, %c0_4] : memref<1x1x32xf32, #tpu.memory_space<vmem>>, vector<1x1x32xf32>
    %5 = vector.shape_cast %4 : vector<1x1x32xf32> to vector<1x32xf32>
    %c0_5 = arith.constant 0 : index
    %c0_6 = arith.constant 0 : index
    %c0_7 = arith.constant 0 : index
    %6 = vector.load %arg4[%c0_5, %c0_6, %c0_7] : memref<1x1x32xf32, #tpu.memory_space<vmem>>, vector<1x1x32xf32>
    %7 = vector.shape_cast %6 : vector<1x1x32xf32> to vector<1x32xf32>
    %cst = arith.constant dense<0.000000e+00> : vector<144xf32>
    %8 = vector.multi_reduction <add>, %3, %cst [1] : vector<144x32xf32> to vector<144xf32>
    %9 = vector.shape_cast %8 : vector<144xf32> to vector<144x1xf32>
    %cst_8 = arith.constant 3.200000e+01 : f32
    %10 = vector.broadcast %cst_8 : f32 to vector<144x1xf32>
    %11 = arith.divf %9, %10 : vector<144x1xf32>
    %12 = vector.broadcast %11 : vector<144x1xf32> to vector<144x32xf32>
    %13 = arith.subf %3, %12 : vector<144x32xf32>
    %14 = arith.mulf %13, %13 : vector<144x32xf32>
    %cst_9 = arith.constant dense<0.000000e+00> : vector<144xf32>
    %15 = vector.multi_reduction <add>, %14, %cst_9 [1] : vector<144x32xf32> to vector<144xf32>
    %16 = vector.shape_cast %15 : vector<144xf32> to vector<144x1xf32>
    %cst_10 = arith.constant 3.200000e+01 : f32
    %17 = vector.broadcast %cst_10 : f32 to vector<144x1xf32>
    %18 = arith.divf %16, %17 : vector<144x1xf32>
    %cst_11 = arith.constant 9.99999974E-6 : f32
    %19 = vector.broadcast %cst_11 : f32 to vector<144x1xf32>
    %20 = arith.addf %18, %19 : vector<144x1xf32>
    %21 = math.rsqrt %20 : vector<144x1xf32>
    %22 = vector.broadcast %21 : vector<144x1xf32> to vector<144x32xf32>
    %23 = arith.mulf %13, %22 : vector<144x32xf32>
    %24 = vector.broadcast %5 : vector<1x32xf32> to vector<144x32xf32>
    %25 = arith.mulf %23, %24 : vector<144x32xf32>
    %26 = vector.broadcast %7 : vector<1x32xf32> to vector<144x32xf32>
    %27 = arith.addf %25, %26 : vector<144x32xf32>
    %c0_12 = arith.constant 0 : index
    %c0_13 = arith.constant 0 : index
    %c0_14 = arith.constant 0 : index
    %28 = vector.load %arg5[%c0_12, %c0_13, %c0_14] : memref<1x32x96xf32, #tpu.memory_space<vmem>>, vector<1x32x96xf32>
    %29 = vector.shape_cast %28 : vector<1x32x96xf32> to vector<32x96xf32>
    %cst_15 = arith.constant dense<0.000000e+00> : vector<144x96xf32>
    %30 = tpu.matmul %27, %29, %cst_15 {dimension_numbers = #tpu.dot_dimension_numbers<[1], [0], [0], [1], [0, 0, 1, 1], [], []>} : vector<144x32xf32>, vector<32x96xf32>, vector<144x96xf32> -> vector<144x96xf32>
    %c0_16 = arith.constant 0 : index
    %c0_17 = arith.constant 0 : index
    %c0_18 = arith.constant 0 : index
    %31 = vector.load %arg6[%c0_16, %c0_17, %c0_18] : memref<1x1x96xf32, #tpu.memory_space<vmem>>, vector<1x1x96xf32>
    %32 = vector.shape_cast %31 : vector<1x1x96xf32> to vector<1x96xf32>
    %33 = vector.broadcast %32 : vector<1x96xf32> to vector<144x96xf32>
    %34 = arith.addf %30, %33 : vector<144x96xf32>
    %35 = vector.extract_strided_slice %34 {offsets = [0, 0], sizes = [144, 32], strides = [1, 1]} : vector<144x96xf32> to vector<144x32xf32>
    %cst_19 = arith.constant 0.353553385 : f32
    %36 = vector.broadcast %cst_19 : f32 to vector<144x32xf32>
    %37 = arith.mulf %35, %36 : vector<144x32xf32>
    %38 = vector.extract_strided_slice %34 {offsets = [0, 32], sizes = [144, 32], strides = [1, 1]} : vector<144x96xf32> to vector<144x32xf32>
    %39 = vector.extract_strided_slice %34 {offsets = [0, 64], sizes = [144, 32], strides = [1, 1]} : vector<144x96xf32> to vector<144x32xf32>
    %40 = vector.extract_strided_slice %37 {offsets = [0, 0], sizes = [144, 8], strides = [1, 1]} : vector<144x32xf32> to vector<144x8xf32>
    %41 = vector.shape_cast %40 : vector<144x8xf32> to vector<2x72x8xf32>
    %42 = vector.extract_strided_slice %38 {offsets = [0, 0], sizes = [144, 8], strides = [1, 1]} : vector<144x32xf32> to vector<144x8xf32>
    %43 = vector.shape_cast %42 : vector<144x8xf32> to vector<2x72x8xf32>
    %44 = vector.extract_strided_slice %39 {offsets = [0, 0], sizes = [144, 8], strides = [1, 1]} : vector<144x32xf32> to vector<144x8xf32>
    %45 = vector.shape_cast %44 : vector<144x8xf32> to vector<2x72x8xf32>
    "tpu.trace_start"() <{level = 10 : i32, message = "bqd,bkd->bqk"}> : () -> ()
    %cst_20 = arith.constant dense<0.000000e+00> : vector<2x72x72xf32>
    %46 = tpu.matmul %41, %43, %cst_20 {dimension_numbers = #tpu.dot_dimension_numbers<[2], [2], [1], [1], [0, 0, 0, 1, 1, 1], [0], [0]>} : vector<2x72x8xf32>, vector<2x72x8xf32>, vector<2x72x72xf32> -> vector<2x72x72xf32>
    "tpu.trace_stop"() : () -> ()
    %cst_21 = arith.constant dense<0xFF800000> : vector<2x72xf32>
    %47 = vector.multi_reduction <maximumf>, %46, %cst_21 [2] : vector<2x72x72xf32> to vector<2x72xf32>
    %48 = vector.shape_cast %47 : vector<2x72xf32> to vector<2x72x1xf32>
    %49 = vector.broadcast %48 : vector<2x72x1xf32> to vector<2x72x72xf32>
    %50 = arith.subf %46, %49 : vector<2x72x72xf32>
    %51 = math.exp %50 : vector<2x72x72xf32>
    %cst_22 = arith.constant dense<0.000000e+00> : vector<2x72xf32>
    %52 = vector.multi_reduction <add>, %51, %cst_22 [2] : vector<2x72x72xf32> to vector<2x72xf32>
    %53 = vector.shape_cast %52 : vector<2x72xf32> to vector<2x72x1xf32>
    %54 = tpu.reciprocal %53 {approx = true} : vector<2x72x1xf32> -> vector<2x72x1xf32>
    %55 = vector.broadcast %54 : vector<2x72x1xf32> to vector<2x72x72xf32>
    %56 = arith.mulf %51, %55 : vector<2x72x72xf32>
    "tpu.trace_start"() <{level = 10 : i32, message = "bqk,bkd->bqd"}> : () -> ()
    %cst_23 = arith.constant dense<0.000000e+00> : vector<2x72x8xf32>
    %57 = tpu.matmul %56, %45, %cst_23 {dimension_numbers = #tpu.dot_dimension_numbers<[2], [1], [1], [2], [0, 0, 0, 1, 1, 2], [0], [0]>} : vector<2x72x72xf32>, vector<2x72x8xf32>, vector<2x72x8xf32> -> vector<2x72x8xf32>
    "tpu.trace_stop"() : () -> ()
    %58 = vector.extract_strided_slice %37 {offsets = [0, 8], sizes = [144, 8], strides = [1, 1]} : vector<144x32xf32> to vector<144x8xf32>
    %59 = vector.shape_cast %58 : vector<144x8xf32> to vector<2x72x8xf32>
    %60 = vector.extract_strided_slice %38 {offsets = [0, 8], sizes = [144, 8], strides = [1, 1]} : vector<144x32xf32> to vector<144x8xf32>
    %61 = vector.shape_cast %60 : vector<144x8xf32> to vector<2x72x8xf32>
    %62 = vector.extract_strided_slice %39 {offsets = [0, 8], sizes = [144, 8], strides = [1, 1]} : vector<144x32xf32> to vector<144x8xf32>
    %63 = vector.shape_cast %62 : vector<144x8xf32> to vector<2x72x8xf32>
    "tpu.trace_start"() <{level = 10 : i32, message = "bqd,bkd->bqk"}> : () -> ()
    %cst_24 = arith.constant dense<0.000000e+00> : vector<2x72x72xf32>
    %64 = tpu.matmul %59, %61, %cst_24 {dimension_numbers = #tpu.dot_dimension_numbers<[2], [2], [1], [1], [0, 0, 0, 1, 1, 1], [0], [0]>} : vector<2x72x8xf32>, vector<2x72x8xf32>, vector<2x72x72xf32> -> vector<2x72x72xf32>
    "tpu.trace_stop"() : () -> ()
    %cst_25 = arith.constant dense<0xFF800000> : vector<2x72xf32>
    %65 = vector.multi_reduction <maximumf>, %64, %cst_25 [2] : vector<2x72x72xf32> to vector<2x72xf32>
    %66 = vector.shape_cast %65 : vector<2x72xf32> to vector<2x72x1xf32>
    %67 = vector.broadcast %66 : vector<2x72x1xf32> to vector<2x72x72xf32>
    %68 = arith.subf %64, %67 : vector<2x72x72xf32>
    %69 = math.exp %68 : vector<2x72x72xf32>
    %cst_26 = arith.constant dense<0.000000e+00> : vector<2x72xf32>
    %70 = vector.multi_reduction <add>, %69, %cst_26 [2] : vector<2x72x72xf32> to vector<2x72xf32>
    %71 = vector.shape_cast %70 : vector<2x72xf32> to vector<2x72x1xf32>
    %72 = tpu.reciprocal %71 {approx = true} : vector<2x72x1xf32> -> vector<2x72x1xf32>
    %73 = vector.broadcast %72 : vector<2x72x1xf32> to vector<2x72x72xf32>
    %74 = arith.mulf %69, %73 : vector<2x72x72xf32>
    "tpu.trace_start"() <{level = 10 : i32, message = "bqk,bkd->bqd"}> : () -> ()
    %cst_27 = arith.constant dense<0.000000e+00> : vector<2x72x8xf32>
    %75 = tpu.matmul %74, %63, %cst_27 {dimension_numbers = #tpu.dot_dimension_numbers<[2], [1], [1], [2], [0, 0, 0, 1, 1, 2], [0], [0]>} : vector<2x72x72xf32>, vector<2x72x8xf32>, vector<2x72x8xf32> -> vector<2x72x8xf32>
    "tpu.trace_stop"() : () -> ()
    %76 = vector.extract_strided_slice %37 {offsets = [0, 16], sizes = [144, 8], strides = [1, 1]} : vector<144x32xf32> to vector<144x8xf32>
    %77 = vector.shape_cast %76 : vector<144x8xf32> to vector<2x72x8xf32>
    %78 = vector.extract_strided_slice %38 {offsets = [0, 16], sizes = [144, 8], strides = [1, 1]} : vector<144x32xf32> to vector<144x8xf32>
    %79 = vector.shape_cast %78 : vector<144x8xf32> to vector<2x72x8xf32>
    %80 = vector.extract_strided_slice %39 {offsets = [0, 16], sizes = [144, 8], strides = [1, 1]} : vector<144x32xf32> to vector<144x8xf32>
    %81 = vector.shape_cast %80 : vector<144x8xf32> to vector<2x72x8xf32>
    "tpu.trace_start"() <{level = 10 : i32, message = "bqd,bkd->bqk"}> : () -> ()
    %cst_28 = arith.constant dense<0.000000e+00> : vector<2x72x72xf32>
    %82 = tpu.matmul %77, %79, %cst_28 {dimension_numbers = #tpu.dot_dimension_numbers<[2], [2], [1], [1], [0, 0, 0, 1, 1, 1], [0], [0]>} : vector<2x72x8xf32>, vector<2x72x8xf32>, vector<2x72x72xf32> -> vector<2x72x72xf32>
    "tpu.trace_stop"() : () -> ()
    %cst_29 = arith.constant dense<0xFF800000> : vector<2x72xf32>
    %83 = vector.multi_reduction <maximumf>, %82, %cst_29 [2] : vector<2x72x72xf32> to vector<2x72xf32>
    %84 = vector.shape_cast %83 : vector<2x72xf32> to vector<2x72x1xf32>
    %85 = vector.broadcast %84 : vector<2x72x1xf32> to vector<2x72x72xf32>
    %86 = arith.subf %82, %85 : vector<2x72x72xf32>
    %87 = math.exp %86 : vector<2x72x72xf32>
    %cst_30 = arith.constant dense<0.000000e+00> : vector<2x72xf32>
    %88 = vector.multi_reduction <add>, %87, %cst_30 [2] : vector<2x72x72xf32> to vector<2x72xf32>
    %89 = vector.shape_cast %88 : vector<2x72xf32> to vector<2x72x1xf32>
    %90 = tpu.reciprocal %89 {approx = true} : vector<2x72x1xf32> -> vector<2x72x1xf32>
    %91 = vector.broadcast %90 : vector<2x72x1xf32> to vector<2x72x72xf32>
    %92 = arith.mulf %87, %91 : vector<2x72x72xf32>
    "tpu.trace_start"() <{level = 10 : i32, message = "bqk,bkd->bqd"}> : () -> ()
    %cst_31 = arith.constant dense<0.000000e+00> : vector<2x72x8xf32>
    %93 = tpu.matmul %92, %81, %cst_31 {dimension_numbers = #tpu.dot_dimension_numbers<[2], [1], [1], [2], [0, 0, 0, 1, 1, 2], [0], [0]>} : vector<2x72x72xf32>, vector<2x72x8xf32>, vector<2x72x8xf32> -> vector<2x72x8xf32>
    "tpu.trace_stop"() : () -> ()
    %94 = vector.extract_strided_slice %37 {offsets = [0, 24], sizes = [144, 8], strides = [1, 1]} : vector<144x32xf32> to vector<144x8xf32>
    %95 = vector.shape_cast %94 : vector<144x8xf32> to vector<2x72x8xf32>
    %96 = vector.extract_strided_slice %38 {offsets = [0, 24], sizes = [144, 8], strides = [1, 1]} : vector<144x32xf32> to vector<144x8xf32>
    %97 = vector.shape_cast %96 : vector<144x8xf32> to vector<2x72x8xf32>
    %98 = vector.extract_strided_slice %39 {offsets = [0, 24], sizes = [144, 8], strides = [1, 1]} : vector<144x32xf32> to vector<144x8xf32>
    %99 = vector.shape_cast %98 : vector<144x8xf32> to vector<2x72x8xf32>
    "tpu.trace_start"() <{level = 10 : i32, message = "bqd,bkd->bqk"}> : () -> ()
    %cst_32 = arith.constant dense<0.000000e+00> : vector<2x72x72xf32>
    %100 = tpu.matmul %95, %97, %cst_32 {dimension_numbers = #tpu.dot_dimension_numbers<[2], [2], [1], [1], [0, 0, 0, 1, 1, 1], [0], [0]>} : vector<2x72x8xf32>, vector<2x72x8xf32>, vector<2x72x72xf32> -> vector<2x72x72xf32>
    "tpu.trace_stop"() : () -> ()
    %cst_33 = arith.constant dense<0xFF800000> : vector<2x72xf32>
    %101 = vector.multi_reduction <maximumf>, %100, %cst_33 [2] : vector<2x72x72xf32> to vector<2x72xf32>
    %102 = vector.shape_cast %101 : vector<2x72xf32> to vector<2x72x1xf32>
    %103 = vector.broadcast %102 : vector<2x72x1xf32> to vector<2x72x72xf32>
    %104 = arith.subf %100, %103 : vector<2x72x72xf32>
    %105 = math.exp %104 : vector<2x72x72xf32>
    %cst_34 = arith.constant dense<0.000000e+00> : vector<2x72xf32>
    %106 = vector.multi_reduction <add>, %105, %cst_34 [2] : vector<2x72x72xf32> to vector<2x72xf32>
    %107 = vector.shape_cast %106 : vector<2x72xf32> to vector<2x72x1xf32>
    %108 = tpu.reciprocal %107 {approx = true} : vector<2x72x1xf32> -> vector<2x72x1xf32>
    %109 = vector.broadcast %108 : vector<2x72x1xf32> to vector<2x72x72xf32>
    %110 = arith.mulf %105, %109 : vector<2x72x72xf32>
    "tpu.trace_start"() <{level = 10 : i32, message = "bqk,bkd->bqd"}> : () -> ()
    %cst_35 = arith.constant dense<0.000000e+00> : vector<2x72x8xf32>
    %111 = tpu.matmul %110, %99, %cst_35 {dimension_numbers = #tpu.dot_dimension_numbers<[2], [1], [1], [2], [0, 0, 0, 1, 1, 2], [0], [0]>} : vector<2x72x72xf32>, vector<2x72x8xf32>, vector<2x72x8xf32> -> vector<2x72x8xf32>
    "tpu.trace_stop"() : () -> ()
    %112 = tpu.concatenate %57, %75, %93, %111 in 2 : vector<2x72x8xf32>, vector<2x72x8xf32>, vector<2x72x8xf32>, vector<2x72x8xf32> -> vector<2x72x32xf32>
    %113 = vector.shape_cast %112 : vector<2x72x32xf32> to vector<144x32xf32>
    %c0_36 = arith.constant 0 : index
    %c0_37 = arith.constant 0 : index
    %c0_38 = arith.constant 0 : index
    %114 = vector.load %arg7[%c0_36, %c0_37, %c0_38] : memref<1x32x32xf32, #tpu.memory_space<vmem>>, vector<1x32x32xf32>
    %115 = vector.shape_cast %114 : vector<1x32x32xf32> to vector<32x32xf32>
    %cst_39 = arith.constant dense<0.000000e+00> : vector<144x32xf32>
    %116 = tpu.matmul %113, %115, %cst_39 {dimension_numbers = #tpu.dot_dimension_numbers<[1], [0], [0], [1], [0, 0, 1, 1], [], []>} : vector<144x32xf32>, vector<32x32xf32>, vector<144x32xf32> -> vector<144x32xf32>
    %117 = arith.addf %3, %116 : vector<144x32xf32>
    %c0_40 = arith.constant 0 : index
    %c0_41 = arith.constant 0 : index
    %c0_42 = arith.constant 0 : index
    %118 = vector.load %arg8[%c0_40, %c0_41, %c0_42] : memref<1x1x32xf32, #tpu.memory_space<vmem>>, vector<1x1x32xf32>
    %119 = vector.shape_cast %118 : vector<1x1x32xf32> to vector<1x32xf32>
    %120 = vector.broadcast %119 : vector<1x32xf32> to vector<144x32xf32>
    %121 = arith.addf %117, %120 : vector<144x32xf32>
    %c0_43 = arith.constant 0 : index
    %c0_44 = arith.constant 0 : index
    %c0_45 = arith.constant 0 : index
    %122 = vector.load %arg9[%c0_43, %c0_44, %c0_45] : memref<1x1x32xf32, #tpu.memory_space<vmem>>, vector<1x1x32xf32>
    %123 = vector.shape_cast %122 : vector<1x1x32xf32> to vector<1x32xf32>
    %c0_46 = arith.constant 0 : index
    %c0_47 = arith.constant 0 : index
    %c0_48 = arith.constant 0 : index
    %124 = vector.load %arg10[%c0_46, %c0_47, %c0_48] : memref<1x1x32xf32, #tpu.memory_space<vmem>>, vector<1x1x32xf32>
    %125 = vector.shape_cast %124 : vector<1x1x32xf32> to vector<1x32xf32>
    %cst_49 = arith.constant dense<0.000000e+00> : vector<144xf32>
    %126 = vector.multi_reduction <add>, %121, %cst_49 [1] : vector<144x32xf32> to vector<144xf32>
    %127 = vector.shape_cast %126 : vector<144xf32> to vector<144x1xf32>
    %cst_50 = arith.constant 3.200000e+01 : f32
    %128 = vector.broadcast %cst_50 : f32 to vector<144x1xf32>
    %129 = arith.divf %127, %128 : vector<144x1xf32>
    %130 = vector.broadcast %129 : vector<144x1xf32> to vector<144x32xf32>
    %131 = arith.subf %121, %130 : vector<144x32xf32>
    %132 = arith.mulf %131, %131 : vector<144x32xf32>
    %cst_51 = arith.constant dense<0.000000e+00> : vector<144xf32>
    %133 = vector.multi_reduction <add>, %132, %cst_51 [1] : vector<144x32xf32> to vector<144xf32>
    %134 = vector.shape_cast %133 : vector<144xf32> to vector<144x1xf32>
    %cst_52 = arith.constant 3.200000e+01 : f32
    %135 = vector.broadcast %cst_52 : f32 to vector<144x1xf32>
    %136 = arith.divf %134, %135 : vector<144x1xf32>
    %cst_53 = arith.constant 9.99999974E-6 : f32
    %137 = vector.broadcast %cst_53 : f32 to vector<144x1xf32>
    %138 = arith.addf %136, %137 : vector<144x1xf32>
    %139 = math.rsqrt %138 : vector<144x1xf32>
    %140 = vector.broadcast %139 : vector<144x1xf32> to vector<144x32xf32>
    %141 = arith.mulf %131, %140 : vector<144x32xf32>
    %142 = vector.broadcast %123 : vector<1x32xf32> to vector<144x32xf32>
    %143 = arith.mulf %141, %142 : vector<144x32xf32>
    %144 = vector.broadcast %125 : vector<1x32xf32> to vector<144x32xf32>
    %145 = arith.addf %143, %144 : vector<144x32xf32>
    %c0_54 = arith.constant 0 : index
    %c0_55 = arith.constant 0 : index
    %c0_56 = arith.constant 0 : index
    %146 = vector.load %arg11[%c0_54, %c0_55, %c0_56] : memref<1x32x128xf32, #tpu.memory_space<vmem>>, vector<1x32x128xf32>
    %147 = vector.shape_cast %146 : vector<1x32x128xf32> to vector<32x128xf32>
    %cst_57 = arith.constant dense<0.000000e+00> : vector<144x128xf32>
    %148 = tpu.matmul %145, %147, %cst_57 {dimension_numbers = #tpu.dot_dimension_numbers<[1], [0], [0], [1], [0, 0, 1, 1], [], []>} : vector<144x32xf32>, vector<32x128xf32>, vector<144x128xf32> -> vector<144x128xf32>
    %c0_58 = arith.constant 0 : index
    %c0_59 = arith.constant 0 : index
    %c0_60 = arith.constant 0 : index
    %149 = vector.load %arg12[%c0_58, %c0_59, %c0_60] : memref<1x1x128xf32, #tpu.memory_space<vmem>>, vector<1x1x128xf32>
    %150 = vector.shape_cast %149 : vector<1x1x128xf32> to vector<1x128xf32>
    %151 = vector.broadcast %150 : vector<1x128xf32> to vector<144x128xf32>
    %152 = arith.addf %148, %151 : vector<144x128xf32>
    %cst_61 = arith.constant 0.000000e+00 : f32
    %153 = vector.broadcast %cst_61 : f32 to vector<144x128xf32>
    %154 = arith.maximumf %152, %153 : vector<144x128xf32>
    %c0_62 = arith.constant 0 : index
    %c0_63 = arith.constant 0 : index
    %c0_64 = arith.constant 0 : index
    %155 = vector.load %arg13[%c0_62, %c0_63, %c0_64] : memref<1x128x32xf32, #tpu.memory_space<vmem>>, vector<1x128x32xf32>
    %156 = vector.shape_cast %155 : vector<1x128x32xf32> to vector<128x32xf32>
    %cst_65 = arith.constant dense<0.000000e+00> : vector<144x32xf32>
    %157 = tpu.matmul %154, %156, %cst_65 {dimension_numbers = #tpu.dot_dimension_numbers<[1], [0], [0], [1], [0, 0, 1, 1], [], []>} : vector<144x128xf32>, vector<128x32xf32>, vector<144x32xf32> -> vector<144x32xf32>
    %158 = arith.addf %121, %157 : vector<144x32xf32>
    %c0_66 = arith.constant 0 : index
    %c0_67 = arith.constant 0 : index
    %c0_68 = arith.constant 0 : index
    %159 = vector.load %arg14[%c0_66, %c0_67, %c0_68] : memref<1x1x32xf32, #tpu.memory_space<vmem>>, vector<1x1x32xf32>
    %160 = vector.shape_cast %159 : vector<1x1x32xf32> to vector<1x32xf32>
    %161 = vector.broadcast %160 : vector<1x32xf32> to vector<144x32xf32>
    %162 = arith.addf %158, %161 : vector<144x32xf32>
    %c0_69 = arith.constant 0 : index
    %c0_70 = arith.constant 0 : index
    %163 = vector.load %arg20[%c0_69, %c0_70] : memref<144x32xf32, #tpu.memory_space<vmem>>, vector<144x32xf32>
    tpu.vector_store %arg20[%c0_69, %c0_70], %162 {strides = array<i32>} : memref<144x32xf32, #tpu.memory_space<vmem>>, vector<144x32xf32>,
    %c1_i32 = arith.constant 1 : i32
    %164 = arith.cmpi eq, %arg1, %c1_i32 : i32
    %165 = arith.extui %164 : i1 to i32
    %c0_i32_71 = arith.constant 0 : i32
    %166 = arith.cmpi ne, %165, %c0_i32_71 : i32
    scf.if %166 {
      %c0_72 = arith.constant 0 : index
      %c0_73 = arith.constant 0 : index
      %167 = vector.load %arg15[%c0_72, %c0_73] : memref<1x32xf32, #tpu.memory_space<vmem>>, vector<1x32xf32>
      %c0_74 = arith.constant 0 : index
      %c0_75 = arith.constant 0 : index
      %168 = vector.load %arg16[%c0_74, %c0_75] : memref<1x32xf32, #tpu.memory_space<vmem>>, vector<1x32xf32>
      %cst_76 = arith.constant dense<0.000000e+00> : vector<144xf32>
      %169 = vector.multi_reduction <add>, %162, %cst_76 [1] : vector<144x32xf32> to vector<144xf32>
      %170 = vector.shape_cast %169 : vector<144xf32> to vector<144x1xf32>
      %cst_77 = arith.constant 3.200000e+01 : f32
      %171 = vector.broadcast %cst_77 : f32 to vector<144x1xf32>
      %172 = arith.divf %170, %171 : vector<144x1xf32>
      %173 = vector.broadcast %172 : vector<144x1xf32> to vector<144x32xf32>
      %174 = arith.subf %162, %173 : vector<144x32xf32>
      %175 = arith.mulf %174, %174 : vector<144x32xf32>
      %cst_78 = arith.constant dense<0.000000e+00> : vector<144xf32>
      %176 = vector.multi_reduction <add>, %175, %cst_78 [1] : vector<144x32xf32> to vector<144xf32>
      %177 = vector.shape_cast %176 : vector<144xf32> to vector<144x1xf32>
      %cst_79 = arith.constant 3.200000e+01 : f32
      %178 = vector.broadcast %cst_79 : f32 to vector<144x1xf32>
      %179 = arith.divf %177, %178 : vector<144x1xf32>
      %cst_80 = arith.constant 9.99999974E-6 : f32
      %180 = vector.broadcast %cst_80 : f32 to vector<144x1xf32>
      %181 = arith.addf %179, %180 : vector<144x1xf32>
      %182 = math.rsqrt %181 : vector<144x1xf32>
      %183 = vector.broadcast %182 : vector<144x1xf32> to vector<144x32xf32>
      %184 = arith.mulf %174, %183 : vector<144x32xf32>
      %185 = vector.broadcast %167 : vector<1x32xf32> to vector<144x32xf32>
      %186 = arith.mulf %184, %185 : vector<144x32xf32>
      %187 = vector.broadcast %168 : vector<1x32xf32> to vector<144x32xf32>
      %188 = arith.addf %186, %187 : vector<144x32xf32>
      %189 = vector.shape_cast %188 : vector<144x32xf32> to vector<2x72x32xf32>
      %c0_81 = arith.constant 0 : index
      %c0_82 = arith.constant 0 : index
      %190 = vector.load %arg17[%c0_81, %c0_82] : memref<72x32xf32, #tpu.memory_space<vmem>>, vector<72x32xf32>
      %191 = vector.shape_cast %190 : vector<72x32xf32> to vector<1x72x32xf32>
      %192 = vector.broadcast %191 : vector<1x72x32xf32> to vector<2x72x32xf32>
      %193 = arith.mulf %189, %192 : vector<2x72x32xf32>
      %cst_83 = arith.constant dense<0.000000e+00> : vector<2x72xf32>
      %194 = vector.multi_reduction <add>, %193, %cst_83 [2] : vector<2x72x32xf32> to vector<2x72xf32>
      %cst_84 = arith.constant dense<0.000000e+00> : vector<2xf32>
      %195 = vector.multi_reduction <add>, %194, %cst_84 [1] : vector<2x72xf32> to vector<2xf32>
      %196 = vector.shape_cast %195 : vector<2xf32> to vector<2x1xf32>
      %c0_85 = arith.constant 0 : index
      %c0_86 = arith.constant 0 : index
      %197 = vector.load %arg18[%c0_85, %c0_86] : memref<1x1xf32, #tpu.memory_space<vmem>>, vector<1x1xf32>
      %198 = vector.broadcast %197 : vector<1x1xf32> to vector<2x1xf32>
      %199 = arith.addf %196, %198 : vector<2x1xf32>
      %cst_87 = arith.constant 0.000000e+00 : f32
      %200 = vector.broadcast %cst_87 : f32 to vector<2x1xf32>
      %201 = arith.subf %200, %199 : vector<2x1xf32>
      %202 = math.exp %201 : vector<2x1xf32>
      %cst_88 = arith.constant 1.000000e+00 : f32
      %203 = vector.broadcast %cst_88 : f32 to vector<2x1xf32>
      %204 = arith.addf %203, %202 : vector<2x1xf32>
      %cst_89 = arith.constant 1.000000e+00 : f32
      %205 = vector.broadcast %cst_89 : f32 to vector<2x1xf32>
      %206 = arith.divf %205, %204 : vector<2x1xf32>
      %207 = vector.shape_cast %206 : vector<2x1xf32> to vector<1x1x2xf32>
      %c0_90 = arith.constant 0 : index
      %c0_91 = arith.constant 0 : index
      %c0_92 = arith.constant 0 : index
      %208 = vector.load %arg19[%c0_90, %c0_91, %c0_92] : memref<1x1x2xf32, #tpu.memory_space<vmem>>, vector<1x1x2xf32>
      tpu.vector_store %arg19[%c0_90, %c0_91, %c0_92], %207 {strides = array<i32>} : memref<1x1x2xf32, #tpu.memory_space<vmem>>, vector<1x1x2xf32>,
    } else {
    }
    return
  }
  func.func @transform_0(%arg0: i32, %arg1: i32) -> (i32, i32, i32) {
    %c0_i32 = arith.constant 0 : i32
    %c0_i32_0 = arith.constant 0 : i32
    %c0_i32_1 = arith.constant 0 : i32
    return %arg0, %c0_i32, %c0_i32_0 : i32, i32, i32
  }
  func.func @transform_1(%arg0: i32, %arg1: i32) -> (i32, i32, i32) {
    %c0_i32 = arith.constant 0 : i32
    %c0_i32_0 = arith.constant 0 : i32
    %c0_i32_1 = arith.constant 0 : i32
    return %arg1, %c0_i32, %c0_i32_0 : i32, i32, i32
  }
  func.func @transform_2(%arg0: i32, %arg1: i32) -> (i32, i32, i32) {
    %c0_i32 = arith.constant 0 : i32
    %c0_i32_0 = arith.constant 0 : i32
    %c0_i32_1 = arith.constant 0 : i32
    return %arg1, %c0_i32, %c0_i32_0 : i32, i32, i32
  }
  func.func @transform_3(%arg0: i32, %arg1: i32) -> (i32, i32, i32) {
    %c0_i32 = arith.constant 0 : i32
    %c0_i32_0 = arith.constant 0 : i32
    %c0_i32_1 = arith.constant 0 : i32
    return %arg1, %c0_i32, %c0_i32_0 : i32, i32, i32
  }
  func.func @transform_4(%arg0: i32, %arg1: i32) -> (i32, i32, i32) {
    %c0_i32 = arith.constant 0 : i32
    %c0_i32_0 = arith.constant 0 : i32
    %c0_i32_1 = arith.constant 0 : i32
    return %arg1, %c0_i32, %c0_i32_0 : i32, i32, i32
  }
  func.func @transform_5(%arg0: i32, %arg1: i32) -> (i32, i32, i32) {
    %c0_i32 = arith.constant 0 : i32
    %c0_i32_0 = arith.constant 0 : i32
    %c0_i32_1 = arith.constant 0 : i32
    return %arg1, %c0_i32, %c0_i32_0 : i32, i32, i32
  }
  func.func @transform_6(%arg0: i32, %arg1: i32) -> (i32, i32, i32) {
    %c0_i32 = arith.constant 0 : i32
    %c0_i32_0 = arith.constant 0 : i32
    %c0_i32_1 = arith.constant 0 : i32
    return %arg1, %c0_i32, %c0_i32_0 : i32, i32, i32
  }
  func.func @transform_7(%arg0: i32, %arg1: i32) -> (i32, i32, i32) {
    %c0_i32 = arith.constant 0 : i32
    %c0_i32_0 = arith.constant 0 : i32
    %c0_i32_1 = arith.constant 0 : i32
    return %arg1, %c0_i32, %c0_i32_0 : i32, i32, i32
  }
  func.func @transform_8(%arg0: i32, %arg1: i32) -> (i32, i32, i32) {
    %c0_i32 = arith.constant 0 : i32
    %c0_i32_0 = arith.constant 0 : i32
    %c0_i32_1 = arith.constant 0 : i32
    return %arg1, %c0_i32, %c0_i32_0 : i32, i32, i32
  }
  func.func @transform_9(%arg0: i32, %arg1: i32) -> (i32, i32, i32) {
    %c0_i32 = arith.constant 0 : i32
    %c0_i32_0 = arith.constant 0 : i32
    %c0_i32_1 = arith.constant 0 : i32
    return %arg1, %c0_i32, %c0_i32_0 : i32, i32, i32
  }
  func.func @transform_10(%arg0: i32, %arg1: i32) -> (i32, i32, i32) {
    %c0_i32 = arith.constant 0 : i32
    %c0_i32_0 = arith.constant 0 : i32
    %c0_i32_1 = arith.constant 0 : i32
    return %arg1, %c0_i32, %c0_i32_0 : i32, i32, i32
  }
  func.func @transform_11(%arg0: i32, %arg1: i32) -> (i32, i32, i32) {
    %c0_i32 = arith.constant 0 : i32
    %c0_i32_0 = arith.constant 0 : i32
    %c0_i32_1 = arith.constant 0 : i32
    return %arg1, %c0_i32, %c0_i32_0 : i32, i32, i32
  }
  func.func @transform_12(%arg0: i32, %arg1: i32) -> (i32, i32, i32) {
    %c0_i32 = arith.constant 0 : i32
    %c0_i32_0 = arith.constant 0 : i32
    %c0_i32_1 = arith.constant 0 : i32
    return %arg1, %c0_i32, %c0_i32_0 : i32, i32, i32
  }
  func.func @transform_13(%arg0: i32, %arg1: i32) -> (i32, i32) {
    %c0_i32 = arith.constant 0 : i32
    %c0_i32_0 = arith.constant 0 : i32
    %c0_i32_1 = arith.constant 0 : i32
    return %c0_i32, %c0_i32_0 : i32, i32
  }
  func.func @transform_14(%arg0: i32, %arg1: i32) -> (i32, i32) {
    %c0_i32 = arith.constant 0 : i32
    %c0_i32_0 = arith.constant 0 : i32
    %c0_i32_1 = arith.constant 0 : i32
    return %c0_i32, %c0_i32_0 : i32, i32
  }
  func.func @transform_15(%arg0: i32, %arg1: i32) -> (i32, i32) {
    %c0_i32 = arith.constant 0 : i32
    %c0_i32_0 = arith.constant 0 : i32
    %c0_i32_1 = arith.constant 0 : i32
    return %c0_i32, %c0_i32_0 : i32, i32
  }
  func.func @transform_16(%arg0: i32, %arg1: i32) -> (i32, i32) {
    %c0_i32 = arith.constant 0 : i32
    %c0_i32_0 = arith.constant 0 : i32
    %c0_i32_1 = arith.constant 0 : i32
    return %c0_i32, %c0_i32_0 : i32, i32
  }
  func.func @transform_17(%arg0: i32, %arg1: i32) -> (i32, i32, i32) {
    %c0_i32 = arith.constant 0 : i32
    %c0_i32_0 = arith.constant 0 : i32
    %c0_i32_1 = arith.constant 0 : i32
    return %arg0, %c0_i32, %c0_i32_0 : i32, i32, i32
  }
}

</mosaic_0001>

<llo_original>
// kernel: tpu_custom_call.1
$region0: #{tpu_custom_call.1}
  #allocation0 [shape = 'u32[]', space=smem, size = 0x4, offset = 0x4, fixed_abs, tag = 'smem constant byte address 0x4 - core index']
  #allocation1 [shape = 'u32[144,128]{1,0:T(1,128)}', space=vmem, size = 0x12000, scoped, tag = 'internal scratch']
  #allocation2 [shape = 'f32[144,32]{1,0:T(8,128)}', space=vmem, size = 0x12000, scoped, tag = 'scratch operand']
  #allocation3 [shape = 'f32[1,1]{1,0:T(1,128)S(1)}', space=vmem, size = 0x200, scoped, tag = 'scoped memory for tpu_custom_call.1']
  %s0 = inlined_call_operand.vmem [shape: f32[2,72,32], index: 0, kind: input, shape index: {}]
  %s1 = inlined_call_operand.vmem [shape: f32[2,1,32], index: 1, kind: input, shape index: {}]
  %s2 = inlined_call_operand.vmem [shape: f32[2,1,32], index: 2, kind: input, shape index: {}]
  %s3 = inlined_call_operand.vmem [shape: f32[2,32,96], index: 3, kind: input, shape index: {}]
  %s4 = inlined_call_operand.vmem [shape: f32[2,1,96], index: 4, kind: input, shape index: {}]
  %s5 = inlined_call_operand.vmem [shape: f32[2,32,32], index: 5, kind: input, shape index: {}]
  %s6 = inlined_call_operand.vmem [shape: f32[2,1,32], index: 6, kind: input, shape index: {}]
  %s7 = inlined_call_operand.vmem [shape: f32[2,1,32], index: 7, kind: input, shape index: {}]
  %s8 = inlined_call_operand.vmem [shape: f32[2,1,32], index: 8, kind: input, shape index: {}]
  %s9 = inlined_call_operand.vmem [shape: f32[2,32,128], index: 9, kind: input, shape index: {}]
  %s10 = inlined_call_operand.vmem [shape: f32[2,1,128], index: 10, kind: input, shape index: {}]
  %s11 = inlined_call_operand.vmem [shape: f32[2,128,32], index: 11, kind: input, shape index: {}]
  %s12 = inlined_call_operand.vmem [shape: f32[2,1,32], index: 12, kind: input, shape index: {}]
  %s13 = inlined_call_operand.vmem [shape: f32[1,32], index: 13, kind: input, shape index: {}]
  %s14 = inlined_call_operand.vmem [shape: f32[1,32], index: 14, kind: input, shape index: {}]
  %s15 = inlined_call_operand.vmem [shape: f32[72,32], index: 15, kind: input, shape index: {}]
  %s16 = inlined_call_operand.<no memory space> [shape: f32[1,1], index: 16, kind: input, shape index: {}]
  %s17 = inlined_call_operand.hbm [shape: f32[1,1,2], index: 17, kind: output, shape index: {}]
  %s18 = sld [smem:[#allocation0]]
  $region109: #{tpu_custom_call.1} parent=0
    _
  %s20 = ssub.s32 1, %s18
  %s21 = scalar_select 0, %s20, %s18
  %v22 = vstv %s16
  %23 = vst [vmem:[#allocation3] sm:$0x1] %v22
  $region1: #{tpu_custom_call.1} parent=0
    #allocation4 [shape = 'u8[512]{0}', space=vmem, size = 0x400, scoped, tag = 'output window, operand 0, single buffered']
    #allocation5 [shape = 's32[2]{0}', space=sflag, size = 0x8, scoped, tag = 'scoped memory for tpu_custom_call.1']
    %24 = vsyncpa [#allocation5], 0
    loop: start=0, step=1, limit=4
    $region2: #{tpu_custom_call.1} parent=1 // loop_pre_header
      _
    $region3: #{tpu_custom_call.1} parent=1 // loop_header
      %s26 = sphi 0, %s30
      %p27 = scmp.ge.s32.totalorder %s26, 4
      %s33 = sphi 0, %s45
      %s34 = sphi 0, %s41
      %s35 = sphi 0, %s33
      %s36 = sphi 0, %s34
      %s37 = sphi 0, %s35
      %s38 = sphi 0, %s36
      %s48 = sphi 0, %s50
      %s51 = sphi 0, %s48
      %s52 = sphi 0, %s51
      %s68 = sphi 0, %s52
      %s74 = sphi 0, %s76
      %s77 = sphi 0, %s74
      %s78 = sphi 0, %s77
      %s94 = sphi 0, %s78
      %s100 = sphi 0, %s102
      %s103 = sphi 0, %s100
      %s104 = sphi 0, %s103
      %s120 = sphi 0, %s104
      %s126 = sphi 0, %s128
      %s129 = sphi 0, %s126
      %s130 = sphi 0, %s129
      %s146 = sphi 0, %s130
      %s152 = sphi 0, %s154
      %s155 = sphi 0, %s152
      %s156 = sphi 0, %s155
      %s172 = sphi 0, %s156
      %s178 = sphi 0, %s180
      %s181 = sphi 0, %s178
      %s182 = sphi 0, %s181
      %s198 = sphi 0, %s182
      %s204 = sphi 0, %s206
      %s207 = sphi 0, %s204
      %s208 = sphi 0, %s207
      %s224 = sphi 0, %s208
      %s230 = sphi 0, %s232
      %s233 = sphi 0, %s230
      %s234 = sphi 0, %s233
      %s250 = sphi 0, %s234
      %s256 = sphi 0, %s258
      %s259 = sphi 0, %s256
      %s260 = sphi 0, %s259
      %s276 = sphi 0, %s260
      %s282 = sphi 0, %s284
      %s285 = sphi 0, %s282
      %s286 = sphi 0, %s285
      %s302 = sphi 0, %s286
      %s308 = sphi 0, %s310
      %s311 = sphi 0, %s308
      %s312 = sphi 0, %s311
      %s328 = sphi 0, %s312
      %s334 = sphi 0, %s336
      %s337 = sphi 0, %s334
      %s338 = sphi 0, %s337
      %s354 = sphi 0, %s338
      %s360 = sphi 0, %s362
      %s363 = sphi 0, %s360
      %s364 = sphi 0, %s363
      %s380 = sphi 0, %s364
      %s384 = sphi 0, %s384
      %s386 = sphi 0, %s384
      %s387 = sphi 0, %s386
      %s401 = sphi 0, %s387
      %s405 = sphi 0, %s405
      %s407 = sphi 0, %s405
      %s408 = sphi 0, %s407
      %s422 = sphi 0, %s408
      %s426 = sphi 0, %s426
      %s428 = sphi 0, %s426
      %s429 = sphi 0, %s428
      %s443 = sphi 0, %s429
      %s447 = sphi 0, %s447
      %s449 = sphi 0, %s447
      %s450 = sphi 0, %s449
      %s464 = sphi 0, %s450
      %s470 = sphi 0, %s472
      %s473 = sphi 0, %s470
      %s474 = sphi 0, %s473
      %s490 = sphi 0, %s474
    $region4: #{tpu_custom_call.1} parent=1 // loop_header_branch
      %29 = sbr.rel (%p27) target = $region8
    $region5: #{tpu_custom_call.1} parent=1 // loop_body
      %s31 = ssub.s32 %s26, 1
      %s32 = ssub.s32 %s26, 2
      %s39 = sadd.s32 1, %s34
      %p40 = scmp.ge.s32.totalorder %s39, 2
      %s41 = scalar_select %p40, 0, %s39
      %s42 = sadd.s32 1, %s33
      %s43 = scalar_select %p40, %s42, %s33
      %p44 = scmp.ge.s32.totalorder %s43, 1
      %s45 = scalar_select %p44, 0, %s43
      %s46 = ssub.s32 %s33, %s45
      %p47 = scmp.eq.s32.totalorder %s46, 0
      %s49 = sadd.s32 %s48, 1
      %s50 = scalar_select %p47, %s48, %s49
      %p53 = pneg %p47
      %p54 = scmp.eq.s32.totalorder %s26, 1
      %p55 = por %p53, %p54
      %p56 = scmp.ne.s32.totalorder %s48, %s51
      %p57 = scmp.eq.s32.totalorder %s26, 0
      %p58 = por %p56, %p57
      %p59 = scmp.ne.s32.totalorder %s48, %s51
      %p60 = scmp.eq.s32.totalorder %s31, 1
      %p61 = por %p59, %p60
      %p62 = scmp.ne.s32.totalorder %s51, %s52
      %p63 = scmp.eq.s32.totalorder %s31, 0
      %p64 = por %p62, %p63
      %p65 = scmp.ne.s32.totalorder %s51, %s52
      %p66 = scmp.eq.s32.totalorder %s32, 1
      %p67 = por %p65, %p66
      %p69 = scmp.ne.s32.totalorder %s52, %s68
      %p70 = scmp.eq.s32.totalorder %s32, 0
      %p71 = por %p69, %p70
      %s72 = ssub.s32 %s34, %s41
      %p73 = scmp.eq.s32.totalorder %s72, 0
      %s75 = sadd.s32 %s74, 1
      %s76 = scalar_select %p73, %s74, %s75
      %p79 = pneg %p73
      %p80 = scmp.eq.s32.totalorder %s26, 1
      %p81 = por %p79, %p80
      %p82 = scmp.ne.s32.totalorder %s74, %s77
      %p83 = scmp.eq.s32.totalorder %s26, 0
      %p84 = por %p82, %p83
      %p85 = scmp.ne.s32.totalorder %s74, %s77
      %p86 = scmp.eq.s32.totalorder %s31, 1
      %p87 = por %p85, %p86
      %p88 = scmp.ne.s32.totalorder %s77, %s78
      %p89 = scmp.eq.s32.totalorder %s31, 0
      %p90 = por %p88, %p89
      %p91 = scmp.ne.s32.totalorder %s77, %s78
      %p92 = scmp.eq.s32.totalorder %s32, 1
      %p93 = por %p91, %p92
      %p95 = scmp.ne.s32.totalorder %s78, %s94
      %p96 = scmp.eq.s32.totalorder %s32, 0
      %p97 = por %p95, %p96
      %s98 = ssub.s32 %s34, %s41
      %p99 = scmp.eq.s32.totalorder %s98, 0
      %s101 = sadd.s32 %s100, 1
      %s102 = scalar_select %p99, %s100, %s101
      %p105 = pneg %p99
      %p106 = scmp.eq.s32.totalorder %s26, 1
      %p107 = por %p105, %p106
      %p108 = scmp.ne.s32.totalorder %s100, %s103
      %p109 = scmp.eq.s32.totalorder %s26, 0
      %p110 = por %p108, %p109
      %p111 = scmp.ne.s32.totalorder %s100, %s103
      %p112 = scmp.eq.s32.totalorder %s31, 1
      %p113 = por %p111, %p112
      %p114 = scmp.ne.s32.totalorder %s103, %s104
      %p115 = scmp.eq.s32.totalorder %s31, 0
      %p116 = por %p114, %p115
      %p117 = scmp.ne.s32.totalorder %s103, %s104
      %p118 = scmp.eq.s32.totalorder %s32, 1
      %p119 = por %p117, %p118
      %p121 = scmp.ne.s32.totalorder %s104, %s120
      %p122 = scmp.eq.s32.totalorder %s32, 0
      %p123 = por %p121, %p122
      %s124 = ssub.s32 %s34, %s41
      %p125 = scmp.eq.s32.totalorder %s124, 0
      %s127 = sadd.s32 %s126, 1
      %s128 = scalar_select %p125, %s126, %s127
      %p131 = pneg %p125
      %p132 = scmp.eq.s32.totalorder %s26, 1
      %p133 = por %p131, %p132
      %p134 = scmp.ne.s32.totalorder %s126, %s129
      %p135 = scmp.eq.s32.totalorder %s26, 0
      %p136 = por %p134, %p135
      %p137 = scmp.ne.s32.totalorder %s126, %s129
      %p138 = scmp.eq.s32.totalorder %s31, 1
      %p139 = por %p137, %p138
      %p140 = scmp.ne.s32.totalorder %s129, %s130
      %p141 = scmp.eq.s32.totalorder %s31, 0
      %p142 = por %p140, %p141
      %p143 = scmp.ne.s32.totalorder %s129, %s130
      %p144 = scmp.eq.s32.totalorder %s32, 1
      %p145 = por %p143, %p144
      %p147 = scmp.ne.s32.totalorder %s130, %s146
      %p148 = scmp.eq.s32.totalorder %s32, 0
      %p149 = por %p147, %p148
      %s150 = ssub.s32 %s34, %s41
      %p151 = scmp.eq.s32.totalorder %s150, 0
      %s153 = sadd.s32 %s152, 1
      %s154 = scalar_select %p151, %s152, %s153
      %p157 = pneg %p151
      %p158 = scmp.eq.s32.totalorder %s26, 1
      %p159 = por %p157, %p158
      %p160 = scmp.ne.s32.totalorder %s152, %s155
      %p161 = scmp.eq.s32.totalorder %s26, 0
      %p162 = por %p160, %p161
      %p163 = scmp.ne.s32.totalorder %s152, %s155
      %p164 = scmp.eq.s32.totalorder %s31, 1
      %p165 = por %p163, %p164
      %p166 = scmp.ne.s32.totalorder %s155, %s156
      %p167 = scmp.eq.s32.totalorder %s31, 0
      %p168 = por %p166, %p167
      %p169 = scmp.ne.s32.totalorder %s155, %s156
      %p170 = scmp.eq.s32.totalorder %s32, 1
      %p171 = por %p169, %p170
      %p173 = scmp.ne.s32.totalorder %s156, %s172
      %p174 = scmp.eq.s32.totalorder %s32, 0
      %p175 = por %p173, %p174
      %s176 = ssub.s32 %s34, %s41
      %p177 = scmp.eq.s32.totalorder %s176, 0
      %s179 = sadd.s32 %s178, 1
      %s180 = scalar_select %p177, %s178, %s179
      %p183 = pneg %p177
      %p184 = scmp.eq.s32.totalorder %s26, 1
      %p185 = por %p183, %p184
      %p186 = scmp.ne.s32.totalorder %s178, %s181
      %p187 = scmp.eq.s32.totalorder %s26, 0
      %p188 = por %p186, %p187
      %p189 = scmp.ne.s32.totalorder %s178, %s181
      %p190 = scmp.eq.s32.totalorder %s31, 1
      %p191 = por %p189, %p190
      %p192 = scmp.ne.s32.totalorder %s181, %s182
      %p193 = scmp.eq.s32.totalorder %s31, 0
      %p194 = por %p192, %p193
      %p195 = scmp.ne.s32.totalorder %s181, %s182
      %p196 = scmp.eq.s32.totalorder %s32, 1
      %p197 = por %p195, %p196
      %p199 = scmp.ne.s32.totalorder %s182, %s198
      %p200 = scmp.eq.s32.totalorder %s32, 0
      %p201 = por %p199, %p200
      %s202 = ssub.s32 %s34, %s41
      %p203 = scmp.eq.s32.totalorder %s202, 0
      %s205 = sadd.s32 %s204, 1
      %s206 = scalar_select %p203, %s204, %s205
      %p209 = pneg %p203
      %p210 = scmp.eq.s32.totalorder %s26, 1
      %p211 = por %p209, %p210
      %p212 = scmp.ne.s32.totalorder %s204, %s207
      %p213 = scmp.eq.s32.totalorder %s26, 0
      %p214 = por %p212, %p213
      %p215 = scmp.ne.s32.totalorder %s204, %s207
      %p216 = scmp.eq.s32.totalorder %s31, 1
      %p217 = por %p215, %p216
      %p218 = scmp.ne.s32.totalorder %s207, %s208
      %p219 = scmp.eq.s32.totalorder %s31, 0
      %p220 = por %p218, %p219
      %p221 = scmp.ne.s32.totalorder %s207, %s208
      %p222 = scmp.eq.s32.totalorder %s32, 1
      %p223 = por %p221, %p222
      %p225 = scmp.ne.s32.totalorder %s208, %s224
      %p226 = scmp.eq.s32.totalorder %s32, 0
      %p227 = por %p225, %p226
      %s228 = ssub.s32 %s34, %s41
      %p229 = scmp.eq.s32.totalorder %s228, 0
      %s231 = sadd.s32 %s230, 1
      %s232 = scalar_select %p229, %s230, %s231
      %p235 = pneg %p229
      %p236 = scmp.eq.s32.totalorder %s26, 1
      %p237 = por %p235, %p236
      %p238 = scmp.ne.s32.totalorder %s230, %s233
      %p239 = scmp.eq.s32.totalorder %s26, 0
      %p240 = por %p238, %p239
      %p241 = scmp.ne.s32.totalorder %s230, %s233
      %p242 = scmp.eq.s32.totalorder %s31, 1
      %p243 = por %p241, %p242
      %p244 = scmp.ne.s32.totalorder %s233, %s234
      %p245 = scmp.eq.s32.totalorder %s31, 0
      %p246 = por %p244, %p245
      %p247 = scmp.ne.s32.totalorder %s233, %s234
      %p248 = scmp.eq.s32.totalorder %s32, 1
      %p249 = por %p247, %p248
      %p251 = scmp.ne.s32.totalorder %s234, %s250
      %p252 = scmp.eq.s32.totalorder %s32, 0
      %p253 = por %p251, %p252
      %s254 = ssub.s32 %s34, %s41
      %p255 = scmp.eq.s32.totalorder %s254, 0
      %s257 = sadd.s32 %s256, 1
      %s258 = scalar_select %p255, %s256, %s257
      %p261 = pneg %p255
      %p262 = scmp.eq.s32.totalorder %s26, 1
      %p263 = por %p261, %p262
      %p264 = scmp.ne.s32.totalorder %s256, %s259
      %p265 = scmp.eq.s32.totalorder %s26, 0
      %p266 = por %p264, %p265
      %p267 = scmp.ne.s32.totalorder %s256, %s259
      %p268 = scmp.eq.s32.totalorder %s31, 1
      %p269 = por %p267, %p268
      %p270 = scmp.ne.s32.totalorder %s259, %s260
      %p271 = scmp.eq.s32.totalorder %s31, 0
      %p272 = por %p270, %p271
      %p273 = scmp.ne.s32.totalorder %s259, %s260
      %p274 = scmp.eq.s32.totalorder %s32, 1
      %p275 = por %p273, %p274
      %p277 = scmp.ne.s32.totalorder %s260, %s276
      %p278 = scmp.eq.s32.totalorder %s32, 0
      %p279 = por %p277, %p278
      %s280 = ssub.s32 %s34, %s41
      %p281 = scmp.eq.s32.totalorder %s280, 0
      %s283 = sadd.s32 %s282, 1
      %s284 = scalar_select %p281, %s282, %s283
      %p287 = pneg %p281
      %p288 = scmp.eq.s32.totalorder %s26, 1
      %p289 = por %p287, %p288
      %p290 = scmp.ne.s32.totalorder %s282, %s285
      %p291 = scmp.eq.s32.totalorder %s26, 0
      %p292 = por %p290, %p291
      %p293 = scmp.ne.s32.totalorder %s282, %s285
      %p294 = scmp.eq.s32.totalorder %s31, 1
      %p295 = por %p293, %p294
      %p296 = scmp.ne.s32.totalorder %s285, %s286
      %p297 = scmp.eq.s32.totalorder %s31, 0
      %p298 = por %p296, %p297
      %p299 = scmp.ne.s32.totalorder %s285, %s286
      %p300 = scmp.eq.s32.totalorder %s32, 1
      %p301 = por %p299, %p300
      %p303 = scmp.ne.s32.totalorder %s286, %s302
      %p304 = scmp.eq.s32.totalorder %s32, 0
      %p305 = por %p303, %p304
      %s306 = ssub.s32 %s34, %s41
      %p307 = scmp.eq.s32.totalorder %s306, 0
      %s309 = sadd.s32 %s308, 1
      %s310 = scalar_select %p307, %s308, %s309
      %p313 = pneg %p307
      %p314 = scmp.eq.s32.totalorder %s26, 1
      %p315 = por %p313, %p314
      %p316 = scmp.ne.s32.totalorder %s308, %s311
      %p317 = scmp.eq.s32.totalorder %s26, 0
      %p318 = por %p316, %p317
      %p319 = scmp.ne.s32.totalorder %s308, %s311
      %p320 = scmp.eq.s32.totalorder %s31, 1
      %p321 = por %p319, %p320
      %p322 = scmp.ne.s32.totalorder %s311, %s312
      %p323 = scmp.eq.s32.totalorder %s31, 0
      %p324 = por %p322, %p323
      %p325 = scmp.ne.s32.totalorder %s311, %s312
      %p326 = scmp.eq.s32.totalorder %s32, 1
      %p327 = por %p325, %p326
      %p329 = scmp.ne.s32.totalorder %s312, %s328
      %p330 = scmp.eq.s32.totalorder %s32, 0
      %p331 = por %p329, %p330
      %s332 = ssub.s32 %s34, %s41
      %p333 = scmp.eq.s32.totalorder %s332, 0
      %s335 = sadd.s32 %s334, 1
      %s336 = scalar_select %p333, %s334, %s335
      %p339 = pneg %p333
      %p340 = scmp.eq.s32.totalorder %s26, 1
      %p341 = por %p339, %p340
      %p342 = scmp.ne.s32.totalorder %s334, %s337
      %p343 = scmp.eq.s32.totalorder %s26, 0
      %p344 = por %p342, %p343
      %p345 = scmp.ne.s32.totalorder %s334, %s337
      %p346 = scmp.eq.s32.totalorder %s31, 1
      %p347 = por %p345, %p346
      %p348 = scmp.ne.s32.totalorder %s337, %s338
      %p349 = scmp.eq.s32.totalorder %s31, 0
      %p350 = por %p348, %p349
      %p351 = scmp.ne.s32.totalorder %s337, %s338
      %p352 = scmp.eq.s32.totalorder %s32, 1
      %p353 = por %p351, %p352
      %p355 = scmp.ne.s32.totalorder %s338, %s354
      %p356 = scmp.eq.s32.totalorder %s32, 0
      %p357 = por %p355, %p356
      %s358 = ssub.s32 %s34, %s41
      %p359 = scmp.eq.s32.totalorder %s358, 0
      %s361 = sadd.s32 %s360, 1
      %s362 = scalar_select %p359, %s360, %s361
      %p365 = pneg %p359
      %p366 = scmp.eq.s32.totalorder %s26, 1
      %p367 = por %p365, %p366
      %p368 = scmp.ne.s32.totalorder %s360, %s363
      %p369 = scmp.eq.s32.totalorder %s26, 0
      %p370 = por %p368, %p369
      %p371 = scmp.ne.s32.totalorder %s360, %s363
      %p372 = scmp.eq.s32.totalorder %s31, 1
      %p373 = por %p371, %p372
      %p374 = scmp.ne.s32.totalorder %s363, %s364
      %p375 = scmp.eq.s32.totalorder %s31, 0
      %p376 = por %p374, %p375
      %p377 = scmp.ne.s32.totalorder %s363, %s364
      %p378 = scmp.eq.s32.totalorder %s32, 1
      %p379 = por %p377, %p378
      %p381 = scmp.ne.s32.totalorder %s364, %s380
      %p382 = scmp.eq.s32.totalorder %s32, 0
      %p383 = por %p381, %p382
      %s385 = sadd.s32 %s384, 1
      %p388 = scmp.eq.s32.totalorder %s26, 1
      %p389 = scmp.ne.s32.totalorder %s384, %s386
      %p390 = scmp.eq.s32.totalorder %s26, 0
      %p391 = por %p389, %p390
      %p392 = scmp.ne.s32.totalorder %s384, %s386
      %p393 = scmp.eq.s32.totalorder %s31, 1
      %p394 = por %p392, %p393
      %p395 = scmp.ne.s32.totalorder %s386, %s387
      %p396 = scmp.eq.s32.totalorder %s31, 0
      %p397 = por %p395, %p396
      %p398 = scmp.ne.s32.totalorder %s386, %s387
      %p399 = scmp.eq.s32.totalorder %s32, 1
      %p400 = por %p398, %p399
      %p402 = scmp.ne.s32.totalorder %s387, %s401
      %p403 = scmp.eq.s32.totalorder %s32, 0
      %p404 = por %p402, %p403
      %s406 = sadd.s32 %s405, 1
      %p409 = scmp.eq.s32.totalorder %s26, 1
      %p410 = scmp.ne.s32.totalorder %s405, %s407
      %p411 = scmp.eq.s32.totalorder %s26, 0
      %p412 = por %p410, %p411
      %p413 = scmp.ne.s32.totalorder %s405, %s407
      %p414 = scmp.eq.s32.totalorder %s31, 1
      %p415 = por %p413, %p414
      %p416 = scmp.ne.s32.totalorder %s407, %s408
      %p417 = scmp.eq.s32.totalorder %s31, 0
      %p418 = por %p416, %p417
      %p419 = scmp.ne.s32.totalorder %s407, %s408
      %p420 = scmp.eq.s32.totalorder %s32, 1
      %p421 = por %p419, %p420
      %p423 = scmp.ne.s32.totalorder %s408, %s422
      %p424 = scmp.eq.s32.totalorder %s32, 0
      %p425 = por %p423, %p424
      %s427 = sadd.s32 %s426, 1
      %p430 = scmp.eq.s32.totalorder %s26, 1
      %p431 = scmp.ne.s32.totalorder %s426, %s428
      %p432 = scmp.eq.s32.totalorder %s26, 0
      %p433 = por %p431, %p432
      %p434 = scmp.ne.s32.totalorder %s426, %s428
      %p435 = scmp.eq.s32.totalorder %s31, 1
      %p436 = por %p434, %p435
      %p437 = scmp.ne.s32.totalorder %s428, %s429
      %p438 = scmp.eq.s32.totalorder %s31, 0
      %p439 = por %p437, %p438
      %p440 = scmp.ne.s32.totalorder %s428, %s429
      %p441 = scmp.eq.s32.totalorder %s32, 1
      %p442 = por %p440, %p441
      %p444 = scmp.ne.s32.totalorder %s429, %s443
      %p445 = scmp.eq.s32.totalorder %s32, 0
      %p446 = por %p444, %p445
      %s448 = sadd.s32 %s447, 1
      %p451 = scmp.eq.s32.totalorder %s26, 1
      %p452 = scmp.ne.s32.totalorder %s447, %s449
      %p453 = scmp.eq.s32.totalorder %s26, 0
      %p454 = por %p452, %p453
      %p455 = scmp.ne.s32.totalorder %s447, %s449
      %p456 = scmp.eq.s32.totalorder %s31, 1
      %p457 = por %p455, %p456
      %p458 = scmp.ne.s32.totalorder %s449, %s450
      %p459 = scmp.eq.s32.totalorder %s31, 0
      %p460 = por %p458, %p459
      %p461 = scmp.ne.s32.totalorder %s449, %s450
      %p462 = scmp.eq.s32.totalorder %s32, 1
      %p463 = por %p461, %p462
      %p465 = scmp.ne.s32.totalorder %s450, %s464
      %p466 = scmp.eq.s32.totalorder %s32, 0
      %p467 = por %p465, %p466
      %s468 = ssub.s32 %s33, %s45
      %p469 = scmp.eq.s32.totalorder %s468, 0
      %s471 = sadd.s32 %s470, 1
      %s472 = scalar_select %p469, %s470, %s471
      %p475 = pneg %p469
      %p476 = scmp.eq.s32.totalorder %s26, 1
      %p477 = por %p475, %p476
      %p478 = scmp.ne.s32.totalorder %s470, %s473
      %p479 = scmp.eq.s32.totalorder %s26, 0
      %p480 = por %p478, %p479
      %p481 = scmp.ne.s32.totalorder %s470, %s473
      %p482 = scmp.eq.s32.totalorder %s31, 1
      %p483 = por %p481, %p482
      %p484 = scmp.ne.s32.totalorder %s473, %s474
      %p485 = scmp.eq.s32.totalorder %s31, 0
      %p486 = por %p484, %p485
      %p487 = scmp.ne.s32.totalorder %s473, %s474
      %p488 = scmp.eq.s32.totalorder %s32, 1
      %p489 = por %p487, %p488
      %p491 = scmp.ne.s32.totalorder %s474, %s490
      %p492 = scmp.eq.s32.totalorder %s32, 0
      %p493 = por %p491, %p492
      %p494 = scmp.le.s32.totalorder 1, %s26
      %p495 = scmp.lt.s32.totalorder %s26, 3
      %p496 = pnand %p494, %p495
      %p497 = pneg %p496
      // Predicated region
      $region9: #{tpu_custom_call.1} parent=5 // pred_check
        _
      $region10: #{tpu_custom_call.1} parent=5 // pred_check_branch
        %499 = sbr.rel (%p496) target = $region12
      $region11: #{tpu_custom_call.1} parent=5 // pred_region
        %s500 = ssub.s32 %s26, 1
        // Predicated region
        $region13: #{tpu_custom_call.1} parent=11 // pred_check
          %p501 = pneg %p64
        $region14: #{tpu_custom_call.1} parent=11 // pred_check_branch
          %503 = sbr.rel (%p501) target = $region16
        $region15: #{tpu_custom_call.1} parent=11 // pred_region
          %s504 = smul.u32 2, %s35
          %p505 = scmp.lt.s32.totalorder %s504, 1
          %s506 = scalar_select %p505, %s504, 1
          %s507 = smul.addr %s506, 9
          %s508 = smul.addr %s507, 8
          %s509 = scalar_lea.vmem %s0, %s508
          %s510 = smul.u32 2, %s35
        $region16: #{tpu_custom_call.1} parent=11 // pred_fallthru
          _
        // Predicated region
        $region17: #{tpu_custom_call.1} parent=11 // pred_check
          %p511 = pneg %p397
        $region18: #{tpu_custom_call.1} parent=11 // pred_check_branch
          %513 = sbr.rel (%p511) target = $region20
        $region19: #{tpu_custom_call.1} parent=11 // pred_region
          _
        $region20: #{tpu_custom_call.1} parent=11 // pred_fallthru
          _
        // Predicated region
        $region21: #{tpu_custom_call.1} parent=11 // pred_check
          %p514 = pneg %p418
        $region22: #{tpu_custom_call.1} parent=11 // pred_check_branch
          %516 = sbr.rel (%p514) target = $region24
        $region23: #{tpu_custom_call.1} parent=11 // pred_region
          _
        $region24: #{tpu_custom_call.1} parent=11 // pred_fallthru
          _
        // Predicated region
        $region25: #{tpu_custom_call.1} parent=11 // pred_check
          %p517 = pneg %p439
        $region26: #{tpu_custom_call.1} parent=11 // pred_check_branch
          %519 = sbr.rel (%p517) target = $region28
        $region27: #{tpu_custom_call.1} parent=11 // pred_region
          _
        $region28: #{tpu_custom_call.1} parent=11 // pred_fallthru
          _
        // Predicated region
        $region29: #{tpu_custom_call.1} parent=11 // pred_check
          %p520 = pneg %p460
        $region30: #{tpu_custom_call.1} parent=11 // pred_check_branch
          %522 = sbr.rel (%p520) target = $region32
        $region31: #{tpu_custom_call.1} parent=11 // pred_region
          _
        $region32: #{tpu_custom_call.1} parent=11 // pred_fallthru
          _
      $region12: #{tpu_custom_call.1} parent=5 // pred_fallthru
        _
      %p523 = scmp.lt.s32.totalorder %s26, 2
      // Predicated region
      $region33: #{tpu_custom_call.1} parent=5 // pred_check
        %p524 = pneg %p523
      $region34: #{tpu_custom_call.1} parent=5 // pred_check_branch
        %526 = sbr.rel (%p524) target = $region36
      $region35: #{tpu_custom_call.1} parent=5 // pred_region
        // Predicated region
        $region37: #{tpu_custom_call.1} parent=35 // pred_check
          %p527 = pneg %p84
        $region38: #{tpu_custom_call.1} parent=35 // pred_check_branch
          %529 = sbr.rel (%p527) target = $region40
        $region39: #{tpu_custom_call.1} parent=35 // pred_region
          %p530 = scmp.lt.s32.totalorder %s34, 1
          %s531 = scalar_select %p530, %s34, 1
          %s532 = scalar_lea.vmem %s1, %s531
        $region40: #{tpu_custom_call.1} parent=35 // pred_fallthru
          _
        // Predicated region
        $region41: #{tpu_custom_call.1} parent=35 // pred_check
          %p533 = pneg %p110
        $region42: #{tpu_custom_call.1} parent=35 // pred_check_branch
          %535 = sbr.rel (%p533) target = $region44
        $region43: #{tpu_custom_call.1} parent=35 // pred_region
          %p536 = scmp.lt.s32.totalorder %s34, 1
          %s537 = scalar_select %p536, %s34, 1
          %s538 = scalar_lea.vmem %s2, %s537
        $region44: #{tpu_custom_call.1} parent=35 // pred_fallthru
          _
        // Predicated region
        $region45: #{tpu_custom_call.1} parent=35 // pred_check
          %p539 = pneg %p136
        $region46: #{tpu_custom_call.1} parent=35 // pred_check_branch
          %541 = sbr.rel (%p539) target = $region48
        $region47: #{tpu_custom_call.1} parent=35 // pred_region
          %p542 = scmp.lt.s32.totalorder %s34, 1
          %s543 = scalar_select %p542, %s34, 1
          %s544 = smul.addr %s543, 4
          %s545 = smul.addr %s544, 8
          %s546 = scalar_lea.vmem %s3, %s545
        $region48: #{tpu_custom_call.1} parent=35 // pred_fallthru
          _
        // Predicated region
        $region49: #{tpu_custom_call.1} parent=35 // pred_check
          %p547 = pneg %p162
        $region50: #{tpu_custom_call.1} parent=35 // pred_check_branch
          %549 = sbr.rel (%p547) target = $region52
        $region51: #{tpu_custom_call.1} parent=35 // pred_region
          %p550 = scmp.lt.s32.totalorder %s34, 1
          %s551 = scalar_select %p550, %s34, 1
          %s552 = scalar_lea.vmem %s4, %s551
        $region52: #{tpu_custom_call.1} parent=35 // pred_fallthru
          _
        // Predicated region
        $region53: #{tpu_custom_call.1} parent=35 // pred_check
          %p553 = pneg %p188
        $region54: #{tpu_custom_call.1} parent=35 // pred_check_branch
          %555 = sbr.rel (%p553) target = $region56
        $region55: #{tpu_custom_call.1} parent=35 // pred_region
          %p556 = scmp.lt.s32.totalorder %s34, 1
          %s557 = scalar_select %p556, %s34, 1
          %s558 = smul.addr %s557, 4
          %s559 = smul.addr %s558, 8
          %s560 = scalar_lea.vmem %s5, %s559
        $region56: #{tpu_custom_call.1} parent=35 // pred_fallthru
          _
        // Predicated region
        $region57: #{tpu_custom_call.1} parent=35 // pred_check
          %p561 = pneg %p214
        $region58: #{tpu_custom_call.1} parent=35 // pred_check_branch
          %563 = sbr.rel (%p561) target = $region60
        $region59: #{tpu_custom_call.1} parent=35 // pred_region
          %p564 = scmp.lt.s32.totalorder %s34, 1
          %s565 = scalar_select %p564, %s34, 1
          %s566 = scalar_lea.vmem %s6, %s565
        $region60: #{tpu_custom_call.1} parent=35 // pred_fallthru
          _
        // Predicated region
        $region61: #{tpu_custom_call.1} parent=35 // pred_check
          %p567 = pneg %p240
        $region62: #{tpu_custom_call.1} parent=35 // pred_check_branch
          %569 = sbr.rel (%p567) target = $region64
        $region63: #{tpu_custom_call.1} parent=35 // pred_region
          %p570 = scmp.lt.s32.totalorder %s34, 1
          %s571 = scalar_select %p570, %s34, 1
          %s572 = scalar_lea.vmem %s7, %s571
        $region64: #{tpu_custom_call.1} parent=35 // pred_fallthru
          _
        // Predicated region
        $region65: #{tpu_custom_call.1} parent=35 // pred_check
          %p573 = pneg %p266
        $region66: #{tpu_custom_call.1} parent=35 // pred_check_branch
          %575 = sbr.rel (%p573) target = $region68
        $region67: #{tpu_custom_call.1} parent=35 // pred_region
          %p576 = scmp.lt.s32.totalorder %s34, 1
          %s577 = scalar_select %p576, %s34, 1
          %s578 = scalar_lea.vmem %s8, %s577
        $region68: #{tpu_custom_call.1} parent=35 // pred_fallthru
          _
        // Predicated region
        $region69: #{tpu_custom_call.1} parent=35 // pred_check
          %p579 = pneg %p292
        $region70: #{tpu_custom_call.1} parent=35 // pred_check_branch
          %581 = sbr.rel (%p579) target = $region72
        $region71: #{tpu_custom_call.1} parent=35 // pred_region
          %p582 = scmp.lt.s32.totalorder %s34, 1
          %s583 = scalar_select %p582, %s34, 1
          %s584 = smul.addr %s583, 4
          %s585 = smul.addr %s584, 8
          %s586 = scalar_lea.vmem %s9, %s585
        $region72: #{tpu_custom_call.1} parent=35 // pred_fallthru
          _
        // Predicated region
        $region73: #{tpu_custom_call.1} parent=35 // pred_check
          %p587 = pneg %p318
        $region74: #{tpu_custom_call.1} parent=35 // pred_check_branch
          %589 = sbr.rel (%p587) target = $region76
        $region75: #{tpu_custom_call.1} parent=35 // pred_region
          %p590 = scmp.lt.s32.totalorder %s34, 1
          %s591 = scalar_select %p590, %s34, 1
          %s592 = scalar_lea.vmem %s10, %s591
        $region76: #{tpu_custom_call.1} parent=35 // pred_fallthru
          _
        // Predicated region
        $region77: #{tpu_custom_call.1} parent=35 // pred_check
          %p593 = pneg %p344
        $region78: #{tpu_custom_call.1} parent=35 // pred_check_branch
          %595 = sbr.rel (%p593) target = $region80
        $region79: #{tpu_custom_call.1} parent=35 // pred_region
          %p596 = scmp.lt.s32.totalorder %s34, 1
          %s597 = scalar_select %p596, %s34, 1
          %s598 = smul.addr %s597, 16
          %s599 = smul.addr %s598, 8
          %s600 = scalar_lea.vmem %s11, %s599
        $region80: #{tpu_custom_call.1} parent=35 // pred_fallthru
          _
        // Predicated region
        $region81: #{tpu_custom_call.1} parent=35 // pred_check
          %p601 = pneg %p370
        $region82: #{tpu_custom_call.1} parent=35 // pred_check_branch
          %603 = sbr.rel (%p601) target = $region84
        $region83: #{tpu_custom_call.1} parent=35 // pred_region
          %p604 = scmp.lt.s32.totalorder %s34, 1
          %s605 = scalar_select %p604, %s34, 1
          %s606 = scalar_lea.vmem %s12, %s605
        $region84: #{tpu_custom_call.1} parent=35 // pred_fallthru
          _
      $region36: #{tpu_custom_call.1} parent=5 // pred_fallthru
        _
      %p607 = scmp.le.s32.totalorder 1, %s26
      %p608 = scmp.lt.s32.totalorder %s26, 3
      %p609 = pnand %p607, %p608
      %p610 = pneg %p609
      // Predicated region
      $region85: #{tpu_custom_call.1} parent=5 // pred_check
        _
      $region86: #{tpu_custom_call.1} parent=5 // pred_check_branch
        %612 = sbr.rel (%p609) target = $region88
      $region87: #{tpu_custom_call.1} parent=5 // pred_region
        %s613 = ssub.s32 %s26, 1
        %s614 = smul.u32 2, %s35
        %p615 = scmp.lt.s32.totalorder %s614, 1
        %s616 = scalar_select %p615, %s614, 1
        %s617 = smul.addr %s616, 9
        %s618 = smul.addr %s617, 8
        %s619 = scalar_lea.vmem %s0, %s618
        %p620 = pneg %p64
        %p621 = pneg %p61
        %p622 = scmp.lt.s32.totalorder %s36, 1
        %s623 = scalar_select %p622, %s36, 1
        %s624 = scalar_lea.vmem %s1, %s623
        %p625 = pneg %p90
        %p626 = pneg %p87
        %p627 = scmp.lt.s32.totalorder %s36, 1
        %s628 = scalar_select %p627, %s36, 1
        %s629 = scalar_lea.vmem %s2, %s628
        %p630 = pneg %p116
        %p631 = pneg %p113
        %p632 = scmp.lt.s32.totalorder %s36, 1
        %s633 = scalar_select %p632, %s36, 1
        %s634 = smul.addr %s633, 4
        %s635 = smul.addr %s634, 8
        %s636 = scalar_lea.vmem %s3, %s635
        %p637 = pneg %p142
        %p638 = pneg %p139
        %p639 = scmp.lt.s32.totalorder %s36, 1
        %s640 = scalar_select %p639, %s36, 1
        %s641 = scalar_lea.vmem %s4, %s640
        %p642 = pneg %p168
        %p643 = pneg %p165
        %p644 = scmp.lt.s32.totalorder %s36, 1
        %s645 = scalar_select %p644, %s36, 1
        %s646 = smul.addr %s645, 4
        %s647 = smul.addr %s646, 8
        %s648 = scalar_lea.vmem %s5, %s647
        %p649 = pneg %p194
        %p650 = pneg %p191
        %p651 = scmp.lt.s32.totalorder %s36, 1
        %s652 = scalar_select %p651, %s36, 1
        %s653 = scalar_lea.vmem %s6, %s652
        %p654 = pneg %p220
        %p655 = pneg %p217
        %p656 = scmp.lt.s32.totalorder %s36, 1
        %s657 = scalar_select %p656, %s36, 1
        %s658 = scalar_lea.vmem %s7, %s657
        %p659 = pneg %p246
        %p660 = pneg %p243
        %p661 = scmp.lt.s32.totalorder %s36, 1
        %s662 = scalar_select %p661, %s36, 1
        %s663 = scalar_lea.vmem %s8, %s662
        %p664 = pneg %p272
        %p665 = pneg %p269
        %p666 = scmp.lt.s32.totalorder %s36, 1
        %s667 = scalar_select %p666, %s36, 1
        %s668 = smul.addr %s667, 4
        %s669 = smul.addr %s668, 8
        %s670 = scalar_lea.vmem %s9, %s669
        %p671 = pneg %p298
        %p672 = pneg %p295
        %p673 = scmp.lt.s32.totalorder %s36, 1
        %s674 = scalar_select %p673, %s36, 1
        %s675 = scalar_lea.vmem %s10, %s674
        %p676 = pneg %p324
        %p677 = pneg %p321
        %p678 = scmp.lt.s32.totalorder %s36, 1
        %s679 = scalar_select %p678, %s36, 1
        %s680 = smul.addr %s679, 16
        %s681 = smul.addr %s680, 8
        %s682 = scalar_lea.vmem %s11, %s681
        %p683 = pneg %p350
        %p684 = pneg %p347
        %p685 = scmp.lt.s32.totalorder %s36, 1
        %s686 = scalar_select %p685, %s36, 1
        %s687 = scalar_lea.vmem %s12, %s686
        %p688 = pneg %p376
        %p689 = pneg %p373
        %p690 = pneg %p397
        %p691 = pneg %p394
        %p692 = pneg %p418
        %p693 = pneg %p415
        %p694 = pneg %p439
        %p695 = pneg %p436
        %p696 = pneg %p460
        %p697 = pneg %p457
        %p698 = pneg %p486
        %p699 = pneg %p483
        %s700 = smul.u32 2, %s35
        %p701 = scmp.lt.s32.totalorder %s700, 1
        %s702 = scalar_select %p701, %s700, 1
        %s703 = smul.addr %s702, 9
        %s704 = smul.addr %s703, 8
        %s705 = scalar_lea.vmem %s0, %s704
        %s706 = smul.u32 2, %s35
        %p707 = scmp.lt.s32.totalorder %s36, 1
        %s708 = scalar_select %p707, %s36, 1
        %s709 = scalar_lea.vmem %s1, %s708
        %p710 = scmp.lt.s32.totalorder %s36, 1
        %s711 = scalar_select %p710, %s36, 1
        %s712 = scalar_lea.vmem %s2, %s711
        %p713 = scmp.lt.s32.totalorder %s36, 1
        %s714 = scalar_select %p713, %s36, 1
        %s715 = smul.addr %s714, 4
        %s716 = smul.addr %s715, 8
        %s717 = scalar_lea.vmem %s3, %s716
        %p718 = scmp.lt.s32.totalorder %s36, 1
        %s719 = scalar_select %p718, %s36, 1
        %s720 = scalar_lea.vmem %s4, %s719
        %p721 = scmp.lt.s32.totalorder %s36, 1
        %s722 = scalar_select %p721, %s36, 1
        %s723 = smul.addr %s722, 4
        %s724 = smul.addr %s723, 8
        %s725 = scalar_lea.vmem %s5, %s724
        %p726 = scmp.lt.s32.totalorder %s36, 1
        %s727 = scalar_select %p726, %s36, 1
        %s728 = scalar_lea.vmem %s6, %s727
        %p729 = scmp.lt.s32.totalorder %s36, 1
        %s730 = scalar_select %p729, %s36, 1
        %s731 = scalar_lea.vmem %s7, %s730
        %p732 = scmp.lt.s32.totalorder %s36, 1
        %s733 = scalar_select %p732, %s36, 1
        %s734 = scalar_lea.vmem %s8, %s733
        %p735 = scmp.lt.s32.totalorder %s36, 1
        %s736 = scalar_select %p735, %s36, 1
        %s737 = smul.addr %s736, 4
        %s738 = smul.addr %s737, 8
        %s739 = scalar_lea.vmem %s9, %s738
        %p740 = scmp.lt.s32.totalorder %s36, 1
        %s741 = scalar_select %p740, %s36, 1
        %s742 = scalar_lea.vmem %s10, %s741
        %p743 = scmp.lt.s32.totalorder %s36, 1
        %s744 = scalar_select %p743, %s36, 1
        %s745 = smul.addr %s744, 16
        %s746 = smul.addr %s745, 8
        %s747 = scalar_lea.vmem %s11, %s746
        %p748 = scmp.lt.s32.totalorder %s36, 1
        %s749 = scalar_select %p748, %s36, 1
        %s750 = scalar_lea.vmem %s12, %s749
        %p751 = scmp.eq.s32.totalorder %s36, 0
        // Predicated region
        $region89: #{tpu_custom_call.1} parent=87 // pred_check
          %p752 = pneg %p751
        $region90: #{tpu_custom_call.1} parent=87 // pred_check_branch
          %754 = sbr.rel (%p752) target = $region92
        $region91: #{tpu_custom_call.1} parent=87 // pred_region
          %v755 = vld [vmem:[%s705] sm:$0xff]
          %v756 = vld [vmem:[%s705 + $0x8] sm:$0xff]
          %v757 = vld [vmem:[%s705 + $0x10] sm:$0xff]
          %v758 = vld [vmem:[%s705 + $0x18] sm:$0xff]
          %v759 = vld [vmem:[%s705 + $0x20] sm:$0xff]
          %v760 = vld [vmem:[%s705 + $0x28] sm:$0xff]
          %v761 = vld [vmem:[%s705 + $0x30] sm:$0xff]
          %v762 = vld [vmem:[%s705 + $0x38] sm:$0xff]
          %v763 = vld [vmem:[%s705 + $0x40] sm:$0xff]
          %v764 = vld [vmem:[%s705 + $0x48] sm:$0xff]
          %v765 = vld [vmem:[%s705 + $0x50] sm:$0xff]
          %v766 = vld [vmem:[%s705 + $0x58] sm:$0xff]
          %v767 = vld [vmem:[%s705 + $0x60] sm:$0xff]
          %v768 = vld [vmem:[%s705 + $0x68] sm:$0xff]
          %v769 = vld [vmem:[%s705 + $0x70] sm:$0xff]
          %v770 = vld [vmem:[%s705 + $0x78] sm:$0xff]
          %v771 = vld [vmem:[%s705 + $0x80] sm:$0xff]
          %v772 = vld [vmem:[%s705 + $0x88] sm:$0xff]
          %vm773 = vcmask 261120
          %774 = vst.msk [vmem:[#allocation2] sm:$0xff] %vm773, %v755
          %775 = vst.msk [vmem:[#allocation2 + $0x8] sm:$0xff] %vm773, %v756
          %776 = vst.msk [vmem:[#allocation2 + $0x10] sm:$0xff] %vm773, %v757
          %777 = vst.msk [vmem:[#allocation2 + $0x18] sm:$0xff] %vm773, %v758
          %778 = vst.msk [vmem:[#allocation2 + $0x20] sm:$0xff] %vm773, %v759
          %779 = vst.msk [vmem:[#allocation2 + $0x28] sm:$0xff] %vm773, %v760
          %780 = vst.msk [vmem:[#allocation2 + $0x30] sm:$0xff] %vm773, %v761
          %781 = vst.msk [vmem:[#allocation2 + $0x38] sm:$0xff] %vm773, %v762
          %782 = vst.msk [vmem:[#allocation2 + $0x40] sm:$0xff] %vm773, %v763
          %783 = vst.msk [vmem:[#allocation2 + $0x48] sm:$0xff] %vm773, %v764
          %784 = vst.msk [vmem:[#allocation2 + $0x50] sm:$0xff] %vm773, %v765
          %785 = vst.msk [vmem:[#allocation2 + $0x58] sm:$0xff] %vm773, %v766
          %786 = vst.msk [vmem:[#allocation2 + $0x60] sm:$0xff] %vm773, %v767
          %787 = vst.msk [vmem:[#allocation2 + $0x68] sm:$0xff] %vm773, %v768
          %788 = vst.msk [vmem:[#allocation2 + $0x70] sm:$0xff] %vm773, %v769
          %789 = vst.msk [vmem:[#allocation2 + $0x78] sm:$0xff] %vm773, %v770
          %790 = vst.msk [vmem:[#allocation2 + $0x80] sm:$0xff] %vm773, %v771
          %791 = vst.msk [vmem:[#allocation2 + $0x88] sm:$0xff] %vm773, %v772
        $region92: #{tpu_custom_call.1} parent=87 // pred_fallthru
          _
        %v792 = vld [vmem:[#allocation2] sm:$0xff]
        %v793 = vld [vmem:[#allocation2 + $0x8] sm:$0xff]
        %v794 = vld [vmem:[#allocation2 + $0x10] sm:$0xff]
        %v795 = vld [vmem:[#allocation2 + $0x18] sm:$0xff]
        %v796 = vld [vmem:[#allocation2 + $0x20] sm:$0xff]
        %v797 = vld [vmem:[#allocation2 + $0x28] sm:$0xff]
        %v798 = vld [vmem:[#allocation2 + $0x30] sm:$0xff]
        %v799 = vld [vmem:[#allocation2 + $0x38] sm:$0xff]
        %v800 = vld [vmem:[#allocation2 + $0x40] sm:$0xff]
        %v801 = vld [vmem:[#allocation2 + $0x48] sm:$0xff]
        %v802 = vld [vmem:[#allocation2 + $0x50] sm:$0xff]
        %v803 = vld [vmem:[#allocation2 + $0x58] sm:$0xff]
        %v804 = vld [vmem:[#allocation2 + $0x60] sm:$0xff]
        %v805 = vld [vmem:[#allocation2 + $0x68] sm:$0xff]
        %v806 = vld [vmem:[#allocation2 + $0x70] sm:$0xff]
        %v807 = vld [vmem:[#allocation2 + $0x78] sm:$0xff]
        %v808 = vld [vmem:[#allocation2 + $0x80] sm:$0xff]
        %v809 = vld [vmem:[#allocation2 + $0x88] sm:$0xff]
        %v810 = vld [vmem:[%s709] sm:$0x1]
        %v811 = vld [vmem:[%s712] sm:$0x1]
        %vm812 = vcmask 261120
        %v813 = vsel %vm812, %v792, 0.0
        %814 = vadd.xlane.f32.xlu0 %v813
        %v815 = vpop.xlane.xlu0 %814
        %v816 = vsel %vm812, %v793, 0.0
        %817 = vadd.xlane.f32.xlu0 %v816
        %v818 = vpop.xlane.xlu0 %817
        %v819 = vsel %vm812, %v794, 0.0
        %820 = vadd.xlane.f32.xlu0 %v819
        %v821 = vpop.xlane.xlu0 %820
        %v822 = vsel %vm812, %v795, 0.0
        %823 = vadd.xlane.f32.xlu0 %v822
        %v824 = vpop.xlane.xlu0 %823
        %v825 = vsel %vm812, %v796, 0.0
        %826 = vadd.xlane.f32.xlu0 %v825
        %v827 = vpop.xlane.xlu0 %826
        %v828 = vsel %vm812, %v797, 0.0
        %829 = vadd.xlane.f32.xlu0 %v828
        %v830 = vpop.xlane.xlu0 %829
        %v831 = vsel %vm812, %v798, 0.0
        %832 = vadd.xlane.f32.xlu0 %v831
        %v833 = vpop.xlane.xlu0 %832
        %v834 = vsel %vm812, %v799, 0.0
        %835 = vadd.xlane.f32.xlu0 %v834
        %v836 = vpop.xlane.xlu0 %835
        %v837 = vsel %vm812, %v800, 0.0
        %838 = vadd.xlane.f32.xlu0 %v837
        %v839 = vpop.xlane.xlu0 %838
        %v840 = vsel %vm812, %v801, 0.0
        %841 = vadd.xlane.f32.xlu0 %v840
        %v842 = vpop.xlane.xlu0 %841
        %v843 = vsel %vm812, %v802, 0.0
        %844 = vadd.xlane.f32.xlu0 %v843
        %v845 = vpop.xlane.xlu0 %844
        %v846 = vsel %vm812, %v803, 0.0
        %847 = vadd.xlane.f32.xlu0 %v846
        %v848 = vpop.xlane.xlu0 %847
        %v849 = vsel %vm812, %v804, 0.0
        %850 = vadd.xlane.f32.xlu0 %v849
        %v851 = vpop.xlane.xlu0 %850
        %v852 = vsel %vm812, %v805, 0.0
        %853 = vadd.xlane.f32.xlu0 %v852
        %v854 = vpop.xlane.xlu0 %853
        %v855 = vsel %vm812, %v806, 0.0
        %856 = vadd.xlane.f32.xlu0 %v855
        %v857 = vpop.xlane.xlu0 %856
        %v858 = vsel %vm812, %v807, 0.0
        %859 = vadd.xlane.f32.xlu0 %v858
        %v860 = vpop.xlane.xlu0 %859
        %v861 = vsel %vm812, %v808, 0.0
        %862 = vadd.xlane.f32.xlu0 %v861
        %v863 = vpop.xlane.xlu0 %862
        %v864 = vsel %vm812, %v809, 0.0
        %865 = vadd.xlane.f32.xlu0 %v864
        %v866 = vpop.xlane.xlu0 %865
        %v867 = vrcp.pop 32.0
        %v868 = vmul.f32 %v815, %v867
        %v869 = vmul.f32 %v818, %v867
        %v870 = vmul.f32 %v821, %v867
        %v871 = vmul.f32 %v824, %v867
        %v872 = vmul.f32 %v827, %v867
        %v873 = vmul.f32 %v830, %v867
        %v874 = vmul.f32 %v833, %v867
        %v875 = vmul.f32 %v836, %v867
        %v876 = vmul.f32 %v839, %v867
        %v877 = vmul.f32 %v842, %v867
        %v878 = vmul.f32 %v845, %v867
        %v879 = vmul.f32 %v848, %v867
        %v880 = vmul.f32 %v851, %v867
        %v881 = vmul.f32 %v854, %v867
        %v882 = vmul.f32 %v857, %v867
        %v883 = vmul.f32 %v860, %v867
        %v884 = vmul.f32 %v863, %v867
        %v885 = vmul.f32 %v866, %v867
        %v886 = vsub.f32 %v792, %v868
        %v887 = vsub.f32 %v793, %v869
        %v888 = vsub.f32 %v794, %v870
        %v889 = vsub.f32 %v795, %v871
        %v890 = vsub.f32 %v796, %v872
        %v891 = vsub.f32 %v797, %v873
        %v892 = vsub.f32 %v798, %v874
        %v893 = vsub.f32 %v799, %v875
        %v894 = vsub.f32 %v800, %v876
        %v895 = vsub.f32 %v801, %v877
        %v896 = vsub.f32 %v802, %v878
        %v897 = vsub.f32 %v803, %v879
        %v898 = vsub.f32 %v804, %v880
        %v899 = vsub.f32 %v805, %v881
        %v900 = vsub.f32 %v806, %v882
        %v901 = vsub.f32 %v807, %v883
        %v902 = vsub.f32 %v808, %v884
        %v903 = vsub.f32 %v809, %v885
        %v904 = vmul.f32 %v886, %v886
        %v905 = vmul.f32 %v887, %v887
        %v906 = vmul.f32 %v888, %v888
        %v907 = vmul.f32 %v889, %v889
        %v908 = vmul.f32 %v890, %v890
        %v909 = vmul.f32 %v891, %v891
        %v910 = vmul.f32 %v892, %v892
        %v911 = vmul.f32 %v893, %v893
        %v912 = vmul.f32 %v894, %v894
        %v913 = vmul.f32 %v895, %v895
        %v914 = vmul.f32 %v896, %v896
        %v915 = vmul.f32 %v897, %v897
        %v916 = vmul.f32 %v898, %v898
        %v917 = vmul.f32 %v899, %v899
        %v918 = vmul.f32 %v900, %v900
        %v919 = vmul.f32 %v901, %v901
        %v920 = vmul.f32 %v902, %v902
        %v921 = vmul.f32 %v903, %v903
        %v922 = vsel %vm812, %v904, 0.0
        %923 = vadd.xlane.f32.xlu0 %v922
        %v924 = vpop.xlane.xlu0 %923
        %v925 = vsel %vm812, %v905, 0.0
        %926 = vadd.xlane.f32.xlu0 %v925
        %v927 = vpop.xlane.xlu0 %926
        %v928 = vsel %vm812, %v906, 0.0
        %929 = vadd.xlane.f32.xlu0 %v928
        %v930 = vpop.xlane.xlu0 %929
        %v931 = vsel %vm812, %v907, 0.0
        %932 = vadd.xlane.f32.xlu0 %v931
        %v933 = vpop.xlane.xlu0 %932
        %v934 = vsel %vm812, %v908, 0.0
        %935 = vadd.xlane.f32.xlu0 %v934
        %v936 = vpop.xlane.xlu0 %935
        %v937 = vsel %vm812, %v909, 0.0
        %938 = vadd.xlane.f32.xlu0 %v937
        %v939 = vpop.xlane.xlu0 %938
        %v940 = vsel %vm812, %v910, 0.0
        %941 = vadd.xlane.f32.xlu0 %v940
        %v942 = vpop.xlane.xlu0 %941
        %v943 = vsel %vm812, %v911, 0.0
        %944 = vadd.xlane.f32.xlu0 %v943
        %v945 = vpop.xlane.xlu0 %944
        %v946 = vsel %vm812, %v912, 0.0
        %947 = vadd.xlane.f32.xlu0 %v946
        %v948 = vpop.xlane.xlu0 %947
        %v949 = vsel %vm812, %v913, 0.0
        %950 = vadd.xlane.f32.xlu0 %v949
        %v951 = vpop.xlane.xlu0 %950
        %v952 = vsel %vm812, %v914, 0.0
        %953 = vadd.xlane.f32.xlu0 %v952
        %v954 = vpop.xlane.xlu0 %953
        %v955 = vsel %vm812, %v915, 0.0
        %956 = vadd.xlane.f32.xlu0 %v955
        %v957 = vpop.xlane.xlu0 %956
        %v958 = vsel %vm812, %v916, 0.0
        %959 = vadd.xlane.f32.xlu0 %v958
        %v960 = vpop.xlane.xlu0 %959
        %v961 = vsel %vm812, %v917, 0.0
        %962 = vadd.xlane.f32.xlu0 %v961
        %v963 = vpop.xlane.xlu0 %962
        %v964 = vsel %vm812, %v918, 0.0
        %965 = vadd.xlane.f32.xlu0 %v964
        %v966 = vpop.xlane.xlu0 %965
        %v967 = vsel %vm812, %v919, 0.0
        %968 = vadd.xlane.f32.xlu0 %v967
        %v969 = vpop.xlane.xlu0 %968
        %v970 = vsel %vm812, %v920, 0.0
        %971 = vadd.xlane.f32.xlu0 %v970
        %v972 = vpop.xlane.xlu0 %971
        %v973 = vsel %vm812, %v921, 0.0
        %974 = vadd.xlane.f32.xlu0 %v973
        %v975 = vpop.xlane.xlu0 %974
        %v976 = vmul.f32 %v924, %v867
        %v977 = vmul.f32 %v927, %v867
        %v978 = vmul.f32 %v930, %v867
        %v979 = vmul.f32 %v933, %v867
        %v980 = vmul.f32 %v936, %v867
        %v981 = vmul.f32 %v939, %v867
        %v982 = vmul.f32 %v942, %v867
        %v983 = vmul.f32 %v945, %v867
        %v984 = vmul.f32 %v948, %v867
        %v985 = vmul.f32 %v951, %v867
        %v986 = vmul.f32 %v954, %v867
        %v987 = vmul.f32 %v957, %v867
        %v988 = vmul.f32 %v960, %v867
        %v989 = vmul.f32 %v963, %v867
        %v990 = vmul.f32 %v966, %v867
        %v991 = vmul.f32 %v969, %v867
        %v992 = vmul.f32 %v972, %v867
        %v993 = vmul.f32 %v975, %v867
        %v994 = vadd.f32 %v976, 1e-05
        %v995 = vadd.f32 %v977, 1e-05
        %v996 = vadd.f32 %v978, 1e-05
        %v997 = vadd.f32 %v979, 1e-05
        %v998 = vadd.f32 %v980, 1e-05
        %v999 = vadd.f32 %v981, 1e-05
        %v1000 = vadd.f32 %v982, 1e-05
        %v1001 = vadd.f32 %v983, 1e-05
        %v1002 = vadd.f32 %v984, 1e-05
        %v1003 = vadd.f32 %v985, 1e-05
        %v1004 = vadd.f32 %v986, 1e-05
        %v1005 = vadd.f32 %v987, 1e-05
        %v1006 = vadd.f32 %v988, 1e-05
        %v1007 = vadd.f32 %v989, 1e-05
        %v1008 = vadd.f32 %v990, 1e-05
        %v1009 = vadd.f32 %v991, 1e-05
        %v1010 = vadd.f32 %v992, 1e-05
        %v1011 = vadd.f32 %v993, 1e-05
        %v1012 = vrsqrt.pop %v994
        %v1013 = vrsqrt.pop %v995
        %v1014 = vrsqrt.pop %v996
        %v1015 = vrsqrt.pop %v997
        %v1016 = vrsqrt.pop %v998
        %v1017 = vrsqrt.pop %v999
        %v1018 = vrsqrt.pop %v1000
        %v1019 = vrsqrt.pop %v1001
        %v1020 = vrsqrt.pop %v1002
        %v1021 = vrsqrt.pop %v1003
        %v1022 = vrsqrt.pop %v1004
        %v1023 = vrsqrt.pop %v1005
        %v1024 = vrsqrt.pop %v1006
        %v1025 = vrsqrt.pop %v1007
        %v1026 = vrsqrt.pop %v1008
        %v1027 = vrsqrt.pop %v1009
        %v1028 = vrsqrt.pop %v1010
        %v1029 = vrsqrt.pop %v1011
        %v1030 = vmul.f32 %v886, %v1012
        %v1031 = vmul.f32 %v887, %v1013
        %v1032 = vmul.f32 %v888, %v1014
        %v1033 = vmul.f32 %v889, %v1015
        %v1034 = vmul.f32 %v890, %v1016
        %v1035 = vmul.f32 %v891, %v1017
        %v1036 = vmul.f32 %v892, %v1018
        %v1037 = vmul.f32 %v893, %v1019
        %v1038 = vmul.f32 %v894, %v1020
        %v1039 = vmul.f32 %v895, %v1021
        %v1040 = vmul.f32 %v896, %v1022
        %v1041 = vmul.f32 %v897, %v1023
        %v1042 = vmul.f32 %v898, %v1024
        %v1043 = vmul.f32 %v899, %v1025
        %v1044 = vmul.f32 %v900, %v1026
        %v1045 = vmul.f32 %v901, %v1027
        %v1046 = vmul.f32 %v902, %v1028
        %v1047 = vmul.f32 %v903, %v1029
        %v1049 = vlaneseq
        %v1050 = vshrl.u32 %v1049, 7
        %v1051 = vsub.s32 0, %v1050
        %v1052 = vrot.slane %v810, %v1051
        %v1054 = vmul.f32 %v1030, %v1052
        %v1055 = vmul.f32 %v1031, %v1052
        %v1056 = vmul.f32 %v1032, %v1052
        %v1057 = vmul.f32 %v1033, %v1052
        %v1058 = vmul.f32 %v1034, %v1052
        %v1059 = vmul.f32 %v1035, %v1052
        %v1060 = vmul.f32 %v1036, %v1052
        %v1061 = vmul.f32 %v1037, %v1052
        %v1062 = vmul.f32 %v1038, %v1052
        %v1063 = vmul.f32 %v1039, %v1052
        %v1064 = vmul.f32 %v1040, %v1052
        %v1065 = vmul.f32 %v1041, %v1052
        %v1066 = vmul.f32 %v1042, %v1052
        %v1067 = vmul.f32 %v1043, %v1052
        %v1068 = vmul.f32 %v1044, %v1052
        %v1069 = vmul.f32 %v1045, %v1052
        %v1070 = vmul.f32 %v1046, %v1052
        %v1071 = vmul.f32 %v1047, %v1052
        %v1073 = vlaneseq
        %v1074 = vshrl.u32 %v1073, 7
        %v1075 = vsub.s32 0, %v1074
        %v1076 = vrot.slane %v811, %v1075
        %v1078 = vadd.f32 %v1054, %v1076
        %v1079 = vadd.f32 %v1055, %v1076
        %v1080 = vadd.f32 %v1056, %v1076
        %v1081 = vadd.f32 %v1057, %v1076
        %v1082 = vadd.f32 %v1058, %v1076
        %v1083 = vadd.f32 %v1059, %v1076
        %v1084 = vadd.f32 %v1060, %v1076
        %v1085 = vadd.f32 %v1061, %v1076
        %v1086 = vadd.f32 %v1062, %v1076
        %v1087 = vadd.f32 %v1063, %v1076
        %v1088 = vadd.f32 %v1064, %v1076
        %v1089 = vadd.f32 %v1065, %v1076
        %v1090 = vadd.f32 %v1066, %v1076
        %v1091 = vadd.f32 %v1067, %v1076
        %v1092 = vadd.f32 %v1068, %v1076
        %v1093 = vadd.f32 %v1069, %v1076
        %v1094 = vadd.f32 %v1070, %v1076
        %v1095 = vadd.f32 %v1071, %v1076
        %v1096 = vld [vmem:[%s717] sm:$0xff]
        %v1097 = vld [vmem:[%s717 + $0x8] sm:$0xff]
        %v1098 = vld [vmem:[%s717 + $0x10] sm:$0xff]
        %v1099 = vld [vmem:[%s717 + $0x18] sm:$0xff]
        %v1100 = vld [vmem:[%s720] sm:$0x1]
        %v1102 = vlaneseq
        %v1103 = vshrl.u32 %v1102, 7
        %v1104 = vsub.s32 0, %v1103
        %v1105 = vrot.slane %v1100, %v1104
        %v1108 = vsel %vm812, %v1078, 0
        %v1111 = vsel %vm812, %v1079, 0
        %v1114 = vsel %vm812, %v1080, 0
        %v1117 = vsel %vm812, %v1081, 0
        %v1120 = vsel %vm812, %v1082, 0
        %v1123 = vsel %vm812, %v1083, 0
        %v1126 = vsel %vm812, %v1084, 0
        %v1129 = vsel %vm812, %v1085, 0
        %v1132 = vsel %vm812, %v1086, 0
        %v1135 = vsel %vm812, %v1087, 0
        %v1138 = vsel %vm812, %v1088, 0
        %v1141 = vsel %vm812, %v1089, 0
        %v1144 = vsel %vm812, %v1090, 0
        %v1147 = vsel %vm812, %v1091, 0
        %v1150 = vsel %vm812, %v1092, 0
        %v1153 = vsel %vm812, %v1093, 0
        %v1156 = vsel %vm812, %v1094, 0
        %v1159 = vsel %vm812, %v1095, 0
        %1161 = vmatprep.subr.mxu0 0.0
        %1162 = vmatpush1.msra.mxu0 %v1096
        %1163 = vmatprep.subr.mxu0 0.0
        %1164 = vmatpush1.msra.mxu0 %v1097
        %1165 = vmatprep.subr.mxu0 0.0
        %1166 = vmatpush1.msra.mxu0 %v1098
        %1167 = vmatprep.subr.mxu0 0.0
        %1168 = vmatpush1.msra.mxu0 %v1099
        %1169 = vmatprep.subr.mxu0 0.0
        %1170 = vmatpush1.msra.mxu0 0.0
        %1171 = vmatprep.subr.mxu0 0.0
        %1172 = vmatpush1.msra.mxu0 0.0
        %1173 = vmatprep.subr.mxu0 0.0
        %1174 = vmatpush1.msra.mxu0 0.0
        %1175 = vmatprep.subr.mxu0 0.0
        %1176 = vmatpush1.msra.mxu0 0.0
        %1177 = vmatprep.subr.mxu0 0.0
        %1178 = vmatpush1.msra.mxu0 0.0
        %1179 = vmatprep.subr.mxu0 0.0
        %1180 = vmatpush1.msra.mxu0 0.0
        %1181 = vmatprep.subr.mxu0 0.0
        %1182 = vmatpush1.msra.mxu0 0.0
        %1183 = vmatprep.subr.mxu0 0.0
        %1184 = vmatpush1.msra.mxu0 0.0
        %1185 = vmatprep.subr.mxu0 0.0
        %1186 = vmatpush1.msra.mxu0 0.0
        %1187 = vmatprep.subr.mxu0 0.0
        %1188 = vmatpush1.msra.mxu0 0.0
        %1189 = vmatprep.subr.mxu0 0.0
        %1190 = vmatpush1.msra.mxu0 0.0
        %1191 = vmatprep.subr.mxu0 0.0
        %1192 = vmatpush1.msra.mxu0 0.0
        %1193 = vmatprep.subr.mxu0 0.0
        %1194 = vmatpush1.msra.mxu0 0.0
        %1195 = vmatprep.subr.mxu0 0.0
        %1196 = vmatpush1.msra.mxu0 0.0
        %1197 = vmatprep.subr.mxu0 0.0
        %1198 = vmatpush1.msra.mxu0 0.0
        %1199 = vmatprep.subr.mxu0 0.0
        %1200 = vmatpush1.msra.mxu0 0.0
        %1201 = vmatprep.subr.mxu0 0.0
        %1202 = vmatpush1.msra.mxu0 0.0
        %1203 = vmatprep.subr.mxu0 0.0
        %1204 = vmatpush1.msra.mxu0 0.0
        %1205 = vmatprep.subr.mxu0 0.0
        %1206 = vmatpush1.msra.mxu0 0.0
        %1207 = vmatprep.subr.mxu0 0.0
        %1208 = vmatpush1.msra.mxu0 0.0
        %1209 = vmatprep.subr.mxu0 0.0
        %1210 = vmatpush1.msra.mxu0 0.0
        %1211 = vmatprep.subr.mxu0 0.0
        %1212 = vmatpush1.msra.mxu0 0.0
        %1213 = vmatprep.subr.mxu0 0.0
        %1214 = vmatpush1.msra.mxu0 0.0
        %1215 = vmatprep.subr.mxu0 0.0
        %1216 = vmatpush1.msra.mxu0 0.0
        %1217 = vmatprep.subr.mxu0 0.0
        %1218 = vmatpush1.msra.mxu0 0.0
        %1219 = vmatprep.subr.mxu0 0.0
        %1220 = vmatpush1.msra.mxu0 0.0
        %1221 = vmatprep.subr.mxu0 0.0
        %1222 = vmatpush1.msra.mxu0 0.0
        %1223 = vmatprep.subr.mxu0 0.0
        %1224 = vmatpush1.msra.mxu0 0.0
        %1225 = vmatprep.mubr.f32.mxu0 0.0
        %1226 = vmatmul.mubr.f32.gmra.mrb[0].mxu0 %v1108
        %v1227 = vpop.f32.mrb[0].mxu0
        %v1228 = vadd.f32 %v1105, %v1227
        %v1229 = vpop.f32.mrb[0].mxu0
        %1230 = vmatprep.mubr.f32.mxu0 0.0
        %1231 = vmatmul.mubr.f32.gmra.mrb[0].mxu0 %v1111
        %v1232 = vpop.f32.mrb[0].mxu0
        %v1233 = vadd.f32 %v1105, %v1232
        %v1234 = vpop.f32.mrb[0].mxu0
        %1235 = vmatprep.mubr.f32.mxu0 0.0
        %1236 = vmatmul.mubr.f32.gmra.mrb[0].mxu0 %v1114
        %v1237 = vpop.f32.mrb[0].mxu0
        %v1238 = vadd.f32 %v1105, %v1237
        %v1239 = vpop.f32.mrb[0].mxu0
        %1240 = vmatprep.mubr.f32.mxu0 0.0
        %1241 = vmatmul.mubr.f32.gmra.mrb[0].mxu0 %v1117
        %v1242 = vpop.f32.mrb[0].mxu0
        %v1243 = vadd.f32 %v1105, %v1242
        %v1244 = vpop.f32.mrb[0].mxu0
        %1245 = vmatprep.mubr.f32.mxu0 0.0
        %1246 = vmatmul.mubr.f32.gmra.mrb[0].mxu0 %v1120
        %v1247 = vpop.f32.mrb[0].mxu0
        %v1248 = vadd.f32 %v1105, %v1247
        %v1249 = vpop.f32.mrb[0].mxu0
        %1250 = vmatprep.mubr.f32.mxu0 0.0
        %1251 = vmatmul.mubr.f32.gmra.mrb[0].mxu0 %v1123
        %v1252 = vpop.f32.mrb[0].mxu0
        %v1253 = vadd.f32 %v1105, %v1252
        %v1254 = vpop.f32.mrb[0].mxu0
        %1255 = vmatprep.mubr.f32.mxu0 0.0
        %1256 = vmatmul.mubr.f32.gmra.mrb[0].mxu0 %v1126
        %v1257 = vpop.f32.mrb[0].mxu0
        %v1258 = vadd.f32 %v1105, %v1257
        %v1259 = vpop.f32.mrb[0].mxu0
        %1260 = vmatprep.mubr.f32.mxu0 0.0
        %1261 = vmatmul.mubr.f32.gmra.mrb[0].mxu0 %v1129
        %v1262 = vpop.f32.mrb[0].mxu0
        %v1263 = vadd.f32 %v1105, %v1262
        %v1264 = vpop.f32.mrb[0].mxu0
        %1265 = vmatprep.mubr.f32.mxu0 0.0
        %1266 = vmatmul.mubr.f32.gmra.mrb[0].mxu0 %v1132
        %v1267 = vpop.f32.mrb[0].mxu0
        %v1268 = vadd.f32 %v1105, %v1267
        %v1269 = vpop.f32.mrb[0].mxu0
        %1270 = vmatprep.mubr.f32.mxu0 0.0
        %1271 = vmatmul.mubr.f32.gmra.mrb[0].mxu0 %v1135
        %v1272 = vpop.f32.mrb[0].mxu0
        %v1273 = vadd.f32 %v1105, %v1272
        %v1274 = vpop.f32.mrb[0].mxu0
        %1275 = vmatprep.mubr.f32.mxu0 0.0
        %1276 = vmatmul.mubr.f32.gmra.mrb[0].mxu0 %v1138
        %v1277 = vpop.f32.mrb[0].mxu0
        %v1278 = vadd.f32 %v1105, %v1277
        %v1279 = vpop.f32.mrb[0].mxu0
        %1280 = vmatprep.mubr.f32.mxu0 0.0
        %1281 = vmatmul.mubr.f32.gmra.mrb[0].mxu0 %v1141
        %v1282 = vpop.f32.mrb[0].mxu0
        %v1283 = vadd.f32 %v1105, %v1282
        %v1284 = vpop.f32.mrb[0].mxu0
        %1285 = vmatprep.mubr.f32.mxu0 0.0
        %1286 = vmatmul.mubr.f32.gmra.mrb[0].mxu0 %v1144
        %v1287 = vpop.f32.mrb[0].mxu0
        %v1288 = vadd.f32 %v1105, %v1287
        %v1289 = vpop.f32.mrb[0].mxu0
        %1290 = vmatprep.mubr.f32.mxu0 0.0
        %1291 = vmatmul.mubr.f32.gmra.mrb[0].mxu0 %v1147
        %v1292 = vpop.f32.mrb[0].mxu0
        %v1293 = vadd.f32 %v1105, %v1292
        %v1294 = vpop.f32.mrb[0].mxu0
        %1295 = vmatprep.mubr.f32.mxu0 0.0
        %1296 = vmatmul.mubr.f32.gmra.mrb[0].mxu0 %v1150
        %v1297 = vpop.f32.mrb[0].mxu0
        %v1298 = vadd.f32 %v1105, %v1297
        %v1299 = vpop.f32.mrb[0].mxu0
        %1300 = vmatprep.mubr.f32.mxu0 0.0
        %1301 = vmatmul.mubr.f32.gmra.mrb[0].mxu0 %v1153
        %v1302 = vpop.f32.mrb[0].mxu0
        %v1303 = vadd.f32 %v1105, %v1302
        %v1304 = vpop.f32.mrb[0].mxu0
        %1305 = vmatprep.mubr.f32.mxu0 0.0
        %1306 = vmatmul.mubr.f32.gmra.mrb[0].mxu0 %v1156
        %v1307 = vpop.f32.mrb[0].mxu0
        %v1308 = vadd.f32 %v1105, %v1307
        %v1309 = vpop.f32.mrb[0].mxu0
        %1310 = vmatprep.mubr.f32.mxu0 0.0
        %1311 = vmatmul.mubr.f32.gmra.mrb[0].mxu0 %v1159
        %v1312 = vpop.f32.mrb[0].mxu0
        %v1313 = vadd.f32 %v1105, %v1312
        %v1314 = vpop.f32.mrb[0].mxu0
        %1315 = vdwg.mxu0
        %v1316 = vmul.f32 %v1228, 0.35355338
        %v1317 = vmul.f32 %v1233, 0.35355338
        %v1318 = vmul.f32 %v1238, 0.35355338
        %v1319 = vmul.f32 %v1243, 0.35355338
        %v1320 = vmul.f32 %v1248, 0.35355338
        %v1321 = vmul.f32 %v1253, 0.35355338
        %v1322 = vmul.f32 %v1258, 0.35355338
        %v1323 = vmul.f32 %v1263, 0.35355338
        %v1324 = vmul.f32 %v1268, 0.35355338
        %v1325 = vmul.f32 %v1273, 0.35355338
        %v1326 = vmul.f32 %v1278, 0.35355338
        %v1327 = vmul.f32 %v1283, 0.35355338
        %v1328 = vmul.f32 %v1288, 0.35355338
        %v1329 = vmul.f32 %v1293, 0.35355338
        %v1330 = vmul.f32 %v1298, 0.35355338
        %v1331 = vmul.f32 %v1303, 0.35355338
        %v1332 = vmul.f32 %v1308, 0.35355338
        %v1333 = vmul.f32 %v1313, 0.35355338
        %1343 = vrot.lane.b32.xlu0 %v1228, 96
        %v1344 = vpop.permute.xlu0 %1343
        %1345 = vrot.lane.b32.xlu0 %v1233, 96
        %v1346 = vpop.permute.xlu0 %1345
        %1347 = vrot.lane.b32.xlu0 %v1238, 96
        %v1348 = vpop.permute.xlu0 %1347
        %1349 = vrot.lane.b32.xlu0 %v1243, 96
        %v1350 = vpop.permute.xlu0 %1349
        %1351 = vrot.lane.b32.xlu0 %v1248, 96
        %v1352 = vpop.permute.xlu0 %1351
        %1353 = vrot.lane.b32.xlu0 %v1253, 96
        %v1354 = vpop.permute.xlu0 %1353
        %1355 = vrot.lane.b32.xlu0 %v1258, 96
        %v1356 = vpop.permute.xlu0 %1355
        %1357 = vrot.lane.b32.xlu0 %v1263, 96
        %v1358 = vpop.permute.xlu0 %1357
        %1359 = vrot.lane.b32.xlu0 %v1268, 96
        %v1360 = vpop.permute.xlu0 %1359
        %vm1361 = vcmask 64512
        %v1363 = vsel %vm1361, %v1316, 0
        %v1366 = vsel %vm1361, %v1317, 0
        %v1369 = vsel %vm1361, %v1318, 0
        %v1372 = vsel %vm1361, %v1319, 0
        %v1375 = vsel %vm1361, %v1320, 0
        %v1378 = vsel %vm1361, %v1321, 0
        %v1381 = vsel %vm1361, %v1322, 0
        %v1384 = vsel %vm1361, %v1323, 0
        %v1387 = vsel %vm1361, %v1324, 0
        %v1389 = vsel %vm1361, %v1344, 0
        %v1391 = vsel %vm1361, %v1346, 0
        %v1393 = vsel %vm1361, %v1348, 0
        %v1395 = vsel %vm1361, %v1350, 0
        %v1397 = vsel %vm1361, %v1352, 0
        %v1399 = vsel %vm1361, %v1354, 0
        %v1401 = vsel %vm1361, %v1356, 0
        %v1403 = vsel %vm1361, %v1358, 0
        %v1405 = vsel %vm1361, %v1360, 0
        %1407 = vmatprep.subr.mxu0 0.0
        %1408 = vmatpush1.xpose.msra.mxu0 %v1389
        %1409 = vmatprep.subr.mxu0 0.0
        %1410 = vmatpush1.xpose.msra.mxu0 %v1391
        %1411 = vmatprep.subr.mxu0 0.0
        %1412 = vmatpush1.xpose.msra.mxu0 %v1393
        %1413 = vmatprep.subr.mxu0 0.0
        %1414 = vmatpush1.xpose.msra.mxu0 %v1395
        %1415 = vmatprep.subr.mxu0 0.0
        %1416 = vmatpush1.xpose.msra.mxu0 %v1397
        %1417 = vmatprep.subr.mxu0 0.0
        %1418 = vmatpush1.xpose.msra.mxu0 %v1399
        %1419 = vmatprep.subr.mxu0 0.0
        %1420 = vmatpush1.xpose.msra.mxu0 %v1401
        %1421 = vmatprep.subr.mxu0 0.0
        %1422 = vmatpush1.xpose.msra.mxu0 %v1403
        %1423 = vmatprep.subr.mxu0 0.0
        %1424 = vmatpush1.xpose.msra.mxu0 %v1405
        %1425 = vmatprep.subr.mxu0 0.0
        %1426 = vmatpush1.xpose.msra.mxu0 0.0
        %1427 = vmatprep.subr.mxu0 0.0
        %1428 = vmatpush1.xpose.msra.mxu0 0.0
        %1429 = vmatprep.subr.mxu0 0.0
        %1430 = vmatpush1.xpose.msra.mxu0 0.0
        %1431 = vmatprep.subr.mxu0 0.0
        %1432 = vmatpush1.xpose.msra.mxu0 0.0
        %1433 = vmatprep.subr.mxu0 0.0
        %1434 = vmatpush1.xpose.msra.mxu0 0.0
        %1435 = vmatprep.subr.mxu0 0.0
        %1436 = vmatpush1.xpose.msra.mxu0 0.0
        %1437 = vmatprep.subr.mxu0 0.0
        %1438 = vmatpush1.xpose.msra.mxu0 0.0
        %1439 = vmatprep.subr.mxu0 0.0
        %1440 = vmatpush1.xpose.msra.mxu0 0.0
        %1441 = vmatprep.subr.mxu0 0.0
        %1442 = vmatpush1.xpose.msra.mxu0 0.0
        %1443 = vmatprep.subr.mxu0 0.0
        %1444 = vmatpush1.xpose.msra.mxu0 0.0
        %1445 = vmatprep.subr.mxu0 0.0
        %1446 = vmatpush1.xpose.msra.mxu0 0.0
        %1447 = vmatprep.subr.mxu0 0.0
        %1448 = vmatpush1.xpose.msra.mxu0 0.0
        %1449 = vmatprep.subr.mxu0 0.0
        %1450 = vmatpush1.xpose.msra.mxu0 0.0
        %1451 = vmatprep.subr.mxu0 0.0
        %1452 = vmatpush1.xpose.msra.mxu0 0.0
        %1453 = vmatprep.subr.mxu0 0.0
        %1454 = vmatpush1.xpose.msra.mxu0 0.0
        %1455 = vmatprep.subr.mxu0 0.0
        %1456 = vmatpush1.xpose.msra.mxu0 0.0
        %1457 = vmatprep.subr.mxu0 0.0
        %1458 = vmatpush1.xpose.msra.mxu0 0.0
        %1459 = vmatprep.subr.mxu0 0.0
        %1460 = vmatpush1.xpose.msra.mxu0 0.0
        %1461 = vmatprep.subr.mxu0 0.0
        %1462 = vmatpush1.xpose.msra.mxu0 0.0
        %1463 = vmatprep.subr.mxu0 0.0
        %1464 = vmatpush1.xpose.msra.mxu0 0.0
        %1465 = vmatprep.subr.mxu0 0.0
        %1466 = vmatpush1.xpose.msra.mxu0 0.0
        %1467 = vmatprep.subr.mxu0 0.0
        %1468 = vmatpush1.xpose.msra.mxu0 0.0
        %1469 = vmatprep.subr.mxu0 0.0
        %1470 = vmatpush1.xpose.msra.mxu0 0.0
        %1471 = vmatprep.mubr.f32.mxu0 0.0
        %1472 = vmatmul.mubr.f32.gmra.mrb[0].mxu0 %v1363
        %v1473 = vpop.f32.mrb[0].mxu0
        %v1474 = vadd.f32 0.0, %v1473
        %v1475 = vpop.f32.mrb[0].mxu0
        %1476 = vmatprep.mubr.f32.mxu0 0.0
        %1477 = vmatmul.mubr.f32.gmra.mrb[0].mxu0 %v1366
        %v1478 = vpop.f32.mrb[0].mxu0
        %v1479 = vadd.f32 0.0, %v1478
        %v1480 = vpop.f32.mrb[0].mxu0
        %1481 = vmatprep.mubr.f32.mxu0 0.0
        %1482 = vmatmul.mubr.f32.gmra.mrb[0].mxu0 %v1369
        %v1483 = vpop.f32.mrb[0].mxu0
        %v1484 = vadd.f32 0.0, %v1483
        %v1485 = vpop.f32.mrb[0].mxu0
        %1486 = vmatprep.mubr.f32.mxu0 0.0
        %1487 = vmatmul.mubr.f32.gmra.mrb[0].mxu0 %v1372
        %v1488 = vpop.f32.mrb[0].mxu0
        %v1489 = vadd.f32 0.0, %v1488
        %v1490 = vpop.f32.mrb[0].mxu0
        %1491 = vmatprep.mubr.f32.mxu0 0.0
        %1492 = vmatmul.mubr.f32.gmra.mrb[0].mxu0 %v1375
        %v1493 = vpop.f32.mrb[0].mxu0
        %v1494 = vadd.f32 0.0, %v1493
        %v1495 = vpop.f32.mrb[0].mxu0
        %1496 = vmatprep.mubr.f32.mxu0 0.0
        %1497 = vmatmul.mubr.f32.gmra.mrb[0].mxu0 %v1378
        %v1498 = vpop.f32.mrb[0].mxu0
        %v1499 = vadd.f32 0.0, %v1498
        %v1500 = vpop.f32.mrb[0].mxu0
        %1501 = vmatprep.mubr.f32.mxu0 0.0
        %1502 = vmatmul.mubr.f32.gmra.mrb[0].mxu0 %v1381
        %v1503 = vpop.f32.mrb[0].mxu0
        %v1504 = vadd.f32 0.0, %v1503
        %v1505 = vpop.f32.mrb[0].mxu0
        %1506 = vmatprep.mubr.f32.mxu0 0.0
        %1507 = vmatmul.mubr.f32.gmra.mrb[0].mxu0 %v1384
        %v1508 = vpop.f32.mrb[0].mxu0
        %v1509 = vadd.f32 0.0, %v1508
        %v1510 = vpop.f32.mrb[0].mxu0
        %1511 = vmatprep.mubr.f32.mxu0 0.0
        %1512 = vmatmul.mubr.f32.gmra.mrb[0].mxu0 %v1387
        %v1513 = vpop.f32.mrb[0].mxu0
        %v1514 = vadd.f32 0.0, %v1513
        %v1515 = vpop.f32.mrb[0].mxu0
        %1516 = vdwg.mxu0
        %1526 = vrot.lane.b32.xlu0 %v1273, 96
        %v1527 = vpop.permute.xlu0 %1526
        %1528 = vrot.lane.b32.xlu0 %v1278, 96
        %v1529 = vpop.permute.xlu0 %1528
        %1530 = vrot.lane.b32.xlu0 %v1283, 96
        %v1531 = vpop.permute.xlu0 %1530
        %1532 = vrot.lane.b32.xlu0 %v1288, 96
        %v1533 = vpop.permute.xlu0 %1532
        %1534 = vrot.lane.b32.xlu0 %v1293, 96
        %v1535 = vpop.permute.xlu0 %1534
        %1536 = vrot.lane.b32.xlu0 %v1298, 96
        %v1537 = vpop.permute.xlu0 %1536
        %1538 = vrot.lane.b32.xlu0 %v1303, 96
        %v1539 = vpop.permute.xlu0 %1538
        %1540 = vrot.lane.b32.xlu0 %v1308, 96
        %v1541 = vpop.permute.xlu0 %1540
        %1542 = vrot.lane.b32.xlu0 %v1313, 96
        %v1543 = vpop.permute.xlu0 %1542
        %v1545 = vsel %vm1361, %v1325, 0
        %v1548 = vsel %vm1361, %v1326, 0
        %v1551 = vsel %vm1361, %v1327, 0
        %v1554 = vsel %vm1361, %v1328, 0
        %v1557 = vsel %vm1361, %v1329, 0
        %v1560 = vsel %vm1361, %v1330, 0
        %v1563 = vsel %vm1361, %v1331, 0
        %v1566 = vsel %vm1361, %v1332, 0
        %v1569 = vsel %vm1361, %v1333, 0
        %v1571 = vsel %vm1361, %v1527, 0
        %v1573 = vsel %vm1361, %v1529, 0
        %v1575 = vsel %vm1361, %v1531, 0
        %v1577 = vsel %vm1361, %v1533, 0
        %v1579 = vsel %vm1361, %v1535, 0
        %v1581 = vsel %vm1361, %v1537, 0
        %v1583 = vsel %vm1361, %v1539, 0
        %v1585 = vsel %vm1361, %v1541, 0
        %v1587 = vsel %vm1361, %v1543, 0
        %1589 = vmatprep.subr.mxu0 0.0
        %1590 = vmatpush1.xpose.msra.mxu0 %v1571
        %1591 = vmatprep.subr.mxu0 0.0
        %1592 = vmatpush1.xpose.msra.mxu0 %v1573
        %1593 = vmatprep.subr.mxu0 0.0
        %1594 = vmatpush1.xpose.msra.mxu0 %v1575
        %1595 = vmatprep.subr.mxu0 0.0
        %1596 = vmatpush1.xpose.msra.mxu0 %v1577
        %1597 = vmatprep.subr.mxu0 0.0
        %1598 = vmatpush1.xpose.msra.mxu0 %v1579
        %1599 = vmatprep.subr.mxu0 0.0
        %1600 = vmatpush1.xpose.msra.mxu0 %v1581
        %1601 = vmatprep.subr.mxu0 0.0
        %1602 = vmatpush1.xpose.msra.mxu0 %v1583
        %1603 = vmatprep.subr.mxu0 0.0
        %1604 = vmatpush1.xpose.msra.mxu0 %v1585
        %1605 = vmatprep.subr.mxu0 0.0
        %1606 = vmatpush1.xpose.msra.mxu0 %v1587
        %1607 = vmatprep.subr.mxu0 0.0
        %1608 = vmatpush1.xpose.msra.mxu0 0.0
        %1609 = vmatprep.subr.mxu0 0.0
        %1610 = vmatpush1.xpose.msra.mxu0 0.0
        %1611 = vmatprep.subr.mxu0 0.0
        %1612 = vmatpush1.xpose.msra.mxu0 0.0
        %1613 = vmatprep.subr.mxu0 0.0
        %1614 = vmatpush1.xpose.msra.mxu0 0.0
        %1615 = vmatprep.subr.mxu0 0.0
        %1616 = vmatpush1.xpose.msra.mxu0 0.0
        %1617 = vmatprep.subr.mxu0 0.0
        %1618 = vmatpush1.xpose.msra.mxu0 0.0
        %1619 = vmatprep.subr.mxu0 0.0
        %1620 = vmatpush1.xpose.msra.mxu0 0.0
        %1621 = vmatprep.subr.mxu0 0.0
        %1622 = vmatpush1.xpose.msra.mxu0 0.0
        %1623 = vmatprep.subr.mxu0 0.0
        %1624 = vmatpush1.xpose.msra.mxu0 0.0
        %1625 = vmatprep.subr.mxu0 0.0
        %1626 = vmatpush1.xpose.msra.mxu0 0.0
        %1627 = vmatprep.subr.mxu0 0.0
        %1628 = vmatpush1.xpose.msra.mxu0 0.0
        %1629 = vmatprep.subr.mxu0 0.0
        %1630 = vmatpush1.xpose.msra.mxu0 0.0
        %1631 = vmatprep.subr.mxu0 0.0
        %1632 = vmatpush1.xpose.msra.mxu0 0.0
        %1633 = vmatprep.subr.mxu0 0.0
        %1634 = vmatpush1.xpose.msra.mxu0 0.0
        %1635 = vmatprep.subr.mxu0 0.0
        %1636 = vmatpush1.xpose.msra.mxu0 0.0
        %1637 = vmatprep.subr.mxu0 0.0
        %1638 = vmatpush1.xpose.msra.mxu0 0.0
        %1639 = vmatprep.subr.mxu0 0.0
        %1640 = vmatpush1.xpose.msra.mxu0 0.0
        %1641 = vmatprep.subr.mxu0 0.0
        %1642 = vmatpush1.xpose.msra.mxu0 0.0
        %1643 = vmatprep.subr.mxu0 0.0
        %1644 = vmatpush1.xpose.msra.mxu0 0.0
        %1645 = vmatprep.subr.mxu0 0.0
        %1646 = vmatpush1.xpose.msra.mxu0 0.0
        %1647 = vmatprep.subr.mxu0 0.0
        %1648 = vmatpush1.xpose.msra.mxu0 0.0
        %1649 = vmatprep.subr.mxu0 0.0
        %1650 = vmatpush1.xpose.msra.mxu0 0.0
        %1651 = vmatprep.subr.mxu0 0.0
        %1652 = vmatpush1.xpose.msra.mxu0 0.0
        %1653 = vmatprep.mubr.f32.mxu0 0.0
        %1654 = vmatmul.mubr.f32.gmra.mrb[0].mxu0 %v1545
        %v1655 = vpop.f32.mrb[0].mxu0
        %v1656 = vadd.f32 0.0, %v1655
        %v1657 = vpop.f32.mrb[0].mxu0
        %1658 = vmatprep.mubr.f32.mxu0 0.0
        %1659 = vmatmul.mubr.f32.gmra.mrb[0].mxu0 %v1548
        %v1660 = vpop.f32.mrb[0].mxu0
        %v1661 = vadd.f32 0.0, %v1660
        %v1662 = vpop.f32.mrb[0].mxu0
        %1663 = vmatprep.mubr.f32.mxu0 0.0
        %1664 = vmatmul.mubr.f32.gmra.mrb[0].mxu0 %v1551
        %v1665 = vpop.f32.mrb[0].mxu0
        %v1666 = vadd.f32 0.0, %v1665
        %v1667 = vpop.f32.mrb[0].mxu0
        %1668 = vmatprep.mubr.f32.mxu0 0.0
        %1669 = vmatmul.mubr.f32.gmra.mrb[0].mxu0 %v1554
        %v1670 = vpop.f32.mrb[0].mxu0
        %v1671 = vadd.f32 0.0, %v1670
        %v1672 = vpop.f32.mrb[0].mxu0
        %1673 = vmatprep.mubr.f32.mxu0 0.0
        %1674 = vmatmul.mubr.f32.gmra.mrb[0].mxu0 %v1557
        %v1675 = vpop.f32.mrb[0].mxu0
        %v1676 = vadd.f32 0.0, %v1675
        %v1677 = vpop.f32.mrb[0].mxu0
        %1678 = vmatprep.mubr.f32.mxu0 0.0
        %1679 = vmatmul.mubr.f32.gmra.mrb[0].mxu0 %v1560
        %v1680 = vpop.f32.mrb[0].mxu0
        %v1681 = vadd.f32 0.0, %v1680
        %v1682 = vpop.f32.mrb[0].mxu0
        %1683 = vmatprep.mubr.f32.mxu0 0.0
        %1684 = vmatmul.mubr.f32.gmra.mrb[0].mxu0 %v1563
        %v1685 = vpop.f32.mrb[0].mxu0
        %v1686 = vadd.f32 0.0, %v1685
        %v1687 = vpop.f32.mrb[0].mxu0
        %1688 = vmatprep.mubr.f32.mxu0 0.0
        %1689 = vmatmul.mubr.f32.gmra.mrb[0].mxu0 %v1566
        %v1690 = vpop.f32.mrb[0].mxu0
        %v1691 = vadd.f32 0.0, %v1690
        %v1692 = vpop.f32.mrb[0].mxu0
        %1693 = vmatprep.mubr.f32.mxu0 0.0
        %1694 = vmatmul.mubr.f32.gmra.mrb[0].mxu0 %v1569
        %v1695 = vpop.f32.mrb[0].mxu0
        %v1696 = vadd.f32 0.0, %v1695
        %v1697 = vpop.f32.mrb[0].mxu0
        %1698 = vdwg.mxu0
        %vm1699 = vcmask 588800
        %v1700 = vsel %vm1699, %v1474, -inf
        %1701 = vmax.xlane.f32.xlu0 %v1700
        %v1702 = vpop.xlane.xlu0 %1701
        %v1703 = vsel %vm1699, %v1479, -inf
        %1704 = vmax.xlane.f32.xlu0 %v1703
        %v1705 = vpop.xlane.xlu0 %1704
        %v1706 = vsel %vm1699, %v1484, -inf
        %1707 = vmax.xlane.f32.xlu0 %v1706
        %v1708 = vpop.xlane.xlu0 %1707
        %v1709 = vsel %vm1699, %v1489, -inf
        %1710 = vmax.xlane.f32.xlu0 %v1709
        %v1711 = vpop.xlane.xlu0 %1710
        %v1712 = vsel %vm1699, %v1494, -inf
        %1713 = vmax.xlane.f32.xlu0 %v1712
        %v1714 = vpop.xlane.xlu0 %1713
        %v1715 = vsel %vm1699, %v1499, -inf
        %1716 = vmax.xlane.f32.xlu0 %v1715
        %v1717 = vpop.xlane.xlu0 %1716
        %v1718 = vsel %vm1699, %v1504, -inf
        %1719 = vmax.xlane.f32.xlu0 %v1718
        %v1720 = vpop.xlane.xlu0 %1719
        %v1721 = vsel %vm1699, %v1509, -inf
        %1722 = vmax.xlane.f32.xlu0 %v1721
        %v1723 = vpop.xlane.xlu0 %1722
        %v1724 = vsel %vm1699, %v1514, -inf
        %1725 = vmax.xlane.f32.xlu0 %v1724
        %v1726 = vpop.xlane.xlu0 %1725
        %v1727 = vsel %vm1699, %v1656, -inf
        %1728 = vmax.xlane.f32.xlu0 %v1727
        %v1729 = vpop.xlane.xlu0 %1728
        %v1730 = vsel %vm1699, %v1661, -inf
        %1731 = vmax.xlane.f32.xlu0 %v1730
        %v1732 = vpop.xlane.xlu0 %1731
        %v1733 = vsel %vm1699, %v1666, -inf
        %1734 = vmax.xlane.f32.xlu0 %v1733
        %v1735 = vpop.xlane.xlu0 %1734
        %v1736 = vsel %vm1699, %v1671, -inf
        %1737 = vmax.xlane.f32.xlu0 %v1736
        %v1738 = vpop.xlane.xlu0 %1737
        %v1739 = vsel %vm1699, %v1676, -inf
        %1740 = vmax.xlane.f32.xlu0 %v1739
        %v1741 = vpop.xlane.xlu0 %1740
        %v1742 = vsel %vm1699, %v1681, -inf
        %1743 = vmax.xlane.f32.xlu0 %v1742
        %v1744 = vpop.xlane.xlu0 %1743
        %v1745 = vsel %vm1699, %v1686, -inf
        %1746 = vmax.xlane.f32.xlu0 %v1745
        %v1747 = vpop.xlane.xlu0 %1746
        %v1748 = vsel %vm1699, %v1691, -inf
        %1749 = vmax.xlane.f32.xlu0 %v1748
        %v1750 = vpop.xlane.xlu0 %1749
        %v1751 = vsel %vm1699, %v1696, -inf
        %1752 = vmax.xlane.f32.xlu0 %v1751
        %v1753 = vpop.xlane.xlu0 %1752
        %v1754 = vsub.f32 %v1474, %v1702
        %v1755 = vsub.f32 %v1479, %v1705
        %v1756 = vsub.f32 %v1484, %v1708
        %v1757 = vsub.f32 %v1489, %v1711
        %v1758 = vsub.f32 %v1494, %v1714
        %v1759 = vsub.f32 %v1499, %v1717
        %v1760 = vsub.f32 %v1504, %v1720
        %v1761 = vsub.f32 %v1509, %v1723
        %v1762 = vsub.f32 %v1514, %v1726
        %v1763 = vsub.f32 %v1656, %v1729
        %v1764 = vsub.f32 %v1661, %v1732
        %v1765 = vsub.f32 %v1666, %v1735
        %v1766 = vsub.f32 %v1671, %v1738
        %v1767 = vsub.f32 %v1676, %v1741
        %v1768 = vsub.f32 %v1681, %v1744
        %v1769 = vsub.f32 %v1686, %v1747
        %v1770 = vsub.f32 %v1691, %v1750
        %v1771 = vsub.f32 %v1696, %v1753
        %v1772 = vmul.f32 %v1754, 1.442695
        %v1773 = vpow.pop %v1772
        %v1774 = vmul.f32 %v1755, 1.442695
        %v1775 = vpow.pop %v1774
        %v1776 = vmul.f32 %v1756, 1.442695
        %v1777 = vpow.pop %v1776
        %v1778 = vmul.f32 %v1757, 1.442695
        %v1779 = vpow.pop %v1778
        %v1780 = vmul.f32 %v1758, 1.442695
        %v1781 = vpow.pop %v1780
        %v1782 = vmul.f32 %v1759, 1.442695
        %v1783 = vpow.pop %v1782
        %v1784 = vmul.f32 %v1760, 1.442695
        %v1785 = vpow.pop %v1784
        %v1786 = vmul.f32 %v1761, 1.442695
        %v1787 = vpow.pop %v1786
        %v1788 = vmul.f32 %v1762, 1.442695
        %v1789 = vpow.pop %v1788
        %v1790 = vmul.f32 %v1763, 1.442695
        %v1791 = vpow.pop %v1790
        %v1792 = vmul.f32 %v1764, 1.442695
        %v1793 = vpow.pop %v1792
        %v1794 = vmul.f32 %v1765, 1.442695
        %v1795 = vpow.pop %v1794
        %v1796 = vmul.f32 %v1766, 1.442695
        %v1797 = vpow.pop %v1796
        %v1798 = vmul.f32 %v1767, 1.442695
        %v1799 = vpow.pop %v1798
        %v1800 = vmul.f32 %v1768, 1.442695
        %v1801 = vpow.pop %v1800
        %v1802 = vmul.f32 %v1769, 1.442695
        %v1803 = vpow.pop %v1802
        %v1804 = vmul.f32 %v1770, 1.442695
        %v1805 = vpow.pop %v1804
        %v1806 = vmul.f32 %v1771, 1.442695
        %v1807 = vpow.pop %v1806
        %v1808 = vsel %vm1699, %v1773, 0.0
        %1809 = vadd.xlane.f32.xlu0 %v1808
        %v1810 = vpop.xlane.xlu0 %1809
        %v1811 = vsel %vm1699, %v1775, 0.0
        %1812 = vadd.xlane.f32.xlu0 %v1811
        %v1813 = vpop.xlane.xlu0 %1812
        %v1814 = vsel %vm1699, %v1777, 0.0
        %1815 = vadd.xlane.f32.xlu0 %v1814
        %v1816 = vpop.xlane.xlu0 %1815
        %v1817 = vsel %vm1699, %v1779, 0.0
        %1818 = vadd.xlane.f32.xlu0 %v1817
        %v1819 = vpop.xlane.xlu0 %1818
        %v1820 = vsel %vm1699, %v1781, 0.0
        %1821 = vadd.xlane.f32.xlu0 %v1820
        %v1822 = vpop.xlane.xlu0 %1821
        %v1823 = vsel %vm1699, %v1783, 0.0
        %1824 = vadd.xlane.f32.xlu0 %v1823
        %v1825 = vpop.xlane.xlu0 %1824
        %v1826 = vsel %vm1699, %v1785, 0.0
        %1827 = vadd.xlane.f32.xlu0 %v1826
        %v1828 = vpop.xlane.xlu0 %1827
        %v1829 = vsel %vm1699, %v1787, 0.0
        %1830 = vadd.xlane.f32.xlu0 %v1829
        %v1831 = vpop.xlane.xlu0 %1830
        %v1832 = vsel %vm1699, %v1789, 0.0
        %1833 = vadd.xlane.f32.xlu0 %v1832
        %v1834 = vpop.xlane.xlu0 %1833
        %v1835 = vsel %vm1699, %v1791, 0.0
        %1836 = vadd.xlane.f32.xlu0 %v1835
        %v1837 = vpop.xlane.xlu0 %1836
        %v1838 = vsel %vm1699, %v1793, 0.0
        %1839 = vadd.xlane.f32.xlu0 %v1838
        %v1840 = vpop.xlane.xlu0 %1839
        %v1841 = vsel %vm1699, %v1795, 0.0
        %1842 = vadd.xlane.f32.xlu0 %v1841
        %v1843 = vpop.xlane.xlu0 %1842
        %v1844 = vsel %vm1699, %v1797, 0.0
        %1845 = vadd.xlane.f32.xlu0 %v1844
        %v1846 = vpop.xlane.xlu0 %1845
        %v1847 = vsel %vm1699, %v1799, 0.0
        %1848 = vadd.xlane.f32.xlu0 %v1847
        %v1849 = vpop.xlane.xlu0 %1848
        %v1850 = vsel %vm1699, %v1801, 0.0
        %1851 = vadd.xlane.f32.xlu0 %v1850
        %v1852 = vpop.xlane.xlu0 %1851
        %v1853 = vsel %vm1699, %v1803, 0.0
        %1854 = vadd.xlane.f32.xlu0 %v1853
        %v1855 = vpop.xlane.xlu0 %1854
        %v1856 = vsel %vm1699, %v1805, 0.0
        %1857 = vadd.xlane.f32.xlu0 %v1856
        %v1858 = vpop.xlane.xlu0 %1857
        %v1859 = vsel %vm1699, %v1807, 0.0
        %1860 = vadd.xlane.f32.xlu0 %v1859
        %v1861 = vpop.xlane.xlu0 %1860
        %v1862 = vrcp.pop %v1810
        %v1863 = vrcp.pop %v1813
        %v1864 = vrcp.pop %v1816
        %v1865 = vrcp.pop %v1819
        %v1866 = vrcp.pop %v1822
        %v1867 = vrcp.pop %v1825
        %v1868 = vrcp.pop %v1828
        %v1869 = vrcp.pop %v1831
        %v1870 = vrcp.pop %v1834
        %v1871 = vrcp.pop %v1837
        %v1872 = vrcp.pop %v1840
        %v1873 = vrcp.pop %v1843
        %v1874 = vrcp.pop %v1846
        %v1875 = vrcp.pop %v1849
        %v1876 = vrcp.pop %v1852
        %v1877 = vrcp.pop %v1855
        %v1878 = vrcp.pop %v1858
        %v1879 = vrcp.pop %v1861
        %v1880 = vmul.f32 %v1773, %v1862
        %v1881 = vmul.f32 %v1775, %v1863
        %v1882 = vmul.f32 %v1777, %v1864
        %v1883 = vmul.f32 %v1779, %v1865
        %v1884 = vmul.f32 %v1781, %v1866
        %v1885 = vmul.f32 %v1783, %v1867
        %v1886 = vmul.f32 %v1785, %v1868
        %v1887 = vmul.f32 %v1787, %v1869
        %v1888 = vmul.f32 %v1789, %v1870
        %v1889 = vmul.f32 %v1791, %v1871
        %v1890 = vmul.f32 %v1793, %v1872
        %v1891 = vmul.f32 %v1795, %v1873
        %v1892 = vmul.f32 %v1797, %v1874
        %v1893 = vmul.f32 %v1799, %v1875
        %v1894 = vmul.f32 %v1801, %v1876
        %v1895 = vmul.f32 %v1803, %v1877
        %v1896 = vmul.f32 %v1805, %v1878
        %v1897 = vmul.f32 %v1807, %v1879
        %1898 = vrot.lane.b32.xlu0 %v1228, 64
        %v1899 = vpop.permute.xlu0 %1898
        %1900 = vrot.lane.b32.xlu0 %v1233, 64
        %v1901 = vpop.permute.xlu0 %1900
        %1902 = vrot.lane.b32.xlu0 %v1238, 64
        %v1903 = vpop.permute.xlu0 %1902
        %1904 = vrot.lane.b32.xlu0 %v1243, 64
        %v1905 = vpop.permute.xlu0 %1904
        %1906 = vrot.lane.b32.xlu0 %v1248, 64
        %v1907 = vpop.permute.xlu0 %1906
        %1908 = vrot.lane.b32.xlu0 %v1253, 64
        %v1909 = vpop.permute.xlu0 %1908
        %1910 = vrot.lane.b32.xlu0 %v1258, 64
        %v1911 = vpop.permute.xlu0 %1910
        %1912 = vrot.lane.b32.xlu0 %v1263, 64
        %v1913 = vpop.permute.xlu0 %1912
        %1914 = vrot.lane.b32.xlu0 %v1268, 64
        %v1915 = vpop.permute.xlu0 %1914
        %v1926 = vsel %vm1699, %v1880, 0
        %v1929 = vsel %vm1699, %v1881, 0
        %v1932 = vsel %vm1699, %v1882, 0
        %v1935 = vsel %vm1699, %v1883, 0
        %v1938 = vsel %vm1699, %v1884, 0
        %v1941 = vsel %vm1699, %v1885, 0
        %v1944 = vsel %vm1699, %v1886, 0
        %v1947 = vsel %vm1699, %v1887, 0
        %v1950 = vsel %vm1699, %v1888, 0
        %1952 = vmatprep.subr.mxu0 0.0
        %1953 = vmatpush1.msra.mxu0 %v1899
        %1954 = vmatprep.subr.mxu0 0.0
        %1955 = vmatpush1.msra.mxu0 %v1901
        %1956 = vmatprep.subr.mxu0 0.0
        %1957 = vmatpush1.msra.mxu0 %v1903
        %1958 = vmatprep.subr.mxu0 0.0
        %1959 = vmatpush1.msra.mxu0 %v1905
        %1960 = vmatprep.subr.mxu0 0.0
        %1961 = vmatpush1.msra.mxu0 %v1907
        %1962 = vmatprep.subr.mxu0 0.0
        %1963 = vmatpush1.msra.mxu0 %v1909
        %1964 = vmatprep.subr.mxu0 0.0
        %1965 = vmatpush1.msra.mxu0 %v1911
        %1966 = vmatprep.subr.mxu0 0.0
        %1967 = vmatpush1.msra.mxu0 %v1913
        %1968 = vmatprep.subr.mxu0 0.0
        %1969 = vmatpush1.msra.mxu0 %v1915
        %1970 = vmatprep.subr.mxu0 0.0
        %1971 = vmatpush1.msra.mxu0 0.0
        %1972 = vmatprep.subr.mxu0 0.0
        %1973 = vmatpush1.msra.mxu0 0.0
        %1974 = vmatprep.subr.mxu0 0.0
        %1975 = vmatpush1.msra.mxu0 0.0
        %1976 = vmatprep.subr.mxu0 0.0
        %1977 = vmatpush1.msra.mxu0 0.0
        %1978 = vmatprep.subr.mxu0 0.0
        %1979 = vmatpush1.msra.mxu0 0.0
        %1980 = vmatprep.subr.mxu0 0.0
        %1981 = vmatpush1.msra.mxu0 0.0
        %1982 = vmatprep.subr.mxu0 0.0
        %1983 = vmatpush1.msra.mxu0 0.0
        %1984 = vmatprep.subr.mxu0 0.0
        %1985 = vmatpush1.msra.mxu0 0.0
        %1986 = vmatprep.subr.mxu0 0.0
        %1987 = vmatpush1.msra.mxu0 0.0
        %1988 = vmatprep.subr.mxu0 0.0
        %1989 = vmatpush1.msra.mxu0 0.0
        %1990 = vmatprep.subr.mxu0 0.0
        %1991 = vmatpush1.msra.mxu0 0.0
        %1992 = vmatprep.subr.mxu0 0.0
        %1993 = vmatpush1.msra.mxu0 0.0
        %1994 = vmatprep.subr.mxu0 0.0
        %1995 = vmatpush1.msra.mxu0 0.0
        %1996 = vmatprep.subr.mxu0 0.0
        %1997 = vmatpush1.msra.mxu0 0.0
        %1998 = vmatprep.subr.mxu0 0.0
        %1999 = vmatpush1.msra.mxu0 0.0
        %2000 = vmatprep.subr.mxu0 0.0
        %2001 = vmatpush1.msra.mxu0 0.0
        %2002 = vmatprep.subr.mxu0 0.0
        %2003 = vmatpush1.msra.mxu0 0.0
        %2004 = vmatprep.subr.mxu0 0.0
        %2005 = vmatpush1.msra.mxu0 0.0
        %2006 = vmatprep.subr.mxu0 0.0
        %2007 = vmatpush1.msra.mxu0 0.0
        %2008 = vmatprep.subr.mxu0 0.0
        %2009 = vmatpush1.msra.mxu0 0.0
        %2010 = vmatprep.subr.mxu0 0.0
        %2011 = vmatpush1.msra.mxu0 0.0
        %2012 = vmatprep.subr.mxu0 0.0
        %2013 = vmatpush1.msra.mxu0 0.0
        %2014 = vmatprep.subr.mxu0 0.0
        %2015 = vmatpush1.msra.mxu0 0.0
        %2016 = vmatprep.mubr.f32.mxu0 0.0
        %2017 = vmatmul.mubr.f32.gmra.mrb[0].mxu0 %v1926
        %v2018 = vpop.f32.mrb[0].mxu0
        %v2019 = vadd.f32 0.0, %v2018
        %v2020 = vpop.f32.mrb[0].mxu0
        %2021 = vmatprep.mubr.f32.mxu0 0.0
        %2022 = vmatmul.mubr.f32.gmra.mrb[0].mxu0 %v1929
        %v2023 = vpop.f32.mrb[0].mxu0
        %v2024 = vadd.f32 0.0, %v2023
        %v2025 = vpop.f32.mrb[0].mxu0
        %2026 = vmatprep.mubr.f32.mxu0 0.0
        %2027 = vmatmul.mubr.f32.gmra.mrb[0].mxu0 %v1932
        %v2028 = vpop.f32.mrb[0].mxu0
        %v2029 = vadd.f32 0.0, %v2028
        %v2030 = vpop.f32.mrb[0].mxu0
        %2031 = vmatprep.mubr.f32.mxu0 0.0
        %2032 = vmatmul.mubr.f32.gmra.mrb[0].mxu0 %v1935
        %v2033 = vpop.f32.mrb[0].mxu0
        %v2034 = vadd.f32 0.0, %v2033
        %v2035 = vpop.f32.mrb[0].mxu0
        %2036 = vmatprep.mubr.f32.mxu0 0.0
        %2037 = vmatmul.mubr.f32.gmra.mrb[0].mxu0 %v1938
        %v2038 = vpop.f32.mrb[0].mxu0
        %v2039 = vadd.f32 0.0, %v2038
        %v2040 = vpop.f32.mrb[0].mxu0
        %2041 = vmatprep.mubr.f32.mxu0 0.0
        %2042 = vmatmul.mubr.f32.gmra.mrb[0].mxu0 %v1941
        %v2043 = vpop.f32.mrb[0].mxu0
        %v2044 = vadd.f32 0.0, %v2043
        %v2045 = vpop.f32.mrb[0].mxu0
        %2046 = vmatprep.mubr.f32.mxu0 0.0
        %2047 = vmatmul.mubr.f32.gmra.mrb[0].mxu0 %v1944
        %v2048 = vpop.f32.mrb[0].mxu0
        %v2049 = vadd.f32 0.0, %v2048
        %v2050 = vpop.f32.mrb[0].mxu0
        %2051 = vmatprep.mubr.f32.mxu0 0.0
        %2052 = vmatmul.mubr.f32.gmra.mrb[0].mxu0 %v1947
        %v2053 = vpop.f32.mrb[0].mxu0
        %v2054 = vadd.f32 0.0, %v2053
        %v2055 = vpop.f32.mrb[0].mxu0
        %2056 = vmatprep.mubr.f32.mxu0 0.0
        %2057 = vmatmul.mubr.f32.gmra.mrb[0].mxu0 %v1950
        %v2058 = vpop.f32.mrb[0].mxu0
        %v2059 = vadd.f32 0.0, %v2058
        %v2060 = vpop.f32.mrb[0].mxu0
        %2061 = vdwg.mxu0
        %2062 = vrot.lane.b32.xlu0 %v1273, 64
        %v2063 = vpop.permute.xlu0 %2062
        %2064 = vrot.lane.b32.xlu0 %v1278, 64
        %v2065 = vpop.permute.xlu0 %2064
        %2066 = vrot.lane.b32.xlu0 %v1283, 64
        %v2067 = vpop.permute.xlu0 %2066
        %2068 = vrot.lane.b32.xlu0 %v1288, 64
        %v2069 = vpop.permute.xlu0 %2068
        %2070 = vrot.lane.b32.xlu0 %v1293, 64
        %v2071 = vpop.permute.xlu0 %2070
        %2072 = vrot.lane.b32.xlu0 %v1298, 64
        %v2073 = vpop.permute.xlu0 %2072
        %2074 = vrot.lane.b32.xlu0 %v1303, 64
        %v2075 = vpop.permute.xlu0 %2074
        %2076 = vrot.lane.b32.xlu0 %v1308, 64
        %v2077 = vpop.permute.xlu0 %2076
        %2078 = vrot.lane.b32.xlu0 %v1313, 64
        %v2079 = vpop.permute.xlu0 %2078
        %v2090 = vsel %vm1699, %v1889, 0
        %v2093 = vsel %vm1699, %v1890, 0
        %v2096 = vsel %vm1699, %v1891, 0
        %v2099 = vsel %vm1699, %v1892, 0
        %v2102 = vsel %vm1699, %v1893, 0
        %v2105 = vsel %vm1699, %v1894, 0
        %v2108 = vsel %vm1699, %v1895, 0
        %v2111 = vsel %vm1699, %v1896, 0
        %v2114 = vsel %vm1699, %v1897, 0
        %2116 = vmatprep.subr.mxu0 0.0
        %2117 = vmatpush1.msra.mxu0 %v2063
        %2118 = vmatprep.subr.mxu0 0.0
        %2119 = vmatpush1.msra.mxu0 %v2065
        %2120 = vmatprep.subr.mxu0 0.0
        %2121 = vmatpush1.msra.mxu0 %v2067
        %2122 = vmatprep.subr.mxu0 0.0
        %2123 = vmatpush1.msra.mxu0 %v2069
        %2124 = vmatprep.subr.mxu0 0.0
        %2125 = vmatpush1.msra.mxu0 %v2071
        %2126 = vmatprep.subr.mxu0 0.0
        %2127 = vmatpush1.msra.mxu0 %v2073
        %2128 = vmatprep.subr.mxu0 0.0
        %2129 = vmatpush1.msra.mxu0 %v2075
        %2130 = vmatprep.subr.mxu0 0.0
        %2131 = vmatpush1.msra.mxu0 %v2077
        %2132 = vmatprep.subr.mxu0 0.0
        %2133 = vmatpush1.msra.mxu0 %v2079
        %2134 = vmatprep.subr.mxu0 0.0
        %2135 = vmatpush1.msra.mxu0 0.0
        %2136 = vmatprep.subr.mxu0 0.0
        %2137 = vmatpush1.msra.mxu0 0.0
        %2138 = vmatprep.subr.mxu0 0.0
        %2139 = vmatpush1.msra.mxu0 0.0
        %2140 = vmatprep.subr.mxu0 0.0
        %2141 = vmatpush1.msra.mxu0 0.0
        %2142 = vmatprep.subr.mxu0 0.0
        %2143 = vmatpush1.msra.mxu0 0.0
        %2144 = vmatprep.subr.mxu0 0.0
        %2145 = vmatpush1.msra.mxu0 0.0
        %2146 = vmatprep.subr.mxu0 0.0
        %2147 = vmatpush1.msra.mxu0 0.0
        %2148 = vmatprep.subr.mxu0 0.0
        %2149 = vmatpush1.msra.mxu0 0.0
        %2150 = vmatprep.subr.mxu0 0.0
        %2151 = vmatpush1.msra.mxu0 0.0
        %2152 = vmatprep.subr.mxu0 0.0
        %2153 = vmatpush1.msra.mxu0 0.0
        %2154 = vmatprep.subr.mxu0 0.0
        %2155 = vmatpush1.msra.mxu0 0.0
        %2156 = vmatprep.subr.mxu0 0.0
        %2157 = vmatpush1.msra.mxu0 0.0
        %2158 = vmatprep.subr.mxu0 0.0
        %2159 = vmatpush1.msra.mxu0 0.0
        %2160 = vmatprep.subr.mxu0 0.0
        %2161 = vmatpush1.msra.mxu0 0.0
        %2162 = vmatprep.subr.mxu0 0.0
        %2163 = vmatpush1.msra.mxu0 0.0
        %2164 = vmatprep.subr.mxu0 0.0
        %2165 = vmatpush1.msra.mxu0 0.0
        %2166 = vmatprep.subr.mxu0 0.0
        %2167 = vmatpush1.msra.mxu0 0.0
        %2168 = vmatprep.subr.mxu0 0.0
        %2169 = vmatpush1.msra.mxu0 0.0
        %2170 = vmatprep.subr.mxu0 0.0
        %2171 = vmatpush1.msra.mxu0 0.0
        %2172 = vmatprep.subr.mxu0 0.0
        %2173 = vmatpush1.msra.mxu0 0.0
        %2174 = vmatprep.subr.mxu0 0.0
        %2175 = vmatpush1.msra.mxu0 0.0
        %2176 = vmatprep.subr.mxu0 0.0
        %2177 = vmatpush1.msra.mxu0 0.0
        %2178 = vmatprep.subr.mxu0 0.0
        %2179 = vmatpush1.msra.mxu0 0.0
        %2180 = vmatprep.mubr.f32.mxu0 0.0
        %2181 = vmatmul.mubr.f32.gmra.mrb[0].mxu0 %v2090
        %v2182 = vpop.f32.mrb[0].mxu0
        %v2183 = vadd.f32 0.0, %v2182
        %v2184 = vpop.f32.mrb[0].mxu0
        %2185 = vmatprep.mubr.f32.mxu0 0.0
        %2186 = vmatmul.mubr.f32.gmra.mrb[0].mxu0 %v2093
        %v2187 = vpop.f32.mrb[0].mxu0
        %v2188 = vadd.f32 0.0, %v2187
        %v2189 = vpop.f32.mrb[0].mxu0
        %2190 = vmatprep.mubr.f32.mxu0 0.0
        %2191 = vmatmul.mubr.f32.gmra.mrb[0].mxu0 %v2096
        %v2192 = vpop.f32.mrb[0].mxu0
        %v2193 = vadd.f32 0.0, %v2192
        %v2194 = vpop.f32.mrb[0].mxu0
        %2195 = vmatprep.mubr.f32.mxu0 0.0
        %2196 = vmatmul.mubr.f32.gmra.mrb[0].mxu0 %v2099
        %v2197 = vpop.f32.mrb[0].mxu0
        %v2198 = vadd.f32 0.0, %v2197
        %v2199 = vpop.f32.mrb[0].mxu0
        %2200 = vmatprep.mubr.f32.mxu0 0.0
        %2201 = vmatmul.mubr.f32.gmra.mrb[0].mxu0 %v2102
        %v2202 = vpop.f32.mrb[0].mxu0
        %v2203 = vadd.f32 0.0, %v2202
        %v2204 = vpop.f32.mrb[0].mxu0
        %2205 = vmatprep.mubr.f32.mxu0 0.0
        %2206 = vmatmul.mubr.f32.gmra.mrb[0].mxu0 %v2105
        %v2207 = vpop.f32.mrb[0].mxu0
        %v2208 = vadd.f32 0.0, %v2207
        %v2209 = vpop.f32.mrb[0].mxu0
        %2210 = vmatprep.mubr.f32.mxu0 0.0
        %2211 = vmatmul.mubr.f32.gmra.mrb[0].mxu0 %v2108
        %v2212 = vpop.f32.mrb[0].mxu0
        %v2213 = vadd.f32 0.0, %v2212
        %v2214 = vpop.f32.mrb[0].mxu0
        %2215 = vmatprep.mubr.f32.mxu0 0.0
        %2216 = vmatmul.mubr.f32.gmra.mrb[0].mxu0 %v2111
        %v2217 = vpop.f32.mrb[0].mxu0
        %v2218 = vadd.f32 0.0, %v2217
        %v2219 = vpop.f32.mrb[0].mxu0
        %2220 = vmatprep.mubr.f32.mxu0 0.0
        %2221 = vmatmul.mubr.f32.gmra.mrb[0].mxu0 %v2114
        %v2222 = vpop.f32.mrb[0].mxu0
        %v2223 = vadd.f32 0.0, %v2222
        %v2224 = vpop.f32.mrb[0].mxu0
        %2225 = vdwg.mxu0
        %2226 = vrot.lane.b32.xlu0 %v1316, 120
        %v2227 = vpop.permute.xlu0 %2226
        %2228 = vrot.lane.b32.xlu0 %v1317, 120
        %v2229 = vpop.permute.xlu0 %2228
        %2230 = vrot.lane.b32.xlu0 %v1318, 120
        %v2231 = vpop.permute.xlu0 %2230
        %2232 = vrot.lane.b32.xlu0 %v1319, 120
        %v2233 = vpop.permute.xlu0 %2232
        %2234 = vrot.lane.b32.xlu0 %v1320, 120
        %v2235 = vpop.permute.xlu0 %2234
        %2236 = vrot.lane.b32.xlu0 %v1321, 120
        %v2237 = vpop.permute.xlu0 %2236
        %2238 = vrot.lane.b32.xlu0 %v1322, 120
        %v2239 = vpop.permute.xlu0 %2238
        %2240 = vrot.lane.b32.xlu0 %v1323, 120
        %v2241 = vpop.permute.xlu0 %2240
        %2242 = vrot.lane.b32.xlu0 %v1324, 120
        %v2243 = vpop.permute.xlu0 %2242
        %2244 = vrot.lane.b32.xlu0 %v1228, 88
        %v2245 = vpop.permute.xlu0 %2244
        %2246 = vrot.lane.b32.xlu0 %v1233, 88
        %v2247 = vpop.permute.xlu0 %2246
        %2248 = vrot.lane.b32.xlu0 %v1238, 88
        %v2249 = vpop.permute.xlu0 %2248
        %2250 = vrot.lane.b32.xlu0 %v1243, 88
        %v2251 = vpop.permute.xlu0 %2250
        %2252 = vrot.lane.b32.xlu0 %v1248, 88
        %v2253 = vpop.permute.xlu0 %2252
        %2254 = vrot.lane.b32.xlu0 %v1253, 88
        %v2255 = vpop.permute.xlu0 %2254
        %2256 = vrot.lane.b32.xlu0 %v1258, 88
        %v2257 = vpop.permute.xlu0 %2256
        %2258 = vrot.lane.b32.xlu0 %v1263, 88
        %v2259 = vpop.permute.xlu0 %2258
        %2260 = vrot.lane.b32.xlu0 %v1268, 88
        %v2261 = vpop.permute.xlu0 %2260
        %v2262 = vsel %vm1361, %v2227, 0
        %v2264 = vsel %vm1361, %v2229, 0
        %v2266 = vsel %vm1361, %v2231, 0
        %v2268 = vsel %vm1361, %v2233, 0
        %v2270 = vsel %vm1361, %v2235, 0
        %v2272 = vsel %vm1361, %v2237, 0
        %v2274 = vsel %vm1361, %v2239, 0
        %v2276 = vsel %vm1361, %v2241, 0
        %v2278 = vsel %vm1361, %v2243, 0
        %v2280 = vsel %vm1361, %v2245, 0
        %v2282 = vsel %vm1361, %v2247, 0
        %v2284 = vsel %vm1361, %v2249, 0
        %v2286 = vsel %vm1361, %v2251, 0
        %v2288 = vsel %vm1361, %v2253, 0
        %v2290 = vsel %vm1361, %v2255, 0
        %v2292 = vsel %vm1361, %v2257, 0
        %v2294 = vsel %vm1361, %v2259, 0
        %v2296 = vsel %vm1361, %v2261, 0
        %2298 = vmatprep.subr.mxu0 0.0
        %2299 = vmatpush1.xpose.msra.mxu0 %v2280
        %2300 = vmatprep.subr.mxu0 0.0
        %2301 = vmatpush1.xpose.msra.mxu0 %v2282
        %2302 = vmatprep.subr.mxu0 0.0
        %2303 = vmatpush1.xpose.msra.mxu0 %v2284
        %2304 = vmatprep.subr.mxu0 0.0
        %2305 = vmatpush1.xpose.msra.mxu0 %v2286
        %2306 = vmatprep.subr.mxu0 0.0
        %2307 = vmatpush1.xpose.msra.mxu0 %v2288
        %2308 = vmatprep.subr.mxu0 0.0
        %2309 = vmatpush1.xpose.msra.mxu0 %v2290
        %2310 = vmatprep.subr.mxu0 0.0
        %2311 = vmatpush1.xpose.msra.mxu0 %v2292
        %2312 = vmatprep.subr.mxu0 0.0
        %2313 = vmatpush1.xpose.msra.mxu0 %v2294
        %2314 = vmatprep.subr.mxu0 0.0
        %2315 = vmatpush1.xpose.msra.mxu0 %v2296
        %2316 = vmatprep.subr.mxu0 0.0
        %2317 = vmatpush1.xpose.msra.mxu0 0.0
        %2318 = vmatprep.subr.mxu0 0.0
        %2319 = vmatpush1.xpose.msra.mxu0 0.0
        %2320 = vmatprep.subr.mxu0 0.0
        %2321 = vmatpush1.xpose.msra.mxu0 0.0
        %2322 = vmatprep.subr.mxu0 0.0
        %2323 = vmatpush1.xpose.msra.mxu0 0.0
        %2324 = vmatprep.subr.mxu0 0.0
        %2325 = vmatpush1.xpose.msra.mxu0 0.0
        %2326 = vmatprep.subr.mxu0 0.0
        %2327 = vmatpush1.xpose.msra.mxu0 0.0
        %2328 = vmatprep.subr.mxu0 0.0
        %2329 = vmatpush1.xpose.msra.mxu0 0.0
        %2330 = vmatprep.subr.mxu0 0.0
        %2331 = vmatpush1.xpose.msra.mxu0 0.0
        %2332 = vmatprep.subr.mxu0 0.0
        %2333 = vmatpush1.xpose.msra.mxu0 0.0
        %2334 = vmatprep.subr.mxu0 0.0
        %2335 = vmatpush1.xpose.msra.mxu0 0.0
        %2336 = vmatprep.subr.mxu0 0.0
        %2337 = vmatpush1.xpose.msra.mxu0 0.0
        %2338 = vmatprep.subr.mxu0 0.0
        %2339 = vmatpush1.xpose.msra.mxu0 0.0
        %2340 = vmatprep.subr.mxu0 0.0
        %2341 = vmatpush1.xpose.msra.mxu0 0.0
        %2342 = vmatprep.subr.mxu0 0.0
        %2343 = vmatpush1.xpose.msra.mxu0 0.0
        %2344 = vmatprep.subr.mxu0 0.0
        %2345 = vmatpush1.xpose.msra.mxu0 0.0
        %2346 = vmatprep.subr.mxu0 0.0
        %2347 = vmatpush1.xpose.msra.mxu0 0.0
        %2348 = vmatprep.subr.mxu0 0.0
        %2349 = vmatpush1.xpose.msra.mxu0 0.0
        %2350 = vmatprep.subr.mxu0 0.0
        %2351 = vmatpush1.xpose.msra.mxu0 0.0
        %2352 = vmatprep.subr.mxu0 0.0
        %2353 = vmatpush1.xpose.msra.mxu0 0.0
        %2354 = vmatprep.subr.mxu0 0.0
        %2355 = vmatpush1.xpose.msra.mxu0 0.0
        %2356 = vmatprep.subr.mxu0 0.0
        %2357 = vmatpush1.xpose.msra.mxu0 0.0
        %2358 = vmatprep.subr.mxu0 0.0
        %2359 = vmatpush1.xpose.msra.mxu0 0.0
        %2360 = vmatprep.subr.mxu0 0.0
        %2361 = vmatpush1.xpose.msra.mxu0 0.0
        %2362 = vmatprep.mubr.f32.mxu0 0.0
        %2363 = vmatmul.mubr.f32.gmra.mrb[0].mxu0 %v2262
        %v2364 = vpop.f32.mrb[0].mxu0
        %v2365 = vadd.f32 0.0, %v2364
        %v2366 = vpop.f32.mrb[0].mxu0
        %2367 = vmatprep.mubr.f32.mxu0 0.0
        %2368 = vmatmul.mubr.f32.gmra.mrb[0].mxu0 %v2264
        %v2369 = vpop.f32.mrb[0].mxu0
        %v2370 = vadd.f32 0.0, %v2369
        %v2371 = vpop.f32.mrb[0].mxu0
        %2372 = vmatprep.mubr.f32.mxu0 0.0
        %2373 = vmatmul.mubr.f32.gmra.mrb[0].mxu0 %v2266
        %v2374 = vpop.f32.mrb[0].mxu0
        %v2375 = vadd.f32 0.0, %v2374
        %v2376 = vpop.f32.mrb[0].mxu0
        %2377 = vmatprep.mubr.f32.mxu0 0.0
        %2378 = vmatmul.mubr.f32.gmra.mrb[0].mxu0 %v2268
        %v2379 = vpop.f32.mrb[0].mxu0
        %v2380 = vadd.f32 0.0, %v2379
        %v2381 = vpop.f32.mrb[0].mxu0
        %2382 = vmatprep.mubr.f32.mxu0 0.0
        %2383 = vmatmul.mubr.f32.gmra.mrb[0].mxu0 %v2270
        %v2384 = vpop.f32.mrb[0].mxu0
        %v2385 = vadd.f32 0.0, %v2384
        %v2386 = vpop.f32.mrb[0].mxu0
        %2387 = vmatprep.mubr.f32.mxu0 0.0
        %2388 = vmatmul.mubr.f32.gmra.mrb[0].mxu0 %v2272
        %v2389 = vpop.f32.mrb[0].mxu0
        %v2390 = vadd.f32 0.0, %v2389
        %v2391 = vpop.f32.mrb[0].mxu0
        %2392 = vmatprep.mubr.f32.mxu0 0.0
        %2393 = vmatmul.mubr.f32.gmra.mrb[0].mxu0 %v2274
        %v2394 = vpop.f32.mrb[0].mxu0
        %v2395 = vadd.f32 0.0, %v2394
        %v2396 = vpop.f32.mrb[0].mxu0
        %2397 = vmatprep.mubr.f32.mxu0 0.0
        %2398 = vmatmul.mubr.f32.gmra.mrb[0].mxu0 %v2276
        %v2399 = vpop.f32.mrb[0].mxu0
        %v2400 = vadd.f32 0.0, %v2399
        %v2401 = vpop.f32.mrb[0].mxu0
        %2402 = vmatprep.mubr.f32.mxu0 0.0
        %2403 = vmatmul.mubr.f32.gmra.mrb[0].mxu0 %v2278
        %v2404 = vpop.f32.mrb[0].mxu0
        %v2405 = vadd.f32 0.0, %v2404
        %v2406 = vpop.f32.mrb[0].mxu0
        %2407 = vdwg.mxu0
        %2408 = vrot.lane.b32.xlu0 %v1325, 120
        %v2409 = vpop.permute.xlu0 %2408
        %2410 = vrot.lane.b32.xlu0 %v1326, 120
        %v2411 = vpop.permute.xlu0 %2410
        %2412 = vrot.lane.b32.xlu0 %v1327, 120
        %v2413 = vpop.permute.xlu0 %2412
        %2414 = vrot.lane.b32.xlu0 %v1328, 120
        %v2415 = vpop.permute.xlu0 %2414
        %2416 = vrot.lane.b32.xlu0 %v1329, 120
        %v2417 = vpop.permute.xlu0 %2416
        %2418 = vrot.lane.b32.xlu0 %v1330, 120
        %v2419 = vpop.permute.xlu0 %2418
        %2420 = vrot.lane.b32.xlu0 %v1331, 120
        %v2421 = vpop.permute.xlu0 %2420
        %2422 = vrot.lane.b32.xlu0 %v1332, 120
        %v2423 = vpop.permute.xlu0 %2422
        %2424 = vrot.lane.b32.xlu0 %v1333, 120
        %v2425 = vpop.permute.xlu0 %2424
        %2426 = vrot.lane.b32.xlu0 %v1273, 88
        %v2427 = vpop.permute.xlu0 %2426
        %2428 = vrot.lane.b32.xlu0 %v1278, 88
        %v2429 = vpop.permute.xlu0 %2428
        %2430 = vrot.lane.b32.xlu0 %v1283, 88
        %v2431 = vpop.permute.xlu0 %2430
        %2432 = vrot.lane.b32.xlu0 %v1288, 88
        %v2433 = vpop.permute.xlu0 %2432
        %2434 = vrot.lane.b32.xlu0 %v1293, 88
        %v2435 = vpop.permute.xlu0 %2434
        %2436 = vrot.lane.b32.xlu0 %v1298, 88
        %v2437 = vpop.permute.xlu0 %2436
        %2438 = vrot.lane.b32.xlu0 %v1303, 88
        %v2439 = vpop.permute.xlu0 %2438
        %2440 = vrot.lane.b32.xlu0 %v1308, 88
        %v2441 = vpop.permute.xlu0 %2440
        %2442 = vrot.lane.b32.xlu0 %v1313, 88
        %v2443 = vpop.permute.xlu0 %2442
        %v2444 = vsel %vm1361, %v2409, 0
        %v2446 = vsel %vm1361, %v2411, 0
        %v2448 = vsel %vm1361, %v2413, 0
        %v2450 = vsel %vm1361, %v2415, 0
        %v2452 = vsel %vm1361, %v2417, 0
        %v2454 = vsel %vm1361, %v2419, 0
        %v2456 = vsel %vm1361, %v2421, 0
        %v2458 = vsel %vm1361, %v2423, 0
        %v2460 = vsel %vm1361, %v2425, 0
        %v2462 = vsel %vm1361, %v2427, 0
        %v2464 = vsel %vm1361, %v2429, 0
        %v2466 = vsel %vm1361, %v2431, 0
        %v2468 = vsel %vm1361, %v2433, 0
        %v2470 = vsel %vm1361, %v2435, 0
        %v2472 = vsel %vm1361, %v2437, 0
        %v2474 = vsel %vm1361, %v2439, 0
        %v2476 = vsel %vm1361, %v2441, 0
        %v2478 = vsel %vm1361, %v2443, 0
        %2480 = vmatprep.subr.mxu0 0.0
        %2481 = vmatpush1.xpose.msra.mxu0 %v2462
        %2482 = vmatprep.subr.mxu0 0.0
        %2483 = vmatpush1.xpose.msra.mxu0 %v2464
        %2484 = vmatprep.subr.mxu0 0.0
        %2485 = vmatpush1.xpose.msra.mxu0 %v2466
        %2486 = vmatprep.subr.mxu0 0.0
        %2487 = vmatpush1.xpose.msra.mxu0 %v2468
        %2488 = vmatprep.subr.mxu0 0.0
        %2489 = vmatpush1.xpose.msra.mxu0 %v2470
        %2490 = vmatprep.subr.mxu0 0.0
        %2491 = vmatpush1.xpose.msra.mxu0 %v2472
        %2492 = vmatprep.subr.mxu0 0.0
        %2493 = vmatpush1.xpose.msra.mxu0 %v2474
        %2494 = vmatprep.subr.mxu0 0.0
        %2495 = vmatpush1.xpose.msra.mxu0 %v2476
        %2496 = vmatprep.subr.mxu0 0.0
        %2497 = vmatpush1.xpose.msra.mxu0 %v2478
        %2498 = vmatprep.subr.mxu0 0.0
        %2499 = vmatpush1.xpose.msra.mxu0 0.0
        %2500 = vmatprep.subr.mxu0 0.0
        %2501 = vmatpush1.xpose.msra.mxu0 0.0
        %2502 = vmatprep.subr.mxu0 0.0
        %2503 = vmatpush1.xpose.msra.mxu0 0.0
        %2504 = vmatprep.subr.mxu0 0.0
        %2505 = vmatpush1.xpose.msra.mxu0 0.0
        %2506 = vmatprep.subr.mxu0 0.0
        %2507 = vmatpush1.xpose.msra.mxu0 0.0
        %2508 = vmatprep.subr.mxu0 0.0
        %2509 = vmatpush1.xpose.msra.mxu0 0.0
        %2510 = vmatprep.subr.mxu0 0.0
        %2511 = vmatpush1.xpose.msra.mxu0 0.0
        %2512 = vmatprep.subr.mxu0 0.0
        %2513 = vmatpush1.xpose.msra.mxu0 0.0
        %2514 = vmatprep.subr.mxu0 0.0
        %2515 = vmatpush1.xpose.msra.mxu0 0.0
        %2516 = vmatprep.subr.mxu0 0.0
        %2517 = vmatpush1.xpose.msra.mxu0 0.0
        %2518 = vmatprep.subr.mxu0 0.0
        %2519 = vmatpush1.xpose.msra.mxu0 0.0
        %2520 = vmatprep.subr.mxu0 0.0
        %2521 = vmatpush1.xpose.msra.mxu0 0.0
        %2522 = vmatprep.subr.mxu0 0.0
        %2523 = vmatpush1.xpose.msra.mxu0 0.0
        %2524 = vmatprep.subr.mxu0 0.0
        %2525 = vmatpush1.xpose.msra.mxu0 0.0
        %2526 = vmatprep.subr.mxu0 0.0
        %2527 = vmatpush1.xpose.msra.mxu0 0.0
        %2528 = vmatprep.subr.mxu0 0.0
        %2529 = vmatpush1.xpose.msra.mxu0 0.0
        %2530 = vmatprep.subr.mxu0 0.0
        %2531 = vmatpush1.xpose.msra.mxu0 0.0
        %2532 = vmatprep.subr.mxu0 0.0
        %2533 = vmatpush1.xpose.msra.mxu0 0.0
        %2534 = vmatprep.subr.mxu0 0.0
        %2535 = vmatpush1.xpose.msra.mxu0 0.0
        %2536 = vmatprep.subr.mxu0 0.0
        %2537 = vmatpush1.xpose.msra.mxu0 0.0
        %2538 = vmatprep.subr.mxu0 0.0
        %2539 = vmatpush1.xpose.msra.mxu0 0.0
        %2540 = vmatprep.subr.mxu0 0.0
        %2541 = vmatpush1.xpose.msra.mxu0 0.0
        %2542 = vmatprep.subr.mxu0 0.0
        %2543 = vmatpush1.xpose.msra.mxu0 0.0
        %2544 = vmatprep.mubr.f32.mxu0 0.0
        %2545 = vmatmul.mubr.f32.gmra.mrb[0].mxu0 %v2444
        %v2546 = vpop.f32.mrb[0].mxu0
        %v2547 = vadd.f32 0.0, %v2546
        %v2548 = vpop.f32.mrb[0].mxu0
        %2549 = vmatprep.mubr.f32.mxu0 0.0
        %2550 = vmatmul.mubr.f32.gmra.mrb[0].mxu0 %v2446
        %v2551 = vpop.f32.mrb[0].mxu0
        %v2552 = vadd.f32 0.0, %v2551
        %v2553 = vpop.f32.mrb[0].mxu0
        %2554 = vmatprep.mubr.f32.mxu0 0.0
        %2555 = vmatmul.mubr.f32.gmra.mrb[0].mxu0 %v2448
        %v2556 = vpop.f32.mrb[0].mxu0
        %v2557 = vadd.f32 0.0, %v2556
        %v2558 = vpop.f32.mrb[0].mxu0
        %2559 = vmatprep.mubr.f32.mxu0 0.0
        %2560 = vmatmul.mubr.f32.gmra.mrb[0].mxu0 %v2450
        %v2561 = vpop.f32.mrb[0].mxu0
        %v2562 = vadd.f32 0.0, %v2561
        %v2563 = vpop.f32.mrb[0].mxu0
        %2564 = vmatprep.mubr.f32.mxu0 0.0
        %2565 = vmatmul.mubr.f32.gmra.mrb[0].mxu0 %v2452
        %v2566 = vpop.f32.mrb[0].mxu0
        %v2567 = vadd.f32 0.0, %v2566
        %v2568 = vpop.f32.mrb[0].mxu0
        %2569 = vmatprep.mubr.f32.mxu0 0.0
        %2570 = vmatmul.mubr.f32.gmra.mrb[0].mxu0 %v2454
        %v2571 = vpop.f32.mrb[0].mxu0
        %v2572 = vadd.f32 0.0, %v2571
        %v2573 = vpop.f32.mrb[0].mxu0
        %2574 = vmatprep.mubr.f32.mxu0 0.0
        %2575 = vmatmul.mubr.f32.gmra.mrb[0].mxu0 %v2456
        %v2576 = vpop.f32.mrb[0].mxu0
        %v2577 = vadd.f32 0.0, %v2576
        %v2578 = vpop.f32.mrb[0].mxu0
        %2579 = vmatprep.mubr.f32.mxu0 0.0
        %2580 = vmatmul.mubr.f32.gmra.mrb[0].mxu0 %v2458
        %v2581 = vpop.f32.mrb[0].mxu0
        %v2582 = vadd.f32 0.0, %v2581
        %v2583 = vpop.f32.mrb[0].mxu0
        %2584 = vmatprep.mubr.f32.mxu0 0.0
        %2585 = vmatmul.mubr.f32.gmra.mrb[0].mxu0 %v2460
        %v2586 = vpop.f32.mrb[0].mxu0
        %v2587 = vadd.f32 0.0, %v2586
        %v2588 = vpop.f32.mrb[0].mxu0
        %2589 = vdwg.mxu0
        %v2590 = vsel %vm1699, %v2365, -inf
        %2591 = vmax.xlane.f32.xlu0 %v2590
        %v2592 = vpop.xlane.xlu0 %2591
        %v2593 = vsel %vm1699, %v2370, -inf
        %2594 = vmax.xlane.f32.xlu0 %v2593
        %v2595 = vpop.xlane.xlu0 %2594
        %v2596 = vsel %vm1699, %v2375, -inf
        %2597 = vmax.xlane.f32.xlu0 %v2596
        %v2598 = vpop.xlane.xlu0 %2597
        %v2599 = vsel %vm1699, %v2380, -inf
        %2600 = vmax.xlane.f32.xlu0 %v2599
        %v2601 = vpop.xlane.xlu0 %2600
        %v2602 = vsel %vm1699, %v2385, -inf
        %2603 = vmax.xlane.f32.xlu0 %v2602
        %v2604 = vpop.xlane.xlu0 %2603
        %v2605 = vsel %vm1699, %v2390, -inf
        %2606 = vmax.xlane.f32.xlu0 %v2605
        %v2607 = vpop.xlane.xlu0 %2606
        %v2608 = vsel %vm1699, %v2395, -inf
        %2609 = vmax.xlane.f32.xlu0 %v2608
        %v2610 = vpop.xlane.xlu0 %2609
        %v2611 = vsel %vm1699, %v2400, -inf
        %2612 = vmax.xlane.f32.xlu0 %v2611
        %v2613 = vpop.xlane.xlu0 %2612
        %v2614 = vsel %vm1699, %v2405, -inf
        %2615 = vmax.xlane.f32.xlu0 %v2614
        %v2616 = vpop.xlane.xlu0 %2615
        %v2617 = vsel %vm1699, %v2547, -inf
        %2618 = vmax.xlane.f32.xlu0 %v2617
        %v2619 = vpop.xlane.xlu0 %2618
        %v2620 = vsel %vm1699, %v2552, -inf
        %2621 = vmax.xlane.f32.xlu0 %v2620
        %v2622 = vpop.xlane.xlu0 %2621
        %v2623 = vsel %vm1699, %v2557, -inf
        %2624 = vmax.xlane.f32.xlu0 %v2623
        %v2625 = vpop.xlane.xlu0 %2624
        %v2626 = vsel %vm1699, %v2562, -inf
        %2627 = vmax.xlane.f32.xlu0 %v2626
        %v2628 = vpop.xlane.xlu0 %2627
        %v2629 = vsel %vm1699, %v2567, -inf
        %2630 = vmax.xlane.f32.xlu0 %v2629
        %v2631 = vpop.xlane.xlu0 %2630
        %v2632 = vsel %vm1699, %v2572, -inf
        %2633 = vmax.xlane.f32.xlu0 %v2632
        %v2634 = vpop.xlane.xlu0 %2633
        %v2635 = vsel %vm1699, %v2577, -inf
        %2636 = vmax.xlane.f32.xlu0 %v2635
        %v2637 = vpop.xlane.xlu0 %2636
        %v2638 = vsel %vm1699, %v2582, -inf
        %2639 = vmax.xlane.f32.xlu0 %v2638
        %v2640 = vpop.xlane.xlu0 %2639
        %v2641 = vsel %vm1699, %v2587, -inf
        %2642 = vmax.xlane.f32.xlu0 %v2641
        %v2643 = vpop.xlane.xlu0 %2642
        %v2644 = vsub.f32 %v2365, %v2592
        %v2645 = vsub.f32 %v2370, %v2595
        %v2646 = vsub.f32 %v2375, %v2598
        %v2647 = vsub.f32 %v2380, %v2601
        %v2648 = vsub.f32 %v2385, %v2604
        %v2649 = vsub.f32 %v2390, %v2607
        %v2650 = vsub.f32 %v2395, %v2610
        %v2651 = vsub.f32 %v2400, %v2613
        %v2652 = vsub.f32 %v2405, %v2616
        %v2653 = vsub.f32 %v2547, %v2619
        %v2654 = vsub.f32 %v2552, %v2622
        %v2655 = vsub.f32 %v2557, %v2625
        %v2656 = vsub.f32 %v2562, %v2628
        %v2657 = vsub.f32 %v2567, %v2631
        %v2658 = vsub.f32 %v2572, %v2634
        %v2659 = vsub.f32 %v2577, %v2637
        %v2660 = vsub.f32 %v2582, %v2640
        %v2661 = vsub.f32 %v2587, %v2643
        %v2662 = vmul.f32 %v2644, 1.442695
        %v2663 = vpow.pop %v2662
        %v2664 = vmul.f32 %v2645, 1.442695
        %v2665 = vpow.pop %v2664
        %v2666 = vmul.f32 %v2646, 1.442695
        %v2667 = vpow.pop %v2666
        %v2668 = vmul.f32 %v2647, 1.442695
        %v2669 = vpow.pop %v2668
        %v2670 = vmul.f32 %v2648, 1.442695
        %v2671 = vpow.pop %v2670
        %v2672 = vmul.f32 %v2649, 1.442695
        %v2673 = vpow.pop %v2672
        %v2674 = vmul.f32 %v2650, 1.442695
        %v2675 = vpow.pop %v2674
        %v2676 = vmul.f32 %v2651, 1.442695
        %v2677 = vpow.pop %v2676
        %v2678 = vmul.f32 %v2652, 1.442695
        %v2679 = vpow.pop %v2678
        %v2680 = vmul.f32 %v2653, 1.442695
        %v2681 = vpow.pop %v2680
        %v2682 = vmul.f32 %v2654, 1.442695
        %v2683 = vpow.pop %v2682
        %v2684 = vmul.f32 %v2655, 1.442695
        %v2685 = vpow.pop %v2684
        %v2686 = vmul.f32 %v2656, 1.442695
        %v2687 = vpow.pop %v2686
        %v2688 = vmul.f32 %v2657, 1.442695
        %v2689 = vpow.pop %v2688
        %v2690 = vmul.f32 %v2658, 1.442695
        %v2691 = vpow.pop %v2690
        %v2692 = vmul.f32 %v2659, 1.442695
        %v2693 = vpow.pop %v2692
        %v2694 = vmul.f32 %v2660, 1.442695
        %v2695 = vpow.pop %v2694
        %v2696 = vmul.f32 %v2661, 1.442695
        %v2697 = vpow.pop %v2696
        %v2698 = vsel %vm1699, %v2663, 0.0
        %2699 = vadd.xlane.f32.xlu0 %v2698
        %v2700 = vpop.xlane.xlu0 %2699
        %v2701 = vsel %vm1699, %v2665, 0.0
        %2702 = vadd.xlane.f32.xlu0 %v2701
        %v2703 = vpop.xlane.xlu0 %2702
        %v2704 = vsel %vm1699, %v2667, 0.0
        %2705 = vadd.xlane.f32.xlu0 %v2704
        %v2706 = vpop.xlane.xlu0 %2705
        %v2707 = vsel %vm1699, %v2669, 0.0
        %2708 = vadd.xlane.f32.xlu0 %v2707
        %v2709 = vpop.xlane.xlu0 %2708
        %v2710 = vsel %vm1699, %v2671, 0.0
        %2711 = vadd.xlane.f32.xlu0 %v2710
        %v2712 = vpop.xlane.xlu0 %2711
        %v2713 = vsel %vm1699, %v2673, 0.0
        %2714 = vadd.xlane.f32.xlu0 %v2713
        %v2715 = vpop.xlane.xlu0 %2714
        %v2716 = vsel %vm1699, %v2675, 0.0
        %2717 = vadd.xlane.f32.xlu0 %v2716
        %v2718 = vpop.xlane.xlu0 %2717
        %v2719 = vsel %vm1699, %v2677, 0.0
        %2720 = vadd.xlane.f32.xlu0 %v2719
        %v2721 = vpop.xlane.xlu0 %2720
        %v2722 = vsel %vm1699, %v2679, 0.0
        %2723 = vadd.xlane.f32.xlu0 %v2722
        %v2724 = vpop.xlane.xlu0 %2723
        %v2725 = vsel %vm1699, %v2681, 0.0
        %2726 = vadd.xlane.f32.xlu0 %v2725
        %v2727 = vpop.xlane.xlu0 %2726
        %v2728 = vsel %vm1699, %v2683, 0.0
        %2729 = vadd.xlane.f32.xlu0 %v2728
        %v2730 = vpop.xlane.xlu0 %2729
        %v2731 = vsel %vm1699, %v2685, 0.0
        %2732 = vadd.xlane.f32.xlu0 %v2731
        %v2733 = vpop.xlane.xlu0 %2732
        %v2734 = vsel %vm1699, %v2687, 0.0
        %2735 = vadd.xlane.f32.xlu0 %v2734
        %v2736 = vpop.xlane.xlu0 %2735
        %v2737 = vsel %vm1699, %v2689, 0.0
        %2738 = vadd.xlane.f32.xlu0 %v2737
        %v2739 = vpop.xlane.xlu0 %2738
        %v2740 = vsel %vm1699, %v2691, 0.0
        %2741 = vadd.xlane.f32.xlu0 %v2740
        %v2742 = vpop.xlane.xlu0 %2741
        %v2743 = vsel %vm1699, %v2693, 0.0
        %2744 = vadd.xlane.f32.xlu0 %v2743
        %v2745 = vpop.xlane.xlu0 %2744
        %v2746 = vsel %vm1699, %v2695, 0.0
        %2747 = vadd.xlane.f32.xlu0 %v2746
        %v2748 = vpop.xlane.xlu0 %2747
        %v2749 = vsel %vm1699, %v2697, 0.0
        %2750 = vadd.xlane.f32.xlu0 %v2749
        %v2751 = vpop.xlane.xlu0 %2750
        %v2752 = vrcp.pop %v2700
        %v2753 = vrcp.pop %v2703
        %v2754 = vrcp.pop %v2706
        %v2755 = vrcp.pop %v2709
        %v2756 = vrcp.pop %v2712
        %v2757 = vrcp.pop %v2715
        %v2758 = vrcp.pop %v2718
        %v2759 = vrcp.pop %v2721
        %v2760 = vrcp.pop %v2724
        %v2761 = vrcp.pop %v2727
        %v2762 = vrcp.pop %v2730
        %v2763 = vrcp.pop %v2733
        %v2764 = vrcp.pop %v2736
        %v2765 = vrcp.pop %v2739
        %v2766 = vrcp.pop %v2742
        %v2767 = vrcp.pop %v2745
        %v2768 = vrcp.pop %v2748
        %v2769 = vrcp.pop %v2751
        %v2770 = vmul.f32 %v2663, %v2752
        %v2771 = vmul.f32 %v2665, %v2753
        %v2772 = vmul.f32 %v2667, %v2754
        %v2773 = vmul.f32 %v2669, %v2755
        %v2774 = vmul.f32 %v2671, %v2756
        %v2775 = vmul.f32 %v2673, %v2757
        %v2776 = vmul.f32 %v2675, %v2758
        %v2777 = vmul.f32 %v2677, %v2759
        %v2778 = vmul.f32 %v2679, %v2760
        %v2779 = vmul.f32 %v2681, %v2761
        %v2780 = vmul.f32 %v2683, %v2762
        %v2781 = vmul.f32 %v2685, %v2763
        %v2782 = vmul.f32 %v2687, %v2764
        %v2783 = vmul.f32 %v2689, %v2765
        %v2784 = vmul.f32 %v2691, %v2766
        %v2785 = vmul.f32 %v2693, %v2767
        %v2786 = vmul.f32 %v2695, %v2768
        %v2787 = vmul.f32 %v2697, %v2769
        %2788 = vrot.lane.b32.xlu0 %v1228, 56
        %v2789 = vpop.permute.xlu0 %2788
        %2790 = vrot.lane.b32.xlu0 %v1233, 56
        %v2791 = vpop.permute.xlu0 %2790
        %2792 = vrot.lane.b32.xlu0 %v1238, 56
        %v2793 = vpop.permute.xlu0 %2792
        %2794 = vrot.lane.b32.xlu0 %v1243, 56
        %v2795 = vpop.permute.xlu0 %2794
        %2796 = vrot.lane.b32.xlu0 %v1248, 56
        %v2797 = vpop.permute.xlu0 %2796
        %2798 = vrot.lane.b32.xlu0 %v1253, 56
        %v2799 = vpop.permute.xlu0 %2798
        %2800 = vrot.lane.b32.xlu0 %v1258, 56
        %v2801 = vpop.permute.xlu0 %2800
        %2802 = vrot.lane.b32.xlu0 %v1263, 56
        %v2803 = vpop.permute.xlu0 %2802
        %2804 = vrot.lane.b32.xlu0 %v1268, 56
        %v2805 = vpop.permute.xlu0 %2804
        %v2816 = vsel %vm1699, %v2770, 0
        %v2819 = vsel %vm1699, %v2771, 0
        %v2822 = vsel %vm1699, %v2772, 0
        %v2825 = vsel %vm1699, %v2773, 0
        %v2828 = vsel %vm1699, %v2774, 0
        %v2831 = vsel %vm1699, %v2775, 0
        %v2834 = vsel %vm1699, %v2776, 0
        %v2837 = vsel %vm1699, %v2777, 0
        %v2840 = vsel %vm1699, %v2778, 0
        %2842 = vmatprep.subr.mxu0 0.0
        %2843 = vmatpush1.msra.mxu0 %v2789
        %2844 = vmatprep.subr.mxu0 0.0
        %2845 = vmatpush1.msra.mxu0 %v2791
        %2846 = vmatprep.subr.mxu0 0.0
        %2847 = vmatpush1.msra.mxu0 %v2793
        %2848 = vmatprep.subr.mxu0 0.0
        %2849 = vmatpush1.msra.mxu0 %v2795
        %2850 = vmatprep.subr.mxu0 0.0
        %2851 = vmatpush1.msra.mxu0 %v2797
        %2852 = vmatprep.subr.mxu0 0.0
        %2853 = vmatpush1.msra.mxu0 %v2799
        %2854 = vmatprep.subr.mxu0 0.0
        %2855 = vmatpush1.msra.mxu0 %v2801
        %2856 = vmatprep.subr.mxu0 0.0
        %2857 = vmatpush1.msra.mxu0 %v2803
        %2858 = vmatprep.subr.mxu0 0.0
        %2859 = vmatpush1.msra.mxu0 %v2805
        %2860 = vmatprep.subr.mxu0 0.0
        %2861 = vmatpush1.msra.mxu0 0.0
        %2862 = vmatprep.subr.mxu0 0.0
        %2863 = vmatpush1.msra.mxu0 0.0
        %2864 = vmatprep.subr.mxu0 0.0
        %2865 = vmatpush1.msra.mxu0 0.0
        %2866 = vmatprep.subr.mxu0 0.0
        %2867 = vmatpush1.msra.mxu0 0.0
        %2868 = vmatprep.subr.mxu0 0.0
        %2869 = vmatpush1.msra.mxu0 0.0
        %2870 = vmatprep.subr.mxu0 0.0
        %2871 = vmatpush1.msra.mxu0 0.0
        %2872 = vmatprep.subr.mxu0 0.0
        %2873 = vmatpush1.msra.mxu0 0.0
        %2874 = vmatprep.subr.mxu0 0.0
        %2875 = vmatpush1.msra.mxu0 0.0
        %2876 = vmatprep.subr.mxu0 0.0
        %2877 = vmatpush1.msra.mxu0 0.0
        %2878 = vmatprep.subr.mxu0 0.0
        %2879 = vmatpush1.msra.mxu0 0.0
        %2880 = vmatprep.subr.mxu0 0.0
        %2881 = vmatpush1.msra.mxu0 0.0
        %2882 = vmatprep.subr.mxu0 0.0
        %2883 = vmatpush1.msra.mxu0 0.0
        %2884 = vmatprep.subr.mxu0 0.0
        %2885 = vmatpush1.msra.mxu0 0.0
        %2886 = vmatprep.subr.mxu0 0.0
        %2887 = vmatpush1.msra.mxu0 0.0
        %2888 = vmatprep.subr.mxu0 0.0
        %2889 = vmatpush1.msra.mxu0 0.0
        %2890 = vmatprep.subr.mxu0 0.0
        %2891 = vmatpush1.msra.mxu0 0.0
        %2892 = vmatprep.subr.mxu0 0.0
        %2893 = vmatpush1.msra.mxu0 0.0
        %2894 = vmatprep.subr.mxu0 0.0
        %2895 = vmatpush1.msra.mxu0 0.0
        %2896 = vmatprep.subr.mxu0 0.0
        %2897 = vmatpush1.msra.mxu0 0.0
        %2898 = vmatprep.subr.mxu0 0.0
        %2899 = vmatpush1.msra.mxu0 0.0
        %2900 = vmatprep.subr.mxu0 0.0
        %2901 = vmatpush1.msra.mxu0 0.0
        %2902 = vmatprep.subr.mxu0 0.0
        %2903 = vmatpush1.msra.mxu0 0.0
        %2904 = vmatprep.subr.mxu0 0.0
        %2905 = vmatpush1.msra.mxu0 0.0
        %2906 = vmatprep.mubr.f32.mxu0 0.0
        %2907 = vmatmul.mubr.f32.gmra.mrb[0].mxu0 %v2816
        %v2908 = vpop.f32.mrb[0].mxu0
        %v2909 = vadd.f32 0.0, %v2908
        %v2910 = vpop.f32.mrb[0].mxu0
        %2911 = vmatprep.mubr.f32.mxu0 0.0
        %2912 = vmatmul.mubr.f32.gmra.mrb[0].mxu0 %v2819
        %v2913 = vpop.f32.mrb[0].mxu0
        %v2914 = vadd.f32 0.0, %v2913
        %v2915 = vpop.f32.mrb[0].mxu0
        %2916 = vmatprep.mubr.f32.mxu0 0.0
        %2917 = vmatmul.mubr.f32.gmra.mrb[0].mxu0 %v2822
        %v2918 = vpop.f32.mrb[0].mxu0
        %v2919 = vadd.f32 0.0, %v2918
        %v2920 = vpop.f32.mrb[0].mxu0
        %2921 = vmatprep.mubr.f32.mxu0 0.0
        %2922 = vmatmul.mubr.f32.gmra.mrb[0].mxu0 %v2825
        %v2923 = vpop.f32.mrb[0].mxu0
        %v2924 = vadd.f32 0.0, %v2923
        %v2925 = vpop.f32.mrb[0].mxu0
        %2926 = vmatprep.mubr.f32.mxu0 0.0
        %2927 = vmatmul.mubr.f32.gmra.mrb[0].mxu0 %v2828
        %v2928 = vpop.f32.mrb[0].mxu0
        %v2929 = vadd.f32 0.0, %v2928
        %v2930 = vpop.f32.mrb[0].mxu0
        %2931 = vmatprep.mubr.f32.mxu0 0.0
        %2932 = vmatmul.mubr.f32.gmra.mrb[0].mxu0 %v2831
        %v2933 = vpop.f32.mrb[0].mxu0
        %v2934 = vadd.f32 0.0, %v2933
        %v2935 = vpop.f32.mrb[0].mxu0
        %2936 = vmatprep.mubr.f32.mxu0 0.0
        %2937 = vmatmul.mubr.f32.gmra.mrb[0].mxu0 %v2834
        %v2938 = vpop.f32.mrb[0].mxu0
        %v2939 = vadd.f32 0.0, %v2938
        %v2940 = vpop.f32.mrb[0].mxu0
        %2941 = vmatprep.mubr.f32.mxu0 0.0
        %2942 = vmatmul.mubr.f32.gmra.mrb[0].mxu0 %v2837
        %v2943 = vpop.f32.mrb[0].mxu0
        %v2944 = vadd.f32 0.0, %v2943
        %v2945 = vpop.f32.mrb[0].mxu0
        %2946 = vmatprep.mubr.f32.mxu0 0.0
        %2947 = vmatmul.mubr.f32.gmra.mrb[0].mxu0 %v2840
        %v2948 = vpop.f32.mrb[0].mxu0
        %v2949 = vadd.f32 0.0, %v2948
        %v2950 = vpop.f32.mrb[0].mxu0
        %2951 = vdwg.mxu0
        %2952 = vrot.lane.b32.xlu0 %v1273, 56
        %v2953 = vpop.permute.xlu0 %2952
        %2954 = vrot.lane.b32.xlu0 %v1278, 56
        %v2955 = vpop.permute.xlu0 %2954
        %2956 = vrot.lane.b32.xlu0 %v1283, 56
        %v2957 = vpop.permute.xlu0 %2956
        %2958 = vrot.lane.b32.xlu0 %v1288, 56
        %v2959 = vpop.permute.xlu0 %2958
        %2960 = vrot.lane.b32.xlu0 %v1293, 56
        %v2961 = vpop.permute.xlu0 %2960
        %2962 = vrot.lane.b32.xlu0 %v1298, 56
        %v2963 = vpop.permute.xlu0 %2962
        %2964 = vrot.lane.b32.xlu0 %v1303, 56
        %v2965 = vpop.permute.xlu0 %2964
        %2966 = vrot.lane.b32.xlu0 %v1308, 56
        %v2967 = vpop.permute.xlu0 %2966
        %2968 = vrot.lane.b32.xlu0 %v1313, 56
        %v2969 = vpop.permute.xlu0 %2968
        %v2980 = vsel %vm1699, %v2779, 0
        %v2983 = vsel %vm1699, %v2780, 0
        %v2986 = vsel %vm1699, %v2781, 0
        %v2989 = vsel %vm1699, %v2782, 0
        %v2992 = vsel %vm1699, %v2783, 0
        %v2995 = vsel %vm1699, %v2784, 0
        %v2998 = vsel %vm1699, %v2785, 0
        %v3001 = vsel %vm1699, %v2786, 0
        %v3004 = vsel %vm1699, %v2787, 0
        %3006 = vmatprep.subr.mxu0 0.0
        %3007 = vmatpush1.msra.mxu0 %v2953
        %3008 = vmatprep.subr.mxu0 0.0
        %3009 = vmatpush1.msra.mxu0 %v2955
        %3010 = vmatprep.subr.mxu0 0.0
        %3011 = vmatpush1.msra.mxu0 %v2957
        %3012 = vmatprep.subr.mxu0 0.0
        %3013 = vmatpush1.msra.mxu0 %v2959
        %3014 = vmatprep.subr.mxu0 0.0
        %3015 = vmatpush1.msra.mxu0 %v2961
        %3016 = vmatprep.subr.mxu0 0.0
        %3017 = vmatpush1.msra.mxu0 %v2963
        %3018 = vmatprep.subr.mxu0 0.0
        %3019 = vmatpush1.msra.mxu0 %v2965
        %3020 = vmatprep.subr.mxu0 0.0
        %3021 = vmatpush1.msra.mxu0 %v2967
        %3022 = vmatprep.subr.mxu0 0.0
        %3023 = vmatpush1.msra.mxu0 %v2969
        %3024 = vmatprep.subr.mxu0 0.0
        %3025 = vmatpush1.msra.mxu0 0.0
        %3026 = vmatprep.subr.mxu0 0.0
        %3027 = vmatpush1.msra.mxu0 0.0
        %3028 = vmatprep.subr.mxu0 0.0
        %3029 = vmatpush1.msra.mxu0 0.0
        %3030 = vmatprep.subr.mxu0 0.0
        %3031 = vmatpush1.msra.mxu0 0.0
        %3032 = vmatprep.subr.mxu0 0.0
        %3033 = vmatpush1.msra.mxu0 0.0
        %3034 = vmatprep.subr.mxu0 0.0
        %3035 = vmatpush1.msra.mxu0 0.0
        %3036 = vmatprep.subr.mxu0 0.0
        %3037 = vmatpush1.msra.mxu0 0.0
        %3038 = vmatprep.subr.mxu0 0.0
        %3039 = vmatpush1.msra.mxu0 0.0
        %3040 = vmatprep.subr.mxu0 0.0
        %3041 = vmatpush1.msra.mxu0 0.0
        %3042 = vmatprep.subr.mxu0 0.0
        %3043 = vmatpush1.msra.mxu0 0.0
        %3044 = vmatprep.subr.mxu0 0.0
        %3045 = vmatpush1.msra.mxu0 0.0
        %3046 = vmatprep.subr.mxu0 0.0
        %3047 = vmatpush1.msra.mxu0 0.0
        %3048 = vmatprep.subr.mxu0 0.0
        %3049 = vmatpush1.msra.mxu0 0.0
        %3050 = vmatprep.subr.mxu0 0.0
        %3051 = vmatpush1.msra.mxu0 0.0
        %3052 = vmatprep.subr.mxu0 0.0
        %3053 = vmatpush1.msra.mxu0 0.0
        %3054 = vmatprep.subr.mxu0 0.0
        %3055 = vmatpush1.msra.mxu0 0.0
        %3056 = vmatprep.subr.mxu0 0.0
        %3057 = vmatpush1.msra.mxu0 0.0
        %3058 = vmatprep.subr.mxu0 0.0
        %3059 = vmatpush1.msra.mxu0 0.0
        %3060 = vmatprep.subr.mxu0 0.0
        %3061 = vmatpush1.msra.mxu0 0.0
        %3062 = vmatprep.subr.mxu0 0.0
        %3063 = vmatpush1.msra.mxu0 0.0
        %3064 = vmatprep.subr.mxu0 0.0
        %3065 = vmatpush1.msra.mxu0 0.0
        %3066 = vmatprep.subr.mxu0 0.0
        %3067 = vmatpush1.msra.mxu0 0.0
        %3068 = vmatprep.subr.mxu0 0.0
        %3069 = vmatpush1.msra.mxu0 0.0
        %3070 = vmatprep.mubr.f32.mxu0 0.0
        %3071 = vmatmul.mubr.f32.gmra.mrb[0].mxu0 %v2980
        %v3072 = vpop.f32.mrb[0].mxu0
        %v3073 = vadd.f32 0.0, %v3072
        %v3074 = vpop.f32.mrb[0].mxu0
        %3075 = vmatprep.mubr.f32.mxu0 0.0
        %3076 = vmatmul.mubr.f32.gmra.mrb[0].mxu0 %v2983
        %v3077 = vpop.f32.mrb[0].mxu0
        %v3078 = vadd.f32 0.0, %v3077
        %v3079 = vpop.f32.mrb[0].mxu0
        %3080 = vmatprep.mubr.f32.mxu0 0.0
        %3081 = vmatmul.mubr.f32.gmra.mrb[0].mxu0 %v2986
        %v3082 = vpop.f32.mrb[0].mxu0
        %v3083 = vadd.f32 0.0, %v3082
        %v3084 = vpop.f32.mrb[0].mxu0
        %3085 = vmatprep.mubr.f32.mxu0 0.0
        %3086 = vmatmul.mubr.f32.gmra.mrb[0].mxu0 %v2989
        %v3087 = vpop.f32.mrb[0].mxu0
        %v3088 = vadd.f32 0.0, %v3087
        %v3089 = vpop.f32.mrb[0].mxu0
        %3090 = vmatprep.mubr.f32.mxu0 0.0
        %3091 = vmatmul.mubr.f32.gmra.mrb[0].mxu0 %v2992
        %v3092 = vpop.f32.mrb[0].mxu0
        %v3093 = vadd.f32 0.0, %v3092
        %v3094 = vpop.f32.mrb[0].mxu0
        %3095 = vmatprep.mubr.f32.mxu0 0.0
        %3096 = vmatmul.mubr.f32.gmra.mrb[0].mxu0 %v2995
        %v3097 = vpop.f32.mrb[0].mxu0
        %v3098 = vadd.f32 0.0, %v3097
        %v3099 = vpop.f32.mrb[0].mxu0
        %3100 = vmatprep.mubr.f32.mxu0 0.0
        %3101 = vmatmul.mubr.f32.gmra.mrb[0].mxu0 %v2998
        %v3102 = vpop.f32.mrb[0].mxu0
        %v3103 = vadd.f32 0.0, %v3102
        %v3104 = vpop.f32.mrb[0].mxu0
        %3105 = vmatprep.mubr.f32.mxu0 0.0
        %3106 = vmatmul.mubr.f32.gmra.mrb[0].mxu0 %v3001
        %v3107 = vpop.f32.mrb[0].mxu0
        %v3108 = vadd.f32 0.0, %v3107
        %v3109 = vpop.f32.mrb[0].mxu0
        %3110 = vmatprep.mubr.f32.mxu0 0.0
        %3111 = vmatmul.mubr.f32.gmra.mrb[0].mxu0 %v3004
        %v3112 = vpop.f32.mrb[0].mxu0
        %v3113 = vadd.f32 0.0, %v3112
        %v3114 = vpop.f32.mrb[0].mxu0
        %3115 = vdwg.mxu0
        %3116 = vrot.lane.b32.xlu0 %v1316, 112
        %v3117 = vpop.permute.xlu0 %3116
        %3118 = vrot.lane.b32.xlu0 %v1317, 112
        %v3119 = vpop.permute.xlu0 %3118
        %3120 = vrot.lane.b32.xlu0 %v1318, 112
        %v3121 = vpop.permute.xlu0 %3120
        %3122 = vrot.lane.b32.xlu0 %v1319, 112
        %v3123 = vpop.permute.xlu0 %3122
        %3124 = vrot.lane.b32.xlu0 %v1320, 112
        %v3125 = vpop.permute.xlu0 %3124
        %3126 = vrot.lane.b32.xlu0 %v1321, 112
        %v3127 = vpop.permute.xlu0 %3126
        %3128 = vrot.lane.b32.xlu0 %v1322, 112
        %v3129 = vpop.permute.xlu0 %3128
        %3130 = vrot.lane.b32.xlu0 %v1323, 112
        %v3131 = vpop.permute.xlu0 %3130
        %3132 = vrot.lane.b32.xlu0 %v1324, 112
        %v3133 = vpop.permute.xlu0 %3132
        %3134 = vrot.lane.b32.xlu0 %v1228, 80
        %v3135 = vpop.permute.xlu0 %3134
        %3136 = vrot.lane.b32.xlu0 %v1233, 80
        %v3137 = vpop.permute.xlu0 %3136
        %3138 = vrot.lane.b32.xlu0 %v1238, 80
        %v3139 = vpop.permute.xlu0 %3138
        %3140 = vrot.lane.b32.xlu0 %v1243, 80
        %v3141 = vpop.permute.xlu0 %3140
        %3142 = vrot.lane.b32.xlu0 %v1248, 80
        %v3143 = vpop.permute.xlu0 %3142
        %3144 = vrot.lane.b32.xlu0 %v1253, 80
        %v3145 = vpop.permute.xlu0 %3144
        %3146 = vrot.lane.b32.xlu0 %v1258, 80
        %v3147 = vpop.permute.xlu0 %3146
        %3148 = vrot.lane.b32.xlu0 %v1263, 80
        %v3149 = vpop.permute.xlu0 %3148
        %3150 = vrot.lane.b32.xlu0 %v1268, 80
        %v3151 = vpop.permute.xlu0 %3150
        %v3152 = vsel %vm1361, %v3117, 0
        %v3154 = vsel %vm1361, %v3119, 0
        %v3156 = vsel %vm1361, %v3121, 0
        %v3158 = vsel %vm1361, %v3123, 0
        %v3160 = vsel %vm1361, %v3125, 0
        %v3162 = vsel %vm1361, %v3127, 0
        %v3164 = vsel %vm1361, %v3129, 0
        %v3166 = vsel %vm1361, %v3131, 0
        %v3168 = vsel %vm1361, %v3133, 0
        %v3170 = vsel %vm1361, %v3135, 0
        %v3172 = vsel %vm1361, %v3137, 0
        %v3174 = vsel %vm1361, %v3139, 0
        %v3176 = vsel %vm1361, %v3141, 0
        %v3178 = vsel %vm1361, %v3143, 0
        %v3180 = vsel %vm1361, %v3145, 0
        %v3182 = vsel %vm1361, %v3147, 0
        %v3184 = vsel %vm1361, %v3149, 0
        %v3186 = vsel %vm1361, %v3151, 0
        %3188 = vmatprep.subr.mxu0 0.0
        %3189 = vmatpush1.xpose.msra.mxu0 %v3170
        %3190 = vmatprep.subr.mxu0 0.0
        %3191 = vmatpush1.xpose.msra.mxu0 %v3172
        %3192 = vmatprep.subr.mxu0 0.0
        %3193 = vmatpush1.xpose.msra.mxu0 %v3174
        %3194 = vmatprep.subr.mxu0 0.0
        %3195 = vmatpush1.xpose.msra.mxu0 %v3176
        %3196 = vmatprep.subr.mxu0 0.0
        %3197 = vmatpush1.xpose.msra.mxu0 %v3178
        %3198 = vmatprep.subr.mxu0 0.0
        %3199 = vmatpush1.xpose.msra.mxu0 %v3180
        %3200 = vmatprep.subr.mxu0 0.0
        %3201 = vmatpush1.xpose.msra.mxu0 %v3182
        %3202 = vmatprep.subr.mxu0 0.0
        %3203 = vmatpush1.xpose.msra.mxu0 %v3184
        %3204 = vmatprep.subr.mxu0 0.0
        %3205 = vmatpush1.xpose.msra.mxu0 %v3186
        %3206 = vmatprep.subr.mxu0 0.0
        %3207 = vmatpush1.xpose.msra.mxu0 0.0
        %3208 = vmatprep.subr.mxu0 0.0
        %3209 = vmatpush1.xpose.msra.mxu0 0.0
        %3210 = vmatprep.subr.mxu0 0.0
        %3211 = vmatpush1.xpose.msra.mxu0 0.0
        %3212 = vmatprep.subr.mxu0 0.0
        %3213 = vmatpush1.xpose.msra.mxu0 0.0
        %3214 = vmatprep.subr.mxu0 0.0
        %3215 = vmatpush1.xpose.msra.mxu0 0.0
        %3216 = vmatprep.subr.mxu0 0.0
        %3217 = vmatpush1.xpose.msra.mxu0 0.0
        %3218 = vmatprep.subr.mxu0 0.0
        %3219 = vmatpush1.xpose.msra.mxu0 0.0
        %3220 = vmatprep.subr.mxu0 0.0
        %3221 = vmatpush1.xpose.msra.mxu0 0.0
        %3222 = vmatprep.subr.mxu0 0.0
        %3223 = vmatpush1.xpose.msra.mxu0 0.0
        %3224 = vmatprep.subr.mxu0 0.0
        %3225 = vmatpush1.xpose.msra.mxu0 0.0
        %3226 = vmatprep.subr.mxu0 0.0
        %3227 = vmatpush1.xpose.msra.mxu0 0.0
        %3228 = vmatprep.subr.mxu0 0.0
        %3229 = vmatpush1.xpose.msra.mxu0 0.0
        %3230 = vmatprep.subr.mxu0 0.0
        %3231 = vmatpush1.xpose.msra.mxu0 0.0
        %3232 = vmatprep.subr.mxu0 0.0
        %3233 = vmatpush1.xpose.msra.mxu0 0.0
        %3234 = vmatprep.subr.mxu0 0.0
        %3235 = vmatpush1.xpose.msra.mxu0 0.0
        %3236 = vmatprep.subr.mxu0 0.0
        %3237 = vmatpush1.xpose.msra.mxu0 0.0
        %3238 = vmatprep.subr.mxu0 0.0
        %3239 = vmatpush1.xpose.msra.mxu0 0.0
        %3240 = vmatprep.subr.mxu0 0.0
        %3241 = vmatpush1.xpose.msra.mxu0 0.0
        %3242 = vmatprep.subr.mxu0 0.0
        %3243 = vmatpush1.xpose.msra.mxu0 0.0
        %3244 = vmatprep.subr.mxu0 0.0
        %3245 = vmatpush1.xpose.msra.mxu0 0.0
        %3246 = vmatprep.subr.mxu0 0.0
        %3247 = vmatpush1.xpose.msra.mxu0 0.0
        %3248 = vmatprep.subr.mxu0 0.0
        %3249 = vmatpush1.xpose.msra.mxu0 0.0
        %3250 = vmatprep.subr.mxu0 0.0
        %3251 = vmatpush1.xpose.msra.mxu0 0.0
        %3252 = vmatprep.mubr.f32.mxu0 0.0
        %3253 = vmatmul.mubr.f32.gmra.mrb[0].mxu0 %v3152
        %v3254 = vpop.f32.mrb[0].mxu0
        %v3255 = vadd.f32 0.0, %v3254
        %v3256 = vpop.f32.mrb[0].mxu0
        %3257 = vmatprep.mubr.f32.mxu0 0.0
        %3258 = vmatmul.mubr.f32.gmra.mrb[0].mxu0 %v3154
        %v3259 = vpop.f32.mrb[0].mxu0
        %v3260 = vadd.f32 0.0, %v3259
        %v3261 = vpop.f32.mrb[0].mxu0
        %3262 = vmatprep.mubr.f32.mxu0 0.0
        %3263 = vmatmul.mubr.f32.gmra.mrb[0].mxu0 %v3156
        %v3264 = vpop.f32.mrb[0].mxu0
        %v3265 = vadd.f32 0.0, %v3264
        %v3266 = vpop.f32.mrb[0].mxu0
        %3267 = vmatprep.mubr.f32.mxu0 0.0
        %3268 = vmatmul.mubr.f32.gmra.mrb[0].mxu0 %v3158
        %v3269 = vpop.f32.mrb[0].mxu0
        %v3270 = vadd.f32 0.0, %v3269
        %v3271 = vpop.f32.mrb[0].mxu0
        %3272 = vmatprep.mubr.f32.mxu0 0.0
        %3273 = vmatmul.mubr.f32.gmra.mrb[0].mxu0 %v3160
        %v3274 = vpop.f32.mrb[0].mxu0
        %v3275 = vadd.f32 0.0, %v3274
        %v3276 = vpop.f32.mrb[0].mxu0
        %3277 = vmatprep.mubr.f32.mxu0 0.0
        %3278 = vmatmul.mubr.f32.gmra.mrb[0].mxu0 %v3162
        %v3279 = vpop.f32.mrb[0].mxu0
        %v3280 = vadd.f32 0.0, %v3279
        %v3281 = vpop.f32.mrb[0].mxu0
        %3282 = vmatprep.mubr.f32.mxu0 0.0
        %3283 = vmatmul.mubr.f32.gmra.mrb[0].mxu0 %v3164
        %v3284 = vpop.f32.mrb[0].mxu0
        %v3285 = vadd.f32 0.0, %v3284
        %v3286 = vpop.f32.mrb[0].mxu0
        %3287 = vmatprep.mubr.f32.mxu0 0.0
        %3288 = vmatmul.mubr.f32.gmra.mrb[0].mxu0 %v3166
        %v3289 = vpop.f32.mrb[0].mxu0
        %v3290 = vadd.f32 0.0, %v3289
        %v3291 = vpop.f32.mrb[0].mxu0
        %3292 = vmatprep.mubr.f32.mxu0 0.0
        %3293 = vmatmul.mubr.f32.gmra.mrb[0].mxu0 %v3168
        %v3294 = vpop.f32.mrb[0].mxu0
        %v3295 = vadd.f32 0.0, %v3294
        %v3296 = vpop.f32.mrb[0].mxu0
        %3297 = vdwg.mxu0
        %3298 = vrot.lane.b32.xlu0 %v1325, 112
        %v3299 = vpop.permute.xlu0 %3298
        %3300 = vrot.lane.b32.xlu0 %v1326, 112
        %v3301 = vpop.permute.xlu0 %3300
        %3302 = vrot.lane.b32.xlu0 %v1327, 112
        %v3303 = vpop.permute.xlu0 %3302
        %3304 = vrot.lane.b32.xlu0 %v1328, 112
        %v3305 = vpop.permute.xlu0 %3304
        %3306 = vrot.lane.b32.xlu0 %v1329, 112
        %v3307 = vpop.permute.xlu0 %3306
        %3308 = vrot.lane.b32.xlu0 %v1330, 112
        %v3309 = vpop.permute.xlu0 %3308
        %3310 = vrot.lane.b32.xlu0 %v1331, 112
        %v3311 = vpop.permute.xlu0 %3310
        %3312 = vrot.lane.b32.xlu0 %v1332, 112
        %v3313 = vpop.permute.xlu0 %3312
        %3314 = vrot.lane.b32.xlu0 %v1333, 112
        %v3315 = vpop.permute.xlu0 %3314
        %3316 = vrot.lane.b32.xlu0 %v1273, 80
        %v3317 = vpop.permute.xlu0 %3316
        %3318 = vrot.lane.b32.xlu0 %v1278, 80
        %v3319 = vpop.permute.xlu0 %3318
        %3320 = vrot.lane.b32.xlu0 %v1283, 80
        %v3321 = vpop.permute.xlu0 %3320
        %3322 = vrot.lane.b32.xlu0 %v1288, 80
        %v3323 = vpop.permute.xlu0 %3322
        %3324 = vrot.lane.b32.xlu0 %v1293, 80
        %v3325 = vpop.permute.xlu0 %3324
        %3326 = vrot.lane.b32.xlu0 %v1298, 80
        %v3327 = vpop.permute.xlu0 %3326
        %3328 = vrot.lane.b32.xlu0 %v1303, 80
        %v3329 = vpop.permute.xlu0 %3328
        %3330 = vrot.lane.b32.xlu0 %v1308, 80
        %v3331 = vpop.permute.xlu0 %3330
        %3332 = vrot.lane.b32.xlu0 %v1313, 80
        %v3333 = vpop.permute.xlu0 %3332
        %v3334 = vsel %vm1361, %v3299, 0
        %v3336 = vsel %vm1361, %v3301, 0
        %v3338 = vsel %vm1361, %v3303, 0
        %v3340 = vsel %vm1361, %v3305, 0
        %v3342 = vsel %vm1361, %v3307, 0
        %v3344 = vsel %vm1361, %v3309, 0
        %v3346 = vsel %vm1361, %v3311, 0
        %v3348 = vsel %vm1361, %v3313, 0
        %v3350 = vsel %vm1361, %v3315, 0
        %v3352 = vsel %vm1361, %v3317, 0
        %v3354 = vsel %vm1361, %v3319, 0
        %v3356 = vsel %vm1361, %v3321, 0
        %v3358 = vsel %vm1361, %v3323, 0
        %v3360 = vsel %vm1361, %v3325, 0
        %v3362 = vsel %vm1361, %v3327, 0
        %v3364 = vsel %vm1361, %v3329, 0
        %v3366 = vsel %vm1361, %v3331, 0
        %v3368 = vsel %vm1361, %v3333, 0
        %3370 = vmatprep.subr.mxu0 0.0
        %3371 = vmatpush1.xpose.msra.mxu0 %v3352
        %3372 = vmatprep.subr.mxu0 0.0
        %3373 = vmatpush1.xpose.msra.mxu0 %v3354
        %3374 = vmatprep.subr.mxu0 0.0
        %3375 = vmatpush1.xpose.msra.mxu0 %v3356
        %3376 = vmatprep.subr.mxu0 0.0
        %3377 = vmatpush1.xpose.msra.mxu0 %v3358
        %3378 = vmatprep.subr.mxu0 0.0
        %3379 = vmatpush1.xpose.msra.mxu0 %v3360
        %3380 = vmatprep.subr.mxu0 0.0
        %3381 = vmatpush1.xpose.msra.mxu0 %v3362
        %3382 = vmatprep.subr.mxu0 0.0
        %3383 = vmatpush1.xpose.msra.mxu0 %v3364
        %3384 = vmatprep.subr.mxu0 0.0
        %3385 = vmatpush1.xpose.msra.mxu0 %v3366
        %3386 = vmatprep.subr.mxu0 0.0
        %3387 = vmatpush1.xpose.msra.mxu0 %v3368
        %3388 = vmatprep.subr.mxu0 0.0
        %3389 = vmatpush1.xpose.msra.mxu0 0.0
        %3390 = vmatprep.subr.mxu0 0.0
        %3391 = vmatpush1.xpose.msra.mxu0 0.0
        %3392 = vmatprep.subr.mxu0 0.0
        %3393 = vmatpush1.xpose.msra.mxu0 0.0
        %3394 = vmatprep.subr.mxu0 0.0
        %3395 = vmatpush1.xpose.msra.mxu0 0.0
        %3396 = vmatprep.subr.mxu0 0.0
        %3397 = vmatpush1.xpose.msra.mxu0 0.0
        %3398 = vmatprep.subr.mxu0 0.0
        %3399 = vmatpush1.xpose.msra.mxu0 0.0
        %3400 = vmatprep.subr.mxu0 0.0
        %3401 = vmatpush1.xpose.msra.mxu0 0.0
        %3402 = vmatprep.subr.mxu0 0.0
        %3403 = vmatpush1.xpose.msra.mxu0 0.0
        %3404 = vmatprep.subr.mxu0 0.0
        %3405 = vmatpush1.xpose.msra.mxu0 0.0
        %3406 = vmatprep.subr.mxu0 0.0
        %3407 = vmatpush1.xpose.msra.mxu0 0.0
        %3408 = vmatprep.subr.mxu0 0.0
        %3409 = vmatpush1.xpose.msra.mxu0 0.0
        %3410 = vmatprep.subr.mxu0 0.0
        %3411 = vmatpush1.xpose.msra.mxu0 0.0
        %3412 = vmatprep.subr.mxu0 0.0
        %3413 = vmatpush1.xpose.msra.mxu0 0.0
        %3414 = vmatprep.subr.mxu0 0.0
        %3415 = vmatpush1.xpose.msra.mxu0 0.0
        %3416 = vmatprep.subr.mxu0 0.0
        %3417 = vmatpush1.xpose.msra.mxu0 0.0
        %3418 = vmatprep.subr.mxu0 0.0
        %3419 = vmatpush1.xpose.msra.mxu0 0.0
        %3420 = vmatprep.subr.mxu0 0.0
        %3421 = vmatpush1.xpose.msra.mxu0 0.0
        %3422 = vmatprep.subr.mxu0 0.0
        %3423 = vmatpush1.xpose.msra.mxu0 0.0
        %3424 = vmatprep.subr.mxu0 0.0
        %3425 = vmatpush1.xpose.msra.mxu0 0.0
        %3426 = vmatprep.subr.mxu0 0.0
        %3427 = vmatpush1.xpose.msra.mxu0 0.0
        %3428 = vmatprep.subr.mxu0 0.0
        %3429 = vmatpush1.xpose.msra.mxu0 0.0
        %3430 = vmatprep.subr.mxu0 0.0
        %3431 = vmatpush1.xpose.msra.mxu0 0.0
        %3432 = vmatprep.subr.mxu0 0.0
        %3433 = vmatpush1.xpose.msra.mxu0 0.0
        %3434 = vmatprep.mubr.f32.mxu0 0.0
        %3435 = vmatmul.mubr.f32.gmra.mrb[0].mxu0 %v3334
        %v3436 = vpop.f32.mrb[0].mxu0
        %v3437 = vadd.f32 0.0, %v3436
        %v3438 = vpop.f32.mrb[0].mxu0
        %3439 = vmatprep.mubr.f32.mxu0 0.0
        %3440 = vmatmul.mubr.f32.gmra.mrb[0].mxu0 %v3336
        %v3441 = vpop.f32.mrb[0].mxu0
        %v3442 = vadd.f32 0.0, %v3441
        %v3443 = vpop.f32.mrb[0].mxu0
        %3444 = vmatprep.mubr.f32.mxu0 0.0
        %3445 = vmatmul.mubr.f32.gmra.mrb[0].mxu0 %v3338
        %v3446 = vpop.f32.mrb[0].mxu0
        %v3447 = vadd.f32 0.0, %v3446
        %v3448 = vpop.f32.mrb[0].mxu0
        %3449 = vmatprep.mubr.f32.mxu0 0.0
        %3450 = vmatmul.mubr.f32.gmra.mrb[0].mxu0 %v3340
        %v3451 = vpop.f32.mrb[0].mxu0
        %v3452 = vadd.f32 0.0, %v3451
        %v3453 = vpop.f32.mrb[0].mxu0
        %3454 = vmatprep.mubr.f32.mxu0 0.0
        %3455 = vmatmul.mubr.f32.gmra.mrb[0].mxu0 %v3342
        %v3456 = vpop.f32.mrb[0].mxu0
        %v3457 = vadd.f32 0.0, %v3456
        %v3458 = vpop.f32.mrb[0].mxu0
        %3459 = vmatprep.mubr.f32.mxu0 0.0
        %3460 = vmatmul.mubr.f32.gmra.mrb[0].mxu0 %v3344
        %v3461 = vpop.f32.mrb[0].mxu0
        %v3462 = vadd.f32 0.0, %v3461
        %v3463 = vpop.f32.mrb[0].mxu0
        %3464 = vmatprep.mubr.f32.mxu0 0.0
        %3465 = vmatmul.mubr.f32.gmra.mrb[0].mxu0 %v3346
        %v3466 = vpop.f32.mrb[0].mxu0
        %v3467 = vadd.f32 0.0, %v3466
        %v3468 = vpop.f32.mrb[0].mxu0
        %3469 = vmatprep.mubr.f32.mxu0 0.0
        %3470 = vmatmul.mubr.f32.gmra.mrb[0].mxu0 %v3348
        %v3471 = vpop.f32.mrb[0].mxu0
        %v3472 = vadd.f32 0.0, %v3471
        %v3473 = vpop.f32.mrb[0].mxu0
        %3474 = vmatprep.mubr.f32.mxu0 0.0
        %3475 = vmatmul.mubr.f32.gmra.mrb[0].mxu0 %v3350
        %v3476 = vpop.f32.mrb[0].mxu0
        %v3477 = vadd.f32 0.0, %v3476
        %v3478 = vpop.f32.mrb[0].mxu0
        %3479 = vdwg.mxu0
        %v3480 = vsel %vm1699, %v3255, -inf
        %3481 = vmax.xlane.f32.xlu0 %v3480
        %v3482 = vpop.xlane.xlu0 %3481
        %v3483 = vsel %vm1699, %v3260, -inf
        %3484 = vmax.xlane.f32.xlu0 %v3483
        %v3485 = vpop.xlane.xlu0 %3484
        %v3486 = vsel %vm1699, %v3265, -inf
        %3487 = vmax.xlane.f32.xlu0 %v3486
        %v3488 = vpop.xlane.xlu0 %3487
        %v3489 = vsel %vm1699, %v3270, -inf
        %3490 = vmax.xlane.f32.xlu0 %v3489
        %v3491 = vpop.xlane.xlu0 %3490
        %v3492 = vsel %vm1699, %v3275, -inf
        %3493 = vmax.xlane.f32.xlu0 %v3492
        %v3494 = vpop.xlane.xlu0 %3493
        %v3495 = vsel %vm1699, %v3280, -inf
        %3496 = vmax.xlane.f32.xlu0 %v3495
        %v3497 = vpop.xlane.xlu0 %3496
        %v3498 = vsel %vm1699, %v3285, -inf
        %3499 = vmax.xlane.f32.xlu0 %v3498
        %v3500 = vpop.xlane.xlu0 %3499
        %v3501 = vsel %vm1699, %v3290, -inf
        %3502 = vmax.xlane.f32.xlu0 %v3501
        %v3503 = vpop.xlane.xlu0 %3502
        %v3504 = vsel %vm1699, %v3295, -inf
        %3505 = vmax.xlane.f32.xlu0 %v3504
        %v3506 = vpop.xlane.xlu0 %3505
        %v3507 = vsel %vm1699, %v3437, -inf
        %3508 = vmax.xlane.f32.xlu0 %v3507
        %v3509 = vpop.xlane.xlu0 %3508
        %v3510 = vsel %vm1699, %v3442, -inf
        %3511 = vmax.xlane.f32.xlu0 %v3510
        %v3512 = vpop.xlane.xlu0 %3511
        %v3513 = vsel %vm1699, %v3447, -inf
        %3514 = vmax.xlane.f32.xlu0 %v3513
        %v3515 = vpop.xlane.xlu0 %3514
        %v3516 = vsel %vm1699, %v3452, -inf
        %3517 = vmax.xlane.f32.xlu0 %v3516
        %v3518 = vpop.xlane.xlu0 %3517
        %v3519 = vsel %vm1699, %v3457, -inf
        %3520 = vmax.xlane.f32.xlu0 %v3519
        %v3521 = vpop.xlane.xlu0 %3520
        %v3522 = vsel %vm1699, %v3462, -inf
        %3523 = vmax.xlane.f32.xlu0 %v3522
        %v3524 = vpop.xlane.xlu0 %3523
        %v3525 = vsel %vm1699, %v3467, -inf
        %3526 = vmax.xlane.f32.xlu0 %v3525
        %v3527 = vpop.xlane.xlu0 %3526
        %v3528 = vsel %vm1699, %v3472, -inf
        %3529 = vmax.xlane.f32.xlu0 %v3528
        %v3530 = vpop.xlane.xlu0 %3529
        %v3531 = vsel %vm1699, %v3477, -inf
        %3532 = vmax.xlane.f32.xlu0 %v3531
        %v3533 = vpop.xlane.xlu0 %3532
        %v3534 = vsub.f32 %v3255, %v3482
        %v3535 = vsub.f32 %v3260, %v3485
        %v3536 = vsub.f32 %v3265, %v3488
        %v3537 = vsub.f32 %v3270, %v3491
        %v3538 = vsub.f32 %v3275, %v3494
        %v3539 = vsub.f32 %v3280, %v3497
        %v3540 = vsub.f32 %v3285, %v3500
        %v3541 = vsub.f32 %v3290, %v3503
        %v3542 = vsub.f32 %v3295, %v3506
        %v3543 = vsub.f32 %v3437, %v3509
        %v3544 = vsub.f32 %v3442, %v3512
        %v3545 = vsub.f32 %v3447, %v3515
        %v3546 = vsub.f32 %v3452, %v3518
        %v3547 = vsub.f32 %v3457, %v3521
        %v3548 = vsub.f32 %v3462, %v3524
        %v3549 = vsub.f32 %v3467, %v3527
        %v3550 = vsub.f32 %v3472, %v3530
        %v3551 = vsub.f32 %v3477, %v3533
        %v3552 = vmul.f32 %v3534, 1.442695
        %v3553 = vpow.pop %v3552
        %v3554 = vmul.f32 %v3535, 1.442695
        %v3555 = vpow.pop %v3554
        %v3556 = vmul.f32 %v3536, 1.442695
        %v3557 = vpow.pop %v3556
        %v3558 = vmul.f32 %v3537, 1.442695
        %v3559 = vpow.pop %v3558
        %v3560 = vmul.f32 %v3538, 1.442695
        %v3561 = vpow.pop %v3560
        %v3562 = vmul.f32 %v3539, 1.442695
        %v3563 = vpow.pop %v3562
        %v3564 = vmul.f32 %v3540, 1.442695
        %v3565 = vpow.pop %v3564
        %v3566 = vmul.f32 %v3541, 1.442695
        %v3567 = vpow.pop %v3566
        %v3568 = vmul.f32 %v3542, 1.442695
        %v3569 = vpow.pop %v3568
        %v3570 = vmul.f32 %v3543, 1.442695
        %v3571 = vpow.pop %v3570
        %v3572 = vmul.f32 %v3544, 1.442695
        %v3573 = vpow.pop %v3572
        %v3574 = vmul.f32 %v3545, 1.442695
        %v3575 = vpow.pop %v3574
        %v3576 = vmul.f32 %v3546, 1.442695
        %v3577 = vpow.pop %v3576
        %v3578 = vmul.f32 %v3547, 1.442695
        %v3579 = vpow.pop %v3578
        %v3580 = vmul.f32 %v3548, 1.442695
        %v3581 = vpow.pop %v3580
        %v3582 = vmul.f32 %v3549, 1.442695
        %v3583 = vpow.pop %v3582
        %v3584 = vmul.f32 %v3550, 1.442695
        %v3585 = vpow.pop %v3584
        %v3586 = vmul.f32 %v3551, 1.442695
        %v3587 = vpow.pop %v3586
        %v3588 = vsel %vm1699, %v3553, 0.0
        %3589 = vadd.xlane.f32.xlu0 %v3588
        %v3590 = vpop.xlane.xlu0 %3589
        %v3591 = vsel %vm1699, %v3555, 0.0
        %3592 = vadd.xlane.f32.xlu0 %v3591
        %v3593 = vpop.xlane.xlu0 %3592
        %v3594 = vsel %vm1699, %v3557, 0.0
        %3595 = vadd.xlane.f32.xlu0 %v3594
        %v3596 = vpop.xlane.xlu0 %3595
        %v3597 = vsel %vm1699, %v3559, 0.0
        %3598 = vadd.xlane.f32.xlu0 %v3597
        %v3599 = vpop.xlane.xlu0 %3598
        %v3600 = vsel %vm1699, %v3561, 0.0
        %3601 = vadd.xlane.f32.xlu0 %v3600
        %v3602 = vpop.xlane.xlu0 %3601
        %v3603 = vsel %vm1699, %v3563, 0.0
        %3604 = vadd.xlane.f32.xlu0 %v3603
        %v3605 = vpop.xlane.xlu0 %3604
        %v3606 = vsel %vm1699, %v3565, 0.0
        %3607 = vadd.xlane.f32.xlu0 %v3606
        %v3608 = vpop.xlane.xlu0 %3607
        %v3609 = vsel %vm1699, %v3567, 0.0
        %3610 = vadd.xlane.f32.xlu0 %v3609
        %v3611 = vpop.xlane.xlu0 %3610
        %v3612 = vsel %vm1699, %v3569, 0.0
        %3613 = vadd.xlane.f32.xlu0 %v3612
        %v3614 = vpop.xlane.xlu0 %3613
        %v3615 = vsel %vm1699, %v3571, 0.0
        %3616 = vadd.xlane.f32.xlu0 %v3615
        %v3617 = vpop.xlane.xlu0 %3616
        %v3618 = vsel %vm1699, %v3573, 0.0
        %3619 = vadd.xlane.f32.xlu0 %v3618
        %v3620 = vpop.xlane.xlu0 %3619
        %v3621 = vsel %vm1699, %v3575, 0.0
        %3622 = vadd.xlane.f32.xlu0 %v3621
        %v3623 = vpop.xlane.xlu0 %3622
        %v3624 = vsel %vm1699, %v3577, 0.0
        %3625 = vadd.xlane.f32.xlu0 %v3624
        %v3626 = vpop.xlane.xlu0 %3625
        %v3627 = vsel %vm1699, %v3579, 0.0
        %3628 = vadd.xlane.f32.xlu0 %v3627
        %v3629 = vpop.xlane.xlu0 %3628
        %v3630 = vsel %vm1699, %v3581, 0.0
        %3631 = vadd.xlane.f32.xlu0 %v3630
        %v3632 = vpop.xlane.xlu0 %3631
        %v3633 = vsel %vm1699, %v3583, 0.0
        %3634 = vadd.xlane.f32.xlu0 %v3633
        %v3635 = vpop.xlane.xlu0 %3634
        %v3636 = vsel %vm1699, %v3585, 0.0
        %3637 = vadd.xlane.f32.xlu0 %v3636
        %v3638 = vpop.xlane.xlu0 %3637
        %v3639 = vsel %vm1699, %v3587, 0.0
        %3640 = vadd.xlane.f32.xlu0 %v3639
        %v3641 = vpop.xlane.xlu0 %3640
        %v3642 = vrcp.pop %v3590
        %v3643 = vrcp.pop %v3593
        %v3644 = vrcp.pop %v3596
        %v3645 = vrcp.pop %v3599
        %v3646 = vrcp.pop %v3602
        %v3647 = vrcp.pop %v3605
        %v3648 = vrcp.pop %v3608
        %v3649 = vrcp.pop %v3611
        %v3650 = vrcp.pop %v3614
        %v3651 = vrcp.pop %v3617
        %v3652 = vrcp.pop %v3620
        %v3653 = vrcp.pop %v3623
        %v3654 = vrcp.pop %v3626
        %v3655 = vrcp.pop %v3629
        %v3656 = vrcp.pop %v3632
        %v3657 = vrcp.pop %v3635
        %v3658 = vrcp.pop %v3638
        %v3659 = vrcp.pop %v3641
        %v3660 = vmul.f32 %v3553, %v3642
        %v3661 = vmul.f32 %v3555, %v3643
        %v3662 = vmul.f32 %v3557, %v3644
        %v3663 = vmul.f32 %v3559, %v3645
        %v3664 = vmul.f32 %v3561, %v3646
        %v3665 = vmul.f32 %v3563, %v3647
        %v3666 = vmul.f32 %v3565, %v3648
        %v3667 = vmul.f32 %v3567, %v3649
        %v3668 = vmul.f32 %v3569, %v3650
        %v3669 = vmul.f32 %v3571, %v3651
        %v3670 = vmul.f32 %v3573, %v3652
        %v3671 = vmul.f32 %v3575, %v3653
        %v3672 = vmul.f32 %v3577, %v3654
        %v3673 = vmul.f32 %v3579, %v3655
        %v3674 = vmul.f32 %v3581, %v3656
        %v3675 = vmul.f32 %v3583, %v3657
        %v3676 = vmul.f32 %v3585, %v3658
        %v3677 = vmul.f32 %v3587, %v3659
        %3678 = vrot.lane.b32.xlu0 %v1228, 48
        %v3679 = vpop.permute.xlu0 %3678
        %3680 = vrot.lane.b32.xlu0 %v1233, 48
        %v3681 = vpop.permute.xlu0 %3680
        %3682 = vrot.lane.b32.xlu0 %v1238, 48
        %v3683 = vpop.permute.xlu0 %3682
        %3684 = vrot.lane.b32.xlu0 %v1243, 48
        %v3685 = vpop.permute.xlu0 %3684
        %3686 = vrot.lane.b32.xlu0 %v1248, 48
        %v3687 = vpop.permute.xlu0 %3686
        %3688 = vrot.lane.b32.xlu0 %v1253, 48
        %v3689 = vpop.permute.xlu0 %3688
        %3690 = vrot.lane.b32.xlu0 %v1258, 48
        %v3691 = vpop.permute.xlu0 %3690
        %3692 = vrot.lane.b32.xlu0 %v1263, 48
        %v3693 = vpop.permute.xlu0 %3692
        %3694 = vrot.lane.b32.xlu0 %v1268, 48
        %v3695 = vpop.permute.xlu0 %3694
        %v3706 = vsel %vm1699, %v3660, 0
        %v3709 = vsel %vm1699, %v3661, 0
        %v3712 = vsel %vm1699, %v3662, 0
        %v3715 = vsel %vm1699, %v3663, 0
        %v3718 = vsel %vm1699, %v3664, 0
        %v3721 = vsel %vm1699, %v3665, 0
        %v3724 = vsel %vm1699, %v3666, 0
        %v3727 = vsel %vm1699, %v3667, 0
        %v3730 = vsel %vm1699, %v3668, 0
        %3732 = vmatprep.subr.mxu0 0.0
        %3733 = vmatpush1.msra.mxu0 %v3679
        %3734 = vmatprep.subr.mxu0 0.0
        %3735 = vmatpush1.msra.mxu0 %v3681
        %3736 = vmatprep.subr.mxu0 0.0
        %3737 = vmatpush1.msra.mxu0 %v3683
        %3738 = vmatprep.subr.mxu0 0.0
        %3739 = vmatpush1.msra.mxu0 %v3685
        %3740 = vmatprep.subr.mxu0 0.0
        %3741 = vmatpush1.msra.mxu0 %v3687
        %3742 = vmatprep.subr.mxu0 0.0
        %3743 = vmatpush1.msra.mxu0 %v3689
        %3744 = vmatprep.subr.mxu0 0.0
        %3745 = vmatpush1.msra.mxu0 %v3691
        %3746 = vmatprep.subr.mxu0 0.0
        %3747 = vmatpush1.msra.mxu0 %v3693
        %3748 = vmatprep.subr.mxu0 0.0
        %3749 = vmatpush1.msra.mxu0 %v3695
        %3750 = vmatprep.subr.mxu0 0.0
        %3751 = vmatpush1.msra.mxu0 0.0
        %3752 = vmatprep.subr.mxu0 0.0
        %3753 = vmatpush1.msra.mxu0 0.0
        %3754 = vmatprep.subr.mxu0 0.0
        %3755 = vmatpush1.msra.mxu0 0.0
        %3756 = vmatprep.subr.mxu0 0.0
        %3757 = vmatpush1.msra.mxu0 0.0
        %3758 = vmatprep.subr.mxu0 0.0
        %3759 = vmatpush1.msra.mxu0 0.0
        %3760 = vmatprep.subr.mxu0 0.0
        %3761 = vmatpush1.msra.mxu0 0.0
        %3762 = vmatprep.subr.mxu0 0.0
        %3763 = vmatpush1.msra.mxu0 0.0
        %3764 = vmatprep.subr.mxu0 0.0
        %3765 = vmatpush1.msra.mxu0 0.0
        %3766 = vmatprep.subr.mxu0 0.0
        %3767 = vmatpush1.msra.mxu0 0.0
        %3768 = vmatprep.subr.mxu0 0.0
        %3769 = vmatpush1.msra.mxu0 0.0
        %3770 = vmatprep.subr.mxu0 0.0
        %3771 = vmatpush1.msra.mxu0 0.0
        %3772 = vmatprep.subr.mxu0 0.0
        %3773 = vmatpush1.msra.mxu0 0.0
        %3774 = vmatprep.subr.mxu0 0.0
        %3775 = vmatpush1.msra.mxu0 0.0
        %3776 = vmatprep.subr.mxu0 0.0
        %3777 = vmatpush1.msra.mxu0 0.0
        %3778 = vmatprep.subr.mxu0 0.0
        %3779 = vmatpush1.msra.mxu0 0.0
        %3780 = vmatprep.subr.mxu0 0.0
        %3781 = vmatpush1.msra.mxu0 0.0
        %3782 = vmatprep.subr.mxu0 0.0
        %3783 = vmatpush1.msra.mxu0 0.0
        %3784 = vmatprep.subr.mxu0 0.0
        %3785 = vmatpush1.msra.mxu0 0.0
        %3786 = vmatprep.subr.mxu0 0.0
        %3787 = vmatpush1.msra.mxu0 0.0
        %3788 = vmatprep.subr.mxu0 0.0
        %3789 = vmatpush1.msra.mxu0 0.0
        %3790 = vmatprep.subr.mxu0 0.0
        %3791 = vmatpush1.msra.mxu0 0.0
        %3792 = vmatprep.subr.mxu0 0.0
        %3793 = vmatpush1.msra.mxu0 0.0
        %3794 = vmatprep.subr.mxu0 0.0
        %3795 = vmatpush1.msra.mxu0 0.0
        %3796 = vmatprep.mubr.f32.mxu0 0.0
        %3797 = vmatmul.mubr.f32.gmra.mrb[0].mxu0 %v3706
        %v3798 = vpop.f32.mrb[0].mxu0
        %v3799 = vadd.f32 0.0, %v3798
        %v3800 = vpop.f32.mrb[0].mxu0
        %3801 = vmatprep.mubr.f32.mxu0 0.0
        %3802 = vmatmul.mubr.f32.gmra.mrb[0].mxu0 %v3709
        %v3803 = vpop.f32.mrb[0].mxu0
        %v3804 = vadd.f32 0.0, %v3803
        %v3805 = vpop.f32.mrb[0].mxu0
        %3806 = vmatprep.mubr.f32.mxu0 0.0
        %3807 = vmatmul.mubr.f32.gmra.mrb[0].mxu0 %v3712
        %v3808 = vpop.f32.mrb[0].mxu0
        %v3809 = vadd.f32 0.0, %v3808
        %v3810 = vpop.f32.mrb[0].mxu0
        %3811 = vmatprep.mubr.f32.mxu0 0.0
        %3812 = vmatmul.mubr.f32.gmra.mrb[0].mxu0 %v3715
        %v3813 = vpop.f32.mrb[0].mxu0
        %v3814 = vadd.f32 0.0, %v3813
        %v3815 = vpop.f32.mrb[0].mxu0
        %3816 = vmatprep.mubr.f32.mxu0 0.0
        %3817 = vmatmul.mubr.f32.gmra.mrb[0].mxu0 %v3718
        %v3818 = vpop.f32.mrb[0].mxu0
        %v3819 = vadd.f32 0.0, %v3818
        %v3820 = vpop.f32.mrb[0].mxu0
        %3821 = vmatprep.mubr.f32.mxu0 0.0
        %3822 = vmatmul.mubr.f32.gmra.mrb[0].mxu0 %v3721
        %v3823 = vpop.f32.mrb[0].mxu0
        %v3824 = vadd.f32 0.0, %v3823
        %v3825 = vpop.f32.mrb[0].mxu0
        %3826 = vmatprep.mubr.f32.mxu0 0.0
        %3827 = vmatmul.mubr.f32.gmra.mrb[0].mxu0 %v3724
        %v3828 = vpop.f32.mrb[0].mxu0
        %v3829 = vadd.f32 0.0, %v3828
        %v3830 = vpop.f32.mrb[0].mxu0
        %3831 = vmatprep.mubr.f32.mxu0 0.0
        %3832 = vmatmul.mubr.f32.gmra.mrb[0].mxu0 %v3727
        %v3833 = vpop.f32.mrb[0].mxu0
        %v3834 = vadd.f32 0.0, %v3833
        %v3835 = vpop.f32.mrb[0].mxu0
        %3836 = vmatprep.mubr.f32.mxu0 0.0
        %3837 = vmatmul.mubr.f32.gmra.mrb[0].mxu0 %v3730
        %v3838 = vpop.f32.mrb[0].mxu0
        %v3839 = vadd.f32 0.0, %v3838
        %v3840 = vpop.f32.mrb[0].mxu0
        %3841 = vdwg.mxu0
        %3842 = vrot.lane.b32.xlu0 %v1273, 48
        %v3843 = vpop.permute.xlu0 %3842
        %3844 = vrot.lane.b32.xlu0 %v1278, 48
        %v3845 = vpop.permute.xlu0 %3844
        %3846 = vrot.lane.b32.xlu0 %v1283, 48
        %v3847 = vpop.permute.xlu0 %3846
        %3848 = vrot.lane.b32.xlu0 %v1288, 48
        %v3849 = vpop.permute.xlu0 %3848
        %3850 = vrot.lane.b32.xlu0 %v1293, 48
        %v3851 = vpop.permute.xlu0 %3850
        %3852 = vrot.lane.b32.xlu0 %v1298, 48
        %v3853 = vpop.permute.xlu0 %3852
        %3854 = vrot.lane.b32.xlu0 %v1303, 48
        %v3855 = vpop.permute.xlu0 %3854
        %3856 = vrot.lane.b32.xlu0 %v1308, 48
        %v3857 = vpop.permute.xlu0 %3856
        %3858 = vrot.lane.b32.xlu0 %v1313, 48
        %v3859 = vpop.permute.xlu0 %3858
        %v3870 = vsel %vm1699, %v3669, 0
        %v3873 = vsel %vm1699, %v3670, 0
        %v3876 = vsel %vm1699, %v3671, 0
        %v3879 = vsel %vm1699, %v3672, 0
        %v3882 = vsel %vm1699, %v3673, 0
        %v3885 = vsel %vm1699, %v3674, 0
        %v3888 = vsel %vm1699, %v3675, 0
        %v3891 = vsel %vm1699, %v3676, 0
        %v3894 = vsel %vm1699, %v3677, 0
        %3896 = vmatprep.subr.mxu0 0.0
        %3897 = vmatpush1.msra.mxu0 %v3843
        %3898 = vmatprep.subr.mxu0 0.0
        %3899 = vmatpush1.msra.mxu0 %v3845
        %3900 = vmatprep.subr.mxu0 0.0
        %3901 = vmatpush1.msra.mxu0 %v3847
        %3902 = vmatprep.subr.mxu0 0.0
        %3903 = vmatpush1.msra.mxu0 %v3849
        %3904 = vmatprep.subr.mxu0 0.0
        %3905 = vmatpush1.msra.mxu0 %v3851
        %3906 = vmatprep.subr.mxu0 0.0
        %3907 = vmatpush1.msra.mxu0 %v3853
        %3908 = vmatprep.subr.mxu0 0.0
        %3909 = vmatpush1.msra.mxu0 %v3855
        %3910 = vmatprep.subr.mxu0 0.0
        %3911 = vmatpush1.msra.mxu0 %v3857
        %3912 = vmatprep.subr.mxu0 0.0
        %3913 = vmatpush1.msra.mxu0 %v3859
        %3914 = vmatprep.subr.mxu0 0.0
        %3915 = vmatpush1.msra.mxu0 0.0
        %3916 = vmatprep.subr.mxu0 0.0
        %3917 = vmatpush1.msra.mxu0 0.0
        %3918 = vmatprep.subr.mxu0 0.0
        %3919 = vmatpush1.msra.mxu0 0.0
        %3920 = vmatprep.subr.mxu0 0.0
        %3921 = vmatpush1.msra.mxu0 0.0
        %3922 = vmatprep.subr.mxu0 0.0
        %3923 = vmatpush1.msra.mxu0 0.0
        %3924 = vmatprep.subr.mxu0 0.0
        %3925 = vmatpush1.msra.mxu0 0.0
        %3926 = vmatprep.subr.mxu0 0.0
        %3927 = vmatpush1.msra.mxu0 0.0
        %3928 = vmatprep.subr.mxu0 0.0
        %3929 = vmatpush1.msra.mxu0 0.0
        %3930 = vmatprep.subr.mxu0 0.0
        %3931 = vmatpush1.msra.mxu0 0.0
        %3932 = vmatprep.subr.mxu0 0.0
        %3933 = vmatpush1.msra.mxu0 0.0
        %3934 = vmatprep.subr.mxu0 0.0
        %3935 = vmatpush1.msra.mxu0 0.0
        %3936 = vmatprep.subr.mxu0 0.0
        %3937 = vmatpush1.msra.mxu0 0.0
        %3938 = vmatprep.subr.mxu0 0.0
        %3939 = vmatpush1.msra.mxu0 0.0
        %3940 = vmatprep.subr.mxu0 0.0
        %3941 = vmatpush1.msra.mxu0 0.0
        %3942 = vmatprep.subr.mxu0 0.0
        %3943 = vmatpush1.msra.mxu0 0.0
        %3944 = vmatprep.subr.mxu0 0.0
        %3945 = vmatpush1.msra.mxu0 0.0
        %3946 = vmatprep.subr.mxu0 0.0
        %3947 = vmatpush1.msra.mxu0 0.0
        %3948 = vmatprep.subr.mxu0 0.0
        %3949 = vmatpush1.msra.mxu0 0.0
        %3950 = vmatprep.subr.mxu0 0.0
        %3951 = vmatpush1.msra.mxu0 0.0
        %3952 = vmatprep.subr.mxu0 0.0
        %3953 = vmatpush1.msra.mxu0 0.0
        %3954 = vmatprep.subr.mxu0 0.0
        %3955 = vmatpush1.msra.mxu0 0.0
        %3956 = vmatprep.subr.mxu0 0.0
        %3957 = vmatpush1.msra.mxu0 0.0
        %3958 = vmatprep.subr.mxu0 0.0
        %3959 = vmatpush1.msra.mxu0 0.0
        %3960 = vmatprep.mubr.f32.mxu0 0.0
        %3961 = vmatmul.mubr.f32.gmra.mrb[0].mxu0 %v3870
        %v3962 = vpop.f32.mrb[0].mxu0
        %v3963 = vadd.f32 0.0, %v3962
        %v3964 = vpop.f32.mrb[0].mxu0
        %3965 = vmatprep.mubr.f32.mxu0 0.0
        %3966 = vmatmul.mubr.f32.gmra.mrb[0].mxu0 %v3873
        %v3967 = vpop.f32.mrb[0].mxu0
        %v3968 = vadd.f32 0.0, %v3967
        %v3969 = vpop.f32.mrb[0].mxu0
        %3970 = vmatprep.mubr.f32.mxu0 0.0
        %3971 = vmatmul.mubr.f32.gmra.mrb[0].mxu0 %v3876
        %v3972 = vpop.f32.mrb[0].mxu0
        %v3973 = vadd.f32 0.0, %v3972
        %v3974 = vpop.f32.mrb[0].mxu0
        %3975 = vmatprep.mubr.f32.mxu0 0.0
        %3976 = vmatmul.mubr.f32.gmra.mrb[0].mxu0 %v3879
        %v3977 = vpop.f32.mrb[0].mxu0
        %v3978 = vadd.f32 0.0, %v3977
        %v3979 = vpop.f32.mrb[0].mxu0
        %3980 = vmatprep.mubr.f32.mxu0 0.0
        %3981 = vmatmul.mubr.f32.gmra.mrb[0].mxu0 %v3882
        %v3982 = vpop.f32.mrb[0].mxu0
        %v3983 = vadd.f32 0.0, %v3982
        %v3984 = vpop.f32.mrb[0].mxu0
        %3985 = vmatprep.mubr.f32.mxu0 0.0
        %3986 = vmatmul.mubr.f32.gmra.mrb[0].mxu0 %v3885
        %v3987 = vpop.f32.mrb[0].mxu0
        %v3988 = vadd.f32 0.0, %v3987
        %v3989 = vpop.f32.mrb[0].mxu0
        %3990 = vmatprep.mubr.f32.mxu0 0.0
        %3991 = vmatmul.mubr.f32.gmra.mrb[0].mxu0 %v3888
        %v3992 = vpop.f32.mrb[0].mxu0
        %v3993 = vadd.f32 0.0, %v3992
        %v3994 = vpop.f32.mrb[0].mxu0
        %3995 = vmatprep.mubr.f32.mxu0 0.0
        %3996 = vmatmul.mubr.f32.gmra.mrb[0].mxu0 %v3891
        %v3997 = vpop.f32.mrb[0].mxu0
        %v3998 = vadd.f32 0.0, %v3997
        %v3999 = vpop.f32.mrb[0].mxu0
        %4000 = vmatprep.mubr.f32.mxu0 0.0
        %4001 = vmatmul.mubr.f32.gmra.mrb[0].mxu0 %v3894
        %v4002 = vpop.f32.mrb[0].mxu0
        %v4003 = vadd.f32 0.0, %v4002
        %v4004 = vpop.f32.mrb[0].mxu0
        %4005 = vdwg.mxu0
        %4006 = vrot.lane.b32.xlu0 %v1316, 104
        %v4007 = vpop.permute.xlu0 %4006
        %4008 = vrot.lane.b32.xlu0 %v1317, 104
        %v4009 = vpop.permute.xlu0 %4008
        %4010 = vrot.lane.b32.xlu0 %v1318, 104
        %v4011 = vpop.permute.xlu0 %4010
        %4012 = vrot.lane.b32.xlu0 %v1319, 104
        %v4013 = vpop.permute.xlu0 %4012
        %4014 = vrot.lane.b32.xlu0 %v1320, 104
        %v4015 = vpop.permute.xlu0 %4014
        %4016 = vrot.lane.b32.xlu0 %v1321, 104
        %v4017 = vpop.permute.xlu0 %4016
        %4018 = vrot.lane.b32.xlu0 %v1322, 104
        %v4019 = vpop.permute.xlu0 %4018
        %4020 = vrot.lane.b32.xlu0 %v1323, 104
        %v4021 = vpop.permute.xlu0 %4020
        %4022 = vrot.lane.b32.xlu0 %v1324, 104
        %v4023 = vpop.permute.xlu0 %4022
        %4024 = vrot.lane.b32.xlu0 %v1228, 72
        %v4025 = vpop.permute.xlu0 %4024
        %4026 = vrot.lane.b32.xlu0 %v1233, 72
        %v4027 = vpop.permute.xlu0 %4026
        %4028 = vrot.lane.b32.xlu0 %v1238, 72
        %v4029 = vpop.permute.xlu0 %4028
        %4030 = vrot.lane.b32.xlu0 %v1243, 72
        %v4031 = vpop.permute.xlu0 %4030
        %4032 = vrot.lane.b32.xlu0 %v1248, 72
        %v4033 = vpop.permute.xlu0 %4032
        %4034 = vrot.lane.b32.xlu0 %v1253, 72
        %v4035 = vpop.permute.xlu0 %4034
        %4036 = vrot.lane.b32.xlu0 %v1258, 72
        %v4037 = vpop.permute.xlu0 %4036
        %4038 = vrot.lane.b32.xlu0 %v1263, 72
        %v4039 = vpop.permute.xlu0 %4038
        %4040 = vrot.lane.b32.xlu0 %v1268, 72
        %v4041 = vpop.permute.xlu0 %4040
        %v4042 = vsel %vm1361, %v4007, 0
        %v4044 = vsel %vm1361, %v4009, 0
        %v4046 = vsel %vm1361, %v4011, 0
        %v4048 = vsel %vm1361, %v4013, 0
        %v4050 = vsel %vm1361, %v4015, 0
        %v4052 = vsel %vm1361, %v4017, 0
        %v4054 = vsel %vm1361, %v4019, 0
        %v4056 = vsel %vm1361, %v4021, 0
        %v4058 = vsel %vm1361, %v4023, 0
        %v4060 = vsel %vm1361, %v4025, 0
        %v4062 = vsel %vm1361, %v4027, 0
        %v4064 = vsel %vm1361, %v4029, 0
        %v4066 = vsel %vm1361, %v4031, 0
        %v4068 = vsel %vm1361, %v4033, 0
        %v4070 = vsel %vm1361, %v4035, 0
        %v4072 = vsel %vm1361, %v4037, 0
        %v4074 = vsel %vm1361, %v4039, 0
        %v4076 = vsel %vm1361, %v4041, 0
        %4078 = vmatprep.subr.mxu0 0.0
        %4079 = vmatpush1.xpose.msra.mxu0 %v4060
        %4080 = vmatprep.subr.mxu0 0.0
        %4081 = vmatpush1.xpose.msra.mxu0 %v4062
        %4082 = vmatprep.subr.mxu0 0.0
        %4083 = vmatpush1.xpose.msra.mxu0 %v4064
        %4084 = vmatprep.subr.mxu0 0.0
        %4085 = vmatpush1.xpose.msra.mxu0 %v4066
        %4086 = vmatprep.subr.mxu0 0.0
        %4087 = vmatpush1.xpose.msra.mxu0 %v4068
        %4088 = vmatprep.subr.mxu0 0.0
        %4089 = vmatpush1.xpose.msra.mxu0 %v4070
        %4090 = vmatprep.subr.mxu0 0.0
        %4091 = vmatpush1.xpose.msra.mxu0 %v4072
        %4092 = vmatprep.subr.mxu0 0.0
        %4093 = vmatpush1.xpose.msra.mxu0 %v4074
        %4094 = vmatprep.subr.mxu0 0.0
        %4095 = vmatpush1.xpose.msra.mxu0 %v4076
        %4096 = vmatprep.subr.mxu0 0.0
        %4097 = vmatpush1.xpose.msra.mxu0 0.0
        %4098 = vmatprep.subr.mxu0 0.0
        %4099 = vmatpush1.xpose.msra.mxu0 0.0
        %4100 = vmatprep.subr.mxu0 0.0
        %4101 = vmatpush1.xpose.msra.mxu0 0.0
        %4102 = vmatprep.subr.mxu0 0.0
        %4103 = vmatpush1.xpose.msra.mxu0 0.0
        %4104 = vmatprep.subr.mxu0 0.0
        %4105 = vmatpush1.xpose.msra.mxu0 0.0
        %4106 = vmatprep.subr.mxu0 0.0
        %4107 = vmatpush1.xpose.msra.mxu0 0.0
        %4108 = vmatprep.subr.mxu0 0.0
        %4109 = vmatpush1.xpose.msra.mxu0 0.0
        %4110 = vmatprep.subr.mxu0 0.0
        %4111 = vmatpush1.xpose.msra.mxu0 0.0
        %4112 = vmatprep.subr.mxu0 0.0
        %4113 = vmatpush1.xpose.msra.mxu0 0.0
        %4114 = vmatprep.subr.mxu0 0.0
        %4115 = vmatpush1.xpose.msra.mxu0 0.0
        %4116 = vmatprep.subr.mxu0 0.0
        %4117 = vmatpush1.xpose.msra.mxu0 0.0
        %4118 = vmatprep.subr.mxu0 0.0
        %4119 = vmatpush1.xpose.msra.mxu0 0.0
        %4120 = vmatprep.subr.mxu0 0.0
        %4121 = vmatpush1.xpose.msra.mxu0 0.0
        %4122 = vmatprep.subr.mxu0 0.0
        %4123 = vmatpush1.xpose.msra.mxu0 0.0
        %4124 = vmatprep.subr.mxu0 0.0
        %4125 = vmatpush1.xpose.msra.mxu0 0.0
        %4126 = vmatprep.subr.mxu0 0.0
        %4127 = vmatpush1.xpose.msra.mxu0 0.0
        %4128 = vmatprep.subr.mxu0 0.0
        %4129 = vmatpush1.xpose.msra.mxu0 0.0
        %4130 = vmatprep.subr.mxu0 0.0
        %4131 = vmatpush1.xpose.msra.mxu0 0.0
        %4132 = vmatprep.subr.mxu0 0.0
        %4133 = vmatpush1.xpose.msra.mxu0 0.0
        %4134 = vmatprep.subr.mxu0 0.0
        %4135 = vmatpush1.xpose.msra.mxu0 0.0
        %4136 = vmatprep.subr.mxu0 0.0
        %4137 = vmatpush1.xpose.msra.mxu0 0.0
        %4138 = vmatprep.subr.mxu0 0.0
        %4139 = vmatpush1.xpose.msra.mxu0 0.0
        %4140 = vmatprep.subr.mxu0 0.0
        %4141 = vmatpush1.xpose.msra.mxu0 0.0
        %4142 = vmatprep.mubr.f32.mxu0 0.0
        %4143 = vmatmul.mubr.f32.gmra.mrb[0].mxu0 %v4042
        %v4144 = vpop.f32.mrb[0].mxu0
        %v4145 = vadd.f32 0.0, %v4144
        %v4146 = vpop.f32.mrb[0].mxu0
        %4147 = vmatprep.mubr.f32.mxu0 0.0
        %4148 = vmatmul.mubr.f32.gmra.mrb[0].mxu0 %v4044
        %v4149 = vpop.f32.mrb[0].mxu0
        %v4150 = vadd.f32 0.0, %v4149
        %v4151 = vpop.f32.mrb[0].mxu0
        %4152 = vmatprep.mubr.f32.mxu0 0.0
        %4153 = vmatmul.mubr.f32.gmra.mrb[0].mxu0 %v4046
        %v4154 = vpop.f32.mrb[0].mxu0
        %v4155 = vadd.f32 0.0, %v4154
        %v4156 = vpop.f32.mrb[0].mxu0
        %4157 = vmatprep.mubr.f32.mxu0 0.0
        %4158 = vmatmul.mubr.f32.gmra.mrb[0].mxu0 %v4048
        %v4159 = vpop.f32.mrb[0].mxu0
        %v4160 = vadd.f32 0.0, %v4159
        %v4161 = vpop.f32.mrb[0].mxu0
        %4162 = vmatprep.mubr.f32.mxu0 0.0
        %4163 = vmatmul.mubr.f32.gmra.mrb[0].mxu0 %v4050
        %v4164 = vpop.f32.mrb[0].mxu0
        %v4165 = vadd.f32 0.0, %v4164
        %v4166 = vpop.f32.mrb[0].mxu0
        %4167 = vmatprep.mubr.f32.mxu0 0.0
        %4168 = vmatmul.mubr.f32.gmra.mrb[0].mxu0 %v4052
        %v4169 = vpop.f32.mrb[0].mxu0
        %v4170 = vadd.f32 0.0, %v4169
        %v4171 = vpop.f32.mrb[0].mxu0
        %4172 = vmatprep.mubr.f32.mxu0 0.0
        %4173 = vmatmul.mubr.f32.gmra.mrb[0].mxu0 %v4054
        %v4174 = vpop.f32.mrb[0].mxu0
        %v4175 = vadd.f32 0.0, %v4174
        %v4176 = vpop.f32.mrb[0].mxu0
        %4177 = vmatprep.mubr.f32.mxu0 0.0
        %4178 = vmatmul.mubr.f32.gmra.mrb[0].mxu0 %v4056
        %v4179 = vpop.f32.mrb[0].mxu0
        %v4180 = vadd.f32 0.0, %v4179
        %v4181 = vpop.f32.mrb[0].mxu0
        %4182 = vmatprep.mubr.f32.mxu0 0.0
        %4183 = vmatmul.mubr.f32.gmra.mrb[0].mxu0 %v4058
        %v4184 = vpop.f32.mrb[0].mxu0
        %v4185 = vadd.f32 0.0, %v4184
        %v4186 = vpop.f32.mrb[0].mxu0
        %4187 = vdwg.mxu0
        %4188 = vrot.lane.b32.xlu0 %v1325, 104
        %v4189 = vpop.permute.xlu0 %4188
        %4190 = vrot.lane.b32.xlu0 %v1326, 104
        %v4191 = vpop.permute.xlu0 %4190
        %4192 = vrot.lane.b32.xlu0 %v1327, 104
        %v4193 = vpop.permute.xlu0 %4192
        %4194 = vrot.lane.b32.xlu0 %v1328, 104
        %v4195 = vpop.permute.xlu0 %4194
        %4196 = vrot.lane.b32.xlu0 %v1329, 104
        %v4197 = vpop.permute.xlu0 %4196
        %4198 = vrot.lane.b32.xlu0 %v1330, 104
        %v4199 = vpop.permute.xlu0 %4198
        %4200 = vrot.lane.b32.xlu0 %v1331, 104
        %v4201 = vpop.permute.xlu0 %4200
        %4202 = vrot.lane.b32.xlu0 %v1332, 104
        %v4203 = vpop.permute.xlu0 %4202
        %4204 = vrot.lane.b32.xlu0 %v1333, 104
        %v4205 = vpop.permute.xlu0 %4204
        %4206 = vrot.lane.b32.xlu0 %v1273, 72
        %v4207 = vpop.permute.xlu0 %4206
        %4208 = vrot.lane.b32.xlu0 %v1278, 72
        %v4209 = vpop.permute.xlu0 %4208
        %4210 = vrot.lane.b32.xlu0 %v1283, 72
        %v4211 = vpop.permute.xlu0 %4210
        %4212 = vrot.lane.b32.xlu0 %v1288, 72
        %v4213 = vpop.permute.xlu0 %4212
        %4214 = vrot.lane.b32.xlu0 %v1293, 72
        %v4215 = vpop.permute.xlu0 %4214
        %4216 = vrot.lane.b32.xlu0 %v1298, 72
        %v4217 = vpop.permute.xlu0 %4216
        %4218 = vrot.lane.b32.xlu0 %v1303, 72
        %v4219 = vpop.permute.xlu0 %4218
        %4220 = vrot.lane.b32.xlu0 %v1308, 72
        %v4221 = vpop.permute.xlu0 %4220
        %4222 = vrot.lane.b32.xlu0 %v1313, 72
        %v4223 = vpop.permute.xlu0 %4222
        %v4224 = vsel %vm1361, %v4189, 0
        %v4226 = vsel %vm1361, %v4191, 0
        %v4228 = vsel %vm1361, %v4193, 0
        %v4230 = vsel %vm1361, %v4195, 0
        %v4232 = vsel %vm1361, %v4197, 0
        %v4234 = vsel %vm1361, %v4199, 0
        %v4236 = vsel %vm1361, %v4201, 0
        %v4238 = vsel %vm1361, %v4203, 0
        %v4240 = vsel %vm1361, %v4205, 0
        %v4242 = vsel %vm1361, %v4207, 0
        %v4244 = vsel %vm1361, %v4209, 0
        %v4246 = vsel %vm1361, %v4211, 0
        %v4248 = vsel %vm1361, %v4213, 0
        %v4250 = vsel %vm1361, %v4215, 0
        %v4252 = vsel %vm1361, %v4217, 0
        %v4254 = vsel %vm1361, %v4219, 0
        %v4256 = vsel %vm1361, %v4221, 0
        %v4258 = vsel %vm1361, %v4223, 0
        %4260 = vmatprep.subr.mxu0 0.0
        %4261 = vmatpush1.xpose.msra.mxu0 %v4242
        %4262 = vmatprep.subr.mxu0 0.0
        %4263 = vmatpush1.xpose.msra.mxu0 %v4244
        %4264 = vmatprep.subr.mxu0 0.0
        %4265 = vmatpush1.xpose.msra.mxu0 %v4246
        %4266 = vmatprep.subr.mxu0 0.0
        %4267 = vmatpush1.xpose.msra.mxu0 %v4248
        %4268 = vmatprep.subr.mxu0 0.0
        %4269 = vmatpush1.xpose.msra.mxu0 %v4250
        %4270 = vmatprep.subr.mxu0 0.0
        %4271 = vmatpush1.xpose.msra.mxu0 %v4252
        %4272 = vmatprep.subr.mxu0 0.0
        %4273 = vmatpush1.xpose.msra.mxu0 %v4254
        %4274 = vmatprep.subr.mxu0 0.0
        %4275 = vmatpush1.xpose.msra.mxu0 %v4256
        %4276 = vmatprep.subr.mxu0 0.0
        %4277 = vmatpush1.xpose.msra.mxu0 %v4258
        %4278 = vmatprep.subr.mxu0 0.0
        %4279 = vmatpush1.xpose.msra.mxu0 0.0
        %4280 = vmatprep.subr.mxu0 0.0
        %4281 = vmatpush1.xpose.msra.mxu0 0.0
        %4282 = vmatprep.subr.mxu0 0.0
        %4283 = vmatpush1.xpose.msra.mxu0 0.0
        %4284 = vmatprep.subr.mxu0 0.0
        %4285 = vmatpush1.xpose.msra.mxu0 0.0
        %4286 = vmatprep.subr.mxu0 0.0
        %4287 = vmatpush1.xpose.msra.mxu0 0.0
        %4288 = vmatprep.subr.mxu0 0.0
        %4289 = vmatpush1.xpose.msra.mxu0 0.0
        %4290 = vmatprep.subr.mxu0 0.0
        %4291 = vmatpush1.xpose.msra.mxu0 0.0
        %4292 = vmatprep.subr.mxu0 0.0
        %4293 = vmatpush1.xpose.msra.mxu0 0.0
        %4294 = vmatprep.subr.mxu0 0.0
        %4295 = vmatpush1.xpose.msra.mxu0 0.0
        %4296 = vmatprep.subr.mxu0 0.0
        %4297 = vmatpush1.xpose.msra.mxu0 0.0
        %4298 = vmatprep.subr.mxu0 0.0
        %4299 = vmatpush1.xpose.msra.mxu0 0.0
        %4300 = vmatprep.subr.mxu0 0.0
        %4301 = vmatpush1.xpose.msra.mxu0 0.0
        %4302 = vmatprep.subr.mxu0 0.0
        %4303 = vmatpush1.xpose.msra.mxu0 0.0
        %4304 = vmatprep.subr.mxu0 0.0
        %4305 = vmatpush1.xpose.msra.mxu0 0.0
        %4306 = vmatprep.subr.mxu0 0.0
        %4307 = vmatpush1.xpose.msra.mxu0 0.0
        %4308 = vmatprep.subr.mxu0 0.0
        %4309 = vmatpush1.xpose.msra.mxu0 0.0
        %4310 = vmatprep.subr.mxu0 0.0
        %4311 = vmatpush1.xpose.msra.mxu0 0.0
        %4312 = vmatprep.subr.mxu0 0.0
        %4313 = vmatpush1.xpose.msra.mxu0 0.0
        %4314 = vmatprep.subr.mxu0 0.0
        %4315 = vmatpush1.xpose.msra.mxu0 0.0
        %4316 = vmatprep.subr.mxu0 0.0
        %4317 = vmatpush1.xpose.msra.mxu0 0.0
        %4318 = vmatprep.subr.mxu0 0.0
        %4319 = vmatpush1.xpose.msra.mxu0 0.0
        %4320 = vmatprep.subr.mxu0 0.0
        %4321 = vmatpush1.xpose.msra.mxu0 0.0
        %4322 = vmatprep.subr.mxu0 0.0
        %4323 = vmatpush1.xpose.msra.mxu0 0.0
        %4324 = vmatprep.mubr.f32.mxu0 0.0
        %4325 = vmatmul.mubr.f32.gmra.mrb[0].mxu0 %v4224
        %v4326 = vpop.f32.mrb[0].mxu0
        %v4327 = vadd.f32 0.0, %v4326
        %v4328 = vpop.f32.mrb[0].mxu0
        %4329 = vmatprep.mubr.f32.mxu0 0.0
        %4330 = vmatmul.mubr.f32.gmra.mrb[0].mxu0 %v4226
        %v4331 = vpop.f32.mrb[0].mxu0
        %v4332 = vadd.f32 0.0, %v4331
        %v4333 = vpop.f32.mrb[0].mxu0
        %4334 = vmatprep.mubr.f32.mxu0 0.0
        %4335 = vmatmul.mubr.f32.gmra.mrb[0].mxu0 %v4228
        %v4336 = vpop.f32.mrb[0].mxu0
        %v4337 = vadd.f32 0.0, %v4336
        %v4338 = vpop.f32.mrb[0].mxu0
        %4339 = vmatprep.mubr.f32.mxu0 0.0
        %4340 = vmatmul.mubr.f32.gmra.mrb[0].mxu0 %v4230
        %v4341 = vpop.f32.mrb[0].mxu0
        %v4342 = vadd.f32 0.0, %v4341
        %v4343 = vpop.f32.mrb[0].mxu0
        %4344 = vmatprep.mubr.f32.mxu0 0.0
        %4345 = vmatmul.mubr.f32.gmra.mrb[0].mxu0 %v4232
        %v4346 = vpop.f32.mrb[0].mxu0
        %v4347 = vadd.f32 0.0, %v4346
        %v4348 = vpop.f32.mrb[0].mxu0
        %4349 = vmatprep.mubr.f32.mxu0 0.0
        %4350 = vmatmul.mubr.f32.gmra.mrb[0].mxu0 %v4234
        %v4351 = vpop.f32.mrb[0].mxu0
        %v4352 = vadd.f32 0.0, %v4351
        %v4353 = vpop.f32.mrb[0].mxu0
        %4354 = vmatprep.mubr.f32.mxu0 0.0
        %4355 = vmatmul.mubr.f32.gmra.mrb[0].mxu0 %v4236
        %v4356 = vpop.f32.mrb[0].mxu0
        %v4357 = vadd.f32 0.0, %v4356
        %v4358 = vpop.f32.mrb[0].mxu0
        %4359 = vmatprep.mubr.f32.mxu0 0.0
        %4360 = vmatmul.mubr.f32.gmra.mrb[0].mxu0 %v4238
        %v4361 = vpop.f32.mrb[0].mxu0
        %v4362 = vadd.f32 0.0, %v4361
        %v4363 = vpop.f32.mrb[0].mxu0
        %4364 = vmatprep.mubr.f32.mxu0 0.0
        %4365 = vmatmul.mubr.f32.gmra.mrb[0].mxu0 %v4240
        %v4366 = vpop.f32.mrb[0].mxu0
        %v4367 = vadd.f32 0.0, %v4366
        %v4368 = vpop.f32.mrb[0].mxu0
        %4369 = vdwg.mxu0
        %v4370 = vsel %vm1699, %v4145, -inf
        %4371 = vmax.xlane.f32.xlu0 %v4370
        %v4372 = vpop.xlane.xlu0 %4371
        %v4373 = vsel %vm1699, %v4150, -inf
        %4374 = vmax.xlane.f32.xlu0 %v4373
        %v4375 = vpop.xlane.xlu0 %4374
        %v4376 = vsel %vm1699, %v4155, -inf
        %4377 = vmax.xlane.f32.xlu0 %v4376
        %v4378 = vpop.xlane.xlu0 %4377
        %v4379 = vsel %vm1699, %v4160, -inf
        %4380 = vmax.xlane.f32.xlu0 %v4379
        %v4381 = vpop.xlane.xlu0 %4380
        %v4382 = vsel %vm1699, %v4165, -inf
        %4383 = vmax.xlane.f32.xlu0 %v4382
        %v4384 = vpop.xlane.xlu0 %4383
        %v4385 = vsel %vm1699, %v4170, -inf
        %4386 = vmax.xlane.f32.xlu0 %v4385
        %v4387 = vpop.xlane.xlu0 %4386
        %v4388 = vsel %vm1699, %v4175, -inf
        %4389 = vmax.xlane.f32.xlu0 %v4388
        %v4390 = vpop.xlane.xlu0 %4389
        %v4391 = vsel %vm1699, %v4180, -inf
        %4392 = vmax.xlane.f32.xlu0 %v4391
        %v4393 = vpop.xlane.xlu0 %4392
        %v4394 = vsel %vm1699, %v4185, -inf
        %4395 = vmax.xlane.f32.xlu0 %v4394
        %v4396 = vpop.xlane.xlu0 %4395
        %v4397 = vsel %vm1699, %v4327, -inf
        %4398 = vmax.xlane.f32.xlu0 %v4397
        %v4399 = vpop.xlane.xlu0 %4398
        %v4400 = vsel %vm1699, %v4332, -inf
        %4401 = vmax.xlane.f32.xlu0 %v4400
        %v4402 = vpop.xlane.xlu0 %4401
        %v4403 = vsel %vm1699, %v4337, -inf
        %4404 = vmax.xlane.f32.xlu0 %v4403
        %v4405 = vpop.xlane.xlu0 %4404
        %v4406 = vsel %vm1699, %v4342, -inf
        %4407 = vmax.xlane.f32.xlu0 %v4406
        %v4408 = vpop.xlane.xlu0 %4407
        %v4409 = vsel %vm1699, %v4347, -inf
        %4410 = vmax.xlane.f32.xlu0 %v4409
        %v4411 = vpop.xlane.xlu0 %4410
        %v4412 = vsel %vm1699, %v4352, -inf
        %4413 = vmax.xlane.f32.xlu0 %v4412
        %v4414 = vpop.xlane.xlu0 %4413
        %v4415 = vsel %vm1699, %v4357, -inf
        %4416 = vmax.xlane.f32.xlu0 %v4415
        %v4417 = vpop.xlane.xlu0 %4416
        %v4418 = vsel %vm1699, %v4362, -inf
        %4419 = vmax.xlane.f32.xlu0 %v4418
        %v4420 = vpop.xlane.xlu0 %4419
        %v4421 = vsel %vm1699, %v4367, -inf
        %4422 = vmax.xlane.f32.xlu0 %v4421
        %v4423 = vpop.xlane.xlu0 %4422
        %v4424 = vsub.f32 %v4145, %v4372
        %v4425 = vsub.f32 %v4150, %v4375
        %v4426 = vsub.f32 %v4155, %v4378
        %v4427 = vsub.f32 %v4160, %v4381
        %v4428 = vsub.f32 %v4165, %v4384
        %v4429 = vsub.f32 %v4170, %v4387
        %v4430 = vsub.f32 %v4175, %v4390
        %v4431 = vsub.f32 %v4180, %v4393
        %v4432 = vsub.f32 %v4185, %v4396
        %v4433 = vsub.f32 %v4327, %v4399
        %v4434 = vsub.f32 %v4332, %v4402
        %v4435 = vsub.f32 %v4337, %v4405
        %v4436 = vsub.f32 %v4342, %v4408
        %v4437 = vsub.f32 %v4347, %v4411
        %v4438 = vsub.f32 %v4352, %v4414
        %v4439 = vsub.f32 %v4357, %v4417
        %v4440 = vsub.f32 %v4362, %v4420
        %v4441 = vsub.f32 %v4367, %v4423
        %v4442 = vmul.f32 %v4424, 1.442695
        %v4443 = vpow.pop %v4442
        %v4444 = vmul.f32 %v4425, 1.442695
        %v4445 = vpow.pop %v4444
        %v4446 = vmul.f32 %v4426, 1.442695
        %v4447 = vpow.pop %v4446
        %v4448 = vmul.f32 %v4427, 1.442695
        %v4449 = vpow.pop %v4448
        %v4450 = vmul.f32 %v4428, 1.442695
        %v4451 = vpow.pop %v4450
        %v4452 = vmul.f32 %v4429, 1.442695
        %v4453 = vpow.pop %v4452
        %v4454 = vmul.f32 %v4430, 1.442695
        %v4455 = vpow.pop %v4454
        %v4456 = vmul.f32 %v4431, 1.442695
        %v4457 = vpow.pop %v4456
        %v4458 = vmul.f32 %v4432, 1.442695
        %v4459 = vpow.pop %v4458
        %v4460 = vmul.f32 %v4433, 1.442695
        %v4461 = vpow.pop %v4460
        %v4462 = vmul.f32 %v4434, 1.442695
        %v4463 = vpow.pop %v4462
        %v4464 = vmul.f32 %v4435, 1.442695
        %v4465 = vpow.pop %v4464
        %v4466 = vmul.f32 %v4436, 1.442695
        %v4467 = vpow.pop %v4466
        %v4468 = vmul.f32 %v4437, 1.442695
        %v4469 = vpow.pop %v4468
        %v4470 = vmul.f32 %v4438, 1.442695
        %v4471 = vpow.pop %v4470
        %v4472 = vmul.f32 %v4439, 1.442695
        %v4473 = vpow.pop %v4472
        %v4474 = vmul.f32 %v4440, 1.442695
        %v4475 = vpow.pop %v4474
        %v4476 = vmul.f32 %v4441, 1.442695
        %v4477 = vpow.pop %v4476
        %v4478 = vsel %vm1699, %v4443, 0.0
        %4479 = vadd.xlane.f32.xlu0 %v4478
        %v4480 = vpop.xlane.xlu0 %4479
        %v4481 = vsel %vm1699, %v4445, 0.0
        %4482 = vadd.xlane.f32.xlu0 %v4481
        %v4483 = vpop.xlane.xlu0 %4482
        %v4484 = vsel %vm1699, %v4447, 0.0
        %4485 = vadd.xlane.f32.xlu0 %v4484
        %v4486 = vpop.xlane.xlu0 %4485
        %v4487 = vsel %vm1699, %v4449, 0.0
        %4488 = vadd.xlane.f32.xlu0 %v4487
        %v4489 = vpop.xlane.xlu0 %4488
        %v4490 = vsel %vm1699, %v4451, 0.0
        %4491 = vadd.xlane.f32.xlu0 %v4490
        %v4492 = vpop.xlane.xlu0 %4491
        %v4493 = vsel %vm1699, %v4453, 0.0
        %4494 = vadd.xlane.f32.xlu0 %v4493
        %v4495 = vpop.xlane.xlu0 %4494
        %v4496 = vsel %vm1699, %v4455, 0.0
        %4497 = vadd.xlane.f32.xlu0 %v4496
        %v4498 = vpop.xlane.xlu0 %4497
        %v4499 = vsel %vm1699, %v4457, 0.0
        %4500 = vadd.xlane.f32.xlu0 %v4499
        %v4501 = vpop.xlane.xlu0 %4500
        %v4502 = vsel %vm1699, %v4459, 0.0
        %4503 = vadd.xlane.f32.xlu0 %v4502
        %v4504 = vpop.xlane.xlu0 %4503
        %v4505 = vsel %vm1699, %v4461, 0.0
        %4506 = vadd.xlane.f32.xlu0 %v4505
        %v4507 = vpop.xlane.xlu0 %4506
        %v4508 = vsel %vm1699, %v4463, 0.0
        %4509 = vadd.xlane.f32.xlu0 %v4508
        %v4510 = vpop.xlane.xlu0 %4509
        %v4511 = vsel %vm1699, %v4465, 0.0
        %4512 = vadd.xlane.f32.xlu0 %v4511
        %v4513 = vpop.xlane.xlu0 %4512
        %v4514 = vsel %vm1699, %v4467, 0.0
        %4515 = vadd.xlane.f32.xlu0 %v4514
        %v4516 = vpop.xlane.xlu0 %4515
        %v4517 = vsel %vm1699, %v4469, 0.0
        %4518 = vadd.xlane.f32.xlu0 %v4517
        %v4519 = vpop.xlane.xlu0 %4518
        %v4520 = vsel %vm1699, %v4471, 0.0
        %4521 = vadd.xlane.f32.xlu0 %v4520
        %v4522 = vpop.xlane.xlu0 %4521
        %v4523 = vsel %vm1699, %v4473, 0.0
        %4524 = vadd.xlane.f32.xlu0 %v4523
        %v4525 = vpop.xlane.xlu0 %4524
        %v4526 = vsel %vm1699, %v4475, 0.0
        %4527 = vadd.xlane.f32.xlu0 %v4526
        %v4528 = vpop.xlane.xlu0 %4527
        %v4529 = vsel %vm1699, %v4477, 0.0
        %4530 = vadd.xlane.f32.xlu0 %v4529
        %v4531 = vpop.xlane.xlu0 %4530
        %v4532 = vrcp.pop %v4480
        %v4533 = vrcp.pop %v4483
        %v4534 = vrcp.pop %v4486
        %v4535 = vrcp.pop %v4489
        %v4536 = vrcp.pop %v4492
        %v4537 = vrcp.pop %v4495
        %v4538 = vrcp.pop %v4498
        %v4539 = vrcp.pop %v4501
        %v4540 = vrcp.pop %v4504
        %v4541 = vrcp.pop %v4507
        %v4542 = vrcp.pop %v4510
        %v4543 = vrcp.pop %v4513
        %v4544 = vrcp.pop %v4516
        %v4545 = vrcp.pop %v4519
        %v4546 = vrcp.pop %v4522
        %v4547 = vrcp.pop %v4525
        %v4548 = vrcp.pop %v4528
        %v4549 = vrcp.pop %v4531
        %v4550 = vmul.f32 %v4443, %v4532
        %v4551 = vmul.f32 %v4445, %v4533
        %v4552 = vmul.f32 %v4447, %v4534
        %v4553 = vmul.f32 %v4449, %v4535
        %v4554 = vmul.f32 %v4451, %v4536
        %v4555 = vmul.f32 %v4453, %v4537
        %v4556 = vmul.f32 %v4455, %v4538
        %v4557 = vmul.f32 %v4457, %v4539
        %v4558 = vmul.f32 %v4459, %v4540
        %v4559 = vmul.f32 %v4461, %v4541
        %v4560 = vmul.f32 %v4463, %v4542
        %v4561 = vmul.f32 %v4465, %v4543
        %v4562 = vmul.f32 %v4467, %v4544
        %v4563 = vmul.f32 %v4469, %v4545
        %v4564 = vmul.f32 %v4471, %v4546
        %v4565 = vmul.f32 %v4473, %v4547
        %v4566 = vmul.f32 %v4475, %v4548
        %v4567 = vmul.f32 %v4477, %v4549
        %4568 = vrot.lane.b32.xlu0 %v1228, 40
        %v4569 = vpop.permute.xlu0 %4568
        %4570 = vrot.lane.b32.xlu0 %v1233, 40
        %v4571 = vpop.permute.xlu0 %4570
        %4572 = vrot.lane.b32.xlu0 %v1238, 40
        %v4573 = vpop.permute.xlu0 %4572
        %4574 = vrot.lane.b32.xlu0 %v1243, 40
        %v4575 = vpop.permute.xlu0 %4574
        %4576 = vrot.lane.b32.xlu0 %v1248, 40
        %v4577 = vpop.permute.xlu0 %4576
        %4578 = vrot.lane.b32.xlu0 %v1253, 40
        %v4579 = vpop.permute.xlu0 %4578
        %4580 = vrot.lane.b32.xlu0 %v1258, 40
        %v4581 = vpop.permute.xlu0 %4580
        %4582 = vrot.lane.b32.xlu0 %v1263, 40
        %v4583 = vpop.permute.xlu0 %4582
        %4584 = vrot.lane.b32.xlu0 %v1268, 40
        %v4585 = vpop.permute.xlu0 %4584
        %v4596 = vsel %vm1699, %v4550, 0
        %v4599 = vsel %vm1699, %v4551, 0
        %v4602 = vsel %vm1699, %v4552, 0
        %v4605 = vsel %vm1699, %v4553, 0
        %v4608 = vsel %vm1699, %v4554, 0
        %v4611 = vsel %vm1699, %v4555, 0
        %v4614 = vsel %vm1699, %v4556, 0
        %v4617 = vsel %vm1699, %v4557, 0
        %v4620 = vsel %vm1699, %v4558, 0
        %4622 = vmatprep.subr.mxu0 0.0
        %4623 = vmatpush1.msra.mxu0 %v4569
        %4624 = vmatprep.subr.mxu0 0.0
        %4625 = vmatpush1.msra.mxu0 %v4571
        %4626 = vmatprep.subr.mxu0 0.0
        %4627 = vmatpush1.msra.mxu0 %v4573
        %4628 = vmatprep.subr.mxu0 0.0
        %4629 = vmatpush1.msra.mxu0 %v4575
        %4630 = vmatprep.subr.mxu0 0.0
        %4631 = vmatpush1.msra.mxu0 %v4577
        %4632 = vmatprep.subr.mxu0 0.0
        %4633 = vmatpush1.msra.mxu0 %v4579
        %4634 = vmatprep.subr.mxu0 0.0
        %4635 = vmatpush1.msra.mxu0 %v4581
        %4636 = vmatprep.subr.mxu0 0.0
        %4637 = vmatpush1.msra.mxu0 %v4583
        %4638 = vmatprep.subr.mxu0 0.0
        %4639 = vmatpush1.msra.mxu0 %v4585
        %4640 = vmatprep.subr.mxu0 0.0
        %4641 = vmatpush1.msra.mxu0 0.0
        %4642 = vmatprep.subr.mxu0 0.0
        %4643 = vmatpush1.msra.mxu0 0.0
        %4644 = vmatprep.subr.mxu0 0.0
        %4645 = vmatpush1.msra.mxu0 0.0
        %4646 = vmatprep.subr.mxu0 0.0
        %4647 = vmatpush1.msra.mxu0 0.0
        %4648 = vmatprep.subr.mxu0 0.0
        %4649 = vmatpush1.msra.mxu0 0.0
        %4650 = vmatprep.subr.mxu0 0.0
        %4651 = vmatpush1.msra.mxu0 0.0
        %4652 = vmatprep.subr.mxu0 0.0
        %4653 = vmatpush1.msra.mxu0 0.0
        %4654 = vmatprep.subr.mxu0 0.0
        %4655 = vmatpush1.msra.mxu0 0.0
        %4656 = vmatprep.subr.mxu0 0.0
        %4657 = vmatpush1.msra.mxu0 0.0
        %4658 = vmatprep.subr.mxu0 0.0
        %4659 = vmatpush1.msra.mxu0 0.0
        %4660 = vmatprep.subr.mxu0 0.0
        %4661 = vmatpush1.msra.mxu0 0.0
        %4662 = vmatprep.subr.mxu0 0.0
        %4663 = vmatpush1.msra.mxu0 0.0
        %4664 = vmatprep.subr.mxu0 0.0
        %4665 = vmatpush1.msra.mxu0 0.0
        %4666 = vmatprep.subr.mxu0 0.0
        %4667 = vmatpush1.msra.mxu0 0.0
        %4668 = vmatprep.subr.mxu0 0.0
        %4669 = vmatpush1.msra.mxu0 0.0
        %4670 = vmatprep.subr.mxu0 0.0
        %4671 = vmatpush1.msra.mxu0 0.0
        %4672 = vmatprep.subr.mxu0 0.0
        %4673 = vmatpush1.msra.mxu0 0.0
        %4674 = vmatprep.subr.mxu0 0.0
        %4675 = vmatpush1.msra.mxu0 0.0
        %4676 = vmatprep.subr.mxu0 0.0
        %4677 = vmatpush1.msra.mxu0 0.0
        %4678 = vmatprep.subr.mxu0 0.0
        %4679 = vmatpush1.msra.mxu0 0.0
        %4680 = vmatprep.subr.mxu0 0.0
        %4681 = vmatpush1.msra.mxu0 0.0
        %4682 = vmatprep.subr.mxu0 0.0
        %4683 = vmatpush1.msra.mxu0 0.0
        %4684 = vmatprep.subr.mxu0 0.0
        %4685 = vmatpush1.msra.mxu0 0.0
        %4686 = vmatprep.mubr.f32.mxu0 0.0
        %4687 = vmatmul.mubr.f32.gmra.mrb[0].mxu0 %v4596
        %v4688 = vpop.f32.mrb[0].mxu0
        %v4689 = vadd.f32 0.0, %v4688
        %v4690 = vpop.f32.mrb[0].mxu0
        %4691 = vmatprep.mubr.f32.mxu0 0.0
        %4692 = vmatmul.mubr.f32.gmra.mrb[0].mxu0 %v4599
        %v4693 = vpop.f32.mrb[0].mxu0
        %v4694 = vadd.f32 0.0, %v4693
        %v4695 = vpop.f32.mrb[0].mxu0
        %4696 = vmatprep.mubr.f32.mxu0 0.0
        %4697 = vmatmul.mubr.f32.gmra.mrb[0].mxu0 %v4602
        %v4698 = vpop.f32.mrb[0].mxu0
        %v4699 = vadd.f32 0.0, %v4698
        %v4700 = vpop.f32.mrb[0].mxu0
        %4701 = vmatprep.mubr.f32.mxu0 0.0
        %4702 = vmatmul.mubr.f32.gmra.mrb[0].mxu0 %v4605
        %v4703 = vpop.f32.mrb[0].mxu0
        %v4704 = vadd.f32 0.0, %v4703
        %v4705 = vpop.f32.mrb[0].mxu0
        %4706 = vmatprep.mubr.f32.mxu0 0.0
        %4707 = vmatmul.mubr.f32.gmra.mrb[0].mxu0 %v4608
        %v4708 = vpop.f32.mrb[0].mxu0
        %v4709 = vadd.f32 0.0, %v4708
        %v4710 = vpop.f32.mrb[0].mxu0
        %4711 = vmatprep.mubr.f32.mxu0 0.0
        %4712 = vmatmul.mubr.f32.gmra.mrb[0].mxu0 %v4611
        %v4713 = vpop.f32.mrb[0].mxu0
        %v4714 = vadd.f32 0.0, %v4713
        %v4715 = vpop.f32.mrb[0].mxu0
        %4716 = vmatprep.mubr.f32.mxu0 0.0
        %4717 = vmatmul.mubr.f32.gmra.mrb[0].mxu0 %v4614
        %v4718 = vpop.f32.mrb[0].mxu0
        %v4719 = vadd.f32 0.0, %v4718
        %v4720 = vpop.f32.mrb[0].mxu0
        %4721 = vmatprep.mubr.f32.mxu0 0.0
        %4722 = vmatmul.mubr.f32.gmra.mrb[0].mxu0 %v4617
        %v4723 = vpop.f32.mrb[0].mxu0
        %v4724 = vadd.f32 0.0, %v4723
        %v4725 = vpop.f32.mrb[0].mxu0
        %4726 = vmatprep.mubr.f32.mxu0 0.0
        %4727 = vmatmul.mubr.f32.gmra.mrb[0].mxu0 %v4620
        %v4728 = vpop.f32.mrb[0].mxu0
        %v4729 = vadd.f32 0.0, %v4728
        %v4730 = vpop.f32.mrb[0].mxu0
        %4731 = vdwg.mxu0
        %4732 = vrot.lane.b32.xlu0 %v1273, 40
        %v4733 = vpop.permute.xlu0 %4732
        %4734 = vrot.lane.b32.xlu0 %v1278, 40
        %v4735 = vpop.permute.xlu0 %4734
        %4736 = vrot.lane.b32.xlu0 %v1283, 40
        %v4737 = vpop.permute.xlu0 %4736
        %4738 = vrot.lane.b32.xlu0 %v1288, 40
        %v4739 = vpop.permute.xlu0 %4738
        %4740 = vrot.lane.b32.xlu0 %v1293, 40
        %v4741 = vpop.permute.xlu0 %4740
        %4742 = vrot.lane.b32.xlu0 %v1298, 40
        %v4743 = vpop.permute.xlu0 %4742
        %4744 = vrot.lane.b32.xlu0 %v1303, 40
        %v4745 = vpop.permute.xlu0 %4744
        %4746 = vrot.lane.b32.xlu0 %v1308, 40
        %v4747 = vpop.permute.xlu0 %4746
        %4748 = vrot.lane.b32.xlu0 %v1313, 40
        %v4749 = vpop.permute.xlu0 %4748
        %v4760 = vsel %vm1699, %v4559, 0
        %v4763 = vsel %vm1699, %v4560, 0
        %v4766 = vsel %vm1699, %v4561, 0
        %v4769 = vsel %vm1699, %v4562, 0
        %v4772 = vsel %vm1699, %v4563, 0
        %v4775 = vsel %vm1699, %v4564, 0
        %v4778 = vsel %vm1699, %v4565, 0
        %v4781 = vsel %vm1699, %v4566, 0
        %v4784 = vsel %vm1699, %v4567, 0
        %4786 = vmatprep.subr.mxu0 0.0
        %4787 = vmatpush1.msra.mxu0 %v4733
        %4788 = vmatprep.subr.mxu0 0.0
        %4789 = vmatpush1.msra.mxu0 %v4735
        %4790 = vmatprep.subr.mxu0 0.0
        %4791 = vmatpush1.msra.mxu0 %v4737
        %4792 = vmatprep.subr.mxu0 0.0
        %4793 = vmatpush1.msra.mxu0 %v4739
        %4794 = vmatprep.subr.mxu0 0.0
        %4795 = vmatpush1.msra.mxu0 %v4741
        %4796 = vmatprep.subr.mxu0 0.0
        %4797 = vmatpush1.msra.mxu0 %v4743
        %4798 = vmatprep.subr.mxu0 0.0
        %4799 = vmatpush1.msra.mxu0 %v4745
        %4800 = vmatprep.subr.mxu0 0.0
        %4801 = vmatpush1.msra.mxu0 %v4747
        %4802 = vmatprep.subr.mxu0 0.0
        %4803 = vmatpush1.msra.mxu0 %v4749
        %4804 = vmatprep.subr.mxu0 0.0
        %4805 = vmatpush1.msra.mxu0 0.0
        %4806 = vmatprep.subr.mxu0 0.0
        %4807 = vmatpush1.msra.mxu0 0.0
        %4808 = vmatprep.subr.mxu0 0.0
        %4809 = vmatpush1.msra.mxu0 0.0
        %4810 = vmatprep.subr.mxu0 0.0
        %4811 = vmatpush1.msra.mxu0 0.0
        %4812 = vmatprep.subr.mxu0 0.0
        %4813 = vmatpush1.msra.mxu0 0.0
        %4814 = vmatprep.subr.mxu0 0.0
        %4815 = vmatpush1.msra.mxu0 0.0
        %4816 = vmatprep.subr.mxu0 0.0
        %4817 = vmatpush1.msra.mxu0 0.0
        %4818 = vmatprep.subr.mxu0 0.0
        %4819 = vmatpush1.msra.mxu0 0.0
        %4820 = vmatprep.subr.mxu0 0.0
        %4821 = vmatpush1.msra.mxu0 0.0
        %4822 = vmatprep.subr.mxu0 0.0
        %4823 = vmatpush1.msra.mxu0 0.0
        %4824 = vmatprep.subr.mxu0 0.0
        %4825 = vmatpush1.msra.mxu0 0.0
        %4826 = vmatprep.subr.mxu0 0.0
        %4827 = vmatpush1.msra.mxu0 0.0
        %4828 = vmatprep.subr.mxu0 0.0
        %4829 = vmatpush1.msra.mxu0 0.0
        %4830 = vmatprep.subr.mxu0 0.0
        %4831 = vmatpush1.msra.mxu0 0.0
        %4832 = vmatprep.subr.mxu0 0.0
        %4833 = vmatpush1.msra.mxu0 0.0
        %4834 = vmatprep.subr.mxu0 0.0
        %4835 = vmatpush1.msra.mxu0 0.0
        %4836 = vmatprep.subr.mxu0 0.0
        %4837 = vmatpush1.msra.mxu0 0.0
        %4838 = vmatprep.subr.mxu0 0.0
        %4839 = vmatpush1.msra.mxu0 0.0
        %4840 = vmatprep.subr.mxu0 0.0
        %4841 = vmatpush1.msra.mxu0 0.0
        %4842 = vmatprep.subr.mxu0 0.0
        %4843 = vmatpush1.msra.mxu0 0.0
        %4844 = vmatprep.subr.mxu0 0.0
        %4845 = vmatpush1.msra.mxu0 0.0
        %4846 = vmatprep.subr.mxu0 0.0
        %4847 = vmatpush1.msra.mxu0 0.0
        %4848 = vmatprep.subr.mxu0 0.0
        %4849 = vmatpush1.msra.mxu0 0.0
        %4850 = vmatprep.mubr.f32.mxu0 0.0
        %4851 = vmatmul.mubr.f32.gmra.mrb[0].mxu0 %v4760
        %v4852 = vpop.f32.mrb[0].mxu0
        %v4853 = vadd.f32 0.0, %v4852
        %v4854 = vpop.f32.mrb[0].mxu0
        %4855 = vmatprep.mubr.f32.mxu0 0.0
        %4856 = vmatmul.mubr.f32.gmra.mrb[0].mxu0 %v4763
        %v4857 = vpop.f32.mrb[0].mxu0
        %v4858 = vadd.f32 0.0, %v4857
        %v4859 = vpop.f32.mrb[0].mxu0
        %4860 = vmatprep.mubr.f32.mxu0 0.0
        %4861 = vmatmul.mubr.f32.gmra.mrb[0].mxu0 %v4766
        %v4862 = vpop.f32.mrb[0].mxu0
        %v4863 = vadd.f32 0.0, %v4862
        %v4864 = vpop.f32.mrb[0].mxu0
        %4865 = vmatprep.mubr.f32.mxu0 0.0
        %4866 = vmatmul.mubr.f32.gmra.mrb[0].mxu0 %v4769
        %v4867 = vpop.f32.mrb[0].mxu0
        %v4868 = vadd.f32 0.0, %v4867
        %v4869 = vpop.f32.mrb[0].mxu0
        %4870 = vmatprep.mubr.f32.mxu0 0.0
        %4871 = vmatmul.mubr.f32.gmra.mrb[0].mxu0 %v4772
        %v4872 = vpop.f32.mrb[0].mxu0
        %v4873 = vadd.f32 0.0, %v4872
        %v4874 = vpop.f32.mrb[0].mxu0
        %4875 = vmatprep.mubr.f32.mxu0 0.0
        %4876 = vmatmul.mubr.f32.gmra.mrb[0].mxu0 %v4775
        %v4877 = vpop.f32.mrb[0].mxu0
        %v4878 = vadd.f32 0.0, %v4877
        %v4879 = vpop.f32.mrb[0].mxu0
        %4880 = vmatprep.mubr.f32.mxu0 0.0
        %4881 = vmatmul.mubr.f32.gmra.mrb[0].mxu0 %v4778
        %v4882 = vpop.f32.mrb[0].mxu0
        %v4883 = vadd.f32 0.0, %v4882
        %v4884 = vpop.f32.mrb[0].mxu0
        %4885 = vmatprep.mubr.f32.mxu0 0.0
        %4886 = vmatmul.mubr.f32.gmra.mrb[0].mxu0 %v4781
        %v4887 = vpop.f32.mrb[0].mxu0
        %v4888 = vadd.f32 0.0, %v4887
        %v4889 = vpop.f32.mrb[0].mxu0
        %4890 = vmatprep.mubr.f32.mxu0 0.0
        %4891 = vmatmul.mubr.f32.gmra.mrb[0].mxu0 %v4784
        %v4892 = vpop.f32.mrb[0].mxu0
        %v4893 = vadd.f32 0.0, %v4892
        %v4894 = vpop.f32.mrb[0].mxu0
        %4895 = vdwg.mxu0
        %4914 = vrot.lane.b32.xlu0 %v2909, 8
        %v4915 = vpop.permute.xlu0 %4914
        %4916 = vrot.lane.b32.xlu0 %v2914, 8
        %v4917 = vpop.permute.xlu0 %4916
        %4918 = vrot.lane.b32.xlu0 %v2919, 8
        %v4919 = vpop.permute.xlu0 %4918
        %4920 = vrot.lane.b32.xlu0 %v2924, 8
        %v4921 = vpop.permute.xlu0 %4920
        %4922 = vrot.lane.b32.xlu0 %v2929, 8
        %v4923 = vpop.permute.xlu0 %4922
        %4924 = vrot.lane.b32.xlu0 %v2934, 8
        %v4925 = vpop.permute.xlu0 %4924
        %4926 = vrot.lane.b32.xlu0 %v2939, 8
        %v4927 = vpop.permute.xlu0 %4926
        %4928 = vrot.lane.b32.xlu0 %v2944, 8
        %v4929 = vpop.permute.xlu0 %4928
        %4930 = vrot.lane.b32.xlu0 %v2949, 8
        %v4931 = vpop.permute.xlu0 %4930
        %4932 = vrot.lane.b32.xlu0 %v3073, 8
        %v4933 = vpop.permute.xlu0 %4932
        %4934 = vrot.lane.b32.xlu0 %v3078, 8
        %v4935 = vpop.permute.xlu0 %4934
        %4936 = vrot.lane.b32.xlu0 %v3083, 8
        %v4937 = vpop.permute.xlu0 %4936
        %4938 = vrot.lane.b32.xlu0 %v3088, 8
        %v4939 = vpop.permute.xlu0 %4938
        %4940 = vrot.lane.b32.xlu0 %v3093, 8
        %v4941 = vpop.permute.xlu0 %4940
        %4942 = vrot.lane.b32.xlu0 %v3098, 8
        %v4943 = vpop.permute.xlu0 %4942
        %4944 = vrot.lane.b32.xlu0 %v3103, 8
        %v4945 = vpop.permute.xlu0 %4944
        %4946 = vrot.lane.b32.xlu0 %v3108, 8
        %v4947 = vpop.permute.xlu0 %4946
        %4948 = vrot.lane.b32.xlu0 %v3113, 8
        %v4949 = vpop.permute.xlu0 %4948
        %4986 = vrot.lane.b32.xlu0 %v3799, 16
        %v4987 = vpop.permute.xlu0 %4986
        %4988 = vrot.lane.b32.xlu0 %v3804, 16
        %v4989 = vpop.permute.xlu0 %4988
        %4990 = vrot.lane.b32.xlu0 %v3809, 16
        %v4991 = vpop.permute.xlu0 %4990
        %4992 = vrot.lane.b32.xlu0 %v3814, 16
        %v4993 = vpop.permute.xlu0 %4992
        %4994 = vrot.lane.b32.xlu0 %v3819, 16
        %v4995 = vpop.permute.xlu0 %4994
        %4996 = vrot.lane.b32.xlu0 %v3824, 16
        %v4997 = vpop.permute.xlu0 %4996
        %4998 = vrot.lane.b32.xlu0 %v3829, 16
        %v4999 = vpop.permute.xlu0 %4998
        %5000 = vrot.lane.b32.xlu0 %v3834, 16
        %v5001 = vpop.permute.xlu0 %5000
        %5002 = vrot.lane.b32.xlu0 %v3839, 16
        %v5003 = vpop.permute.xlu0 %5002
        %5004 = vrot.lane.b32.xlu0 %v3963, 16
        %v5005 = vpop.permute.xlu0 %5004
        %5006 = vrot.lane.b32.xlu0 %v3968, 16
        %v5007 = vpop.permute.xlu0 %5006
        %5008 = vrot.lane.b32.xlu0 %v3973, 16
        %v5009 = vpop.permute.xlu0 %5008
        %5010 = vrot.lane.b32.xlu0 %v3978, 16
        %v5011 = vpop.permute.xlu0 %5010
        %5012 = vrot.lane.b32.xlu0 %v3983, 16
        %v5013 = vpop.permute.xlu0 %5012
        %5014 = vrot.lane.b32.xlu0 %v3988, 16
        %v5015 = vpop.permute.xlu0 %5014
        %5016 = vrot.lane.b32.xlu0 %v3993, 16
        %v5017 = vpop.permute.xlu0 %5016
        %5018 = vrot.lane.b32.xlu0 %v3998, 16
        %v5019 = vpop.permute.xlu0 %5018
        %5020 = vrot.lane.b32.xlu0 %v4003, 16
        %v5021 = vpop.permute.xlu0 %5020
        %5058 = vrot.lane.b32.xlu0 %v4689, 24
        %v5059 = vpop.permute.xlu0 %5058
        %5060 = vrot.lane.b32.xlu0 %v4694, 24
        %v5061 = vpop.permute.xlu0 %5060
        %5062 = vrot.lane.b32.xlu0 %v4699, 24
        %v5063 = vpop.permute.xlu0 %5062
        %5064 = vrot.lane.b32.xlu0 %v4704, 24
        %v5065 = vpop.permute.xlu0 %5064
        %5066 = vrot.lane.b32.xlu0 %v4709, 24
        %v5067 = vpop.permute.xlu0 %5066
        %5068 = vrot.lane.b32.xlu0 %v4714, 24
        %v5069 = vpop.permute.xlu0 %5068
        %5070 = vrot.lane.b32.xlu0 %v4719, 24
        %v5071 = vpop.permute.xlu0 %5070
        %5072 = vrot.lane.b32.xlu0 %v4724, 24
        %v5073 = vpop.permute.xlu0 %5072
        %5074 = vrot.lane.b32.xlu0 %v4729, 24
        %v5075 = vpop.permute.xlu0 %5074
        %5076 = vrot.lane.b32.xlu0 %v4853, 24
        %v5077 = vpop.permute.xlu0 %5076
        %5078 = vrot.lane.b32.xlu0 %v4858, 24
        %v5079 = vpop.permute.xlu0 %5078
        %5080 = vrot.lane.b32.xlu0 %v4863, 24
        %v5081 = vpop.permute.xlu0 %5080
        %5082 = vrot.lane.b32.xlu0 %v4868, 24
        %v5083 = vpop.permute.xlu0 %5082
        %5084 = vrot.lane.b32.xlu0 %v4873, 24
        %v5085 = vpop.permute.xlu0 %5084
        %5086 = vrot.lane.b32.xlu0 %v4878, 24
        %v5087 = vpop.permute.xlu0 %5086
        %5088 = vrot.lane.b32.xlu0 %v4883, 24
        %v5089 = vpop.permute.xlu0 %5088
        %5090 = vrot.lane.b32.xlu0 %v4888, 24
        %v5091 = vpop.permute.xlu0 %5090
        %5092 = vrot.lane.b32.xlu0 %v4893, 24
        %v5093 = vpop.permute.xlu0 %5092
        %v5112 = vsel %vm1361, %v2019, %v4915
        %v5113 = vsel %vm1361, %v2024, %v4917
        %v5114 = vsel %vm1361, %v2029, %v4919
        %v5115 = vsel %vm1361, %v2034, %v4921
        %v5116 = vsel %vm1361, %v2039, %v4923
        %v5117 = vsel %vm1361, %v2044, %v4925
        %v5118 = vsel %vm1361, %v2049, %v4927
        %v5119 = vsel %vm1361, %v2054, %v4929
        %v5120 = vsel %vm1361, %v2059, %v4931
        %v5121 = vsel %vm1361, %v2183, %v4933
        %v5122 = vsel %vm1361, %v2188, %v4935
        %v5123 = vsel %vm1361, %v2193, %v4937
        %v5124 = vsel %vm1361, %v2198, %v4939
        %v5125 = vsel %vm1361, %v2203, %v4941
        %v5126 = vsel %vm1361, %v2208, %v4943
        %v5127 = vsel %vm1361, %v2213, %v4945
        %v5128 = vsel %vm1361, %v2218, %v4947
        %v5129 = vsel %vm1361, %v2223, %v4949
        %vm5130 = vcmask 130048
        %v5131 = vsel %vm5130, %v5112, %v4987
        %v5132 = vsel %vm5130, %v5113, %v4989
        %v5133 = vsel %vm5130, %v5114, %v4991
        %v5134 = vsel %vm5130, %v5115, %v4993
        %v5135 = vsel %vm5130, %v5116, %v4995
        %v5136 = vsel %vm5130, %v5117, %v4997
        %v5137 = vsel %vm5130, %v5118, %v4999
        %v5138 = vsel %vm5130, %v5119, %v5001
        %v5139 = vsel %vm5130, %v5120, %v5003
        %v5140 = vsel %vm5130, %v5121, %v5005
        %v5141 = vsel %vm5130, %v5122, %v5007
        %v5142 = vsel %vm5130, %v5123, %v5009
        %v5143 = vsel %vm5130, %v5124, %v5011
        %v5144 = vsel %vm5130, %v5125, %v5013
        %v5145 = vsel %vm5130, %v5126, %v5015
        %v5146 = vsel %vm5130, %v5127, %v5017
        %v5147 = vsel %vm5130, %v5128, %v5019
        %v5148 = vsel %vm5130, %v5129, %v5021
        %vm5149 = vcmask 195584
        %v5150 = vsel %vm5149, %v5131, %v5059
        %v5151 = vsel %vm5149, %v5132, %v5061
        %v5152 = vsel %vm5149, %v5133, %v5063
        %v5153 = vsel %vm5149, %v5134, %v5065
        %v5154 = vsel %vm5149, %v5135, %v5067
        %v5155 = vsel %vm5149, %v5136, %v5069
        %v5156 = vsel %vm5149, %v5137, %v5071
        %v5157 = vsel %vm5149, %v5138, %v5073
        %v5158 = vsel %vm5149, %v5139, %v5075
        %v5159 = vsel %vm5149, %v5140, %v5077
        %v5160 = vsel %vm5149, %v5141, %v5079
        %v5161 = vsel %vm5149, %v5142, %v5081
        %v5162 = vsel %vm5149, %v5143, %v5083
        %v5163 = vsel %vm5149, %v5144, %v5085
        %v5164 = vsel %vm5149, %v5145, %v5087
        %v5165 = vsel %vm5149, %v5146, %v5089
        %v5166 = vsel %vm5149, %v5147, %v5091
        %v5167 = vsel %vm5149, %v5148, %v5093
        %v5168 = vld [vmem:[%s725] sm:$0xff]
        %v5169 = vld [vmem:[%s725 + $0x8] sm:$0xff]
        %v5170 = vld [vmem:[%s725 + $0x10] sm:$0xff]
        %v5171 = vld [vmem:[%s725 + $0x18] sm:$0xff]
        %v5173 = vsel %vm812, %v5150, 0
        %v5176 = vsel %vm812, %v5151, 0
        %v5179 = vsel %vm812, %v5152, 0
        %v5182 = vsel %vm812, %v5153, 0
        %v5185 = vsel %vm812, %v5154, 0
        %v5188 = vsel %vm812, %v5155, 0
        %v5191 = vsel %vm812, %v5156, 0
        %v5194 = vsel %vm812, %v5157, 0
        %v5197 = vsel %vm812, %v5158, 0
        %v5200 = vsel %vm812, %v5159, 0
        %v5203 = vsel %vm812, %v5160, 0
        %v5206 = vsel %vm812, %v5161, 0
        %v5209 = vsel %vm812, %v5162, 0
        %v5212 = vsel %vm812, %v5163, 0
        %v5215 = vsel %vm812, %v5164, 0
        %v5218 = vsel %vm812, %v5165, 0
        %v5221 = vsel %vm812, %v5166, 0
        %v5224 = vsel %vm812, %v5167, 0
        %5226 = vmatprep.subr.mxu0 0.0
        %5227 = vmatpush1.msra.mxu0 %v5168
        %5228 = vmatprep.subr.mxu0 0.0
        %5229 = vmatpush1.msra.mxu0 %v5169
        %5230 = vmatprep.subr.mxu0 0.0
        %5231 = vmatpush1.msra.mxu0 %v5170
        %5232 = vmatprep.subr.mxu0 0.0
        %5233 = vmatpush1.msra.mxu0 %v5171
        %5234 = vmatprep.subr.mxu0 0.0
        %5235 = vmatpush1.msra.mxu0 0.0
        %5236 = vmatprep.subr.mxu0 0.0
        %5237 = vmatpush1.msra.mxu0 0.0
        %5238 = vmatprep.subr.mxu0 0.0
        %5239 = vmatpush1.msra.mxu0 0.0
        %5240 = vmatprep.subr.mxu0 0.0
        %5241 = vmatpush1.msra.mxu0 0.0
        %5242 = vmatprep.subr.mxu0 0.0
        %5243 = vmatpush1.msra.mxu0 0.0
        %5244 = vmatprep.subr.mxu0 0.0
        %5245 = vmatpush1.msra.mxu0 0.0
        %5246 = vmatprep.subr.mxu0 0.0
        %5247 = vmatpush1.msra.mxu0 0.0
        %5248 = vmatprep.subr.mxu0 0.0
        %5249 = vmatpush1.msra.mxu0 0.0
        %5250 = vmatprep.subr.mxu0 0.0
        %5251 = vmatpush1.msra.mxu0 0.0
        %5252 = vmatprep.subr.mxu0 0.0
        %5253 = vmatpush1.msra.mxu0 0.0
        %5254 = vmatprep.subr.mxu0 0.0
        %5255 = vmatpush1.msra.mxu0 0.0
        %5256 = vmatprep.subr.mxu0 0.0
        %5257 = vmatpush1.msra.mxu0 0.0
        %5258 = vmatprep.subr.mxu0 0.0
        %5259 = vmatpush1.msra.mxu0 0.0
        %5260 = vmatprep.subr.mxu0 0.0
        %5261 = vmatpush1.msra.mxu0 0.0
        %5262 = vmatprep.subr.mxu0 0.0
        %5263 = vmatpush1.msra.mxu0 0.0
        %5264 = vmatprep.subr.mxu0 0.0
        %5265 = vmatpush1.msra.mxu0 0.0
        %5266 = vmatprep.subr.mxu0 0.0
        %5267 = vmatpush1.msra.mxu0 0.0
        %5268 = vmatprep.subr.mxu0 0.0
        %5269 = vmatpush1.msra.mxu0 0.0
        %5270 = vmatprep.subr.mxu0 0.0
        %5271 = vmatpush1.msra.mxu0 0.0
        %5272 = vmatprep.subr.mxu0 0.0
        %5273 = vmatpush1.msra.mxu0 0.0
        %5274 = vmatprep.subr.mxu0 0.0
        %5275 = vmatpush1.msra.mxu0 0.0
        %5276 = vmatprep.subr.mxu0 0.0
        %5277 = vmatpush1.msra.mxu0 0.0
        %5278 = vmatprep.subr.mxu0 0.0
        %5279 = vmatpush1.msra.mxu0 0.0
        %5280 = vmatprep.subr.mxu0 0.0
        %5281 = vmatpush1.msra.mxu0 0.0
        %5282 = vmatprep.subr.mxu0 0.0
        %5283 = vmatpush1.msra.mxu0 0.0
        %5284 = vmatprep.subr.mxu0 0.0
        %5285 = vmatpush1.msra.mxu0 0.0
        %5286 = vmatprep.subr.mxu0 0.0
        %5287 = vmatpush1.msra.mxu0 0.0
        %5288 = vmatprep.subr.mxu0 0.0
        %5289 = vmatpush1.msra.mxu0 0.0
        %5290 = vmatprep.mubr.f32.mxu0 0.0
        %5291 = vmatmul.mubr.f32.gmra.mrb[0].mxu0 %v5173
        %v5292 = vpop.f32.mrb[0].mxu0
        %v5293 = vadd.f32 0.0, %v5292
        %v5294 = vpop.f32.mrb[0].mxu0
        %5295 = vmatprep.mubr.f32.mxu0 0.0
        %5296 = vmatmul.mubr.f32.gmra.mrb[0].mxu0 %v5176
        %v5297 = vpop.f32.mrb[0].mxu0
        %v5298 = vadd.f32 0.0, %v5297
        %v5299 = vpop.f32.mrb[0].mxu0
        %5300 = vmatprep.mubr.f32.mxu0 0.0
        %5301 = vmatmul.mubr.f32.gmra.mrb[0].mxu0 %v5179
        %v5302 = vpop.f32.mrb[0].mxu0
        %v5303 = vadd.f32 0.0, %v5302
        %v5304 = vpop.f32.mrb[0].mxu0
        %5305 = vmatprep.mubr.f32.mxu0 0.0
        %5306 = vmatmul.mubr.f32.gmra.mrb[0].mxu0 %v5182
        %v5307 = vpop.f32.mrb[0].mxu0
        %v5308 = vadd.f32 0.0, %v5307
        %v5309 = vpop.f32.mrb[0].mxu0
        %5310 = vmatprep.mubr.f32.mxu0 0.0
        %5311 = vmatmul.mubr.f32.gmra.mrb[0].mxu0 %v5185
        %v5312 = vpop.f32.mrb[0].mxu0
        %v5313 = vadd.f32 0.0, %v5312
        %v5314 = vpop.f32.mrb[0].mxu0
        %5315 = vmatprep.mubr.f32.mxu0 0.0
        %5316 = vmatmul.mubr.f32.gmra.mrb[0].mxu0 %v5188
        %v5317 = vpop.f32.mrb[0].mxu0
        %v5318 = vadd.f32 0.0, %v5317
        %v5319 = vpop.f32.mrb[0].mxu0
        %5320 = vmatprep.mubr.f32.mxu0 0.0
        %5321 = vmatmul.mubr.f32.gmra.mrb[0].mxu0 %v5191
        %v5322 = vpop.f32.mrb[0].mxu0
        %v5323 = vadd.f32 0.0, %v5322
        %v5324 = vpop.f32.mrb[0].mxu0
        %5325 = vmatprep.mubr.f32.mxu0 0.0
        %5326 = vmatmul.mubr.f32.gmra.mrb[0].mxu0 %v5194
        %v5327 = vpop.f32.mrb[0].mxu0
        %v5328 = vadd.f32 0.0, %v5327
        %v5329 = vpop.f32.mrb[0].mxu0
        %5330 = vmatprep.mubr.f32.mxu0 0.0
        %5331 = vmatmul.mubr.f32.gmra.mrb[0].mxu0 %v5197
        %v5332 = vpop.f32.mrb[0].mxu0
        %v5333 = vadd.f32 0.0, %v5332
        %v5334 = vpop.f32.mrb[0].mxu0
        %5335 = vmatprep.mubr.f32.mxu0 0.0
        %5336 = vmatmul.mubr.f32.gmra.mrb[0].mxu0 %v5200
        %v5337 = vpop.f32.mrb[0].mxu0
        %v5338 = vadd.f32 0.0, %v5337
        %v5339 = vpop.f32.mrb[0].mxu0
        %5340 = vmatprep.mubr.f32.mxu0 0.0
        %5341 = vmatmul.mubr.f32.gmra.mrb[0].mxu0 %v5203
        %v5342 = vpop.f32.mrb[0].mxu0
        %v5343 = vadd.f32 0.0, %v5342
        %v5344 = vpop.f32.mrb[0].mxu0
        %5345 = vmatprep.mubr.f32.mxu0 0.0
        %5346 = vmatmul.mubr.f32.gmra.mrb[0].mxu0 %v5206
        %v5347 = vpop.f32.mrb[0].mxu0
        %v5348 = vadd.f32 0.0, %v5347
        %v5349 = vpop.f32.mrb[0].mxu0
        %5350 = vmatprep.mubr.f32.mxu0 0.0
        %5351 = vmatmul.mubr.f32.gmra.mrb[0].mxu0 %v5209
        %v5352 = vpop.f32.mrb[0].mxu0
        %v5353 = vadd.f32 0.0, %v5352
        %v5354 = vpop.f32.mrb[0].mxu0
        %5355 = vmatprep.mubr.f32.mxu0 0.0
        %5356 = vmatmul.mubr.f32.gmra.mrb[0].mxu0 %v5212
        %v5357 = vpop.f32.mrb[0].mxu0
        %v5358 = vadd.f32 0.0, %v5357
        %v5359 = vpop.f32.mrb[0].mxu0
        %5360 = vmatprep.mubr.f32.mxu0 0.0
        %5361 = vmatmul.mubr.f32.gmra.mrb[0].mxu0 %v5215
        %v5362 = vpop.f32.mrb[0].mxu0
        %v5363 = vadd.f32 0.0, %v5362
        %v5364 = vpop.f32.mrb[0].mxu0
        %5365 = vmatprep.mubr.f32.mxu0 0.0
        %5366 = vmatmul.mubr.f32.gmra.mrb[0].mxu0 %v5218
        %v5367 = vpop.f32.mrb[0].mxu0
        %v5368 = vadd.f32 0.0, %v5367
        %v5369 = vpop.f32.mrb[0].mxu0
        %5370 = vmatprep.mubr.f32.mxu0 0.0
        %5371 = vmatmul.mubr.f32.gmra.mrb[0].mxu0 %v5221
        %v5372 = vpop.f32.mrb[0].mxu0
        %v5373 = vadd.f32 0.0, %v5372
        %v5374 = vpop.f32.mrb[0].mxu0
        %5375 = vmatprep.mubr.f32.mxu0 0.0
        %5376 = vmatmul.mubr.f32.gmra.mrb[0].mxu0 %v5224
        %v5377 = vpop.f32.mrb[0].mxu0
        %v5378 = vadd.f32 0.0, %v5377
        %v5379 = vpop.f32.mrb[0].mxu0
        %5380 = vdwg.mxu0
        %v5381 = vadd.f32 %v792, %v5293
        %v5382 = vadd.f32 %v793, %v5298
        %v5383 = vadd.f32 %v794, %v5303
        %v5384 = vadd.f32 %v795, %v5308
        %v5385 = vadd.f32 %v796, %v5313
        %v5386 = vadd.f32 %v797, %v5318
        %v5387 = vadd.f32 %v798, %v5323
        %v5388 = vadd.f32 %v799, %v5328
        %v5389 = vadd.f32 %v800, %v5333
        %v5390 = vadd.f32 %v801, %v5338
        %v5391 = vadd.f32 %v802, %v5343
        %v5392 = vadd.f32 %v803, %v5348
        %v5393 = vadd.f32 %v804, %v5353
        %v5394 = vadd.f32 %v805, %v5358
        %v5395 = vadd.f32 %v806, %v5363
        %v5396 = vadd.f32 %v807, %v5368
        %v5397 = vadd.f32 %v808, %v5373
        %v5398 = vadd.f32 %v809, %v5378
        %v5399 = vld [vmem:[%s728] sm:$0x1]
        %v5401 = vlaneseq
        %v5402 = vshrl.u32 %v5401, 7
        %v5403 = vsub.s32 0, %v5402
        %v5404 = vrot.slane %v5399, %v5403
        %v5406 = vadd.f32 %v5381, %v5404
        %v5407 = vadd.f32 %v5382, %v5404
        %v5408 = vadd.f32 %v5383, %v5404
        %v5409 = vadd.f32 %v5384, %v5404
        %v5410 = vadd.f32 %v5385, %v5404
        %v5411 = vadd.f32 %v5386, %v5404
        %v5412 = vadd.f32 %v5387, %v5404
        %v5413 = vadd.f32 %v5388, %v5404
        %v5414 = vadd.f32 %v5389, %v5404
        %v5415 = vadd.f32 %v5390, %v5404
        %v5416 = vadd.f32 %v5391, %v5404
        %v5417 = vadd.f32 %v5392, %v5404
        %v5418 = vadd.f32 %v5393, %v5404
        %v5419 = vadd.f32 %v5394, %v5404
        %v5420 = vadd.f32 %v5395, %v5404
        %v5421 = vadd.f32 %v5396, %v5404
        %v5422 = vadd.f32 %v5397, %v5404
        %v5423 = vadd.f32 %v5398, %v5404
        %v5424 = vld [vmem:[%s731] sm:$0x1]
        %v5425 = vld [vmem:[%s734] sm:$0x1]
        %v5426 = vsel %vm812, %v5406, 0.0
        %5427 = vadd.xlane.f32.xlu0 %v5426
        %v5428 = vpop.xlane.xlu0 %5427
        %v5429 = vsel %vm812, %v5407, 0.0
        %5430 = vadd.xlane.f32.xlu0 %v5429
        %v5431 = vpop.xlane.xlu0 %5430
        %v5432 = vsel %vm812, %v5408, 0.0
        %5433 = vadd.xlane.f32.xlu0 %v5432
        %v5434 = vpop.xlane.xlu0 %5433
        %v5435 = vsel %vm812, %v5409, 0.0
        %5436 = vadd.xlane.f32.xlu0 %v5435
        %v5437 = vpop.xlane.xlu0 %5436
        %v5438 = vsel %vm812, %v5410, 0.0
        %5439 = vadd.xlane.f32.xlu0 %v5438
        %v5440 = vpop.xlane.xlu0 %5439
        %v5441 = vsel %vm812, %v5411, 0.0
        %5442 = vadd.xlane.f32.xlu0 %v5441
        %v5443 = vpop.xlane.xlu0 %5442
        %v5444 = vsel %vm812, %v5412, 0.0
        %5445 = vadd.xlane.f32.xlu0 %v5444
        %v5446 = vpop.xlane.xlu0 %5445
        %v5447 = vsel %vm812, %v5413, 0.0
        %5448 = vadd.xlane.f32.xlu0 %v5447
        %v5449 = vpop.xlane.xlu0 %5448
        %v5450 = vsel %vm812, %v5414, 0.0
        %5451 = vadd.xlane.f32.xlu0 %v5450
        %v5452 = vpop.xlane.xlu0 %5451
        %v5453 = vsel %vm812, %v5415, 0.0
        %5454 = vadd.xlane.f32.xlu0 %v5453
        %v5455 = vpop.xlane.xlu0 %5454
        %v5456 = vsel %vm812, %v5416, 0.0
        %5457 = vadd.xlane.f32.xlu0 %v5456
        %v5458 = vpop.xlane.xlu0 %5457
        %v5459 = vsel %vm812, %v5417, 0.0
        %5460 = vadd.xlane.f32.xlu0 %v5459
        %v5461 = vpop.xlane.xlu0 %5460
        %v5462 = vsel %vm812, %v5418, 0.0
        %5463 = vadd.xlane.f32.xlu0 %v5462
        %v5464 = vpop.xlane.xlu0 %5463
        %v5465 = vsel %vm812, %v5419, 0.0
        %5466 = vadd.xlane.f32.xlu0 %v5465
        %v5467 = vpop.xlane.xlu0 %5466
        %v5468 = vsel %vm812, %v5420, 0.0
        %5469 = vadd.xlane.f32.xlu0 %v5468
        %v5470 = vpop.xlane.xlu0 %5469
        %v5471 = vsel %vm812, %v5421, 0.0
        %5472 = vadd.xlane.f32.xlu0 %v5471
        %v5473 = vpop.xlane.xlu0 %5472
        %v5474 = vsel %vm812, %v5422, 0.0
        %5475 = vadd.xlane.f32.xlu0 %v5474
        %v5476 = vpop.xlane.xlu0 %5475
        %v5477 = vsel %vm812, %v5423, 0.0
        %5478 = vadd.xlane.f32.xlu0 %v5477
        %v5479 = vpop.xlane.xlu0 %5478
        %v5480 = vmul.f32 %v5428, %v867
        %v5481 = vmul.f32 %v5431, %v867
        %v5482 = vmul.f32 %v5434, %v867
        %v5483 = vmul.f32 %v5437, %v867
        %v5484 = vmul.f32 %v5440, %v867
        %v5485 = vmul.f32 %v5443, %v867
        %v5486 = vmul.f32 %v5446, %v867
        %v5487 = vmul.f32 %v5449, %v867
        %v5488 = vmul.f32 %v5452, %v867
        %v5489 = vmul.f32 %v5455, %v867
        %v5490 = vmul.f32 %v5458, %v867
        %v5491 = vmul.f32 %v5461, %v867
        %v5492 = vmul.f32 %v5464, %v867
        %v5493 = vmul.f32 %v5467, %v867
        %v5494 = vmul.f32 %v5470, %v867
        %v5495 = vmul.f32 %v5473, %v867
        %v5496 = vmul.f32 %v5476, %v867
        %v5497 = vmul.f32 %v5479, %v867
        %v5498 = vsub.f32 %v5406, %v5480
        %v5499 = vsub.f32 %v5407, %v5481
        %v5500 = vsub.f32 %v5408, %v5482
        %v5501 = vsub.f32 %v5409, %v5483
        %v5502 = vsub.f32 %v5410, %v5484
        %v5503 = vsub.f32 %v5411, %v5485
        %v5504 = vsub.f32 %v5412, %v5486
        %v5505 = vsub.f32 %v5413, %v5487
        %v5506 = vsub.f32 %v5414, %v5488
        %v5507 = vsub.f32 %v5415, %v5489
        %v5508 = vsub.f32 %v5416, %v5490
        %v5509 = vsub.f32 %v5417, %v5491
        %v5510 = vsub.f32 %v5418, %v5492
        %v5511 = vsub.f32 %v5419, %v5493
        %v5512 = vsub.f32 %v5420, %v5494
        %v5513 = vsub.f32 %v5421, %v5495
        %v5514 = vsub.f32 %v5422, %v5496
        %v5515 = vsub.f32 %v5423, %v5497
        %v5516 = vmul.f32 %v5498, %v5498
        %v5517 = vmul.f32 %v5499, %v5499
        %v5518 = vmul.f32 %v5500, %v5500
        %v5519 = vmul.f32 %v5501, %v5501
        %v5520 = vmul.f32 %v5502, %v5502
        %v5521 = vmul.f32 %v5503, %v5503
        %v5522 = vmul.f32 %v5504, %v5504
        %v5523 = vmul.f32 %v5505, %v5505
        %v5524 = vmul.f32 %v5506, %v5506
        %v5525 = vmul.f32 %v5507, %v5507
        %v5526 = vmul.f32 %v5508, %v5508
        %v5527 = vmul.f32 %v5509, %v5509
        %v5528 = vmul.f32 %v5510, %v5510
        %v5529 = vmul.f32 %v5511, %v5511
        %v5530 = vmul.f32 %v5512, %v5512
        %v5531 = vmul.f32 %v5513, %v5513
        %v5532 = vmul.f32 %v5514, %v5514
        %v5533 = vmul.f32 %v5515, %v5515
        %v5534 = vsel %vm812, %v5516, 0.0
        %5535 = vadd.xlane.f32.xlu0 %v5534
        %v5536 = vpop.xlane.xlu0 %5535
        %v5537 = vsel %vm812, %v5517, 0.0
        %5538 = vadd.xlane.f32.xlu0 %v5537
        %v5539 = vpop.xlane.xlu0 %5538
        %v5540 = vsel %vm812, %v5518, 0.0
        %5541 = vadd.xlane.f32.xlu0 %v5540
        %v5542 = vpop.xlane.xlu0 %5541
        %v5543 = vsel %vm812, %v5519, 0.0
        %5544 = vadd.xlane.f32.xlu0 %v5543
        %v5545 = vpop.xlane.xlu0 %5544
        %v5546 = vsel %vm812, %v5520, 0.0
        %5547 = vadd.xlane.f32.xlu0 %v5546
        %v5548 = vpop.xlane.xlu0 %5547
        %v5549 = vsel %vm812, %v5521, 0.0
        %5550 = vadd.xlane.f32.xlu0 %v5549
        %v5551 = vpop.xlane.xlu0 %5550
        %v5552 = vsel %vm812, %v5522, 0.0
        %5553 = vadd.xlane.f32.xlu0 %v5552
        %v5554 = vpop.xlane.xlu0 %5553
        %v5555 = vsel %vm812, %v5523, 0.0
        %5556 = vadd.xlane.f32.xlu0 %v5555
        %v5557 = vpop.xlane.xlu0 %5556
        %v5558 = vsel %vm812, %v5524, 0.0
        %5559 = vadd.xlane.f32.xlu0 %v5558
        %v5560 = vpop.xlane.xlu0 %5559
        %v5561 = vsel %vm812, %v5525, 0.0
        %5562 = vadd.xlane.f32.xlu0 %v5561
        %v5563 = vpop.xlane.xlu0 %5562
        %v5564 = vsel %vm812, %v5526, 0.0
        %5565 = vadd.xlane.f32.xlu0 %v5564
        %v5566 = vpop.xlane.xlu0 %5565
        %v5567 = vsel %vm812, %v5527, 0.0
        %5568 = vadd.xlane.f32.xlu0 %v5567
        %v5569 = vpop.xlane.xlu0 %5568
        %v5570 = vsel %vm812, %v5528, 0.0
        %5571 = vadd.xlane.f32.xlu0 %v5570
        %v5572 = vpop.xlane.xlu0 %5571
        %v5573 = vsel %vm812, %v5529, 0.0
        %5574 = vadd.xlane.f32.xlu0 %v5573
        %v5575 = vpop.xlane.xlu0 %5574
        %v5576 = vsel %vm812, %v5530, 0.0
        %5577 = vadd.xlane.f32.xlu0 %v5576
        %v5578 = vpop.xlane.xlu0 %5577
        %v5579 = vsel %vm812, %v5531, 0.0
        %5580 = vadd.xlane.f32.xlu0 %v5579
        %v5581 = vpop.xlane.xlu0 %5580
        %v5582 = vsel %vm812, %v5532, 0.0
        %5583 = vadd.xlane.f32.xlu0 %v5582
        %v5584 = vpop.xlane.xlu0 %5583
        %v5585 = vsel %vm812, %v5533, 0.0
        %5586 = vadd.xlane.f32.xlu0 %v5585
        %v5587 = vpop.xlane.xlu0 %5586
        %v5588 = vmul.f32 %v5536, %v867
        %v5589 = vmul.f32 %v5539, %v867
        %v5590 = vmul.f32 %v5542, %v867
        %v5591 = vmul.f32 %v5545, %v867
        %v5592 = vmul.f32 %v5548, %v867
        %v5593 = vmul.f32 %v5551, %v867
        %v5594 = vmul.f32 %v5554, %v867
        %v5595 = vmul.f32 %v5557, %v867
        %v5596 = vmul.f32 %v5560, %v867
        %v5597 = vmul.f32 %v5563, %v867
        %v5598 = vmul.f32 %v5566, %v867
        %v5599 = vmul.f32 %v5569, %v867
        %v5600 = vmul.f32 %v5572, %v867
        %v5601 = vmul.f32 %v5575, %v867
        %v5602 = vmul.f32 %v5578, %v867
        %v5603 = vmul.f32 %v5581, %v867
        %v5604 = vmul.f32 %v5584, %v867
        %v5605 = vmul.f32 %v5587, %v867
        %v5606 = vadd.f32 %v5588, 1e-05
        %v5607 = vadd.f32 %v5589, 1e-05
        %v5608 = vadd.f32 %v5590, 1e-05
        %v5609 = vadd.f32 %v5591, 1e-05
        %v5610 = vadd.f32 %v5592, 1e-05
        %v5611 = vadd.f32 %v5593, 1e-05
        %v5612 = vadd.f32 %v5594, 1e-05
        %v5613 = vadd.f32 %v5595, 1e-05
        %v5614 = vadd.f32 %v5596, 1e-05
        %v5615 = vadd.f32 %v5597, 1e-05
        %v5616 = vadd.f32 %v5598, 1e-05
        %v5617 = vadd.f32 %v5599, 1e-05
        %v5618 = vadd.f32 %v5600, 1e-05
        %v5619 = vadd.f32 %v5601, 1e-05
        %v5620 = vadd.f32 %v5602, 1e-05
        %v5621 = vadd.f32 %v5603, 1e-05
        %v5622 = vadd.f32 %v5604, 1e-05
        %v5623 = vadd.f32 %v5605, 1e-05
        %v5624 = vrsqrt.pop %v5606
        %v5625 = vrsqrt.pop %v5607
        %v5626 = vrsqrt.pop %v5608
        %v5627 = vrsqrt.pop %v5609
        %v5628 = vrsqrt.pop %v5610
        %v5629 = vrsqrt.pop %v5611
        %v5630 = vrsqrt.pop %v5612
        %v5631 = vrsqrt.pop %v5613
        %v5632 = vrsqrt.pop %v5614
        %v5633 = vrsqrt.pop %v5615
        %v5634 = vrsqrt.pop %v5616
        %v5635 = vrsqrt.pop %v5617
        %v5636 = vrsqrt.pop %v5618
        %v5637 = vrsqrt.pop %v5619
        %v5638 = vrsqrt.pop %v5620
        %v5639 = vrsqrt.pop %v5621
        %v5640 = vrsqrt.pop %v5622
        %v5641 = vrsqrt.pop %v5623
        %v5642 = vmul.f32 %v5498, %v5624
        %v5643 = vmul.f32 %v5499, %v5625
        %v5644 = vmul.f32 %v5500, %v5626
        %v5645 = vmul.f32 %v5501, %v5627
        %v5646 = vmul.f32 %v5502, %v5628
        %v5647 = vmul.f32 %v5503, %v5629
        %v5648 = vmul.f32 %v5504, %v5630
        %v5649 = vmul.f32 %v5505, %v5631
        %v5650 = vmul.f32 %v5506, %v5632
        %v5651 = vmul.f32 %v5507, %v5633
        %v5652 = vmul.f32 %v5508, %v5634
        %v5653 = vmul.f32 %v5509, %v5635
        %v5654 = vmul.f32 %v5510, %v5636
        %v5655 = vmul.f32 %v5511, %v5637
        %v5656 = vmul.f32 %v5512, %v5638
        %v5657 = vmul.f32 %v5513, %v5639
        %v5658 = vmul.f32 %v5514, %v5640
        %v5659 = vmul.f32 %v5515, %v5641
        %v5661 = vlaneseq
        %v5662 = vshrl.u32 %v5661, 7
        %v5663 = vsub.s32 0, %v5662
        %v5664 = vrot.slane %v5424, %v5663
        %v5666 = vmul.f32 %v5642, %v5664
        %v5667 = vmul.f32 %v5643, %v5664
        %v5668 = vmul.f32 %v5644, %v5664
        %v5669 = vmul.f32 %v5645, %v5664
        %v5670 = vmul.f32 %v5646, %v5664
        %v5671 = vmul.f32 %v5647, %v5664
        %v5672 = vmul.f32 %v5648, %v5664
        %v5673 = vmul.f32 %v5649, %v5664
        %v5674 = vmul.f32 %v5650, %v5664
        %v5675 = vmul.f32 %v5651, %v5664
        %v5676 = vmul.f32 %v5652, %v5664
        %v5677 = vmul.f32 %v5653, %v5664
        %v5678 = vmul.f32 %v5654, %v5664
        %v5679 = vmul.f32 %v5655, %v5664
        %v5680 = vmul.f32 %v5656, %v5664
        %v5681 = vmul.f32 %v5657, %v5664
        %v5682 = vmul.f32 %v5658, %v5664
        %v5683 = vmul.f32 %v5659, %v5664
        %v5685 = vlaneseq
        %v5686 = vshrl.u32 %v5685, 7
        %v5687 = vsub.s32 0, %v5686
        %v5688 = vrot.slane %v5425, %v5687
        %v5690 = vadd.f32 %v5666, %v5688
        %v5691 = vadd.f32 %v5667, %v5688
        %v5692 = vadd.f32 %v5668, %v5688
        %v5693 = vadd.f32 %v5669, %v5688
        %v5694 = vadd.f32 %v5670, %v5688
        %v5695 = vadd.f32 %v5671, %v5688
        %v5696 = vadd.f32 %v5672, %v5688
        %v5697 = vadd.f32 %v5673, %v5688
        %v5698 = vadd.f32 %v5674, %v5688
        %v5699 = vadd.f32 %v5675, %v5688
        %v5700 = vadd.f32 %v5676, %v5688
        %v5701 = vadd.f32 %v5677, %v5688
        %v5702 = vadd.f32 %v5678, %v5688
        %v5703 = vadd.f32 %v5679, %v5688
        %v5704 = vadd.f32 %v5680, %v5688
        %v5705 = vadd.f32 %v5681, %v5688
        %v5706 = vadd.f32 %v5682, %v5688
        %v5707 = vadd.f32 %v5683, %v5688
        %v5708 = vld [vmem:[%s739] sm:$0xff]
        %v5709 = vld [vmem:[%s739 + $0x8] sm:$0xff]
        %v5710 = vld [vmem:[%s739 + $0x10] sm:$0xff]
        %v5711 = vld [vmem:[%s739 + $0x18] sm:$0xff]
        %v5712 = vld [vmem:[%s742] sm:$0x1]
        %v5714 = vlaneseq
        %v5715 = vshrl.u32 %v5714, 7
        %v5716 = vsub.s32 0, %v5715
        %v5717 = vrot.slane %v5712, %v5716
        %v5720 = vsel %vm812, %v5690, 0
        %v5723 = vsel %vm812, %v5691, 0
        %v5726 = vsel %vm812, %v5692, 0
        %v5729 = vsel %vm812, %v5693, 0
        %v5732 = vsel %vm812, %v5694, 0
        %v5735 = vsel %vm812, %v5695, 0
        %v5738 = vsel %vm812, %v5696, 0
        %v5741 = vsel %vm812, %v5697, 0
        %v5744 = vsel %vm812, %v5698, 0
        %v5747 = vsel %vm812, %v5699, 0
        %v5750 = vsel %vm812, %v5700, 0
        %v5753 = vsel %vm812, %v5701, 0
        %v5756 = vsel %vm812, %v5702, 0
        %v5759 = vsel %vm812, %v5703, 0
        %v5762 = vsel %vm812, %v5704, 0
        %v5765 = vsel %vm812, %v5705, 0
        %v5768 = vsel %vm812, %v5706, 0
        %v5771 = vsel %vm812, %v5707, 0
        %5773 = vmatprep.subr.mxu0 0.0
        %5774 = vmatpush1.msra.mxu0 %v5708
        %5775 = vmatprep.subr.mxu0 0.0
        %5776 = vmatpush1.msra.mxu0 %v5709
        %5777 = vmatprep.subr.mxu0 0.0
        %5778 = vmatpush1.msra.mxu0 %v5710
        %5779 = vmatprep.subr.mxu0 0.0
        %5780 = vmatpush1.msra.mxu0 %v5711
        %5781 = vmatprep.subr.mxu0 0.0
        %5782 = vmatpush1.msra.mxu0 0.0
        %5783 = vmatprep.subr.mxu0 0.0
        %5784 = vmatpush1.msra.mxu0 0.0
        %5785 = vmatprep.subr.mxu0 0.0
        %5786 = vmatpush1.msra.mxu0 0.0
        %5787 = vmatprep.subr.mxu0 0.0
        %5788 = vmatpush1.msra.mxu0 0.0
        %5789 = vmatprep.subr.mxu0 0.0
        %5790 = vmatpush1.msra.mxu0 0.0
        %5791 = vmatprep.subr.mxu0 0.0
        %5792 = vmatpush1.msra.mxu0 0.0
        %5793 = vmatprep.subr.mxu0 0.0
        %5794 = vmatpush1.msra.mxu0 0.0
        %5795 = vmatprep.subr.mxu0 0.0
        %5796 = vmatpush1.msra.mxu0 0.0
        %5797 = vmatprep.subr.mxu0 0.0
        %5798 = vmatpush1.msra.mxu0 0.0
        %5799 = vmatprep.subr.mxu0 0.0
        %5800 = vmatpush1.msra.mxu0 0.0
        %5801 = vmatprep.subr.mxu0 0.0
        %5802 = vmatpush1.msra.mxu0 0.0
        %5803 = vmatprep.subr.mxu0 0.0
        %5804 = vmatpush1.msra.mxu0 0.0
        %5805 = vmatprep.subr.mxu0 0.0
        %5806 = vmatpush1.msra.mxu0 0.0
        %5807 = vmatprep.subr.mxu0 0.0
        %5808 = vmatpush1.msra.mxu0 0.0
        %5809 = vmatprep.subr.mxu0 0.0
        %5810 = vmatpush1.msra.mxu0 0.0
        %5811 = vmatprep.subr.mxu0 0.0
        %5812 = vmatpush1.msra.mxu0 0.0
        %5813 = vmatprep.subr.mxu0 0.0
        %5814 = vmatpush1.msra.mxu0 0.0
        %5815 = vmatprep.subr.mxu0 0.0
        %5816 = vmatpush1.msra.mxu0 0.0
        %5817 = vmatprep.subr.mxu0 0.0
        %5818 = vmatpush1.msra.mxu0 0.0
        %5819 = vmatprep.subr.mxu0 0.0
        %5820 = vmatpush1.msra.mxu0 0.0
        %5821 = vmatprep.subr.mxu0 0.0
        %5822 = vmatpush1.msra.mxu0 0.0
        %5823 = vmatprep.subr.mxu0 0.0
        %5824 = vmatpush1.msra.mxu0 0.0
        %5825 = vmatprep.subr.mxu0 0.0
        %5826 = vmatpush1.msra.mxu0 0.0
        %5827 = vmatprep.subr.mxu0 0.0
        %5828 = vmatpush1.msra.mxu0 0.0
        %5829 = vmatprep.subr.mxu0 0.0
        %5830 = vmatpush1.msra.mxu0 0.0
        %5831 = vmatprep.subr.mxu0 0.0
        %5832 = vmatpush1.msra.mxu0 0.0
        %5833 = vmatprep.subr.mxu0 0.0
        %5834 = vmatpush1.msra.mxu0 0.0
        %5835 = vmatprep.subr.mxu0 0.0
        %5836 = vmatpush1.msra.mxu0 0.0
        %5837 = vmatprep.mubr.f32.mxu0 0.0
        %5838 = vmatmul.mubr.f32.gmra.mrb[0].mxu0 %v5720
        %v5839 = vpop.f32.mrb[0].mxu0
        %v5840 = vadd.f32 %v5717, %v5839
        %v5841 = vpop.f32.mrb[0].mxu0
        %5842 = vmatprep.mubr.f32.mxu0 0.0
        %5843 = vmatmul.mubr.f32.gmra.mrb[0].mxu0 %v5723
        %v5844 = vpop.f32.mrb[0].mxu0
        %v5845 = vadd.f32 %v5717, %v5844
        %v5846 = vpop.f32.mrb[0].mxu0
        %5847 = vmatprep.mubr.f32.mxu0 0.0
        %5848 = vmatmul.mubr.f32.gmra.mrb[0].mxu0 %v5726
        %v5849 = vpop.f32.mrb[0].mxu0
        %v5850 = vadd.f32 %v5717, %v5849
        %v5851 = vpop.f32.mrb[0].mxu0
        %5852 = vmatprep.mubr.f32.mxu0 0.0
        %5853 = vmatmul.mubr.f32.gmra.mrb[0].mxu0 %v5729
        %v5854 = vpop.f32.mrb[0].mxu0
        %v5855 = vadd.f32 %v5717, %v5854
        %v5856 = vpop.f32.mrb[0].mxu0
        %5857 = vmatprep.mubr.f32.mxu0 0.0
        %5858 = vmatmul.mubr.f32.gmra.mrb[0].mxu0 %v5732
        %v5859 = vpop.f32.mrb[0].mxu0
        %v5860 = vadd.f32 %v5717, %v5859
        %v5861 = vpop.f32.mrb[0].mxu0
        %5862 = vmatprep.mubr.f32.mxu0 0.0
        %5863 = vmatmul.mubr.f32.gmra.mrb[0].mxu0 %v5735
        %v5864 = vpop.f32.mrb[0].mxu0
        %v5865 = vadd.f32 %v5717, %v5864
        %v5866 = vpop.f32.mrb[0].mxu0
        %5867 = vmatprep.mubr.f32.mxu0 0.0
        %5868 = vmatmul.mubr.f32.gmra.mrb[0].mxu0 %v5738
        %v5869 = vpop.f32.mrb[0].mxu0
        %v5870 = vadd.f32 %v5717, %v5869
        %v5871 = vpop.f32.mrb[0].mxu0
        %5872 = vmatprep.mubr.f32.mxu0 0.0
        %5873 = vmatmul.mubr.f32.gmra.mrb[0].mxu0 %v5741
        %v5874 = vpop.f32.mrb[0].mxu0
        %v5875 = vadd.f32 %v5717, %v5874
        %v5876 = vpop.f32.mrb[0].mxu0
        %5877 = vmatprep.mubr.f32.mxu0 0.0
        %5878 = vmatmul.mubr.f32.gmra.mrb[0].mxu0 %v5744
        %v5879 = vpop.f32.mrb[0].mxu0
        %v5880 = vadd.f32 %v5717, %v5879
        %v5881 = vpop.f32.mrb[0].mxu0
        %5882 = vmatprep.mubr.f32.mxu0 0.0
        %5883 = vmatmul.mubr.f32.gmra.mrb[0].mxu0 %v5747
        %v5884 = vpop.f32.mrb[0].mxu0
        %v5885 = vadd.f32 %v5717, %v5884
        %v5886 = vpop.f32.mrb[0].mxu0
        %5887 = vmatprep.mubr.f32.mxu0 0.0
        %5888 = vmatmul.mubr.f32.gmra.mrb[0].mxu0 %v5750
        %v5889 = vpop.f32.mrb[0].mxu0
        %v5890 = vadd.f32 %v5717, %v5889
        %v5891 = vpop.f32.mrb[0].mxu0
        %5892 = vmatprep.mubr.f32.mxu0 0.0
        %5893 = vmatmul.mubr.f32.gmra.mrb[0].mxu0 %v5753
        %v5894 = vpop.f32.mrb[0].mxu0
        %v5895 = vadd.f32 %v5717, %v5894
        %v5896 = vpop.f32.mrb[0].mxu0
        %5897 = vmatprep.mubr.f32.mxu0 0.0
        %5898 = vmatmul.mubr.f32.gmra.mrb[0].mxu0 %v5756
        %v5899 = vpop.f32.mrb[0].mxu0
        %v5900 = vadd.f32 %v5717, %v5899
        %v5901 = vpop.f32.mrb[0].mxu0
        %5902 = vmatprep.mubr.f32.mxu0 0.0
        %5903 = vmatmul.mubr.f32.gmra.mrb[0].mxu0 %v5759
        %v5904 = vpop.f32.mrb[0].mxu0
        %v5905 = vadd.f32 %v5717, %v5904
        %v5906 = vpop.f32.mrb[0].mxu0
        %5907 = vmatprep.mubr.f32.mxu0 0.0
        %5908 = vmatmul.mubr.f32.gmra.mrb[0].mxu0 %v5762
        %v5909 = vpop.f32.mrb[0].mxu0
        %v5910 = vadd.f32 %v5717, %v5909
        %v5911 = vpop.f32.mrb[0].mxu0
        %5912 = vmatprep.mubr.f32.mxu0 0.0
        %5913 = vmatmul.mubr.f32.gmra.mrb[0].mxu0 %v5765
        %v5914 = vpop.f32.mrb[0].mxu0
        %v5915 = vadd.f32 %v5717, %v5914
        %v5916 = vpop.f32.mrb[0].mxu0
        %5917 = vmatprep.mubr.f32.mxu0 0.0
        %5918 = vmatmul.mubr.f32.gmra.mrb[0].mxu0 %v5768
        %v5919 = vpop.f32.mrb[0].mxu0
        %v5920 = vadd.f32 %v5717, %v5919
        %v5921 = vpop.f32.mrb[0].mxu0
        %5922 = vmatprep.mubr.f32.mxu0 0.0
        %5923 = vmatmul.mubr.f32.gmra.mrb[0].mxu0 %v5771
        %v5924 = vpop.f32.mrb[0].mxu0
        %v5925 = vadd.f32 %v5717, %v5924
        %v5926 = vpop.f32.mrb[0].mxu0
        %5927 = vdwg.mxu0
        %v5928 = vmax.f32 %v5840, 0.0
        %v5929 = vmax.f32 %v5845, 0.0
        %v5930 = vmax.f32 %v5850, 0.0
        %v5931 = vmax.f32 %v5855, 0.0
        %v5932 = vmax.f32 %v5860, 0.0
        %v5933 = vmax.f32 %v5865, 0.0
        %v5934 = vmax.f32 %v5870, 0.0
        %v5935 = vmax.f32 %v5875, 0.0
        %v5936 = vmax.f32 %v5880, 0.0
        %v5937 = vmax.f32 %v5885, 0.0
        %v5938 = vmax.f32 %v5890, 0.0
        %v5939 = vmax.f32 %v5895, 0.0
        %v5940 = vmax.f32 %v5900, 0.0
        %v5941 = vmax.f32 %v5905, 0.0
        %v5942 = vmax.f32 %v5910, 0.0
        %v5943 = vmax.f32 %v5915, 0.0
        %v5944 = vmax.f32 %v5920, 0.0
        %v5945 = vmax.f32 %v5925, 0.0
        %v5946 = vld [vmem:[%s747] sm:$0xff]
        %v5947 = vld [vmem:[%s747 + $0x8] sm:$0xff]
        %v5948 = vld [vmem:[%s747 + $0x10] sm:$0xff]
        %v5949 = vld [vmem:[%s747 + $0x18] sm:$0xff]
        %v5950 = vld [vmem:[%s747 + $0x20] sm:$0xff]
        %v5951 = vld [vmem:[%s747 + $0x28] sm:$0xff]
        %v5952 = vld [vmem:[%s747 + $0x30] sm:$0xff]
        %v5953 = vld [vmem:[%s747 + $0x38] sm:$0xff]
        %v5954 = vld [vmem:[%s747 + $0x40] sm:$0xff]
        %v5955 = vld [vmem:[%s747 + $0x48] sm:$0xff]
        %v5956 = vld [vmem:[%s747 + $0x50] sm:$0xff]
        %v5957 = vld [vmem:[%s747 + $0x58] sm:$0xff]
        %v5958 = vld [vmem:[%s747 + $0x60] sm:$0xff]
        %v5959 = vld [vmem:[%s747 + $0x68] sm:$0xff]
        %v5960 = vld [vmem:[%s747 + $0x70] sm:$0xff]
        %v5961 = vld [vmem:[%s747 + $0x78] sm:$0xff]
        %5962 = vmatprep.subr.mxu0 0.0
        %5963 = vmatpush1.msra.mxu0 %v5946
        %5964 = vmatprep.subr.mxu0 0.0
        %5965 = vmatpush1.msra.mxu0 %v5947
        %5966 = vmatprep.subr.mxu0 0.0
        %5967 = vmatpush1.msra.mxu0 %v5948
        %5968 = vmatprep.subr.mxu0 0.0
        %5969 = vmatpush1.msra.mxu0 %v5949
        %5970 = vmatprep.subr.mxu0 0.0
        %5971 = vmatpush1.msra.mxu0 %v5950
        %5972 = vmatprep.subr.mxu0 0.0
        %5973 = vmatpush1.msra.mxu0 %v5951
        %5974 = vmatprep.subr.mxu0 0.0
        %5975 = vmatpush1.msra.mxu0 %v5952
        %5976 = vmatprep.subr.mxu0 0.0
        %5977 = vmatpush1.msra.mxu0 %v5953
        %5978 = vmatprep.subr.mxu0 0.0
        %5979 = vmatpush1.msra.mxu0 %v5954
        %5980 = vmatprep.subr.mxu0 0.0
        %5981 = vmatpush1.msra.mxu0 %v5955
        %5982 = vmatprep.subr.mxu0 0.0
        %5983 = vmatpush1.msra.mxu0 %v5956
        %5984 = vmatprep.subr.mxu0 0.0
        %5985 = vmatpush1.msra.mxu0 %v5957
        %5986 = vmatprep.subr.mxu0 0.0
        %5987 = vmatpush1.msra.mxu0 %v5958
        %5988 = vmatprep.subr.mxu0 0.0
        %5989 = vmatpush1.msra.mxu0 %v5959
        %5990 = vmatprep.subr.mxu0 0.0
        %5991 = vmatpush1.msra.mxu0 %v5960
        %5992 = vmatprep.subr.mxu0 0.0
        %5993 = vmatpush1.msra.mxu0 %v5961
        %5994 = vmatprep.subr.mxu0 0.0
        %5995 = vmatpush1.msra.mxu0 0.0
        %5996 = vmatprep.subr.mxu0 0.0
        %5997 = vmatpush1.msra.mxu0 0.0
        %5998 = vmatprep.subr.mxu0 0.0
        %5999 = vmatpush1.msra.mxu0 0.0
        %6000 = vmatprep.subr.mxu0 0.0
        %6001 = vmatpush1.msra.mxu0 0.0
        %6002 = vmatprep.subr.mxu0 0.0
        %6003 = vmatpush1.msra.mxu0 0.0
        %6004 = vmatprep.subr.mxu0 0.0
        %6005 = vmatpush1.msra.mxu0 0.0
        %6006 = vmatprep.subr.mxu0 0.0
        %6007 = vmatpush1.msra.mxu0 0.0
        %6008 = vmatprep.subr.mxu0 0.0
        %6009 = vmatpush1.msra.mxu0 0.0
        %6010 = vmatprep.subr.mxu0 0.0
        %6011 = vmatpush1.msra.mxu0 0.0
        %6012 = vmatprep.subr.mxu0 0.0
        %6013 = vmatpush1.msra.mxu0 0.0
        %6014 = vmatprep.subr.mxu0 0.0
        %6015 = vmatpush1.msra.mxu0 0.0
        %6016 = vmatprep.subr.mxu0 0.0
        %6017 = vmatpush1.msra.mxu0 0.0
        %6018 = vmatprep.subr.mxu0 0.0
        %6019 = vmatpush1.msra.mxu0 0.0
        %6020 = vmatprep.subr.mxu0 0.0
        %6021 = vmatpush1.msra.mxu0 0.0
        %6022 = vmatprep.subr.mxu0 0.0
        %6023 = vmatpush1.msra.mxu0 0.0
        %6024 = vmatprep.subr.mxu0 0.0
        %6025 = vmatpush1.msra.mxu0 0.0
        %6026 = vmatprep.mubr.f32.mxu0 0.0
        %6027 = vmatmul.mubr.f32.gmra.mrb[0].mxu0 %v5928
        %v6028 = vpop.f32.mrb[0].mxu0
        %v6029 = vadd.f32 0.0, %v6028
        %v6030 = vpop.f32.mrb[0].mxu0
        %6031 = vmatprep.mubr.f32.mxu0 0.0
        %6032 = vmatmul.mubr.f32.gmra.mrb[0].mxu0 %v5929
        %v6033 = vpop.f32.mrb[0].mxu0
        %v6034 = vadd.f32 0.0, %v6033
        %v6035 = vpop.f32.mrb[0].mxu0
        %6036 = vmatprep.mubr.f32.mxu0 0.0
        %6037 = vmatmul.mubr.f32.gmra.mrb[0].mxu0 %v5930
        %v6038 = vpop.f32.mrb[0].mxu0
        %v6039 = vadd.f32 0.0, %v6038
        %v6040 = vpop.f32.mrb[0].mxu0
        %6041 = vmatprep.mubr.f32.mxu0 0.0
        %6042 = vmatmul.mubr.f32.gmra.mrb[0].mxu0 %v5931
        %v6043 = vpop.f32.mrb[0].mxu0
        %v6044 = vadd.f32 0.0, %v6043
        %v6045 = vpop.f32.mrb[0].mxu0
        %6046 = vmatprep.mubr.f32.mxu0 0.0
        %6047 = vmatmul.mubr.f32.gmra.mrb[0].mxu0 %v5932
        %v6048 = vpop.f32.mrb[0].mxu0
        %v6049 = vadd.f32 0.0, %v6048
        %v6050 = vpop.f32.mrb[0].mxu0
        %6051 = vmatprep.mubr.f32.mxu0 0.0
        %6052 = vmatmul.mubr.f32.gmra.mrb[0].mxu0 %v5933
        %v6053 = vpop.f32.mrb[0].mxu0
        %v6054 = vadd.f32 0.0, %v6053
        %v6055 = vpop.f32.mrb[0].mxu0
        %6056 = vmatprep.mubr.f32.mxu0 0.0
        %6057 = vmatmul.mubr.f32.gmra.mrb[0].mxu0 %v5934
        %v6058 = vpop.f32.mrb[0].mxu0
        %v6059 = vadd.f32 0.0, %v6058
        %v6060 = vpop.f32.mrb[0].mxu0
        %6061 = vmatprep.mubr.f32.mxu0 0.0
        %6062 = vmatmul.mubr.f32.gmra.mrb[0].mxu0 %v5935
        %v6063 = vpop.f32.mrb[0].mxu0
        %v6064 = vadd.f32 0.0, %v6063
        %v6065 = vpop.f32.mrb[0].mxu0
        %6066 = vmatprep.mubr.f32.mxu0 0.0
        %6067 = vmatmul.mubr.f32.gmra.mrb[0].mxu0 %v5936
        %v6068 = vpop.f32.mrb[0].mxu0
        %v6069 = vadd.f32 0.0, %v6068
        %v6070 = vpop.f32.mrb[0].mxu0
        %6071 = vmatprep.mubr.f32.mxu0 0.0
        %6072 = vmatmul.mubr.f32.gmra.mrb[0].mxu0 %v5937
        %v6073 = vpop.f32.mrb[0].mxu0
        %v6074 = vadd.f32 0.0, %v6073
        %v6075 = vpop.f32.mrb[0].mxu0
        %6076 = vmatprep.mubr.f32.mxu0 0.0
        %6077 = vmatmul.mubr.f32.gmra.mrb[0].mxu0 %v5938
        %v6078 = vpop.f32.mrb[0].mxu0
        %v6079 = vadd.f32 0.0, %v6078
        %v6080 = vpop.f32.mrb[0].mxu0
        %6081 = vmatprep.mubr.f32.mxu0 0.0
        %6082 = vmatmul.mubr.f32.gmra.mrb[0].mxu0 %v5939
        %v6083 = vpop.f32.mrb[0].mxu0
        %v6084 = vadd.f32 0.0, %v6083
        %v6085 = vpop.f32.mrb[0].mxu0
        %6086 = vmatprep.mubr.f32.mxu0 0.0
        %6087 = vmatmul.mubr.f32.gmra.mrb[0].mxu0 %v5940
        %v6088 = vpop.f32.mrb[0].mxu0
        %v6089 = vadd.f32 0.0, %v6088
        %v6090 = vpop.f32.mrb[0].mxu0
        %6091 = vmatprep.mubr.f32.mxu0 0.0
        %6092 = vmatmul.mubr.f32.gmra.mrb[0].mxu0 %v5941
        %v6093 = vpop.f32.mrb[0].mxu0
        %v6094 = vadd.f32 0.0, %v6093
        %v6095 = vpop.f32.mrb[0].mxu0
        %6096 = vmatprep.mubr.f32.mxu0 0.0
        %6097 = vmatmul.mubr.f32.gmra.mrb[0].mxu0 %v5942
        %v6098 = vpop.f32.mrb[0].mxu0
        %v6099 = vadd.f32 0.0, %v6098
        %v6100 = vpop.f32.mrb[0].mxu0
        %6101 = vmatprep.mubr.f32.mxu0 0.0
        %6102 = vmatmul.mubr.f32.gmra.mrb[0].mxu0 %v5943
        %v6103 = vpop.f32.mrb[0].mxu0
        %v6104 = vadd.f32 0.0, %v6103
        %v6105 = vpop.f32.mrb[0].mxu0
        %6106 = vmatprep.mubr.f32.mxu0 0.0
        %6107 = vmatmul.mubr.f32.gmra.mrb[0].mxu0 %v5944
        %v6108 = vpop.f32.mrb[0].mxu0
        %v6109 = vadd.f32 0.0, %v6108
        %v6110 = vpop.f32.mrb[0].mxu0
        %6111 = vmatprep.mubr.f32.mxu0 0.0
        %6112 = vmatmul.mubr.f32.gmra.mrb[0].mxu0 %v5945
        %v6113 = vpop.f32.mrb[0].mxu0
        %v6114 = vadd.f32 0.0, %v6113
        %v6115 = vpop.f32.mrb[0].mxu0
        %6116 = vdwg.mxu0
        %v6117 = vadd.f32 %v5406, %v6029
        %v6118 = vadd.f32 %v5407, %v6034
        %v6119 = vadd.f32 %v5408, %v6039
        %v6120 = vadd.f32 %v5409, %v6044
        %v6121 = vadd.f32 %v5410, %v6049
        %v6122 = vadd.f32 %v5411, %v6054
        %v6123 = vadd.f32 %v5412, %v6059
        %v6124 = vadd.f32 %v5413, %v6064
        %v6125 = vadd.f32 %v5414, %v6069
        %v6126 = vadd.f32 %v5415, %v6074
        %v6127 = vadd.f32 %v5416, %v6079
        %v6128 = vadd.f32 %v5417, %v6084
        %v6129 = vadd.f32 %v5418, %v6089
        %v6130 = vadd.f32 %v5419, %v6094
        %v6131 = vadd.f32 %v5420, %v6099
        %v6132 = vadd.f32 %v5421, %v6104
        %v6133 = vadd.f32 %v5422, %v6109
        %v6134 = vadd.f32 %v5423, %v6114
        %v6135 = vld [vmem:[%s750] sm:$0x1]
        %v6137 = vlaneseq
        %v6138 = vshrl.u32 %v6137, 7
        %v6139 = vsub.s32 0, %v6138
        %v6140 = vrot.slane %v6135, %v6139
        %v6142 = vadd.f32 %v6117, %v6140
        %v6143 = vadd.f32 %v6118, %v6140
        %v6144 = vadd.f32 %v6119, %v6140
        %v6145 = vadd.f32 %v6120, %v6140
        %v6146 = vadd.f32 %v6121, %v6140
        %v6147 = vadd.f32 %v6122, %v6140
        %v6148 = vadd.f32 %v6123, %v6140
        %v6149 = vadd.f32 %v6124, %v6140
        %v6150 = vadd.f32 %v6125, %v6140
        %v6151 = vadd.f32 %v6126, %v6140
        %v6152 = vadd.f32 %v6127, %v6140
        %v6153 = vadd.f32 %v6128, %v6140
        %v6154 = vadd.f32 %v6129, %v6140
        %v6155 = vadd.f32 %v6130, %v6140
        %v6156 = vadd.f32 %v6131, %v6140
        %v6157 = vadd.f32 %v6132, %v6140
        %v6158 = vadd.f32 %v6133, %v6140
        %v6159 = vadd.f32 %v6134, %v6140
        %6160 = vst.msk [vmem:[#allocation2] sm:$0xff] %vm812, %v6142
        %6161 = vst.msk [vmem:[#allocation2 + $0x8] sm:$0xff] %vm812, %v6143
        %6162 = vst.msk [vmem:[#allocation2 + $0x10] sm:$0xff] %vm812, %v6144
        %6163 = vst.msk [vmem:[#allocation2 + $0x18] sm:$0xff] %vm812, %v6145
        %6164 = vst.msk [vmem:[#allocation2 + $0x20] sm:$0xff] %vm812, %v6146
        %6165 = vst.msk [vmem:[#allocation2 + $0x28] sm:$0xff] %vm812, %v6147
        %6166 = vst.msk [vmem:[#allocation2 + $0x30] sm:$0xff] %vm812, %v6148
        %6167 = vst.msk [vmem:[#allocation2 + $0x38] sm:$0xff] %vm812, %v6149
        %6168 = vst.msk [vmem:[#allocation2 + $0x40] sm:$0xff] %vm812, %v6150
        %6169 = vst.msk [vmem:[#allocation2 + $0x48] sm:$0xff] %vm812, %v6151
        %6170 = vst.msk [vmem:[#allocation2 + $0x50] sm:$0xff] %vm812, %v6152
        %6171 = vst.msk [vmem:[#allocation2 + $0x58] sm:$0xff] %vm812, %v6153
        %6172 = vst.msk [vmem:[#allocation2 + $0x60] sm:$0xff] %vm812, %v6154
        %6173 = vst.msk [vmem:[#allocation2 + $0x68] sm:$0xff] %vm812, %v6155
        %6174 = vst.msk [vmem:[#allocation2 + $0x70] sm:$0xff] %vm812, %v6156
        %6175 = vst.msk [vmem:[#allocation2 + $0x78] sm:$0xff] %vm812, %v6157
        %6176 = vst.msk [vmem:[#allocation2 + $0x80] sm:$0xff] %vm812, %v6158
        %6177 = vst.msk [vmem:[#allocation2 + $0x88] sm:$0xff] %vm812, %v6159
        %p6178 = scmp.eq.s32.totalorder %s36, 1
        // Predicated region
        $region93: #{tpu_custom_call.1} parent=87 // pred_check
          %p6179 = pneg %p6178
        $region94: #{tpu_custom_call.1} parent=87 // pred_check_branch
          %6181 = sbr.rel (%p6179) target = $region96
        $region95: #{tpu_custom_call.1} parent=87 // pred_region
          %v6182 = vld [vmem:[%s13] sm:$0x1]
          %v6183 = vld [vmem:[%s14] sm:$0x1]
          %v6184 = vsel %vm812, %v6142, 0.0
          %6185 = vadd.xlane.f32.xlu0 %v6184
          %v6186 = vpop.xlane.xlu0 %6185
          %v6187 = vsel %vm812, %v6143, 0.0
          %6188 = vadd.xlane.f32.xlu0 %v6187
          %v6189 = vpop.xlane.xlu0 %6188
          %v6190 = vsel %vm812, %v6144, 0.0
          %6191 = vadd.xlane.f32.xlu0 %v6190
          %v6192 = vpop.xlane.xlu0 %6191
          %v6193 = vsel %vm812, %v6145, 0.0
          %6194 = vadd.xlane.f32.xlu0 %v6193
          %v6195 = vpop.xlane.xlu0 %6194
          %v6196 = vsel %vm812, %v6146, 0.0
          %6197 = vadd.xlane.f32.xlu0 %v6196
          %v6198 = vpop.xlane.xlu0 %6197
          %v6199 = vsel %vm812, %v6147, 0.0
          %6200 = vadd.xlane.f32.xlu0 %v6199
          %v6201 = vpop.xlane.xlu0 %6200
          %v6202 = vsel %vm812, %v6148, 0.0
          %6203 = vadd.xlane.f32.xlu0 %v6202
          %v6204 = vpop.xlane.xlu0 %6203
          %v6205 = vsel %vm812, %v6149, 0.0
          %6206 = vadd.xlane.f32.xlu0 %v6205
          %v6207 = vpop.xlane.xlu0 %6206
          %v6208 = vsel %vm812, %v6150, 0.0
          %6209 = vadd.xlane.f32.xlu0 %v6208
          %v6210 = vpop.xlane.xlu0 %6209
          %v6211 = vsel %vm812, %v6151, 0.0
          %6212 = vadd.xlane.f32.xlu0 %v6211
          %v6213 = vpop.xlane.xlu0 %6212
          %v6214 = vsel %vm812, %v6152, 0.0
          %6215 = vadd.xlane.f32.xlu0 %v6214
          %v6216 = vpop.xlane.xlu0 %6215
          %v6217 = vsel %vm812, %v6153, 0.0
          %6218 = vadd.xlane.f32.xlu0 %v6217
          %v6219 = vpop.xlane.xlu0 %6218
          %v6220 = vsel %vm812, %v6154, 0.0
          %6221 = vadd.xlane.f32.xlu0 %v6220
          %v6222 = vpop.xlane.xlu0 %6221
          %v6223 = vsel %vm812, %v6155, 0.0
          %6224 = vadd.xlane.f32.xlu0 %v6223
          %v6225 = vpop.xlane.xlu0 %6224
          %v6226 = vsel %vm812, %v6156, 0.0
          %6227 = vadd.xlane.f32.xlu0 %v6226
          %v6228 = vpop.xlane.xlu0 %6227
          %v6229 = vsel %vm812, %v6157, 0.0
          %6230 = vadd.xlane.f32.xlu0 %v6229
          %v6231 = vpop.xlane.xlu0 %6230
          %v6232 = vsel %vm812, %v6158, 0.0
          %6233 = vadd.xlane.f32.xlu0 %v6232
          %v6234 = vpop.xlane.xlu0 %6233
          %v6235 = vsel %vm812, %v6159, 0.0
          %6236 = vadd.xlane.f32.xlu0 %v6235
          %v6237 = vpop.xlane.xlu0 %6236
          %v6238 = vmul.f32 %v6186, %v867
          %v6239 = vmul.f32 %v6189, %v867
          %v6240 = vmul.f32 %v6192, %v867
          %v6241 = vmul.f32 %v6195, %v867
          %v6242 = vmul.f32 %v6198, %v867
          %v6243 = vmul.f32 %v6201, %v867
          %v6244 = vmul.f32 %v6204, %v867
          %v6245 = vmul.f32 %v6207, %v867
          %v6246 = vmul.f32 %v6210, %v867
          %v6247 = vmul.f32 %v6213, %v867
          %v6248 = vmul.f32 %v6216, %v867
          %v6249 = vmul.f32 %v6219, %v867
          %v6250 = vmul.f32 %v6222, %v867
          %v6251 = vmul.f32 %v6225, %v867
          %v6252 = vmul.f32 %v6228, %v867
          %v6253 = vmul.f32 %v6231, %v867
          %v6254 = vmul.f32 %v6234, %v867
          %v6255 = vmul.f32 %v6237, %v867
          %v6256 = vsub.f32 %v6142, %v6238
          %v6257 = vsub.f32 %v6143, %v6239
          %v6258 = vsub.f32 %v6144, %v6240
          %v6259 = vsub.f32 %v6145, %v6241
          %v6260 = vsub.f32 %v6146, %v6242
          %v6261 = vsub.f32 %v6147, %v6243
          %v6262 = vsub.f32 %v6148, %v6244
          %v6263 = vsub.f32 %v6149, %v6245
          %v6264 = vsub.f32 %v6150, %v6246
          %v6265 = vsub.f32 %v6151, %v6247
          %v6266 = vsub.f32 %v6152, %v6248
          %v6267 = vsub.f32 %v6153, %v6249
          %v6268 = vsub.f32 %v6154, %v6250
          %v6269 = vsub.f32 %v6155, %v6251
          %v6270 = vsub.f32 %v6156, %v6252
          %v6271 = vsub.f32 %v6157, %v6253
          %v6272 = vsub.f32 %v6158, %v6254
          %v6273 = vsub.f32 %v6159, %v6255
          %v6274 = vmul.f32 %v6256, %v6256
          %v6275 = vmul.f32 %v6257, %v6257
          %v6276 = vmul.f32 %v6258, %v6258
          %v6277 = vmul.f32 %v6259, %v6259
          %v6278 = vmul.f32 %v6260, %v6260
          %v6279 = vmul.f32 %v6261, %v6261
          %v6280 = vmul.f32 %v6262, %v6262
          %v6281 = vmul.f32 %v6263, %v6263
          %v6282 = vmul.f32 %v6264, %v6264
          %v6283 = vmul.f32 %v6265, %v6265
          %v6284 = vmul.f32 %v6266, %v6266
          %v6285 = vmul.f32 %v6267, %v6267
          %v6286 = vmul.f32 %v6268, %v6268
          %v6287 = vmul.f32 %v6269, %v6269
          %v6288 = vmul.f32 %v6270, %v6270
          %v6289 = vmul.f32 %v6271, %v6271
          %v6290 = vmul.f32 %v6272, %v6272
          %v6291 = vmul.f32 %v6273, %v6273
          %v6292 = vsel %vm812, %v6274, 0.0
          %6293 = vadd.xlane.f32.xlu0 %v6292
          %v6294 = vpop.xlane.xlu0 %6293
          %v6295 = vsel %vm812, %v6275, 0.0
          %6296 = vadd.xlane.f32.xlu0 %v6295
          %v6297 = vpop.xlane.xlu0 %6296
          %v6298 = vsel %vm812, %v6276, 0.0
          %6299 = vadd.xlane.f32.xlu0 %v6298
          %v6300 = vpop.xlane.xlu0 %6299
          %v6301 = vsel %vm812, %v6277, 0.0
          %6302 = vadd.xlane.f32.xlu0 %v6301
          %v6303 = vpop.xlane.xlu0 %6302
          %v6304 = vsel %vm812, %v6278, 0.0
          %6305 = vadd.xlane.f32.xlu0 %v6304
          %v6306 = vpop.xlane.xlu0 %6305
          %v6307 = vsel %vm812, %v6279, 0.0
          %6308 = vadd.xlane.f32.xlu0 %v6307
          %v6309 = vpop.xlane.xlu0 %6308
          %v6310 = vsel %vm812, %v6280, 0.0
          %6311 = vadd.xlane.f32.xlu0 %v6310
          %v6312 = vpop.xlane.xlu0 %6311
          %v6313 = vsel %vm812, %v6281, 0.0
          %6314 = vadd.xlane.f32.xlu0 %v6313
          %v6315 = vpop.xlane.xlu0 %6314
          %v6316 = vsel %vm812, %v6282, 0.0
          %6317 = vadd.xlane.f32.xlu0 %v6316
          %v6318 = vpop.xlane.xlu0 %6317
          %v6319 = vsel %vm812, %v6283, 0.0
          %6320 = vadd.xlane.f32.xlu0 %v6319
          %v6321 = vpop.xlane.xlu0 %6320
          %v6322 = vsel %vm812, %v6284, 0.0
          %6323 = vadd.xlane.f32.xlu0 %v6322
          %v6324 = vpop.xlane.xlu0 %6323
          %v6325 = vsel %vm812, %v6285, 0.0
          %6326 = vadd.xlane.f32.xlu0 %v6325
          %v6327 = vpop.xlane.xlu0 %6326
          %v6328 = vsel %vm812, %v6286, 0.0
          %6329 = vadd.xlane.f32.xlu0 %v6328
          %v6330 = vpop.xlane.xlu0 %6329
          %v6331 = vsel %vm812, %v6287, 0.0
          %6332 = vadd.xlane.f32.xlu0 %v6331
          %v6333 = vpop.xlane.xlu0 %6332
          %v6334 = vsel %vm812, %v6288, 0.0
          %6335 = vadd.xlane.f32.xlu0 %v6334
          %v6336 = vpop.xlane.xlu0 %6335
          %v6337 = vsel %vm812, %v6289, 0.0
          %6338 = vadd.xlane.f32.xlu0 %v6337
          %v6339 = vpop.xlane.xlu0 %6338
          %v6340 = vsel %vm812, %v6290, 0.0
          %6341 = vadd.xlane.f32.xlu0 %v6340
          %v6342 = vpop.xlane.xlu0 %6341
          %v6343 = vsel %vm812, %v6291, 0.0
          %6344 = vadd.xlane.f32.xlu0 %v6343
          %v6345 = vpop.xlane.xlu0 %6344
          %v6346 = vmul.f32 %v6294, %v867
          %v6347 = vmul.f32 %v6297, %v867
          %v6348 = vmul.f32 %v6300, %v867
          %v6349 = vmul.f32 %v6303, %v867
          %v6350 = vmul.f32 %v6306, %v867
          %v6351 = vmul.f32 %v6309, %v867
          %v6352 = vmul.f32 %v6312, %v867
          %v6353 = vmul.f32 %v6315, %v867
          %v6354 = vmul.f32 %v6318, %v867
          %v6355 = vmul.f32 %v6321, %v867
          %v6356 = vmul.f32 %v6324, %v867
          %v6357 = vmul.f32 %v6327, %v867
          %v6358 = vmul.f32 %v6330, %v867
          %v6359 = vmul.f32 %v6333, %v867
          %v6360 = vmul.f32 %v6336, %v867
          %v6361 = vmul.f32 %v6339, %v867
          %v6362 = vmul.f32 %v6342, %v867
          %v6363 = vmul.f32 %v6345, %v867
          %v6364 = vadd.f32 %v6346, 1e-05
          %v6365 = vadd.f32 %v6347, 1e-05
          %v6366 = vadd.f32 %v6348, 1e-05
          %v6367 = vadd.f32 %v6349, 1e-05
          %v6368 = vadd.f32 %v6350, 1e-05
          %v6369 = vadd.f32 %v6351, 1e-05
          %v6370 = vadd.f32 %v6352, 1e-05
          %v6371 = vadd.f32 %v6353, 1e-05
          %v6372 = vadd.f32 %v6354, 1e-05
          %v6373 = vadd.f32 %v6355, 1e-05
          %v6374 = vadd.f32 %v6356, 1e-05
          %v6375 = vadd.f32 %v6357, 1e-05
          %v6376 = vadd.f32 %v6358, 1e-05
          %v6377 = vadd.f32 %v6359, 1e-05
          %v6378 = vadd.f32 %v6360, 1e-05
          %v6379 = vadd.f32 %v6361, 1e-05
          %v6380 = vadd.f32 %v6362, 1e-05
          %v6381 = vadd.f32 %v6363, 1e-05
          %v6382 = vrsqrt.pop %v6364
          %v6383 = vrsqrt.pop %v6365
          %v6384 = vrsqrt.pop %v6366
          %v6385 = vrsqrt.pop %v6367
          %v6386 = vrsqrt.pop %v6368
          %v6387 = vrsqrt.pop %v6369
          %v6388 = vrsqrt.pop %v6370
          %v6389 = vrsqrt.pop %v6371
          %v6390 = vrsqrt.pop %v6372
          %v6391 = vrsqrt.pop %v6373
          %v6392 = vrsqrt.pop %v6374
          %v6393 = vrsqrt.pop %v6375
          %v6394 = vrsqrt.pop %v6376
          %v6395 = vrsqrt.pop %v6377
          %v6396 = vrsqrt.pop %v6378
          %v6397 = vrsqrt.pop %v6379
          %v6398 = vrsqrt.pop %v6380
          %v6399 = vrsqrt.pop %v6381
          %v6400 = vmul.f32 %v6256, %v6382
          %v6401 = vmul.f32 %v6257, %v6383
          %v6402 = vmul.f32 %v6258, %v6384
          %v6403 = vmul.f32 %v6259, %v6385
          %v6404 = vmul.f32 %v6260, %v6386
          %v6405 = vmul.f32 %v6261, %v6387
          %v6406 = vmul.f32 %v6262, %v6388
          %v6407 = vmul.f32 %v6263, %v6389
          %v6408 = vmul.f32 %v6264, %v6390
          %v6409 = vmul.f32 %v6265, %v6391
          %v6410 = vmul.f32 %v6266, %v6392
          %v6411 = vmul.f32 %v6267, %v6393
          %v6412 = vmul.f32 %v6268, %v6394
          %v6413 = vmul.f32 %v6269, %v6395
          %v6414 = vmul.f32 %v6270, %v6396
          %v6415 = vmul.f32 %v6271, %v6397
          %v6416 = vmul.f32 %v6272, %v6398
          %v6417 = vmul.f32 %v6273, %v6399
          %v6419 = vlaneseq
          %v6420 = vshrl.u32 %v6419, 7
          %v6421 = vsub.s32 0, %v6420
          %v6422 = vrot.slane %v6182, %v6421
          %v6424 = vmul.f32 %v6400, %v6422
          %v6425 = vmul.f32 %v6401, %v6422
          %v6426 = vmul.f32 %v6402, %v6422
          %v6427 = vmul.f32 %v6403, %v6422
          %v6428 = vmul.f32 %v6404, %v6422
          %v6429 = vmul.f32 %v6405, %v6422
          %v6430 = vmul.f32 %v6406, %v6422
          %v6431 = vmul.f32 %v6407, %v6422
          %v6432 = vmul.f32 %v6408, %v6422
          %v6433 = vmul.f32 %v6409, %v6422
          %v6434 = vmul.f32 %v6410, %v6422
          %v6435 = vmul.f32 %v6411, %v6422
          %v6436 = vmul.f32 %v6412, %v6422
          %v6437 = vmul.f32 %v6413, %v6422
          %v6438 = vmul.f32 %v6414, %v6422
          %v6439 = vmul.f32 %v6415, %v6422
          %v6440 = vmul.f32 %v6416, %v6422
          %v6441 = vmul.f32 %v6417, %v6422
          %v6443 = vlaneseq
          %v6444 = vshrl.u32 %v6443, 7
          %v6445 = vsub.s32 0, %v6444
          %v6446 = vrot.slane %v6183, %v6445
          %v6448 = vadd.f32 %v6424, %v6446
          %v6449 = vadd.f32 %v6425, %v6446
          %v6450 = vadd.f32 %v6426, %v6446
          %v6451 = vadd.f32 %v6427, %v6446
          %v6452 = vadd.f32 %v6428, %v6446
          %v6453 = vadd.f32 %v6429, %v6446
          %v6454 = vadd.f32 %v6430, %v6446
          %v6455 = vadd.f32 %v6431, %v6446
          %v6456 = vadd.f32 %v6432, %v6446
          %v6457 = vadd.f32 %v6433, %v6446
          %v6458 = vadd.f32 %v6434, %v6446
          %v6459 = vadd.f32 %v6435, %v6446
          %v6460 = vadd.f32 %v6436, %v6446
          %v6461 = vadd.f32 %v6437, %v6446
          %v6462 = vadd.f32 %v6438, %v6446
          %v6463 = vadd.f32 %v6439, %v6446
          %v6464 = vadd.f32 %v6440, %v6446
          %v6465 = vadd.f32 %v6441, %v6446
          %v6466 = vld [vmem:[%s15] sm:$0xff]
          %v6467 = vld [vmem:[%s15 + $0x8] sm:$0xff]
          %v6468 = vld [vmem:[%s15 + $0x10] sm:$0xff]
          %v6469 = vld [vmem:[%s15 + $0x18] sm:$0xff]
          %v6470 = vld [vmem:[%s15 + $0x20] sm:$0xff]
          %v6471 = vld [vmem:[%s15 + $0x28] sm:$0xff]
          %v6472 = vld [vmem:[%s15 + $0x30] sm:$0xff]
          %v6473 = vld [vmem:[%s15 + $0x38] sm:$0xff]
          %v6474 = vld [vmem:[%s15 + $0x40] sm:$0xff]
          %v6475 = vmul.f32 %v6448, %v6466
          %v6476 = vmul.f32 %v6449, %v6467
          %v6477 = vmul.f32 %v6450, %v6468
          %v6478 = vmul.f32 %v6451, %v6469
          %v6479 = vmul.f32 %v6452, %v6470
          %v6480 = vmul.f32 %v6453, %v6471
          %v6481 = vmul.f32 %v6454, %v6472
          %v6482 = vmul.f32 %v6455, %v6473
          %v6483 = vmul.f32 %v6456, %v6474
          %v6484 = vmul.f32 %v6457, %v6466
          %v6485 = vmul.f32 %v6458, %v6467
          %v6486 = vmul.f32 %v6459, %v6468
          %v6487 = vmul.f32 %v6460, %v6469
          %v6488 = vmul.f32 %v6461, %v6470
          %v6489 = vmul.f32 %v6462, %v6471
          %v6490 = vmul.f32 %v6463, %v6472
          %v6491 = vmul.f32 %v6464, %v6473
          %v6492 = vmul.f32 %v6465, %v6474
          %v6493 = vsel %vm812, %v6475, 0.0
          %6494 = vadd.xlane.f32.xlu0 %v6493
          %v6495 = vpop.xlane.xlu0 %6494
          %v6496 = vsel %vm812, %v6476, 0.0
          %6497 = vadd.xlane.f32.xlu0 %v6496
          %v6498 = vpop.xlane.xlu0 %6497
          %v6499 = vsel %vm812, %v6477, 0.0
          %6500 = vadd.xlane.f32.xlu0 %v6499
          %v6501 = vpop.xlane.xlu0 %6500
          %v6502 = vsel %vm812, %v6478, 0.0
          %6503 = vadd.xlane.f32.xlu0 %v6502
          %v6504 = vpop.xlane.xlu0 %6503
          %v6505 = vsel %vm812, %v6479, 0.0
          %6506 = vadd.xlane.f32.xlu0 %v6505
          %v6507 = vpop.xlane.xlu0 %6506
          %v6508 = vsel %vm812, %v6480, 0.0
          %6509 = vadd.xlane.f32.xlu0 %v6508
          %v6510 = vpop.xlane.xlu0 %6509
          %v6511 = vsel %vm812, %v6481, 0.0
          %6512 = vadd.xlane.f32.xlu0 %v6511
          %v6513 = vpop.xlane.xlu0 %6512
          %v6514 = vsel %vm812, %v6482, 0.0
          %6515 = vadd.xlane.f32.xlu0 %v6514
          %v6516 = vpop.xlane.xlu0 %6515
          %v6517 = vsel %vm812, %v6483, 0.0
          %6518 = vadd.xlane.f32.xlu0 %v6517
          %v6519 = vpop.xlane.xlu0 %6518
          %v6520 = vsel %vm812, %v6484, 0.0
          %6521 = vadd.xlane.f32.xlu0 %v6520
          %v6522 = vpop.xlane.xlu0 %6521
          %v6523 = vsel %vm812, %v6485, 0.0
          %6524 = vadd.xlane.f32.xlu0 %v6523
          %v6525 = vpop.xlane.xlu0 %6524
          %v6526 = vsel %vm812, %v6486, 0.0
          %6527 = vadd.xlane.f32.xlu0 %v6526
          %v6528 = vpop.xlane.xlu0 %6527
          %v6529 = vsel %vm812, %v6487, 0.0
          %6530 = vadd.xlane.f32.xlu0 %v6529
          %v6531 = vpop.xlane.xlu0 %6530
          %v6532 = vsel %vm812, %v6488, 0.0
          %6533 = vadd.xlane.f32.xlu0 %v6532
          %v6534 = vpop.xlane.xlu0 %6533
          %v6535 = vsel %vm812, %v6489, 0.0
          %6536 = vadd.xlane.f32.xlu0 %v6535
          %v6537 = vpop.xlane.xlu0 %6536
          %v6538 = vsel %vm812, %v6490, 0.0
          %6539 = vadd.xlane.f32.xlu0 %v6538
          %v6540 = vpop.xlane.xlu0 %6539
          %v6541 = vsel %vm812, %v6491, 0.0
          %6542 = vadd.xlane.f32.xlu0 %v6541
          %v6543 = vpop.xlane.xlu0 %6542
          %v6544 = vsel %vm812, %v6492, 0.0
          %6545 = vadd.xlane.f32.xlu0 %v6544
          %v6546 = vpop.xlane.xlu0 %6545
          %v6565 = vlaneseq
          %v6566 = vand.u32 %v6565, 127
          %v6567 = vlaneseq
          %v6568 = vshrl.u32 %v6567, 7
          %v6569 = vsub.s32 %v6566, %v6568
          %v6570 = vrot.slane %v6495, %v6569
          %v6571 = vadd.s32 %v6566, 4294967288
          %v6572 = vlaneseq
          %v6573 = vshrl.u32 %v6572, 7
          %v6574 = vsub.s32 %v6571, %v6573
          %v6575 = vrot.slane %v6498, %v6574
          %vm6576 = vcmask 130112
          %v6577 = vsel %vm6576, %v6575, %v6570
          %v6578 = vadd.s32 %v6566, 4294967280
          %v6579 = vlaneseq
          %v6580 = vshrl.u32 %v6579, 7
          %v6581 = vsub.s32 %v6578, %v6580
          %v6582 = vrot.slane %v6501, %v6581
          %vm6583 = vcmask 195712
          %v6584 = vsel %vm6583, %v6582, %v6577
          %v6585 = vadd.s32 %v6566, 4294967272
          %v6586 = vlaneseq
          %v6587 = vshrl.u32 %v6586, 7
          %v6588 = vsub.s32 %v6585, %v6587
          %v6589 = vrot.slane %v6504, %v6588
          %vm6590 = vcmask 261312
          %v6591 = vsel %vm6590, %v6589, %v6584
          %v6592 = vadd.s32 %v6566, 4294967264
          %v6593 = vlaneseq
          %v6594 = vshrl.u32 %v6593, 7
          %v6595 = vsub.s32 %v6592, %v6594
          %v6596 = vrot.slane %v6507, %v6595
          %vm6597 = vcmask 326912
          %v6598 = vsel %vm6597, %v6596, %v6591
          %v6599 = vadd.s32 %v6566, 4294967256
          %v6600 = vlaneseq
          %v6601 = vshrl.u32 %v6600, 7
          %v6602 = vsub.s32 %v6599, %v6601
          %v6603 = vrot.slane %v6510, %v6602
          %vm6604 = vcmask 392512
          %v6605 = vsel %vm6604, %v6603, %v6598
          %v6606 = vadd.s32 %v6566, 4294967248
          %v6607 = vlaneseq
          %v6608 = vshrl.u32 %v6607, 7
          %v6609 = vsub.s32 %v6606, %v6608
          %v6610 = vrot.slane %v6513, %v6609
          %vm6611 = vcmask 458112
          %v6612 = vsel %vm6611, %v6610, %v6605
          %v6613 = vadd.s32 %v6566, 4294967240
          %v6614 = vlaneseq
          %v6615 = vshrl.u32 %v6614, 7
          %v6616 = vsub.s32 %v6613, %v6615
          %v6617 = vrot.slane %v6516, %v6616
          %vm6618 = vcmask 523712
          %v6619 = vsel %vm6618, %v6617, %v6612
          %v6620 = vadd.s32 %v6566, 4294967232
          %v6621 = vlaneseq
          %v6622 = vshrl.u32 %v6621, 7
          %v6623 = vsub.s32 %v6620, %v6622
          %v6624 = vrot.slane %v6519, %v6623
          %vm6625 = vcmask 589312
          %v6626 = vsel %vm6625, %v6624, %v6619
          %v6627 = vlaneseq
          %v6628 = vshrl.u32 %v6627, 7
          %v6629 = vsub.s32 %v6566, %v6628
          %v6630 = vrot.slane %v6522, %v6629
          %v6631 = vlaneseq
          %v6632 = vshrl.u32 %v6631, 7
          %v6633 = vsub.s32 %v6571, %v6632
          %v6634 = vrot.slane %v6525, %v6633
          %v6635 = vsel %vm6576, %v6634, %v6630
          %v6636 = vlaneseq
          %v6637 = vshrl.u32 %v6636, 7
          %v6638 = vsub.s32 %v6578, %v6637
          %v6639 = vrot.slane %v6528, %v6638
          %v6640 = vsel %vm6583, %v6639, %v6635
          %v6641 = vlaneseq
          %v6642 = vshrl.u32 %v6641, 7
          %v6643 = vsub.s32 %v6585, %v6642
          %v6644 = vrot.slane %v6531, %v6643
          %v6645 = vsel %vm6590, %v6644, %v6640
          %v6646 = vlaneseq
          %v6647 = vshrl.u32 %v6646, 7
          %v6648 = vsub.s32 %v6592, %v6647
          %v6649 = vrot.slane %v6534, %v6648
          %v6650 = vsel %vm6597, %v6649, %v6645
          %v6651 = vlaneseq
          %v6652 = vshrl.u32 %v6651, 7
          %v6653 = vsub.s32 %v6599, %v6652
          %v6654 = vrot.slane %v6537, %v6653
          %v6655 = vsel %vm6604, %v6654, %v6650
          %v6656 = vlaneseq
          %v6657 = vshrl.u32 %v6656, 7
          %v6658 = vsub.s32 %v6606, %v6657
          %v6659 = vrot.slane %v6540, %v6658
          %v6660 = vsel %vm6611, %v6659, %v6655
          %v6661 = vlaneseq
          %v6662 = vshrl.u32 %v6661, 7
          %v6663 = vsub.s32 %v6613, %v6662
          %v6664 = vrot.slane %v6543, %v6663
          %v6665 = vsel %vm6618, %v6664, %v6660
          %v6666 = vlaneseq
          %v6667 = vshrl.u32 %v6666, 7
          %v6668 = vsub.s32 %v6620, %v6667
          %v6669 = vrot.slane %v6546, %v6668
          %v6670 = vsel %vm6625, %v6669, %v6665
          %vm6671 = vcmask 1041409
          %v6672 = vsel %vm6671, %v6670, %v6626
          %vm6674 = vcmask 582656
          %v6675 = vsel %vm6674, %v6672, 0.0
          %6676 = vadd.xlane.f32.xlu0 %v6675
          %v6677 = vpop.xlane.xlu0 %6676
          %v6678 = vld [vmem:[#allocation3] sm:$0x1]
          %v6680 = vlaneseq
          %v6681 = vshrl.u32 %v6680, 7
          %v6682 = vsub.s32 0, %v6681
          %v6683 = vrot.slane %v6678, %v6682
          %v6685 = vadd.f32 %v6677, %v6683
          %v6686 = vsub.f32 0.0, %v6685
          %v6687 = vmul.f32 %v6686, 1.442695
          %v6688 = vpow.pop %v6687
          %v6689 = vadd.f32 %v6688, 1.0
          %v6690 = vrcp.pop %v6689
          %v6691 = vmul.f32 1.0, %v6690
          %6693 = vset.pattern.permute.xlu0 0
          %6694 = vperm.xlu0 %6693, %v6691
          %v6695 = vpop.permute.xlu0 %6694
          %v6696 = vlaneseq
          %v6697 = vshrl.u32 %v6696, 7
          %v6698 = vsub.s32 %v6566, %v6697
          %v6699 = vrot.slane %v6695, %v6698
          %vm6701 = vcmask 8192
          %6702 = vst.msk [vmem:[#allocation4] sm:$0x1] %vm6701, %v6699
        $region96: #{tpu_custom_call.1} parent=87 // pred_fallthru
          _
        // Predicated region
        $region97: #{tpu_custom_call.1} parent=87 // pred_check
          %p6703 = pneg %p483
        $region98: #{tpu_custom_call.1} parent=87 // pred_check_branch
          %6705 = sbr.rel (%p6703) target = $region100
        $region99: #{tpu_custom_call.1} parent=87 // pred_region
          %s6707 = ssub.s32 16, 16
          %6708 = vsyncadd [#allocation5], %s6707
          %s6709 = smul.addr %s35, 16
          %s6710 = scalar_lea.hbm %s17, %s6709
          %s6712 = sshll.u32 [#allocation4], 4
          %s6713 = int_to_ptr.vmem [resolvable:$true] %s6712
          %6715 = dma.vmem_to_hbm [thread:$0]  %s6713, 16, %s6710, [#allocation5]
        $region100: #{tpu_custom_call.1} parent=87 // pred_fallthru
          _
        // Predicated region
        $region101: #{tpu_custom_call.1} parent=87 // pred_check
          %p6716 = pneg %p483
        $region102: #{tpu_custom_call.1} parent=87 // pred_check_branch
          %6718 = sbr.rel (%p6716) target = $region104
        $region103: #{tpu_custom_call.1} parent=87 // pred_region
          %6719 = dma.done [#allocation5], 16
        $region104: #{tpu_custom_call.1} parent=87 // pred_fallthru
          _
      $region88: #{tpu_custom_call.1} parent=5 // pred_fallthru
        _
      %p6720 = scmp.le.s32.totalorder 2, %s26
      // Predicated region
      $region105: #{tpu_custom_call.1} parent=5 // pred_check
        %p6721 = pneg %p6720
      $region106: #{tpu_custom_call.1} parent=5 // pred_check_branch
        %6723 = sbr.rel (%p6721) target = $region108
      $region107: #{tpu_custom_call.1} parent=5 // pred_region
        %s6724 = ssub.s32 %s26, 2
      $region108: #{tpu_custom_call.1} parent=5 // pred_fallthru
        _
    $region6: #{tpu_custom_call.1} parent=1 // loop_footer
      %s30 = sadd.s32 1, %s26
    $region7: #{tpu_custom_call.1} parent=1 // loop_footer_branch
      %25 = sbr.rel target = $region3
    $region8: #{tpu_custom_call.1} parent=1 // loop_exit
      _
    %6725 = vsyncpa [#allocation5], 1
    %s6726 = scalar_lea.sflag [#allocation5], 1
    %6727 = vsyncpa %s6726, 1

</llo_original>
